<compile_context>
chip_gen: v6e
topology: v6e:2x2x1
jax: 0.10.0
libtpu: 0.0.40
codegen_flags: <defaults>
</compile_context>

<pallas_src>
import jax
import jax.numpy as jnp
from jax import lax
from jax.experimental import pallas as pl
from jax.experimental.pallas import tpu as pltpu


# ----------------------------- in-kernel helpers -----------------------------

def _shift_rows_down(x, s):
    """result[m] = x[m + s] (s > 0) with zero fill past the end (flat row shift)."""
    z = jnp.zeros((s,) + x.shape[1:], x.dtype)
    return jnp.concatenate([x[s:], z], axis=0)


def _edge_masks(m, w, c, dtype):
    """left_ok = 1 where pixel column > 0; right_ok = 1 where column < w-1."""
    col = lax.broadcasted_iota(jnp.int32, (m, c), 0) & (w - 1)   # w is a power of 2
    left_ok = (col > 0).astype(jnp.float32).astype(dtype)
    right_ok = (col < w - 1).astype(jnp.float32).astype(dtype)
    return left_ok, right_ok


def _padded_sources(x, w, left_ok, right_ok):
    """Zero-padded copies of x from which all 9 conv taps are static slices.

    Pre-masking the *source* columns is equivalent to masking the destination
    after the shift: a dx=+1 tap may only read source columns > 0 (left_ok),
    a dx=-1 tap only columns < w-1 (right_ok).  Vertical (dy) boundaries fall
    out of the W+1 zero padding rows.
    """
    pad = jnp.zeros((w + 1,) + x.shape[1:], x.dtype)
    p_c = jnp.concatenate([pad, x, pad], axis=0)              # dx == 0 taps
    p_p = jnp.concatenate([pad, x * left_ok, pad], axis=0)    # dx == +1 taps
    p_m = jnp.concatenate([pad, x * right_ok, pad], axis=0)   # dx == -1 taps
    return p_c, p_p, p_m


def _tap(sources, m, w, dy, dx):
    p_c, p_p, p_m = sources
    src = p_m if dx == -1 else (p_p if dx == 1 else p_c)
    off = (w + 1) + dy * w + dx
    return lax.slice_in_dim(src, off, off + m, axis=0)


def _pool_select(mo, m, w, wo):
    """(mo, m) bf16 one-hot rows selecting the top-left pixel of each 2x2 window."""
    shift = wo.bit_length() - 1                               # wo is a power of 2
    ii = lax.broadcasted_iota(jnp.int32, (mo, m), 0)
    jj = lax.broadcasted_iota(jnp.int32, (mo, m), 1)
    tgt = (ii >> shift) * (2 * w) + (ii & (wo - 1)) * 2
    return (jj == tgt).astype(jnp.float32).astype(jnp.bfloat16)


# --------------------------- fused network builder ---------------------------

def build_fused_darknet(module_defs, params, in_hw, batch):
    """Whole layer stack in ONE pallas_call / one grid step (batch folded into M)."""
    h0, w0 = in_hw
    in_ch = module_defs[0]['channels']
    cur_h, cur_w, cur_c = h0, w0, in_ch

    SLAB_W = 64                       # lane width of the packed constant slabs
    bf_pieces, f32_pieces = [], []

    def _add(pieces, arr, dtype):
        off = sum(pc.shape[0] for pc in pieces)
        r, c = arr.shape
        assert c <= SLAB_W
        blk = jnp.zeros((r + ((-r) % 8), SLAB_W), dtype)      # 8-aligned row blocks
        blk = blk.at[:r, :c].set(arr.astype(dtype))
        pieces.append(blk)
        return off

    add_bf = lambda a: _add(bf_pieces, a, jnp.bfloat16)
    add_f32 = lambda a: _add(f32_pieces, a, jnp.float32)

    layers, scratch_shapes = [], []

    for mdef, p in zip(module_defs[1:], params):
        mtype = mdef['type']
        m = cur_h * cur_w
        if mtype == 'convolutional':
            k, cout = mdef['size'], mdef['filters']
            relu = mdef['activation'] == 'relu6'       # reference maps relu6 -> nn.ReLU
            scale, bias = p['scale'], p['bias']
            if k == 3:
                assert mdef['pad'] == 1 and mdef.get('stride', 1) == 1
                assert cur_w & (cur_w - 1) == 0        # edge masks use & (W-1)
                # (Cout,Cin,3,3) -> im2col weight (9*Cin, Cout), BN scale folded in.
                wmat = (jnp.transpose(p['w'], (2, 3, 1, 0)).reshape(9 * cur_c, cout)
                        * scale[None, :])
                si = len(scratch_shapes)
                scratch_shapes.append(pltpu.VMEM((batch * m, 9 * cur_c), jnp.bfloat16))
                layers.append(dict(kind='conv3', m=m, w=cur_w, cin=cur_c, cout=cout,
                                   relu=relu, si=si, wo=add_bf(wmat),
                                   bo=add_f32(bias.reshape(1, cout))))
            elif k == 1:
                wmat = p['w'][:, :, 0, 0].T * scale[None, :]
                layers.append(dict(kind='conv1', m=m, cin=cur_c, cout=cout, relu=relu,
                                   wo=add_bf(wmat), bo=add_f32(bias.reshape(1, cout))))
            else:
                raise NotImplementedError("only 1x1 / 3x3 convs in this cfg")
            cur_c = cout
        elif mtype == 'conv_dw':
            cout = mdef['filters']
            relu = mdef['activation'] == 'relu6'
            assert mdef['size'] == 3 and mdef['pad'] == 1 and mdef.get('stride', 1) == 1
            assert cur_w & (cur_w - 1) == 0
            wdw = (jnp.transpose(p['w_dw'], (2, 3, 1, 0)).reshape(9, cur_c)
                   * p['scale_dw'][None, :])
            layers.append(dict(kind='dw3', m=m, w=cur_w, c=cur_c, relu=relu,
                               wo=add_f32(wdw),
                               bo=add_f32(p['bias_dw'].reshape(1, cur_c))))
            wpw = p['w_pw'][:, :, 0, 0].T * p['scale_pw'][None, :]
            layers.append(dict(kind='conv1', m=m, cin=cur_c, cout=cout, relu=relu,
                               wo=add_bf(wpw),
                               bo=add_f32(p['bias_pw'].reshape(1, cout))))
            cur_c = cout
        elif mtype == 'maxpool':
            assert mdef['size'] == 2 and mdef['stride'] == 2
            layers.append(dict(kind='pool2', m=m, w=cur_w, c=cur_c,
                               mo=m // 4, wo=cur_w // 2))
            cur_h //= 2
            cur_w //= 2
        else:
            # TODO(synk): shortcut / fcLayer / yolo layers are not in this cfg.
            raise NotImplementedError(mtype)

    bslab = (jnp.concatenate(bf_pieces, axis=0) if bf_pieces
             else jnp.zeros((8, SLAB_W), jnp.bfloat16))
    fslab = (jnp.concatenate(f32_pieces, axis=0) if f32_pieces
             else jnp.zeros((8, SLAB_W), jnp.float32))

    m_in, m_out, c_out = h0 * w0, cur_h * cur_w, cur_c

    def kernel(x_ref, bslab_ref, fslab_ref, o_ref, *scr):
        mask_cache = {}

        def masks(mm, ww, cc, dtype):
            key = (mm, ww, cc, dtype)
            if key not in mask_cache:          # built once per distinct shape/dtype
                mask_cache[key] = _edge_masks(mm, ww, cc, dtype)
            return mask_cache[key]

        xs = [x_ref[b] for b in range(batch)]  # per-image (H*W, C) f32, stays in VMEM

        for ly in layers:
            kind = ly['kind']
            if kind == 'conv3':
                m, w, cin, cout = ly['m'], ly['w'], ly['cin'], ly['cout']
                lm, rm = masks(m, w, cin, jnp.bfloat16)
                buf = scr[ly['si']]            # (B*m, 9*cin) bf16 im2col staging
                for b in range(batch):
                    srcs = _padded_sources(xs[b].astype(jnp.bfloat16), w, lm, rm)
                    t = 0
                    for dy in (-1, 0, 1):
                        for dx in (-1, 0, 1):
                            buf[b * m:(b + 1) * m, t * cin:(t + 1) * cin] = \
                                _tap(srcs, m, w, dy, dx)
                            t += 1
                wmat = bslab_ref[ly['wo']:ly['wo'] + 9 * cin, :cout]
                bias = fslab_ref[ly['bo']:ly['bo'] + 1, :cout]
                y = jnp.dot(buf[...], wmat, preferred_element_type=jnp.float32) + bias
                if ly['relu']:
                    y = jnp.maximum(y, 0.0)
                xs = [y[b * m:(b + 1) * m] for b in range(batch)]
            elif kind == 'conv1':
                m, cin, cout = ly['m'], ly['cin'], ly['cout']
                wmat = bslab_ref[ly['wo']:ly['wo'] + cin, :cout]
                bias = fslab_ref[ly['bo']:ly['bo'] + 1, :cout]
                xx = jnp.concatenate([xb.astype(jnp.bfloat16) for xb in xs], axis=0)
                y = jnp.dot(xx, wmat, preferred_element_type=jnp.float32) + bias
                if ly['relu']:
                    y = jnp.maximum(y, 0.0)
                xs = [y[b * m:(b + 1) * m] for b in range(batch)]
            elif kind == 'dw3':
                m, w, c = ly['m'], ly['w'], ly['c']
                lm, rm = masks(m, w, c, jnp.float32)
                wdw = fslab_ref[ly['wo']:ly['wo'] + 9, :c]        # (9, C) f32
                bias = fslab_ref[ly['bo']:ly['bo'] + 1, :c]
                new_xs = []
                for xb in xs:
                    srcs = _padded_sources(xb, w, lm, rm)
                    acc = jnp.zeros((m, c), jnp.float32)
                    t = 0
                    for dy in (-1, 0, 1):
                        for dx in (-1, 0, 1):                    # 9 unrolled VPU FMAs
                            acc = acc + _tap(srcs, m, w, dy, dx) * wdw[t:t + 1, :]
                            t += 1
                    y = acc + bias
                    if ly['relu']:
                        y = jnp.maximum(y, 0.0)
                    new_xs.append(y)
                xs = new_xs
            else:  # pool2
                m, w, c, mo, wo = ly['m'], ly['w'], ly['c'], ly['mo'], ly['wo']
                sel = _pool_select(mo, m, w, wo)                 # built once per layer
                new_xs = []
                for xb in xs:
                    hmax = jnp.maximum(xb, _shift_rows_down(xb, 1))
                    vmax = jnp.maximum(hmax, _shift_rows_down(hmax, w))
                    new_xs.append(jnp.dot(sel, vmax.astype(jnp.bfloat16),
                                          preferred_element_type=jnp.float32))
                xs = new_xs

        # Single HBM store of the whole net (4 KiB per image); sub-128-lane
        # width of this final store is negligible at this size.
        for b in range(batch):
            o_ref[b] = xs[b].astype(o_ref.dtype)

    fwd = pl.pallas_call(
        kernel,
        out_shape=jax.ShapeDtypeStruct((batch, m_out, c_out), jnp.float32),
        grid_spec=pltpu.PrefetchScalarGridSpec(
            num_scalar_prefetch=0,
            grid=(1,),
            in_specs=[pl.BlockSpec((batch, m_in, in_ch), lambda i: (0, 0, 0)),
                      pl.BlockSpec(bslab.shape, lambda i: (0, 0)),
                      pl.BlockSpec(fslab.shape, lambda i: (0, 0))],
            out_specs=pl.BlockSpec((batch, m_out, c_out), lambda i: (0, 0, 0)),
            scratch_shapes=tuple(scratch_shapes)),
        compiler_params=pltpu.CompilerParams(
            dimension_semantics=("arbitrary",)),
    )
    return fwd, (bslab, fslab), (cur_h, cur_w, c_out)


def make_darknet_forward(module_defs, params, in_shape):
    n, c, h, w = in_shape
    fwd, consts, (ho, wo, co) = build_fused_darknet(module_defs, params, (h, w), n)
    bslab, fslab = consts

    @jax.jit
    def forward(x_nchw, bslab_, fslab_):
        x = jnp.transpose(x_nchw, (0, 2, 3, 1)).reshape(n, h * w, c)   # NCHW -> flat NHWC
        y = fwd(x, bslab_, fslab_)
        return jnp.transpose(y.reshape(n, ho, wo, co), (0, 3, 1, 2))   # -> NCHW

    return lambda x_nchw: forward(x_nchw, bslab, fslab)


# ----------------------------- synthetic "cfg" ------------------------------

MODULE_DEFS = [
    dict(type='net', channels=4, target_device='tpu', bita=8, bitw=8, is_quantize=0),
    dict(type='convolutional', batch_normalize=1, filters=16, size=3, stride=1, pad=1, activation='relu6'),
    dict(type='maxpool', size=2, stride=2),
    dict(type='convolutional', batch_normalize=1, filters=32, size=3, stride=1, pad=1, activation='relu6'),
    dict(type='conv_dw', batch_normalize=1, filters=32, size=3, stride=1, pad=1, activation='relu6',
         first_layer=0, last_layer=0),
    dict(type='maxpool', size=2, stride=2),
    dict(type='convolutional', batch_normalize=1, filters=64, size=3, stride=1, pad=1, activation='relu6'),
]


def _fold_bn(gamma, beta, mean, var, eps=1e-4):
    scale = gamma / jnp.sqrt(var + eps)
    return scale, beta - mean * scale


def _bn_params(key, c):
    k1, k2, k3, k4 = jax.random.split(key, 4)
    gamma = 1.0 + 0.1 * jax.random.normal(k1, (c,), jnp.float32)
    beta = 0.1 * jax.random.normal(k2, (c,), jnp.float32)
    mean = 0.1 * jax.random.normal(k3, (c,), jnp.float32)
    var = jnp.abs(jax.random.normal(k4, (c,), jnp.float32)) + 0.5
    return _fold_bn(gamma, beta, mean, var)


def init_params(key, module_defs):
    in_ch = module_defs[0]['channels']
    params = []
    for mdef in module_defs[1:]:
        if mdef['type'] == 'convolutional':
            k, cout = mdef['size'], mdef['filters']
            key, kw, kb = jax.random.split(key, 3)
            w = 0.1 * jax.random.normal(kw, (cout, in_ch, k, k), jnp.float32)
            scale, bias = _bn_params(kb, cout)
            params.append(dict(w=w, scale=scale, bias=bias))
            in_ch = cout
        elif mdef['type'] == 'conv_dw':
            k, cout = mdef['size'], mdef['filters']
            key, k1, k2, k3, k4 = jax.random.split(key, 5)
            w_dw = 0.1 * jax.random.normal(k1, (in_ch, 1, k, k), jnp.float32)
            s_dw, b_dw = _bn_params(k2, in_ch)
            w_pw = 0.1 * jax.random.normal(k3, (cout, in_ch, 1, 1), jnp.float32)
            s_pw, b_pw = _bn_params(k4, cout)
            params.append(dict(w_dw=w_dw, scale_dw=s_dw, bias_dw=b_dw,
                               w_pw=w_pw, scale_pw=s_pw, bias_pw=b_pw))
            in_ch = cout
        else:
            params.append(None)
    return params


# --------------------------- pure-JAX reference ------------------------------

def reference_forward(x_nchw, module_defs, params):
    x = x_nchw
    for mdef, p in zip(module_defs[1:], params):
        mtype = mdef['type']
        if mtype == 'convolutional':
            k = mdef['size']
            pad = (k - 1) // 2 if mdef['pad'] else 0
            x = lax.conv_general_dilated(x, p['w'], (1, 1), [(pad, pad), (pad, pad)],
                                         dimension_numbers=('NCHW', 'OIHW', 'NCHW'))
            x = x * p['scale'][None, :, None, None] + p['bias'][None, :, None, None]
            x = jnp.maximum(x, 0.0)
        elif mtype == 'conv_dw':
            k = mdef['size']
            pad = (k - 1) // 2 if mdef['pad'] else 0
            c = x.shape[1]
            x = lax.conv_general_dilated(x, p['w_dw'], (1, 1), [(pad, pad), (pad, pad)],
                                         dimension_numbers=('NCHW', 'OIHW', 'NCHW'),
                                         feature_group_count=c)
            x = x * p['scale_dw'][None, :, None, None] + p['bias_dw'][None, :, None, None]
            x = jnp.maximum(x, 0.0)
            x = lax.conv_general_dilated(x, p['w_pw'], (1, 1), [(0, 0), (0, 0)],
                                         dimension_numbers=('NCHW', 'OIHW', 'NCHW'))
            x = x * p['scale_pw'][None, :, None, None] + p['bias_pw'][None, :, None, None]
            x = jnp.maximum(x, 0.0)
        elif mtype == 'maxpool':
            x = lax.reduce_window(x, -jnp.inf, lax.max, (1, 1, 2, 2), (1, 1, 2, 2), 'VALID')
    return x


# ----------------------------------- main ------------------------------------

if __name__ == "__main__":
    key = jax.random.PRNGKey(0)
    kx, kp = jax.random.split(key)
    x = jax.random.normal(kx, (2, 4, 16, 16), jnp.float32)   # NCHW, like PyTorch
    params = init_params(kp, MODULE_DEFS)

    forward = make_darknet_forward(MODULE_DEFS, params, x.shape)
    y = jax.block_until_ready(forward(x))

    y_ref = reference_forward(x, MODULE_DEFS, params)
    assert y.shape == (2, 64, 4, 4), y.shape
    # bf16 MXU operands (f32 accumulation) vs. a full-f32 reference: allow a
    # small absolute + relative slack.
    err = jnp.abs(y - y_ref)
    tol = 5e-2 + 2e-2 * jnp.abs(y_ref)
    assert bool(jnp.all(err <= tol)), f"max abs error {float(jnp.max(err))}"

    print("KERNEL_OK")
</pallas_src>

<mosaic_0001>
module attributes {stable_mosaic.version = 11 : i64} {
  func.func @kernel(%arg0: i32, %arg1: memref<2x256x4xf32, #tpu.memory_space<vmem>>, %arg2: memref<504x64xbf16, #tpu.memory_space<vmem>>, %arg3: memref<56x64xf32, #tpu.memory_space<vmem>>, %arg4: memref<2x16x64xf32, #tpu.memory_space<vmem>>, %arg5: memref<512x36xbf16, #tpu.memory_space<vmem>>, %arg6: memref<128x144xbf16, #tpu.memory_space<vmem>>, %arg7: memref<32x288xbf16, #tpu.memory_space<vmem>>) attributes {dimension_semantics = [#tpu.dimension_semantics<arbitrary>], iteration_bounds = array<i64: 1>, scalar_prefetch = 0 : i64, scratch_operands = 3 : i64, tpu.core_type = #tpu.core_type<tc>, window_params = [{pipeline_mode = #tpu.pipeline_mode<synchronous>, transform_indices = @transform_0, window_bounds = array<i64: 2, 256, 4>}, {pipeline_mode = #tpu.pipeline_mode<synchronous>, transform_indices = @transform_1, window_bounds = array<i64: 504, 64>}, {pipeline_mode = #tpu.pipeline_mode<synchronous>, transform_indices = @transform_2, window_bounds = array<i64: 56, 64>}, {pipeline_mode = #tpu.pipeline_mode<synchronous>, transform_indices = @transform_3, window_bounds = array<i64: 2, 16, 64>}]} {
    %c0 = arith.constant 0 : index
    %c0_0 = arith.constant 0 : index
    %c0_1 = arith.constant 0 : index
    %0 = vector.load %arg1[%c0, %c0_0, %c0_1] : memref<2x256x4xf32, #tpu.memory_space<vmem>>, vector<1x256x4xf32>
    %1 = vector.shape_cast %0 : vector<1x256x4xf32> to vector<256x4xf32>
    %c1 = arith.constant 1 : index
    %c0_2 = arith.constant 0 : index
    %c0_3 = arith.constant 0 : index
    %2 = vector.load %arg1[%c1, %c0_2, %c0_3] : memref<2x256x4xf32, #tpu.memory_space<vmem>>, vector<1x256x4xf32>
    %3 = vector.shape_cast %2 : vector<1x256x4xf32> to vector<256x4xf32>
    %4 = tpu.iota {dimensions = array<i32: 0>} : vector<256x4xi32>
    %c15_i32 = arith.constant 15 : i32
    %5 = vector.broadcast %c15_i32 : i32 to vector<256x4xi32>
    %6 = arith.andi %4, %5 : vector<256x4xi32>
    %c0_i32 = arith.constant 0 : i32
    %7 = vector.broadcast %c0_i32 : i32 to vector<256x4xi32>
    %8 = arith.cmpi sgt, %6, %7 : vector<256x4xi32>
    %9 = arith.extui %8 : vector<256x4xi1> to vector<256x4xi32>
    %10 = arith.sitofp %9 : vector<256x4xi32> to vector<256x4xf32>
    %11 = arith.truncf %10 : vector<256x4xf32> to vector<256x4xbf16>
    %c15_i32_4 = arith.constant 15 : i32
    %12 = vector.broadcast %c15_i32_4 : i32 to vector<256x4xi32>
    %13 = arith.cmpi slt, %6, %12 : vector<256x4xi32>
    %14 = arith.extui %13 : vector<256x4xi1> to vector<256x4xi32>
    %15 = arith.sitofp %14 : vector<256x4xi32> to vector<256x4xf32>
    %16 = arith.truncf %15 : vector<256x4xf32> to vector<256x4xbf16>
    %17 = arith.truncf %1 : vector<256x4xf32> to vector<256x4xbf16>
    %cst = arith.constant 0.000000e+00 : bf16
    %18 = vector.broadcast %cst : bf16 to vector<17x4xbf16>
    %19 = tpu.concatenate %18, %17, %18 in 0 : vector<17x4xbf16>, vector<256x4xbf16>, vector<17x4xbf16> -> vector<290x4xbf16>
    %20 = arith.mulf %17, %11 : vector<256x4xbf16>
    %21 = tpu.concatenate %18, %20, %18 in 0 : vector<17x4xbf16>, vector<256x4xbf16>, vector<17x4xbf16> -> vector<290x4xbf16>
    %22 = arith.mulf %17, %16 : vector<256x4xbf16>
    %23 = tpu.concatenate %18, %22, %18 in 0 : vector<17x4xbf16>, vector<256x4xbf16>, vector<17x4xbf16> -> vector<290x4xbf16>
    %24 = vector.extract_strided_slice %23 {offsets = [0, 0], sizes = [256, 4], strides = [1, 1]} : vector<290x4xbf16> to vector<256x4xbf16>
    %c0_5 = arith.constant 0 : index
    %c0_6 = arith.constant 0 : index
    %25 = vector.load %arg5[%c0_5, %c0_6] : memref<512x36xbf16, #tpu.memory_space<vmem>>, vector<256x4xbf16>
    tpu.vector_store %arg5[%c0_5, %c0_6], %24 {strides = array<i32>} : memref<512x36xbf16, #tpu.memory_space<vmem>>, vector<256x4xbf16>,
    %26 = vector.extract_strided_slice %19 {offsets = [1, 0], sizes = [256, 4], strides = [1, 1]} : vector<290x4xbf16> to vector<256x4xbf16>
    %c0_7 = arith.constant 0 : index
    %c4 = arith.constant 4 : index
    %27 = vector.load %arg5[%c0_7, %c4] : memref<512x36xbf16, #tpu.memory_space<vmem>>, vector<256x4xbf16>
    tpu.vector_store %arg5[%c0_7, %c4], %26 {strides = array<i32>} : memref<512x36xbf16, #tpu.memory_space<vmem>>, vector<256x4xbf16>,
    %28 = vector.extract_strided_slice %21 {offsets = [2, 0], sizes = [256, 4], strides = [1, 1]} : vector<290x4xbf16> to vector<256x4xbf16>
    %c0_8 = arith.constant 0 : index
    %c8 = arith.constant 8 : index
    %29 = vector.load %arg5[%c0_8, %c8] : memref<512x36xbf16, #tpu.memory_space<vmem>>, vector<256x4xbf16>
    tpu.vector_store %arg5[%c0_8, %c8], %28 {strides = array<i32>} : memref<512x36xbf16, #tpu.memory_space<vmem>>, vector<256x4xbf16>,
    %30 = vector.extract_strided_slice %23 {offsets = [16, 0], sizes = [256, 4], strides = [1, 1]} : vector<290x4xbf16> to vector<256x4xbf16>
    %c0_9 = arith.constant 0 : index
    %c12 = arith.constant 12 : index
    %31 = vector.load %arg5[%c0_9, %c12] : memref<512x36xbf16, #tpu.memory_space<vmem>>, vector<256x4xbf16>
    tpu.vector_store %arg5[%c0_9, %c12], %30 {strides = array<i32>} : memref<512x36xbf16, #tpu.memory_space<vmem>>, vector<256x4xbf16>,
    %32 = vector.extract_strided_slice %19 {offsets = [17, 0], sizes = [256, 4], strides = [1, 1]} : vector<290x4xbf16> to vector<256x4xbf16>
    %c0_10 = arith.constant 0 : index
    %c16 = arith.constant 16 : index
    %33 = vector.load %arg5[%c0_10, %c16] : memref<512x36xbf16, #tpu.memory_space<vmem>>, vector<256x4xbf16>
    tpu.vector_store %arg5[%c0_10, %c16], %32 {strides = array<i32>} : memref<512x36xbf16, #tpu.memory_space<vmem>>, vector<256x4xbf16>,
    %34 = vector.extract_strided_slice %21 {offsets = [18, 0], sizes = [256, 4], strides = [1, 1]} : vector<290x4xbf16> to vector<256x4xbf16>
    %c0_11 = arith.constant 0 : index
    %c20 = arith.constant 20 : index
    %35 = vector.load %arg5[%c0_11, %c20] : memref<512x36xbf16, #tpu.memory_space<vmem>>, vector<256x4xbf16>
    tpu.vector_store %arg5[%c0_11, %c20], %34 {strides = array<i32>} : memref<512x36xbf16, #tpu.memory_space<vmem>>, vector<256x4xbf16>,
    %36 = vector.extract_strided_slice %23 {offsets = [32, 0], sizes = [256, 4], strides = [1, 1]} : vector<290x4xbf16> to vector<256x4xbf16>
    %c0_12 = arith.constant 0 : index
    %c24 = arith.constant 24 : index
    %37 = vector.load %arg5[%c0_12, %c24] : memref<512x36xbf16, #tpu.memory_space<vmem>>, vector<256x4xbf16>
    tpu.vector_store %arg5[%c0_12, %c24], %36 {strides = array<i32>} : memref<512x36xbf16, #tpu.memory_space<vmem>>, vector<256x4xbf16>,
    %38 = vector.extract_strided_slice %19 {offsets = [33, 0], sizes = [256, 4], strides = [1, 1]} : vector<290x4xbf16> to vector<256x4xbf16>
    %c0_13 = arith.constant 0 : index
    %c28 = arith.constant 28 : index
    %39 = vector.load %arg5[%c0_13, %c28] : memref<512x36xbf16, #tpu.memory_space<vmem>>, vector<256x4xbf16>
    tpu.vector_store %arg5[%c0_13, %c28], %38 {strides = array<i32>} : memref<512x36xbf16, #tpu.memory_space<vmem>>, vector<256x4xbf16>,
    %40 = vector.extract_strided_slice %21 {offsets = [34, 0], sizes = [256, 4], strides = [1, 1]} : vector<290x4xbf16> to vector<256x4xbf16>
    %c0_14 = arith.constant 0 : index
    %c32 = arith.constant 32 : index
    %41 = vector.load %arg5[%c0_14, %c32] : memref<512x36xbf16, #tpu.memory_space<vmem>>, vector<256x4xbf16>
    tpu.vector_store %arg5[%c0_14, %c32], %40 {strides = array<i32>} : memref<512x36xbf16, #tpu.memory_space<vmem>>, vector<256x4xbf16>,
    %42 = arith.truncf %3 : vector<256x4xf32> to vector<256x4xbf16>
    %cst_15 = arith.constant 0.000000e+00 : bf16
    %43 = vector.broadcast %cst_15 : bf16 to vector<17x4xbf16>
    %44 = tpu.concatenate %43, %42, %43 in 0 : vector<17x4xbf16>, vector<256x4xbf16>, vector<17x4xbf16> -> vector<290x4xbf16>
    %45 = arith.mulf %42, %11 : vector<256x4xbf16>
    %46 = tpu.concatenate %43, %45, %43 in 0 : vector<17x4xbf16>, vector<256x4xbf16>, vector<17x4xbf16> -> vector<290x4xbf16>
    %47 = arith.mulf %42, %16 : vector<256x4xbf16>
    %48 = tpu.concatenate %43, %47, %43 in 0 : vector<17x4xbf16>, vector<256x4xbf16>, vector<17x4xbf16> -> vector<290x4xbf16>
    %49 = vector.extract_strided_slice %48 {offsets = [0, 0], sizes = [256, 4], strides = [1, 1]} : vector<290x4xbf16> to vector<256x4xbf16>
    %c256 = arith.constant 256 : index
    %c0_16 = arith.constant 0 : index
    %50 = vector.load %arg5[%c256, %c0_16] : memref<512x36xbf16, #tpu.memory_space<vmem>>, vector<256x4xbf16>
    tpu.vector_store %arg5[%c256, %c0_16], %49 {strides = array<i32>} : memref<512x36xbf16, #tpu.memory_space<vmem>>, vector<256x4xbf16>,
    %51 = vector.extract_strided_slice %44 {offsets = [1, 0], sizes = [256, 4], strides = [1, 1]} : vector<290x4xbf16> to vector<256x4xbf16>
    %c256_17 = arith.constant 256 : index
    %c4_18 = arith.constant 4 : index
    %52 = vector.load %arg5[%c256_17, %c4_18] : memref<512x36xbf16, #tpu.memory_space<vmem>>, vector<256x4xbf16>
    tpu.vector_store %arg5[%c256_17, %c4_18], %51 {strides = array<i32>} : memref<512x36xbf16, #tpu.memory_space<vmem>>, vector<256x4xbf16>,
    %53 = vector.extract_strided_slice %46 {offsets = [2, 0], sizes = [256, 4], strides = [1, 1]} : vector<290x4xbf16> to vector<256x4xbf16>
    %c256_19 = arith.constant 256 : index
    %c8_20 = arith.constant 8 : index
    %54 = vector.load %arg5[%c256_19, %c8_20] : memref<512x36xbf16, #tpu.memory_space<vmem>>, vector<256x4xbf16>
    tpu.vector_store %arg5[%c256_19, %c8_20], %53 {strides = array<i32>} : memref<512x36xbf16, #tpu.memory_space<vmem>>, vector<256x4xbf16>,
    %55 = vector.extract_strided_slice %48 {offsets = [16, 0], sizes = [256, 4], strides = [1, 1]} : vector<290x4xbf16> to vector<256x4xbf16>
    %c256_21 = arith.constant 256 : index
    %c12_22 = arith.constant 12 : index
    %56 = vector.load %arg5[%c256_21, %c12_22] : memref<512x36xbf16, #tpu.memory_space<vmem>>, vector<256x4xbf16>
    tpu.vector_store %arg5[%c256_21, %c12_22], %55 {strides = array<i32>} : memref<512x36xbf16, #tpu.memory_space<vmem>>, vector<256x4xbf16>,
    %57 = vector.extract_strided_slice %44 {offsets = [17, 0], sizes = [256, 4], strides = [1, 1]} : vector<290x4xbf16> to vector<256x4xbf16>
    %c256_23 = arith.constant 256 : index
    %c16_24 = arith.constant 16 : index
    %58 = vector.load %arg5[%c256_23, %c16_24] : memref<512x36xbf16, #tpu.memory_space<vmem>>, vector<256x4xbf16>
    tpu.vector_store %arg5[%c256_23, %c16_24], %57 {strides = array<i32>} : memref<512x36xbf16, #tpu.memory_space<vmem>>, vector<256x4xbf16>,
    %59 = vector.extract_strided_slice %46 {offsets = [18, 0], sizes = [256, 4], strides = [1, 1]} : vector<290x4xbf16> to vector<256x4xbf16>
    %c256_25 = arith.constant 256 : index
    %c20_26 = arith.constant 20 : index
    %60 = vector.load %arg5[%c256_25, %c20_26] : memref<512x36xbf16, #tpu.memory_space<vmem>>, vector<256x4xbf16>
    tpu.vector_store %arg5[%c256_25, %c20_26], %59 {strides = array<i32>} : memref<512x36xbf16, #tpu.memory_space<vmem>>, vector<256x4xbf16>,
    %61 = vector.extract_strided_slice %48 {offsets = [32, 0], sizes = [256, 4], strides = [1, 1]} : vector<290x4xbf16> to vector<256x4xbf16>
    %c256_27 = arith.constant 256 : index
    %c24_28 = arith.constant 24 : index
    %62 = vector.load %arg5[%c256_27, %c24_28] : memref<512x36xbf16, #tpu.memory_space<vmem>>, vector<256x4xbf16>
    tpu.vector_store %arg5[%c256_27, %c24_28], %61 {strides = array<i32>} : memref<512x36xbf16, #tpu.memory_space<vmem>>, vector<256x4xbf16>,
    %63 = vector.extract_strided_slice %44 {offsets = [33, 0], sizes = [256, 4], strides = [1, 1]} : vector<290x4xbf16> to vector<256x4xbf16>
    %c256_29 = arith.constant 256 : index
    %c28_30 = arith.constant 28 : index
    %64 = vector.load %arg5[%c256_29, %c28_30] : memref<512x36xbf16, #tpu.memory_space<vmem>>, vector<256x4xbf16>
    tpu.vector_store %arg5[%c256_29, %c28_30], %63 {strides = array<i32>} : memref<512x36xbf16, #tpu.memory_space<vmem>>, vector<256x4xbf16>,
    %65 = vector.extract_strided_slice %46 {offsets = [34, 0], sizes = [256, 4], strides = [1, 1]} : vector<290x4xbf16> to vector<256x4xbf16>
    %c256_31 = arith.constant 256 : index
    %c32_32 = arith.constant 32 : index
    %66 = vector.load %arg5[%c256_31, %c32_32] : memref<512x36xbf16, #tpu.memory_space<vmem>>, vector<256x4xbf16>
    tpu.vector_store %arg5[%c256_31, %c32_32], %65 {strides = array<i32>} : memref<512x36xbf16, #tpu.memory_space<vmem>>, vector<256x4xbf16>,
    %c0_33 = arith.constant 0 : index
    %c0_34 = arith.constant 0 : index
    %67 = vector.load %arg2[%c0_33, %c0_34] : memref<504x64xbf16, #tpu.memory_space<vmem>>, vector<36x16xbf16>
    %c0_35 = arith.constant 0 : index
    %c0_36 = arith.constant 0 : index
    %68 = vector.load %arg3[%c0_35, %c0_36] : memref<56x64xf32, #tpu.memory_space<vmem>>, vector<1x16xf32>
    %c0_37 = arith.constant 0 : index
    %c0_38 = arith.constant 0 : index
    %69 = vector.load %arg5[%c0_37, %c0_38] : memref<512x36xbf16, #tpu.memory_space<vmem>>, vector<512x36xbf16>
    %cst_39 = arith.constant dense<0.000000e+00> : vector<512x16xf32>
    %70 = tpu.matmul %69, %67, %cst_39 {dimension_numbers = #tpu.dot_dimension_numbers<[1], [0], [0], [1], [0, 0, 1, 1], [], []>} : vector<512x36xbf16>, vector<36x16xbf16>, vector<512x16xf32> -> vector<512x16xf32>
    %71 = vector.broadcast %68 : vector<1x16xf32> to vector<512x16xf32>
    %72 = arith.addf %70, %71 : vector<512x16xf32>
    %cst_40 = arith.constant 0.000000e+00 : f32
    %73 = vector.broadcast %cst_40 : f32 to vector<512x16xf32>
    %74 = arith.maximumf %72, %73 : vector<512x16xf32>
    %75 = vector.extract_strided_slice %74 {offsets = [0, 0], sizes = [256, 16], strides = [1, 1]} : vector<512x16xf32> to vector<256x16xf32>
    %76 = vector.extract_strided_slice %74 {offsets = [256, 0], sizes = [256, 16], strides = [1, 1]} : vector<512x16xf32> to vector<256x16xf32>
    %77 = tpu.iota {dimensions = array<i32: 0>} : vector<64x256xi32>
    %78 = tpu.iota {dimensions = array<i32: 1>} : vector<64x256xi32>
    %c3_i32 = arith.constant 3 : i32
    %79 = vector.broadcast %c3_i32 : i32 to vector<64x256xi32>
    %80 = arith.shrsi %77, %79 : vector<64x256xi32>
    %c32_i32 = arith.constant 32 : i32
    %81 = vector.broadcast %c32_i32 : i32 to vector<64x256xi32>
    %82 = arith.muli %80, %81 : vector<64x256xi32>
    %c7_i32 = arith.constant 7 : i32
    %83 = vector.broadcast %c7_i32 : i32 to vector<64x256xi32>
    %84 = arith.andi %77, %83 : vector<64x256xi32>
    %c2_i32 = arith.constant 2 : i32
    %85 = vector.broadcast %c2_i32 : i32 to vector<64x256xi32>
    %86 = arith.muli %84, %85 : vector<64x256xi32>
    %87 = arith.addi %82, %86 : vector<64x256xi32>
    %88 = arith.cmpi eq, %78, %87 : vector<64x256xi32>
    %89 = arith.extui %88 : vector<64x256xi1> to vector<64x256xi32>
    %90 = arith.sitofp %89 : vector<64x256xi32> to vector<64x256xf32>
    %91 = arith.truncf %90 : vector<64x256xf32> to vector<64x256xbf16>
    %cst_41 = arith.constant 0.000000e+00 : f32
    %92 = vector.broadcast %cst_41 : f32 to vector<1x16xf32>
    %93 = vector.extract_strided_slice %75 {offsets = [1, 0], sizes = [255, 16], strides = [1, 1]} : vector<256x16xf32> to vector<255x16xf32>
    %94 = tpu.concatenate %93, %92 in 0 : vector<255x16xf32>, vector<1x16xf32> -> vector<256x16xf32>
    %95 = arith.maximumf %75, %94 : vector<256x16xf32>
    %cst_42 = arith.constant 0.000000e+00 : f32
    %96 = vector.broadcast %cst_42 : f32 to vector<16x16xf32>
    %97 = vector.extract_strided_slice %95 {offsets = [16, 0], sizes = [240, 16], strides = [1, 1]} : vector<256x16xf32> to vector<240x16xf32>
    %98 = tpu.concatenate %97, %96 in 0 : vector<240x16xf32>, vector<16x16xf32> -> vector<256x16xf32>
    %99 = arith.maximumf %95, %98 : vector<256x16xf32>
    %100 = arith.truncf %99 : vector<256x16xf32> to vector<256x16xbf16>
    %cst_43 = arith.constant dense<0.000000e+00> : vector<64x16xf32>
    %101 = tpu.matmul %91, %100, %cst_43 {dimension_numbers = #tpu.dot_dimension_numbers<[1], [0], [0], [1], [0, 0, 1, 1], [], []>} : vector<64x256xbf16>, vector<256x16xbf16>, vector<64x16xf32> -> vector<64x16xf32>
    %cst_44 = arith.constant 0.000000e+00 : f32
    %102 = vector.broadcast %cst_44 : f32 to vector<1x16xf32>
    %103 = vector.extract_strided_slice %76 {offsets = [1, 0], sizes = [255, 16], strides = [1, 1]} : vector<256x16xf32> to vector<255x16xf32>
    %104 = tpu.concatenate %103, %102 in 0 : vector<255x16xf32>, vector<1x16xf32> -> vector<256x16xf32>
    %105 = arith.maximumf %76, %104 : vector<256x16xf32>
    %cst_45 = arith.constant 0.000000e+00 : f32
    %106 = vector.broadcast %cst_45 : f32 to vector<16x16xf32>
    %107 = vector.extract_strided_slice %105 {offsets = [16, 0], sizes = [240, 16], strides = [1, 1]} : vector<256x16xf32> to vector<240x16xf32>
    %108 = tpu.concatenate %107, %106 in 0 : vector<240x16xf32>, vector<16x16xf32> -> vector<256x16xf32>
    %109 = arith.maximumf %105, %108 : vector<256x16xf32>
    %110 = arith.truncf %109 : vector<256x16xf32> to vector<256x16xbf16>
    %cst_46 = arith.constant dense<0.000000e+00> : vector<64x16xf32>
    %111 = tpu.matmul %91, %110, %cst_46 {dimension_numbers = #tpu.dot_dimension_numbers<[1], [0], [0], [1], [0, 0, 1, 1], [], []>} : vector<64x256xbf16>, vector<256x16xbf16>, vector<64x16xf32> -> vector<64x16xf32>
    %112 = tpu.iota {dimensions = array<i32: 0>} : vector<64x16xi32>
    %c7_i32_47 = arith.constant 7 : i32
    %113 = vector.broadcast %c7_i32_47 : i32 to vector<64x16xi32>
    %114 = arith.andi %112, %113 : vector<64x16xi32>
    %c0_i32_48 = arith.constant 0 : i32
    %115 = vector.broadcast %c0_i32_48 : i32 to vector<64x16xi32>
    %116 = arith.cmpi sgt, %114, %115 : vector<64x16xi32>
    %117 = arith.extui %116 : vector<64x16xi1> to vector<64x16xi32>
    %118 = arith.sitofp %117 : vector<64x16xi32> to vector<64x16xf32>
    %119 = arith.truncf %118 : vector<64x16xf32> to vector<64x16xbf16>
    %c7_i32_49 = arith.constant 7 : i32
    %120 = vector.broadcast %c7_i32_49 : i32 to vector<64x16xi32>
    %121 = arith.cmpi slt, %114, %120 : vector<64x16xi32>
    %122 = arith.extui %121 : vector<64x16xi1> to vector<64x16xi32>
    %123 = arith.sitofp %122 : vector<64x16xi32> to vector<64x16xf32>
    %124 = arith.truncf %123 : vector<64x16xf32> to vector<64x16xbf16>
    %125 = arith.truncf %101 : vector<64x16xf32> to vector<64x16xbf16>
    %cst_50 = arith.constant 0.000000e+00 : bf16
    %126 = vector.broadcast %cst_50 : bf16 to vector<9x16xbf16>
    %127 = tpu.concatenate %126, %125, %126 in 0 : vector<9x16xbf16>, vector<64x16xbf16>, vector<9x16xbf16> -> vector<82x16xbf16>
    %128 = arith.mulf %125, %119 : vector<64x16xbf16>
    %129 = tpu.concatenate %126, %128, %126 in 0 : vector<9x16xbf16>, vector<64x16xbf16>, vector<9x16xbf16> -> vector<82x16xbf16>
    %130 = arith.mulf %125, %124 : vector<64x16xbf16>
    %131 = tpu.concatenate %126, %130, %126 in 0 : vector<9x16xbf16>, vector<64x16xbf16>, vector<9x16xbf16> -> vector<82x16xbf16>
    %132 = vector.extract_strided_slice %131 {offsets = [0, 0], sizes = [64, 16], strides = [1, 1]} : vector<82x16xbf16> to vector<64x16xbf16>
    %c0_51 = arith.constant 0 : index
    %c0_52 = arith.constant 0 : index
    %133 = vector.load %arg6[%c0_51, %c0_52] : memref<128x144xbf16, #tpu.memory_space<vmem>>, vector<64x16xbf16>
    tpu.vector_store %arg6[%c0_51, %c0_52], %132 {strides = array<i32>} : memref<128x144xbf16, #tpu.memory_space<vmem>>, vector<64x16xbf16>,
    %134 = vector.extract_strided_slice %127 {offsets = [1, 0], sizes = [64, 16], strides = [1, 1]} : vector<82x16xbf16> to vector<64x16xbf16>
    %c0_53 = arith.constant 0 : index
    %c16_54 = arith.constant 16 : index
    %135 = vector.load %arg6[%c0_53, %c16_54] : memref<128x144xbf16, #tpu.memory_space<vmem>>, vector<64x16xbf16>
    tpu.vector_store %arg6[%c0_53, %c16_54], %134 {strides = array<i32>} : memref<128x144xbf16, #tpu.memory_space<vmem>>, vector<64x16xbf16>,
    %136 = vector.extract_strided_slice %129 {offsets = [2, 0], sizes = [64, 16], strides = [1, 1]} : vector<82x16xbf16> to vector<64x16xbf16>
    %c0_55 = arith.constant 0 : index
    %c32_56 = arith.constant 32 : index
    %137 = vector.load %arg6[%c0_55, %c32_56] : memref<128x144xbf16, #tpu.memory_space<vmem>>, vector<64x16xbf16>
    tpu.vector_store %arg6[%c0_55, %c32_56], %136 {strides = array<i32>} : memref<128x144xbf16, #tpu.memory_space<vmem>>, vector<64x16xbf16>,
    %138 = vector.extract_strided_slice %131 {offsets = [8, 0], sizes = [64, 16], strides = [1, 1]} : vector<82x16xbf16> to vector<64x16xbf16>
    %c0_57 = arith.constant 0 : index
    %c48 = arith.constant 48 : index
    %139 = vector.load %arg6[%c0_57, %c48] : memref<128x144xbf16, #tpu.memory_space<vmem>>, vector<64x16xbf16>
    tpu.vector_store %arg6[%c0_57, %c48], %138 {strides = array<i32>} : memref<128x144xbf16, #tpu.memory_space<vmem>>, vector<64x16xbf16>,
    %140 = vector.extract_strided_slice %127 {offsets = [9, 0], sizes = [64, 16], strides = [1, 1]} : vector<82x16xbf16> to vector<64x16xbf16>
    %c0_58 = arith.constant 0 : index
    %c64 = arith.constant 64 : index
    %141 = vector.load %arg6[%c0_58, %c64] : memref<128x144xbf16, #tpu.memory_space<vmem>>, vector<64x16xbf16>
    tpu.vector_store %arg6[%c0_58, %c64], %140 {strides = array<i32>} : memref<128x144xbf16, #tpu.memory_space<vmem>>, vector<64x16xbf16>,
    %142 = vector.extract_strided_slice %129 {offsets = [10, 0], sizes = [64, 16], strides = [1, 1]} : vector<82x16xbf16> to vector<64x16xbf16>
    %c0_59 = arith.constant 0 : index
    %c80 = arith.constant 80 : index
    %143 = vector.load %arg6[%c0_59, %c80] : memref<128x144xbf16, #tpu.memory_space<vmem>>, vector<64x16xbf16>
    tpu.vector_store %arg6[%c0_59, %c80], %142 {strides = array<i32>} : memref<128x144xbf16, #tpu.memory_space<vmem>>, vector<64x16xbf16>,
    %144 = vector.extract_strided_slice %131 {offsets = [16, 0], sizes = [64, 16], strides = [1, 1]} : vector<82x16xbf16> to vector<64x16xbf16>
    %c0_60 = arith.constant 0 : index
    %c96 = arith.constant 96 : index
    %145 = vector.load %arg6[%c0_60, %c96] : memref<128x144xbf16, #tpu.memory_space<vmem>>, vector<64x16xbf16>
    tpu.vector_store %arg6[%c0_60, %c96], %144 {strides = array<i32>} : memref<128x144xbf16, #tpu.memory_space<vmem>>, vector<64x16xbf16>,
    %146 = vector.extract_strided_slice %127 {offsets = [17, 0], sizes = [64, 16], strides = [1, 1]} : vector<82x16xbf16> to vector<64x16xbf16>
    %c0_61 = arith.constant 0 : index
    %c112 = arith.constant 112 : index
    %147 = vector.load %arg6[%c0_61, %c112] : memref<128x144xbf16, #tpu.memory_space<vmem>>, vector<64x16xbf16>
    tpu.vector_store %arg6[%c0_61, %c112], %146 {strides = array<i32>} : memref<128x144xbf16, #tpu.memory_space<vmem>>, vector<64x16xbf16>,
    %148 = vector.extract_strided_slice %129 {offsets = [18, 0], sizes = [64, 16], strides = [1, 1]} : vector<82x16xbf16> to vector<64x16xbf16>
    %c0_62 = arith.constant 0 : index
    %c128 = arith.constant 128 : index
    %149 = vector.load %arg6[%c0_62, %c128] : memref<128x144xbf16, #tpu.memory_space<vmem>>, vector<64x16xbf16>
    tpu.vector_store %arg6[%c0_62, %c128], %148 {strides = array<i32>} : memref<128x144xbf16, #tpu.memory_space<vmem>>, vector<64x16xbf16>,
    %150 = arith.truncf %111 : vector<64x16xf32> to vector<64x16xbf16>
    %cst_63 = arith.constant 0.000000e+00 : bf16
    %151 = vector.broadcast %cst_63 : bf16 to vector<9x16xbf16>
    %152 = tpu.concatenate %151, %150, %151 in 0 : vector<9x16xbf16>, vector<64x16xbf16>, vector<9x16xbf16> -> vector<82x16xbf16>
    %153 = arith.mulf %150, %119 : vector<64x16xbf16>
    %154 = tpu.concatenate %151, %153, %151 in 0 : vector<9x16xbf16>, vector<64x16xbf16>, vector<9x16xbf16> -> vector<82x16xbf16>
    %155 = arith.mulf %150, %124 : vector<64x16xbf16>
    %156 = tpu.concatenate %151, %155, %151 in 0 : vector<9x16xbf16>, vector<64x16xbf16>, vector<9x16xbf16> -> vector<82x16xbf16>
    %157 = vector.extract_strided_slice %156 {offsets = [0, 0], sizes = [64, 16], strides = [1, 1]} : vector<82x16xbf16> to vector<64x16xbf16>
    %c64_64 = arith.constant 64 : index
    %c0_65 = arith.constant 0 : index
    %158 = vector.load %arg6[%c64_64, %c0_65] : memref<128x144xbf16, #tpu.memory_space<vmem>>, vector<64x16xbf16>
    tpu.vector_store %arg6[%c64_64, %c0_65], %157 {strides = array<i32>} : memref<128x144xbf16, #tpu.memory_space<vmem>>, vector<64x16xbf16>,
    %159 = vector.extract_strided_slice %152 {offsets = [1, 0], sizes = [64, 16], strides = [1, 1]} : vector<82x16xbf16> to vector<64x16xbf16>
    %c64_66 = arith.constant 64 : index
    %c16_67 = arith.constant 16 : index
    %160 = vector.load %arg6[%c64_66, %c16_67] : memref<128x144xbf16, #tpu.memory_space<vmem>>, vector<64x16xbf16>
    tpu.vector_store %arg6[%c64_66, %c16_67], %159 {strides = array<i32>} : memref<128x144xbf16, #tpu.memory_space<vmem>>, vector<64x16xbf16>,
    %161 = vector.extract_strided_slice %154 {offsets = [2, 0], sizes = [64, 16], strides = [1, 1]} : vector<82x16xbf16> to vector<64x16xbf16>
    %c64_68 = arith.constant 64 : index
    %c32_69 = arith.constant 32 : index
    %162 = vector.load %arg6[%c64_68, %c32_69] : memref<128x144xbf16, #tpu.memory_space<vmem>>, vector<64x16xbf16>
    tpu.vector_store %arg6[%c64_68, %c32_69], %161 {strides = array<i32>} : memref<128x144xbf16, #tpu.memory_space<vmem>>, vector<64x16xbf16>,
    %163 = vector.extract_strided_slice %156 {offsets = [8, 0], sizes = [64, 16], strides = [1, 1]} : vector<82x16xbf16> to vector<64x16xbf16>
    %c64_70 = arith.constant 64 : index
    %c48_71 = arith.constant 48 : index
    %164 = vector.load %arg6[%c64_70, %c48_71] : memref<128x144xbf16, #tpu.memory_space<vmem>>, vector<64x16xbf16>
    tpu.vector_store %arg6[%c64_70, %c48_71], %163 {strides = array<i32>} : memref<128x144xbf16, #tpu.memory_space<vmem>>, vector<64x16xbf16>,
    %165 = vector.extract_strided_slice %152 {offsets = [9, 0], sizes = [64, 16], strides = [1, 1]} : vector<82x16xbf16> to vector<64x16xbf16>
    %c64_72 = arith.constant 64 : index
    %c64_73 = arith.constant 64 : index
    %166 = vector.load %arg6[%c64_72, %c64_73] : memref<128x144xbf16, #tpu.memory_space<vmem>>, vector<64x16xbf16>
    tpu.vector_store %arg6[%c64_72, %c64_73], %165 {strides = array<i32>} : memref<128x144xbf16, #tpu.memory_space<vmem>>, vector<64x16xbf16>,
    %167 = vector.extract_strided_slice %154 {offsets = [10, 0], sizes = [64, 16], strides = [1, 1]} : vector<82x16xbf16> to vector<64x16xbf16>
    %c64_74 = arith.constant 64 : index
    %c80_75 = arith.constant 80 : index
    %168 = vector.load %arg6[%c64_74, %c80_75] : memref<128x144xbf16, #tpu.memory_space<vmem>>, vector<64x16xbf16>
    tpu.vector_store %arg6[%c64_74, %c80_75], %167 {strides = array<i32>} : memref<128x144xbf16, #tpu.memory_space<vmem>>, vector<64x16xbf16>,
    %169 = vector.extract_strided_slice %156 {offsets = [16, 0], sizes = [64, 16], strides = [1, 1]} : vector<82x16xbf16> to vector<64x16xbf16>
    %c64_76 = arith.constant 64 : index
    %c96_77 = arith.constant 96 : index
    %170 = vector.load %arg6[%c64_76, %c96_77] : memref<128x144xbf16, #tpu.memory_space<vmem>>, vector<64x16xbf16>
    tpu.vector_store %arg6[%c64_76, %c96_77], %169 {strides = array<i32>} : memref<128x144xbf16, #tpu.memory_space<vmem>>, vector<64x16xbf16>,
    %171 = vector.extract_strided_slice %152 {offsets = [17, 0], sizes = [64, 16], strides = [1, 1]} : vector<82x16xbf16> to vector<64x16xbf16>
    %c64_78 = arith.constant 64 : index
    %c112_79 = arith.constant 112 : index
    %172 = vector.load %arg6[%c64_78, %c112_79] : memref<128x144xbf16, #tpu.memory_space<vmem>>, vector<64x16xbf16>
    tpu.vector_store %arg6[%c64_78, %c112_79], %171 {strides = array<i32>} : memref<128x144xbf16, #tpu.memory_space<vmem>>, vector<64x16xbf16>,
    %173 = vector.extract_strided_slice %154 {offsets = [18, 0], sizes = [64, 16], strides = [1, 1]} : vector<82x16xbf16> to vector<64x16xbf16>
    %c64_80 = arith.constant 64 : index
    %c128_81 = arith.constant 128 : index
    %174 = vector.load %arg6[%c64_80, %c128_81] : memref<128x144xbf16, #tpu.memory_space<vmem>>, vector<64x16xbf16>
    tpu.vector_store %arg6[%c64_80, %c128_81], %173 {strides = array<i32>} : memref<128x144xbf16, #tpu.memory_space<vmem>>, vector<64x16xbf16>,
    %c40 = arith.constant 40 : index
    %c0_82 = arith.constant 0 : index
    %175 = vector.load %arg2[%c40, %c0_82] : memref<504x64xbf16, #tpu.memory_space<vmem>>, vector<144x32xbf16>
    %c8_83 = arith.constant 8 : index
    %c0_84 = arith.constant 0 : index
    %176 = vector.load %arg3[%c8_83, %c0_84] : memref<56x64xf32, #tpu.memory_space<vmem>>, vector<1x32xf32>
    %c0_85 = arith.constant 0 : index
    %c0_86 = arith.constant 0 : index
    %177 = vector.load %arg6[%c0_85, %c0_86] : memref<128x144xbf16, #tpu.memory_space<vmem>>, vector<128x144xbf16>
    %cst_87 = arith.constant dense<0.000000e+00> : vector<128x32xf32>
    %178 = tpu.matmul %177, %175, %cst_87 {dimension_numbers = #tpu.dot_dimension_numbers<[1], [0], [0], [1], [0, 0, 1, 1], [], []>} : vector<128x144xbf16>, vector<144x32xbf16>, vector<128x32xf32> -> vector<128x32xf32>
    %179 = vector.broadcast %176 : vector<1x32xf32> to vector<128x32xf32>
    %180 = arith.addf %178, %179 : vector<128x32xf32>
    %cst_88 = arith.constant 0.000000e+00 : f32
    %181 = vector.broadcast %cst_88 : f32 to vector<128x32xf32>
    %182 = arith.maximumf %180, %181 : vector<128x32xf32>
    %183 = vector.extract_strided_slice %182 {offsets = [0, 0], sizes = [64, 32], strides = [1, 1]} : vector<128x32xf32> to vector<64x32xf32>
    %184 = vector.extract_strided_slice %182 {offsets = [64, 0], sizes = [64, 32], strides = [1, 1]} : vector<128x32xf32> to vector<64x32xf32>
    %185 = tpu.iota {dimensions = array<i32: 0>} : vector<64x32xi32>
    %c7_i32_89 = arith.constant 7 : i32
    %186 = vector.broadcast %c7_i32_89 : i32 to vector<64x32xi32>
    %187 = arith.andi %185, %186 : vector<64x32xi32>
    %c0_i32_90 = arith.constant 0 : i32
    %188 = vector.broadcast %c0_i32_90 : i32 to vector<64x32xi32>
    %189 = arith.cmpi sgt, %187, %188 : vector<64x32xi32>
    %190 = arith.extui %189 : vector<64x32xi1> to vector<64x32xi32>
    %191 = arith.sitofp %190 : vector<64x32xi32> to vector<64x32xf32>
    %c7_i32_91 = arith.constant 7 : i32
    %192 = vector.broadcast %c7_i32_91 : i32 to vector<64x32xi32>
    %193 = arith.cmpi slt, %187, %192 : vector<64x32xi32>
    %194 = arith.extui %193 : vector<64x32xi1> to vector<64x32xi32>
    %195 = arith.sitofp %194 : vector<64x32xi32> to vector<64x32xf32>
    %c16_92 = arith.constant 16 : index
    %c0_93 = arith.constant 0 : index
    %196 = vector.load %arg3[%c16_92, %c0_93] : memref<56x64xf32, #tpu.memory_space<vmem>>, vector<9x32xf32>
    %c32_94 = arith.constant 32 : index
    %c0_95 = arith.constant 0 : index
    %197 = vector.load %arg3[%c32_94, %c0_95] : memref<56x64xf32, #tpu.memory_space<vmem>>, vector<1x32xf32>
    %cst_96 = arith.constant 0.000000e+00 : f32
    %198 = vector.broadcast %cst_96 : f32 to vector<9x32xf32>
    %199 = tpu.concatenate %198, %183, %198 in 0 : vector<9x32xf32>, vector<64x32xf32>, vector<9x32xf32> -> vector<82x32xf32>
    %200 = arith.mulf %183, %191 : vector<64x32xf32>
    %201 = tpu.concatenate %198, %200, %198 in 0 : vector<9x32xf32>, vector<64x32xf32>, vector<9x32xf32> -> vector<82x32xf32>
    %202 = arith.mulf %183, %195 : vector<64x32xf32>
    %203 = tpu.concatenate %198, %202, %198 in 0 : vector<9x32xf32>, vector<64x32xf32>, vector<9x32xf32> -> vector<82x32xf32>
    %cst_97 = arith.constant 0.000000e+00 : f32
    %204 = vector.broadcast %cst_97 : f32 to vector<64x32xf32>
    %205 = vector.extract_strided_slice %203 {offsets = [0, 0], sizes = [64, 32], strides = [1, 1]} : vector<82x32xf32> to vector<64x32xf32>
    %206 = vector.extract_strided_slice %196 {offsets = [0, 0], sizes = [1, 32], strides = [1, 1]} : vector<9x32xf32> to vector<1x32xf32>
    %207 = vector.broadcast %206 : vector<1x32xf32> to vector<64x32xf32>
    %208 = arith.mulf %205, %207 : vector<64x32xf32>
    %209 = arith.addf %204, %208 : vector<64x32xf32>
    %210 = vector.extract_strided_slice %199 {offsets = [1, 0], sizes = [64, 32], strides = [1, 1]} : vector<82x32xf32> to vector<64x32xf32>
    %211 = vector.extract_strided_slice %196 {offsets = [1, 0], sizes = [1, 32], strides = [1, 1]} : vector<9x32xf32> to vector<1x32xf32>
    %212 = vector.broadcast %211 : vector<1x32xf32> to vector<64x32xf32>
    %213 = arith.mulf %210, %212 : vector<64x32xf32>
    %214 = arith.addf %209, %213 : vector<64x32xf32>
    %215 = vector.extract_strided_slice %201 {offsets = [2, 0], sizes = [64, 32], strides = [1, 1]} : vector<82x32xf32> to vector<64x32xf32>
    %216 = vector.extract_strided_slice %196 {offsets = [2, 0], sizes = [1, 32], strides = [1, 1]} : vector<9x32xf32> to vector<1x32xf32>
    %217 = vector.broadcast %216 : vector<1x32xf32> to vector<64x32xf32>
    %218 = arith.mulf %215, %217 : vector<64x32xf32>
    %219 = arith.addf %214, %218 : vector<64x32xf32>
    %220 = vector.extract_strided_slice %203 {offsets = [8, 0], sizes = [64, 32], strides = [1, 1]} : vector<82x32xf32> to vector<64x32xf32>
    %221 = vector.extract_strided_slice %196 {offsets = [3, 0], sizes = [1, 32], strides = [1, 1]} : vector<9x32xf32> to vector<1x32xf32>
    %222 = vector.broadcast %221 : vector<1x32xf32> to vector<64x32xf32>
    %223 = arith.mulf %220, %222 : vector<64x32xf32>
    %224 = arith.addf %219, %223 : vector<64x32xf32>
    %225 = vector.extract_strided_slice %199 {offsets = [9, 0], sizes = [64, 32], strides = [1, 1]} : vector<82x32xf32> to vector<64x32xf32>
    %226 = vector.extract_strided_slice %196 {offsets = [4, 0], sizes = [1, 32], strides = [1, 1]} : vector<9x32xf32> to vector<1x32xf32>
    %227 = vector.broadcast %226 : vector<1x32xf32> to vector<64x32xf32>
    %228 = arith.mulf %225, %227 : vector<64x32xf32>
    %229 = arith.addf %224, %228 : vector<64x32xf32>
    %230 = vector.extract_strided_slice %201 {offsets = [10, 0], sizes = [64, 32], strides = [1, 1]} : vector<82x32xf32> to vector<64x32xf32>
    %231 = vector.extract_strided_slice %196 {offsets = [5, 0], sizes = [1, 32], strides = [1, 1]} : vector<9x32xf32> to vector<1x32xf32>
    %232 = vector.broadcast %231 : vector<1x32xf32> to vector<64x32xf32>
    %233 = arith.mulf %230, %232 : vector<64x32xf32>
    %234 = arith.addf %229, %233 : vector<64x32xf32>
    %235 = vector.extract_strided_slice %203 {offsets = [16, 0], sizes = [64, 32], strides = [1, 1]} : vector<82x32xf32> to vector<64x32xf32>
    %236 = vector.extract_strided_slice %196 {offsets = [6, 0], sizes = [1, 32], strides = [1, 1]} : vector<9x32xf32> to vector<1x32xf32>
    %237 = vector.broadcast %236 : vector<1x32xf32> to vector<64x32xf32>
    %238 = arith.mulf %235, %237 : vector<64x32xf32>
    %239 = arith.addf %234, %238 : vector<64x32xf32>
    %240 = vector.extract_strided_slice %199 {offsets = [17, 0], sizes = [64, 32], strides = [1, 1]} : vector<82x32xf32> to vector<64x32xf32>
    %241 = vector.extract_strided_slice %196 {offsets = [7, 0], sizes = [1, 32], strides = [1, 1]} : vector<9x32xf32> to vector<1x32xf32>
    %242 = vector.broadcast %241 : vector<1x32xf32> to vector<64x32xf32>
    %243 = arith.mulf %240, %242 : vector<64x32xf32>
    %244 = arith.addf %239, %243 : vector<64x32xf32>
    %245 = vector.extract_strided_slice %201 {offsets = [18, 0], sizes = [64, 32], strides = [1, 1]} : vector<82x32xf32> to vector<64x32xf32>
    %246 = vector.extract_strided_slice %196 {offsets = [8, 0], sizes = [1, 32], strides = [1, 1]} : vector<9x32xf32> to vector<1x32xf32>
    %247 = vector.broadcast %246 : vector<1x32xf32> to vector<64x32xf32>
    %248 = arith.mulf %245, %247 : vector<64x32xf32>
    %249 = arith.addf %244, %248 : vector<64x32xf32>
    %250 = vector.broadcast %197 : vector<1x32xf32> to vector<64x32xf32>
    %251 = arith.addf %249, %250 : vector<64x32xf32>
    %cst_98 = arith.constant 0.000000e+00 : f32
    %252 = vector.broadcast %cst_98 : f32 to vector<64x32xf32>
    %253 = arith.maximumf %251, %252 : vector<64x32xf32>
    %cst_99 = arith.constant 0.000000e+00 : f32
    %254 = vector.broadcast %cst_99 : f32 to vector<9x32xf32>
    %255 = tpu.concatenate %254, %184, %254 in 0 : vector<9x32xf32>, vector<64x32xf32>, vector<9x32xf32> -> vector<82x32xf32>
    %256 = arith.mulf %184, %191 : vector<64x32xf32>
    %257 = tpu.concatenate %254, %256, %254 in 0 : vector<9x32xf32>, vector<64x32xf32>, vector<9x32xf32> -> vector<82x32xf32>
    %258 = arith.mulf %184, %195 : vector<64x32xf32>
    %259 = tpu.concatenate %254, %258, %254 in 0 : vector<9x32xf32>, vector<64x32xf32>, vector<9x32xf32> -> vector<82x32xf32>
    %cst_100 = arith.constant 0.000000e+00 : f32
    %260 = vector.broadcast %cst_100 : f32 to vector<64x32xf32>
    %261 = vector.extract_strided_slice %259 {offsets = [0, 0], sizes = [64, 32], strides = [1, 1]} : vector<82x32xf32> to vector<64x32xf32>
    %262 = vector.extract_strided_slice %196 {offsets = [0, 0], sizes = [1, 32], strides = [1, 1]} : vector<9x32xf32> to vector<1x32xf32>
    %263 = vector.broadcast %262 : vector<1x32xf32> to vector<64x32xf32>
    %264 = arith.mulf %261, %263 : vector<64x32xf32>
    %265 = arith.addf %260, %264 : vector<64x32xf32>
    %266 = vector.extract_strided_slice %255 {offsets = [1, 0], sizes = [64, 32], strides = [1, 1]} : vector<82x32xf32> to vector<64x32xf32>
    %267 = vector.extract_strided_slice %196 {offsets = [1, 0], sizes = [1, 32], strides = [1, 1]} : vector<9x32xf32> to vector<1x32xf32>
    %268 = vector.broadcast %267 : vector<1x32xf32> to vector<64x32xf32>
    %269 = arith.mulf %266, %268 : vector<64x32xf32>
    %270 = arith.addf %265, %269 : vector<64x32xf32>
    %271 = vector.extract_strided_slice %257 {offsets = [2, 0], sizes = [64, 32], strides = [1, 1]} : vector<82x32xf32> to vector<64x32xf32>
    %272 = vector.extract_strided_slice %196 {offsets = [2, 0], sizes = [1, 32], strides = [1, 1]} : vector<9x32xf32> to vector<1x32xf32>
    %273 = vector.broadcast %272 : vector<1x32xf32> to vector<64x32xf32>
    %274 = arith.mulf %271, %273 : vector<64x32xf32>
    %275 = arith.addf %270, %274 : vector<64x32xf32>
    %276 = vector.extract_strided_slice %259 {offsets = [8, 0], sizes = [64, 32], strides = [1, 1]} : vector<82x32xf32> to vector<64x32xf32>
    %277 = vector.extract_strided_slice %196 {offsets = [3, 0], sizes = [1, 32], strides = [1, 1]} : vector<9x32xf32> to vector<1x32xf32>
    %278 = vector.broadcast %277 : vector<1x32xf32> to vector<64x32xf32>
    %279 = arith.mulf %276, %278 : vector<64x32xf32>
    %280 = arith.addf %275, %279 : vector<64x32xf32>
    %281 = vector.extract_strided_slice %255 {offsets = [9, 0], sizes = [64, 32], strides = [1, 1]} : vector<82x32xf32> to vector<64x32xf32>
    %282 = vector.extract_strided_slice %196 {offsets = [4, 0], sizes = [1, 32], strides = [1, 1]} : vector<9x32xf32> to vector<1x32xf32>
    %283 = vector.broadcast %282 : vector<1x32xf32> to vector<64x32xf32>
    %284 = arith.mulf %281, %283 : vector<64x32xf32>
    %285 = arith.addf %280, %284 : vector<64x32xf32>
    %286 = vector.extract_strided_slice %257 {offsets = [10, 0], sizes = [64, 32], strides = [1, 1]} : vector<82x32xf32> to vector<64x32xf32>
    %287 = vector.extract_strided_slice %196 {offsets = [5, 0], sizes = [1, 32], strides = [1, 1]} : vector<9x32xf32> to vector<1x32xf32>
    %288 = vector.broadcast %287 : vector<1x32xf32> to vector<64x32xf32>
    %289 = arith.mulf %286, %288 : vector<64x32xf32>
    %290 = arith.addf %285, %289 : vector<64x32xf32>
    %291 = vector.extract_strided_slice %259 {offsets = [16, 0], sizes = [64, 32], strides = [1, 1]} : vector<82x32xf32> to vector<64x32xf32>
    %292 = vector.extract_strided_slice %196 {offsets = [6, 0], sizes = [1, 32], strides = [1, 1]} : vector<9x32xf32> to vector<1x32xf32>
    %293 = vector.broadcast %292 : vector<1x32xf32> to vector<64x32xf32>
    %294 = arith.mulf %291, %293 : vector<64x32xf32>
    %295 = arith.addf %290, %294 : vector<64x32xf32>
    %296 = vector.extract_strided_slice %255 {offsets = [17, 0], sizes = [64, 32], strides = [1, 1]} : vector<82x32xf32> to vector<64x32xf32>
    %297 = vector.extract_strided_slice %196 {offsets = [7, 0], sizes = [1, 32], strides = [1, 1]} : vector<9x32xf32> to vector<1x32xf32>
    %298 = vector.broadcast %297 : vector<1x32xf32> to vector<64x32xf32>
    %299 = arith.mulf %296, %298 : vector<64x32xf32>
    %300 = arith.addf %295, %299 : vector<64x32xf32>
    %301 = vector.extract_strided_slice %257 {offsets = [18, 0], sizes = [64, 32], strides = [1, 1]} : vector<82x32xf32> to vector<64x32xf32>
    %302 = vector.extract_strided_slice %196 {offsets = [8, 0], sizes = [1, 32], strides = [1, 1]} : vector<9x32xf32> to vector<1x32xf32>
    %303 = vector.broadcast %302 : vector<1x32xf32> to vector<64x32xf32>
    %304 = arith.mulf %301, %303 : vector<64x32xf32>
    %305 = arith.addf %300, %304 : vector<64x32xf32>
    %306 = vector.broadcast %197 : vector<1x32xf32> to vector<64x32xf32>
    %307 = arith.addf %305, %306 : vector<64x32xf32>
    %cst_101 = arith.constant 0.000000e+00 : f32
    %308 = vector.broadcast %cst_101 : f32 to vector<64x32xf32>
    %309 = arith.maximumf %307, %308 : vector<64x32xf32>
    %c184 = arith.constant 184 : index
    %c0_102 = arith.constant 0 : index
    %310 = vector.load %arg2[%c184, %c0_102] : memref<504x64xbf16, #tpu.memory_space<vmem>>, vector<32x32xbf16>
    %c40_103 = arith.constant 40 : index
    %c0_104 = arith.constant 0 : index
    %311 = vector.load %arg3[%c40_103, %c0_104] : memref<56x64xf32, #tpu.memory_space<vmem>>, vector<1x32xf32>
    %312 = arith.truncf %253 : vector<64x32xf32> to vector<64x32xbf16>
    %313 = arith.truncf %309 : vector<64x32xf32> to vector<64x32xbf16>
    %314 = tpu.concatenate %312, %313 in 0 : vector<64x32xbf16>, vector<64x32xbf16> -> vector<128x32xbf16>
    %cst_105 = arith.constant dense<0.000000e+00> : vector<128x32xf32>
    %315 = tpu.matmul %314, %310, %cst_105 {dimension_numbers = #tpu.dot_dimension_numbers<[1], [0], [0], [1], [0, 0, 1, 1], [], []>} : vector<128x32xbf16>, vector<32x32xbf16>, vector<128x32xf32> -> vector<128x32xf32>
    %316 = vector.broadcast %311 : vector<1x32xf32> to vector<128x32xf32>
    %317 = arith.addf %315, %316 : vector<128x32xf32>
    %cst_106 = arith.constant 0.000000e+00 : f32
    %318 = vector.broadcast %cst_106 : f32 to vector<128x32xf32>
    %319 = arith.maximumf %317, %318 : vector<128x32xf32>
    %320 = vector.extract_strided_slice %319 {offsets = [0, 0], sizes = [64, 32], strides = [1, 1]} : vector<128x32xf32> to vector<64x32xf32>
    %321 = vector.extract_strided_slice %319 {offsets = [64, 0], sizes = [64, 32], strides = [1, 1]} : vector<128x32xf32> to vector<64x32xf32>
    %322 = tpu.iota {dimensions = array<i32: 0>} : vector<16x64xi32>
    %323 = tpu.iota {dimensions = array<i32: 1>} : vector<16x64xi32>
    %c2_i32_107 = arith.constant 2 : i32
    %324 = vector.broadcast %c2_i32_107 : i32 to vector<16x64xi32>
    %325 = arith.shrsi %322, %324 : vector<16x64xi32>
    %c16_i32 = arith.constant 16 : i32
    %326 = vector.broadcast %c16_i32 : i32 to vector<16x64xi32>
    %327 = arith.muli %325, %326 : vector<16x64xi32>
    %c3_i32_108 = arith.constant 3 : i32
    %328 = vector.broadcast %c3_i32_108 : i32 to vector<16x64xi32>
    %329 = arith.andi %322, %328 : vector<16x64xi32>
    %c2_i32_109 = arith.constant 2 : i32
    %330 = vector.broadcast %c2_i32_109 : i32 to vector<16x64xi32>
    %331 = arith.muli %329, %330 : vector<16x64xi32>
    %332 = arith.addi %327, %331 : vector<16x64xi32>
    %333 = arith.cmpi eq, %323, %332 : vector<16x64xi32>
    %334 = arith.extui %333 : vector<16x64xi1> to vector<16x64xi32>
    %335 = arith.sitofp %334 : vector<16x64xi32> to vector<16x64xf32>
    %336 = arith.truncf %335 : vector<16x64xf32> to vector<16x64xbf16>
    %cst_110 = arith.constant 0.000000e+00 : f32
    %337 = vector.broadcast %cst_110 : f32 to vector<1x32xf32>
    %338 = vector.extract_strided_slice %320 {offsets = [1, 0], sizes = [63, 32], strides = [1, 1]} : vector<64x32xf32> to vector<63x32xf32>
    %339 = tpu.concatenate %338, %337 in 0 : vector<63x32xf32>, vector<1x32xf32> -> vector<64x32xf32>
    %340 = arith.maximumf %320, %339 : vector<64x32xf32>
    %cst_111 = arith.constant 0.000000e+00 : f32
    %341 = vector.broadcast %cst_111 : f32 to vector<8x32xf32>
    %342 = vector.extract_strided_slice %340 {offsets = [8, 0], sizes = [56, 32], strides = [1, 1]} : vector<64x32xf32> to vector<56x32xf32>
    %343 = tpu.concatenate %342, %341 in 0 : vector<56x32xf32>, vector<8x32xf32> -> vector<64x32xf32>
    %344 = arith.maximumf %340, %343 : vector<64x32xf32>
    %345 = arith.truncf %344 : vector<64x32xf32> to vector<64x32xbf16>
    %cst_112 = arith.constant dense<0.000000e+00> : vector<16x32xf32>
    %346 = tpu.matmul %336, %345, %cst_112 {dimension_numbers = #tpu.dot_dimension_numbers<[1], [0], [0], [1], [0, 0, 1, 1], [], []>} : vector<16x64xbf16>, vector<64x32xbf16>, vector<16x32xf32> -> vector<16x32xf32>
    %cst_113 = arith.constant 0.000000e+00 : f32
    %347 = vector.broadcast %cst_113 : f32 to vector<1x32xf32>
    %348 = vector.extract_strided_slice %321 {offsets = [1, 0], sizes = [63, 32], strides = [1, 1]} : vector<64x32xf32> to vector<63x32xf32>
    %349 = tpu.concatenate %348, %347 in 0 : vector<63x32xf32>, vector<1x32xf32> -> vector<64x32xf32>
    %350 = arith.maximumf %321, %349 : vector<64x32xf32>
    %cst_114 = arith.constant 0.000000e+00 : f32
    %351 = vector.broadcast %cst_114 : f32 to vector<8x32xf32>
    %352 = vector.extract_strided_slice %350 {offsets = [8, 0], sizes = [56, 32], strides = [1, 1]} : vector<64x32xf32> to vector<56x32xf32>
    %353 = tpu.concatenate %352, %351 in 0 : vector<56x32xf32>, vector<8x32xf32> -> vector<64x32xf32>
    %354 = arith.maximumf %350, %353 : vector<64x32xf32>
    %355 = arith.truncf %354 : vector<64x32xf32> to vector<64x32xbf16>
    %cst_115 = arith.constant dense<0.000000e+00> : vector<16x32xf32>
    %356 = tpu.matmul %336, %355, %cst_115 {dimension_numbers = #tpu.dot_dimension_numbers<[1], [0], [0], [1], [0, 0, 1, 1], [], []>} : vector<16x64xbf16>, vector<64x32xbf16>, vector<16x32xf32> -> vector<16x32xf32>
    %357 = tpu.iota {dimensions = array<i32: 0>} : vector<16x32xi32>
    %c3_i32_116 = arith.constant 3 : i32
    %358 = vector.broadcast %c3_i32_116 : i32 to vector<16x32xi32>
    %359 = arith.andi %357, %358 : vector<16x32xi32>
    %c0_i32_117 = arith.constant 0 : i32
    %360 = vector.broadcast %c0_i32_117 : i32 to vector<16x32xi32>
    %361 = arith.cmpi sgt, %359, %360 : vector<16x32xi32>
    %362 = arith.extui %361 : vector<16x32xi1> to vector<16x32xi32>
    %363 = arith.sitofp %362 : vector<16x32xi32> to vector<16x32xf32>
    %364 = arith.truncf %363 : vector<16x32xf32> to vector<16x32xbf16>
    %c3_i32_118 = arith.constant 3 : i32
    %365 = vector.broadcast %c3_i32_118 : i32 to vector<16x32xi32>
    %366 = arith.cmpi slt, %359, %365 : vector<16x32xi32>
    %367 = arith.extui %366 : vector<16x32xi1> to vector<16x32xi32>
    %368 = arith.sitofp %367 : vector<16x32xi32> to vector<16x32xf32>
    %369 = arith.truncf %368 : vector<16x32xf32> to vector<16x32xbf16>
    %370 = arith.truncf %346 : vector<16x32xf32> to vector<16x32xbf16>
    %cst_119 = arith.constant 0.000000e+00 : bf16
    %371 = vector.broadcast %cst_119 : bf16 to vector<5x32xbf16>
    %372 = tpu.concatenate %371, %370, %371 in 0 : vector<5x32xbf16>, vector<16x32xbf16>, vector<5x32xbf16> -> vector<26x32xbf16>
    %373 = arith.mulf %370, %364 : vector<16x32xbf16>
    %374 = tpu.concatenate %371, %373, %371 in 0 : vector<5x32xbf16>, vector<16x32xbf16>, vector<5x32xbf16> -> vector<26x32xbf16>
    %375 = arith.mulf %370, %369 : vector<16x32xbf16>
    %376 = tpu.concatenate %371, %375, %371 in 0 : vector<5x32xbf16>, vector<16x32xbf16>, vector<5x32xbf16> -> vector<26x32xbf16>
    %377 = vector.extract_strided_slice %376 {offsets = [0, 0], sizes = [16, 32], strides = [1, 1]} : vector<26x32xbf16> to vector<16x32xbf16>
    %c0_120 = arith.constant 0 : index
    %c0_121 = arith.constant 0 : index
    %378 = vector.load %arg7[%c0_120, %c0_121] : memref<32x288xbf16, #tpu.memory_space<vmem>>, vector<16x32xbf16>
    tpu.vector_store %arg7[%c0_120, %c0_121], %377 {strides = array<i32>} : memref<32x288xbf16, #tpu.memory_space<vmem>>, vector<16x32xbf16>,
    %379 = vector.extract_strided_slice %372 {offsets = [1, 0], sizes = [16, 32], strides = [1, 1]} : vector<26x32xbf16> to vector<16x32xbf16>
    %c0_122 = arith.constant 0 : index
    %c32_123 = arith.constant 32 : index
    %380 = vector.load %arg7[%c0_122, %c32_123] : memref<32x288xbf16, #tpu.memory_space<vmem>>, vector<16x32xbf16>
    tpu.vector_store %arg7[%c0_122, %c32_123], %379 {strides = array<i32>} : memref<32x288xbf16, #tpu.memory_space<vmem>>, vector<16x32xbf16>,
    %381 = vector.extract_strided_slice %374 {offsets = [2, 0], sizes = [16, 32], strides = [1, 1]} : vector<26x32xbf16> to vector<16x32xbf16>
    %c0_124 = arith.constant 0 : index
    %c64_125 = arith.constant 64 : index
    %382 = vector.load %arg7[%c0_124, %c64_125] : memref<32x288xbf16, #tpu.memory_space<vmem>>, vector<16x32xbf16>
    tpu.vector_store %arg7[%c0_124, %c64_125], %381 {strides = array<i32>} : memref<32x288xbf16, #tpu.memory_space<vmem>>, vector<16x32xbf16>,
    %383 = vector.extract_strided_slice %376 {offsets = [4, 0], sizes = [16, 32], strides = [1, 1]} : vector<26x32xbf16> to vector<16x32xbf16>
    %c0_126 = arith.constant 0 : index
    %c96_127 = arith.constant 96 : index
    %384 = vector.load %arg7[%c0_126, %c96_127] : memref<32x288xbf16, #tpu.memory_space<vmem>>, vector<16x32xbf16>
    tpu.vector_store %arg7[%c0_126, %c96_127], %383 {strides = array<i32>} : memref<32x288xbf16, #tpu.memory_space<vmem>>, vector<16x32xbf16>,
    %385 = vector.extract_strided_slice %372 {offsets = [5, 0], sizes = [16, 32], strides = [1, 1]} : vector<26x32xbf16> to vector<16x32xbf16>
    %c0_128 = arith.constant 0 : index
    %c128_129 = arith.constant 128 : index
    %386 = vector.load %arg7[%c0_128, %c128_129] : memref<32x288xbf16, #tpu.memory_space<vmem>>, vector<16x32xbf16>
    tpu.vector_store %arg7[%c0_128, %c128_129], %385 {strides = array<i32>} : memref<32x288xbf16, #tpu.memory_space<vmem>>, vector<16x32xbf16>,
    %387 = vector.extract_strided_slice %374 {offsets = [6, 0], sizes = [16, 32], strides = [1, 1]} : vector<26x32xbf16> to vector<16x32xbf16>
    %c0_130 = arith.constant 0 : index
    %c160 = arith.constant 160 : index
    %388 = vector.load %arg7[%c0_130, %c160] : memref<32x288xbf16, #tpu.memory_space<vmem>>, vector<16x32xbf16>
    tpu.vector_store %arg7[%c0_130, %c160], %387 {strides = array<i32>} : memref<32x288xbf16, #tpu.memory_space<vmem>>, vector<16x32xbf16>,
    %389 = vector.extract_strided_slice %376 {offsets = [8, 0], sizes = [16, 32], strides = [1, 1]} : vector<26x32xbf16> to vector<16x32xbf16>
    %c0_131 = arith.constant 0 : index
    %c192 = arith.constant 192 : index
    %390 = vector.load %arg7[%c0_131, %c192] : memref<32x288xbf16, #tpu.memory_space<vmem>>, vector<16x32xbf16>
    tpu.vector_store %arg7[%c0_131, %c192], %389 {strides = array<i32>} : memref<32x288xbf16, #tpu.memory_space<vmem>>, vector<16x32xbf16>,
    %391 = vector.extract_strided_slice %372 {offsets = [9, 0], sizes = [16, 32], strides = [1, 1]} : vector<26x32xbf16> to vector<16x32xbf16>
    %c0_132 = arith.constant 0 : index
    %c224 = arith.constant 224 : index
    %392 = vector.load %arg7[%c0_132, %c224] : memref<32x288xbf16, #tpu.memory_space<vmem>>, vector<16x32xbf16>
    tpu.vector_store %arg7[%c0_132, %c224], %391 {strides = array<i32>} : memref<32x288xbf16, #tpu.memory_space<vmem>>, vector<16x32xbf16>,
    %393 = vector.extract_strided_slice %374 {offsets = [10, 0], sizes = [16, 32], strides = [1, 1]} : vector<26x32xbf16> to vector<16x32xbf16>
    %c0_133 = arith.constant 0 : index
    %c256_134 = arith.constant 256 : index
    %394 = vector.load %arg7[%c0_133, %c256_134] : memref<32x288xbf16, #tpu.memory_space<vmem>>, vector<16x32xbf16>
    tpu.vector_store %arg7[%c0_133, %c256_134], %393 {strides = array<i32>} : memref<32x288xbf16, #tpu.memory_space<vmem>>, vector<16x32xbf16>,
    %395 = arith.truncf %356 : vector<16x32xf32> to vector<16x32xbf16>
    %cst_135 = arith.constant 0.000000e+00 : bf16
    %396 = vector.broadcast %cst_135 : bf16 to vector<5x32xbf16>
    %397 = tpu.concatenate %396, %395, %396 in 0 : vector<5x32xbf16>, vector<16x32xbf16>, vector<5x32xbf16> -> vector<26x32xbf16>
    %398 = arith.mulf %395, %364 : vector<16x32xbf16>
    %399 = tpu.concatenate %396, %398, %396 in 0 : vector<5x32xbf16>, vector<16x32xbf16>, vector<5x32xbf16> -> vector<26x32xbf16>
    %400 = arith.mulf %395, %369 : vector<16x32xbf16>
    %401 = tpu.concatenate %396, %400, %396 in 0 : vector<5x32xbf16>, vector<16x32xbf16>, vector<5x32xbf16> -> vector<26x32xbf16>
    %402 = vector.extract_strided_slice %401 {offsets = [0, 0], sizes = [16, 32], strides = [1, 1]} : vector<26x32xbf16> to vector<16x32xbf16>
    %c16_136 = arith.constant 16 : index
    %c0_137 = arith.constant 0 : index
    %403 = vector.load %arg7[%c16_136, %c0_137] : memref<32x288xbf16, #tpu.memory_space<vmem>>, vector<16x32xbf16>
    tpu.vector_store %arg7[%c16_136, %c0_137], %402 {strides = array<i32>} : memref<32x288xbf16, #tpu.memory_space<vmem>>, vector<16x32xbf16>,
    %404 = vector.extract_strided_slice %397 {offsets = [1, 0], sizes = [16, 32], strides = [1, 1]} : vector<26x32xbf16> to vector<16x32xbf16>
    %c16_138 = arith.constant 16 : index
    %c32_139 = arith.constant 32 : index
    %405 = vector.load %arg7[%c16_138, %c32_139] : memref<32x288xbf16, #tpu.memory_space<vmem>>, vector<16x32xbf16>
    tpu.vector_store %arg7[%c16_138, %c32_139], %404 {strides = array<i32>} : memref<32x288xbf16, #tpu.memory_space<vmem>>, vector<16x32xbf16>,
    %406 = vector.extract_strided_slice %399 {offsets = [2, 0], sizes = [16, 32], strides = [1, 1]} : vector<26x32xbf16> to vector<16x32xbf16>
    %c16_140 = arith.constant 16 : index
    %c64_141 = arith.constant 64 : index
    %407 = vector.load %arg7[%c16_140, %c64_141] : memref<32x288xbf16, #tpu.memory_space<vmem>>, vector<16x32xbf16>
    tpu.vector_store %arg7[%c16_140, %c64_141], %406 {strides = array<i32>} : memref<32x288xbf16, #tpu.memory_space<vmem>>, vector<16x32xbf16>,
    %408 = vector.extract_strided_slice %401 {offsets = [4, 0], sizes = [16, 32], strides = [1, 1]} : vector<26x32xbf16> to vector<16x32xbf16>
    %c16_142 = arith.constant 16 : index
    %c96_143 = arith.constant 96 : index
    %409 = vector.load %arg7[%c16_142, %c96_143] : memref<32x288xbf16, #tpu.memory_space<vmem>>, vector<16x32xbf16>
    tpu.vector_store %arg7[%c16_142, %c96_143], %408 {strides = array<i32>} : memref<32x288xbf16, #tpu.memory_space<vmem>>, vector<16x32xbf16>,
    %410 = vector.extract_strided_slice %397 {offsets = [5, 0], sizes = [16, 32], strides = [1, 1]} : vector<26x32xbf16> to vector<16x32xbf16>
    %c16_144 = arith.constant 16 : index
    %c128_145 = arith.constant 128 : index
    %411 = vector.load %arg7[%c16_144, %c128_145] : memref<32x288xbf16, #tpu.memory_space<vmem>>, vector<16x32xbf16>
    tpu.vector_store %arg7[%c16_144, %c128_145], %410 {strides = array<i32>} : memref<32x288xbf16, #tpu.memory_space<vmem>>, vector<16x32xbf16>,
    %412 = vector.extract_strided_slice %399 {offsets = [6, 0], sizes = [16, 32], strides = [1, 1]} : vector<26x32xbf16> to vector<16x32xbf16>
    %c16_146 = arith.constant 16 : index
    %c160_147 = arith.constant 160 : index
    %413 = vector.load %arg7[%c16_146, %c160_147] : memref<32x288xbf16, #tpu.memory_space<vmem>>, vector<16x32xbf16>
    tpu.vector_store %arg7[%c16_146, %c160_147], %412 {strides = array<i32>} : memref<32x288xbf16, #tpu.memory_space<vmem>>, vector<16x32xbf16>,
    %414 = vector.extract_strided_slice %401 {offsets = [8, 0], sizes = [16, 32], strides = [1, 1]} : vector<26x32xbf16> to vector<16x32xbf16>
    %c16_148 = arith.constant 16 : index
    %c192_149 = arith.constant 192 : index
    %415 = vector.load %arg7[%c16_148, %c192_149] : memref<32x288xbf16, #tpu.memory_space<vmem>>, vector<16x32xbf16>
    tpu.vector_store %arg7[%c16_148, %c192_149], %414 {strides = array<i32>} : memref<32x288xbf16, #tpu.memory_space<vmem>>, vector<16x32xbf16>,
    %416 = vector.extract_strided_slice %397 {offsets = [9, 0], sizes = [16, 32], strides = [1, 1]} : vector<26x32xbf16> to vector<16x32xbf16>
    %c16_150 = arith.constant 16 : index
    %c224_151 = arith.constant 224 : index
    %417 = vector.load %arg7[%c16_150, %c224_151] : memref<32x288xbf16, #tpu.memory_space<vmem>>, vector<16x32xbf16>
    tpu.vector_store %arg7[%c16_150, %c224_151], %416 {strides = array<i32>} : memref<32x288xbf16, #tpu.memory_space<vmem>>, vector<16x32xbf16>,
    %418 = vector.extract_strided_slice %399 {offsets = [10, 0], sizes = [16, 32], strides = [1, 1]} : vector<26x32xbf16> to vector<16x32xbf16>
    %c16_152 = arith.constant 16 : index
    %c256_153 = arith.constant 256 : index
    %419 = vector.load %arg7[%c16_152, %c256_153] : memref<32x288xbf16, #tpu.memory_space<vmem>>, vector<16x32xbf16>
    tpu.vector_store %arg7[%c16_152, %c256_153], %418 {strides = array<i32>} : memref<32x288xbf16, #tpu.memory_space<vmem>>, vector<16x32xbf16>,
    %c216 = arith.constant 216 : index
    %c0_154 = arith.constant 0 : index
    %420 = vector.load %arg2[%c216, %c0_154] : memref<504x64xbf16, #tpu.memory_space<vmem>>, vector<288x64xbf16>
    %c48_155 = arith.constant 48 : index
    %c0_156 = arith.constant 0 : index
    %421 = vector.load %arg3[%c48_155, %c0_156] : memref<56x64xf32, #tpu.memory_space<vmem>>, vector<1x64xf32>
    %c0_157 = arith.constant 0 : index
    %c0_158 = arith.constant 0 : index
    %422 = vector.load %arg7[%c0_157, %c0_158] : memref<32x288xbf16, #tpu.memory_space<vmem>>, vector<32x288xbf16>
    %cst_159 = arith.constant dense<0.000000e+00> : vector<32x64xf32>
    %423 = tpu.matmul %422, %420, %cst_159 {dimension_numbers = #tpu.dot_dimension_numbers<[1], [0], [0], [1], [0, 0, 1, 1], [], []>} : vector<32x288xbf16>, vector<288x64xbf16>, vector<32x64xf32> -> vector<32x64xf32>
    %424 = vector.broadcast %421 : vector<1x64xf32> to vector<32x64xf32>
    %425 = arith.addf %423, %424 : vector<32x64xf32>
    %cst_160 = arith.constant 0.000000e+00 : f32
    %426 = vector.broadcast %cst_160 : f32 to vector<32x64xf32>
    %427 = arith.maximumf %425, %426 : vector<32x64xf32>
    %428 = vector.extract_strided_slice %427 {offsets = [0, 0], sizes = [16, 64], strides = [1, 1]} : vector<32x64xf32> to vector<16x64xf32>
    %429 = vector.extract_strided_slice %427 {offsets = [16, 0], sizes = [16, 64], strides = [1, 1]} : vector<32x64xf32> to vector<16x64xf32>
    %c0_161 = arith.constant 0 : index
    %c0_162 = arith.constant 0 : index
    %c0_163 = arith.constant 0 : index
    %430 = vector.load %arg4[%c0_161, %c0_162, %c0_163] : memref<2x16x64xf32, #tpu.memory_space<vmem>>, vector<1x16x64xf32>
    %431 = vector.shape_cast %430 : vector<1x16x64xf32> to vector<16x64xf32>
    %432 = vector.shape_cast %428 : vector<16x64xf32> to vector<1x16x64xf32>
    tpu.vector_store %arg4[%c0_161, %c0_162, %c0_163], %432 {strides = array<i32>} : memref<2x16x64xf32, #tpu.memory_space<vmem>>, vector<1x16x64xf32>,
    %c1_164 = arith.constant 1 : index
    %c0_165 = arith.constant 0 : index
    %c0_166 = arith.constant 0 : index
    %433 = vector.load %arg4[%c1_164, %c0_165, %c0_166] : memref<2x16x64xf32, #tpu.memory_space<vmem>>, vector<1x16x64xf32>
    %434 = vector.shape_cast %433 : vector<1x16x64xf32> to vector<16x64xf32>
    %435 = vector.shape_cast %429 : vector<16x64xf32> to vector<1x16x64xf32>
    tpu.vector_store %arg4[%c1_164, %c0_165, %c0_166], %435 {strides = array<i32>} : memref<2x16x64xf32, #tpu.memory_space<vmem>>, vector<1x16x64xf32>,
    return
  }
  func.func @transform_0(%arg0: i32) -> (i32, i32, i32) {
    %c0_i32 = arith.constant 0 : i32
    %c0_i32_0 = arith.constant 0 : i32
    %c0_i32_1 = arith.constant 0 : i32
    %c0_i32_2 = arith.constant 0 : i32
    return %c0_i32, %c0_i32_0, %c0_i32_1 : i32, i32, i32
  }
  func.func @transform_1(%arg0: i32) -> (i32, i32) {
    %c0_i32 = arith.constant 0 : i32
    %c0_i32_0 = arith.constant 0 : i32
    %c0_i32_1 = arith.constant 0 : i32
    return %c0_i32, %c0_i32_0 : i32, i32
  }
  func.func @transform_2(%arg0: i32) -> (i32, i32) {
    %c0_i32 = arith.constant 0 : i32
    %c0_i32_0 = arith.constant 0 : i32
    %c0_i32_1 = arith.constant 0 : i32
    return %c0_i32, %c0_i32_0 : i32, i32
  }
  func.func @transform_3(%arg0: i32) -> (i32, i32, i32) {
    %c0_i32 = arith.constant 0 : i32
    %c0_i32_0 = arith.constant 0 : i32
    %c0_i32_1 = arith.constant 0 : i32
    %c0_i32_2 = arith.constant 0 : i32
    return %c0_i32, %c0_i32_0, %c0_i32_1 : i32, i32, i32
  }
}

</mosaic_0001>

<llo_original>
// kernel: forward.1
$region0: #{forward.1}
  #allocation0 [shape = 'u32[]', space=smem, size = 0x4, offset = 0x4, fixed_abs, tag = 'smem constant byte address 0x4 - core index']
  #allocation1 [shape = 'u32[144,128]{1,0:T(1,128)}', space=vmem, size = 0x12000, scoped, tag = 'internal scratch']
  #allocation2 [shape = 'bf16[512,36]{1,0:T(8,128)(2,1)}', space=vmem, size = 0x20000, scoped, tag = 'scratch operand']
  #allocation3 [shape = 'bf16[128,144]{1,0:T(8,128)(2,1)}', space=vmem, size = 0x10000, scoped, tag = 'scratch operand']
  #allocation4 [shape = 'bf16[32,288]{1,0:T(8,128)(2,1)}', space=vmem, size = 0x6000, scoped, tag = 'scratch operand']
  %s0 = inlined_call_operand.vmem [shape: f32[2,256,4], index: 0, kind: input, shape index: {}]
  %s1 = inlined_call_operand.vmem [shape: bf16[504,64], index: 1, kind: input, shape index: {}]
  %s2 = inlined_call_operand.vmem [shape: f32[56,64], index: 2, kind: input, shape index: {}]
  %s3 = inlined_call_operand.hbm [shape: f32[2,16,64], index: 3, kind: output, shape index: {}]
  %s4 = sld [smem:[#allocation0]]
  $region22: #{forward.1} parent=0
    _
  %s6 = ssub.s32 1, %s4
  %s7 = scalar_select 0, %s6, %s4
  $region1: #{forward.1} parent=0
    #allocation5 [shape = 'u8[16384]{0}', space=vmem, size = 0x4000, scoped, tag = 'output window, operand 0, single buffered']
    #allocation6 [shape = 's32[1]{0}', space=sflag, size = 0x4, scoped, tag = 'scoped memory for forward.1']
    %8 = vsyncpa [#allocation6], 0
    // Predicated region
    $region2: #{forward.1} parent=1 // pred_check
      _
    $region3: #{forward.1} parent=1 // pred_check_branch
      %10 = sbr.rel (0) target = $region5
    $region4: #{forward.1} parent=1 // pred_region
      _
    $region5: #{forward.1} parent=1 // pred_fallthru
      _
    // Predicated region
    $region6: #{forward.1} parent=1 // pred_check
      _
    $region7: #{forward.1} parent=1 // pred_check_branch
      %12 = sbr.rel (0) target = $region9
    $region8: #{forward.1} parent=1 // pred_region
      _
    $region9: #{forward.1} parent=1 // pred_fallthru
      _
    // Predicated region
    $region10: #{forward.1} parent=1 // pred_check
      _
    $region11: #{forward.1} parent=1 // pred_check_branch
      %14 = sbr.rel (0) target = $region13
    $region12: #{forward.1} parent=1 // pred_region
      _
    $region13: #{forward.1} parent=1 // pred_fallthru
      _
    %v16 = vld [vmem:[%s0] sm:$0xff]
    %v17 = vld [vmem:[%s0 + $0x8] sm:$0xff]
    %v18 = vld [vmem:[%s0 + $0x10] sm:$0xff]
    %v19 = vld [vmem:[%s0 + $0x18] sm:$0xff]
    %v20 = vld [vmem:[%s0 + $0x20] sm:$0xff]
    %v21 = vld [vmem:[%s0 + $0x28] sm:$0xff]
    %v22 = vld [vmem:[%s0 + $0x30] sm:$0xff]
    %v23 = vld [vmem:[%s0 + $0x38] sm:$0xff]
    %v24 = vld [vmem:[%s0 + $0x40] sm:$0xff]
    %v25 = vld [vmem:[%s0 + $0x48] sm:$0xff]
    %v26 = vld [vmem:[%s0 + $0x50] sm:$0xff]
    %v27 = vld [vmem:[%s0 + $0x58] sm:$0xff]
    %v28 = vld [vmem:[%s0 + $0x60] sm:$0xff]
    %v29 = vld [vmem:[%s0 + $0x68] sm:$0xff]
    %v30 = vld [vmem:[%s0 + $0x70] sm:$0xff]
    %v31 = vld [vmem:[%s0 + $0x78] sm:$0xff]
    %v32 = vld [vmem:[%s0 + $0x80] sm:$0xff]
    %v33 = vld [vmem:[%s0 + $0x88] sm:$0xff]
    %v34 = vld [vmem:[%s0 + $0x90] sm:$0xff]
    %v35 = vld [vmem:[%s0 + $0x98] sm:$0xff]
    %v36 = vld [vmem:[%s0 + $0xa0] sm:$0xff]
    %v37 = vld [vmem:[%s0 + $0xa8] sm:$0xff]
    %v38 = vld [vmem:[%s0 + $0xb0] sm:$0xff]
    %v39 = vld [vmem:[%s0 + $0xb8] sm:$0xff]
    %v40 = vld [vmem:[%s0 + $0xc0] sm:$0xff]
    %v41 = vld [vmem:[%s0 + $0xc8] sm:$0xff]
    %v42 = vld [vmem:[%s0 + $0xd0] sm:$0xff]
    %v43 = vld [vmem:[%s0 + $0xd8] sm:$0xff]
    %v44 = vld [vmem:[%s0 + $0xe0] sm:$0xff]
    %v45 = vld [vmem:[%s0 + $0xe8] sm:$0xff]
    %v46 = vld [vmem:[%s0 + $0xf0] sm:$0xff]
    %v47 = vld [vmem:[%s0 + $0xf8] sm:$0xff]
    %s48 = scalar_lea.vmem %s0, 256
    %v49 = vld [vmem:[%s48] sm:$0xff]
    %v50 = vld [vmem:[%s48 + $0x8] sm:$0xff]
    %v51 = vld [vmem:[%s48 + $0x10] sm:$0xff]
    %v52 = vld [vmem:[%s48 + $0x18] sm:$0xff]
    %v53 = vld [vmem:[%s48 + $0x20] sm:$0xff]
    %v54 = vld [vmem:[%s48 + $0x28] sm:$0xff]
    %v55 = vld [vmem:[%s48 + $0x30] sm:$0xff]
    %v56 = vld [vmem:[%s48 + $0x38] sm:$0xff]
    %v57 = vld [vmem:[%s48 + $0x40] sm:$0xff]
    %v58 = vld [vmem:[%s48 + $0x48] sm:$0xff]
    %v59 = vld [vmem:[%s48 + $0x50] sm:$0xff]
    %v60 = vld [vmem:[%s48 + $0x58] sm:$0xff]
    %v61 = vld [vmem:[%s48 + $0x60] sm:$0xff]
    %v62 = vld [vmem:[%s48 + $0x68] sm:$0xff]
    %v63 = vld [vmem:[%s48 + $0x70] sm:$0xff]
    %v64 = vld [vmem:[%s48 + $0x78] sm:$0xff]
    %v65 = vld [vmem:[%s48 + $0x80] sm:$0xff]
    %v66 = vld [vmem:[%s48 + $0x88] sm:$0xff]
    %v67 = vld [vmem:[%s48 + $0x90] sm:$0xff]
    %v68 = vld [vmem:[%s48 + $0x98] sm:$0xff]
    %v69 = vld [vmem:[%s48 + $0xa0] sm:$0xff]
    %v70 = vld [vmem:[%s48 + $0xa8] sm:$0xff]
    %v71 = vld [vmem:[%s48 + $0xb0] sm:$0xff]
    %v72 = vld [vmem:[%s48 + $0xb8] sm:$0xff]
    %v73 = vld [vmem:[%s48 + $0xc0] sm:$0xff]
    %v74 = vld [vmem:[%s48 + $0xc8] sm:$0xff]
    %v75 = vld [vmem:[%s48 + $0xd0] sm:$0xff]
    %v76 = vld [vmem:[%s48 + $0xd8] sm:$0xff]
    %v77 = vld [vmem:[%s48 + $0xe0] sm:$0xff]
    %v78 = vld [vmem:[%s48 + $0xe8] sm:$0xff]
    %v79 = vld [vmem:[%s48 + $0xf0] sm:$0xff]
    %v80 = vld [vmem:[%s48 + $0xf8] sm:$0xff]
    %v81 = vlaneseq
    %v82 = vshrl.u32 %v81, 7
    %v83 = vadd.s32 %v82, 8
    %v84 = vadd.s32 %v82, 16
    %v85 = vadd.s32 %v82, 24
    %v86 = vadd.s32 %v82, 32
    %v87 = vadd.s32 %v82, 40
    %v88 = vadd.s32 %v82, 48
    %v89 = vadd.s32 %v82, 56
    %v90 = vadd.s32 %v82, 64
    %v91 = vadd.s32 %v82, 72
    %v92 = vadd.s32 %v82, 80
    %v93 = vadd.s32 %v82, 88
    %v94 = vadd.s32 %v82, 96
    %v95 = vadd.s32 %v82, 104
    %v96 = vadd.s32 %v82, 112
    %v97 = vadd.s32 %v82, 120
    %v98 = vadd.s32 %v82, 128
    %v99 = vadd.s32 %v82, 136
    %v100 = vadd.s32 %v82, 144
    %v101 = vadd.s32 %v82, 152
    %v102 = vadd.s32 %v82, 160
    %v103 = vadd.s32 %v82, 168
    %v104 = vadd.s32 %v82, 176
    %v105 = vadd.s32 %v82, 184
    %v106 = vadd.s32 %v82, 192
    %v107 = vadd.s32 %v82, 200
    %v108 = vadd.s32 %v82, 208
    %v109 = vadd.s32 %v82, 216
    %v110 = vadd.s32 %v82, 224
    %v111 = vadd.s32 %v82, 232
    %v112 = vadd.s32 %v82, 240
    %v113 = vadd.s32 %v82, 248
    %v114 = vand.u32 %v82, 15
    %v115 = vand.u32 %v83, 15
    %v116 = vand.u32 %v84, 15
    %v117 = vand.u32 %v85, 15
    %v118 = vand.u32 %v86, 15
    %v119 = vand.u32 %v87, 15
    %v120 = vand.u32 %v88, 15
    %v121 = vand.u32 %v89, 15
    %v122 = vand.u32 %v90, 15
    %v123 = vand.u32 %v91, 15
    %v124 = vand.u32 %v92, 15
    %v125 = vand.u32 %v93, 15
    %v126 = vand.u32 %v94, 15
    %v127 = vand.u32 %v95, 15
    %v128 = vand.u32 %v96, 15
    %v129 = vand.u32 %v97, 15
    %v130 = vand.u32 %v98, 15
    %v131 = vand.u32 %v99, 15
    %v132 = vand.u32 %v100, 15
    %v133 = vand.u32 %v101, 15
    %v134 = vand.u32 %v102, 15
    %v135 = vand.u32 %v103, 15
    %v136 = vand.u32 %v104, 15
    %v137 = vand.u32 %v105, 15
    %v138 = vand.u32 %v106, 15
    %v139 = vand.u32 %v107, 15
    %v140 = vand.u32 %v108, 15
    %v141 = vand.u32 %v109, 15
    %v142 = vand.u32 %v110, 15
    %v143 = vand.u32 %v111, 15
    %v144 = vand.u32 %v112, 15
    %v145 = vand.u32 %v113, 15
    %vm146 = vcmp.gt.s32.totalorder %v114, 0
    %vm147 = vcmp.gt.s32.totalorder %v115, 0
    %vm148 = vcmp.gt.s32.totalorder %v116, 0
    %vm149 = vcmp.gt.s32.totalorder %v117, 0
    %vm150 = vcmp.gt.s32.totalorder %v118, 0
    %vm151 = vcmp.gt.s32.totalorder %v119, 0
    %vm152 = vcmp.gt.s32.totalorder %v120, 0
    %vm153 = vcmp.gt.s32.totalorder %v121, 0
    %vm154 = vcmp.gt.s32.totalorder %v122, 0
    %vm155 = vcmp.gt.s32.totalorder %v123, 0
    %vm156 = vcmp.gt.s32.totalorder %v124, 0
    %vm157 = vcmp.gt.s32.totalorder %v125, 0
    %vm158 = vcmp.gt.s32.totalorder %v126, 0
    %vm159 = vcmp.gt.s32.totalorder %v127, 0
    %vm160 = vcmp.gt.s32.totalorder %v128, 0
    %vm161 = vcmp.gt.s32.totalorder %v129, 0
    %vm162 = vcmp.gt.s32.totalorder %v130, 0
    %vm163 = vcmp.gt.s32.totalorder %v131, 0
    %vm164 = vcmp.gt.s32.totalorder %v132, 0
    %vm165 = vcmp.gt.s32.totalorder %v133, 0
    %vm166 = vcmp.gt.s32.totalorder %v134, 0
    %vm167 = vcmp.gt.s32.totalorder %v135, 0
    %vm168 = vcmp.gt.s32.totalorder %v136, 0
    %vm169 = vcmp.gt.s32.totalorder %v137, 0
    %vm170 = vcmp.gt.s32.totalorder %v138, 0
    %vm171 = vcmp.gt.s32.totalorder %v139, 0
    %vm172 = vcmp.gt.s32.totalorder %v140, 0
    %vm173 = vcmp.gt.s32.totalorder %v141, 0
    %vm174 = vcmp.gt.s32.totalorder %v142, 0
    %vm175 = vcmp.gt.s32.totalorder %v143, 0
    %vm176 = vcmp.gt.s32.totalorder %v144, 0
    %vm177 = vcmp.gt.s32.totalorder %v145, 0
    %v178 = vsel %vm146, 1, 0
    %v179 = vsel %vm147, 1, 0
    %v180 = vsel %vm148, 1, 0
    %v181 = vsel %vm149, 1, 0
    %v182 = vsel %vm150, 1, 0
    %v183 = vsel %vm151, 1, 0
    %v184 = vsel %vm152, 1, 0
    %v185 = vsel %vm153, 1, 0
    %v186 = vsel %vm154, 1, 0
    %v187 = vsel %vm155, 1, 0
    %v188 = vsel %vm156, 1, 0
    %v189 = vsel %vm157, 1, 0
    %v190 = vsel %vm158, 1, 0
    %v191 = vsel %vm159, 1, 0
    %v192 = vsel %vm160, 1, 0
    %v193 = vsel %vm161, 1, 0
    %v194 = vsel %vm162, 1, 0
    %v195 = vsel %vm163, 1, 0
    %v196 = vsel %vm164, 1, 0
    %v197 = vsel %vm165, 1, 0
    %v198 = vsel %vm166, 1, 0
    %v199 = vsel %vm167, 1, 0
    %v200 = vsel %vm168, 1, 0
    %v201 = vsel %vm169, 1, 0
    %v202 = vsel %vm170, 1, 0
    %v203 = vsel %vm171, 1, 0
    %v204 = vsel %vm172, 1, 0
    %v205 = vsel %vm173, 1, 0
    %v206 = vsel %vm174, 1, 0
    %v207 = vsel %vm175, 1, 0
    %v208 = vsel %vm176, 1, 0
    %v209 = vsel %vm177, 1, 0
    %v210 = vcvt.s32.f32 %v178
    %v211 = vcvt.s32.f32 %v179
    %v212 = vcvt.s32.f32 %v180
    %v213 = vcvt.s32.f32 %v181
    %v214 = vcvt.s32.f32 %v182
    %v215 = vcvt.s32.f32 %v183
    %v216 = vcvt.s32.f32 %v184
    %v217 = vcvt.s32.f32 %v185
    %v218 = vcvt.s32.f32 %v186
    %v219 = vcvt.s32.f32 %v187
    %v220 = vcvt.s32.f32 %v188
    %v221 = vcvt.s32.f32 %v189
    %v222 = vcvt.s32.f32 %v190
    %v223 = vcvt.s32.f32 %v191
    %v224 = vcvt.s32.f32 %v192
    %v225 = vcvt.s32.f32 %v193
    %v226 = vcvt.s32.f32 %v194
    %v227 = vcvt.s32.f32 %v195
    %v228 = vcvt.s32.f32 %v196
    %v229 = vcvt.s32.f32 %v197
    %v230 = vcvt.s32.f32 %v198
    %v231 = vcvt.s32.f32 %v199
    %v232 = vcvt.s32.f32 %v200
    %v233 = vcvt.s32.f32 %v201
    %v234 = vcvt.s32.f32 %v202
    %v235 = vcvt.s32.f32 %v203
    %v236 = vcvt.s32.f32 %v204
    %v237 = vcvt.s32.f32 %v205
    %v238 = vcvt.s32.f32 %v206
    %v239 = vcvt.s32.f32 %v207
    %v240 = vcvt.s32.f32 %v208
    %v241 = vcvt.s32.f32 %v209
    %v242 = vpack.c.bf16 %v211, %v210
    %v243 = vpack.c.bf16 %v213, %v212
    %v244 = vpack.c.bf16 %v215, %v214
    %v245 = vpack.c.bf16 %v217, %v216
    %v246 = vpack.c.bf16 %v219, %v218
    %v247 = vpack.c.bf16 %v221, %v220
    %v248 = vpack.c.bf16 %v223, %v222
    %v249 = vpack.c.bf16 %v225, %v224
    %v250 = vpack.c.bf16 %v227, %v226
    %v251 = vpack.c.bf16 %v229, %v228
    %v252 = vpack.c.bf16 %v231, %v230
    %v253 = vpack.c.bf16 %v233, %v232
    %v254 = vpack.c.bf16 %v235, %v234
    %v255 = vpack.c.bf16 %v237, %v236
    %v256 = vpack.c.bf16 %v239, %v238
    %v257 = vpack.c.bf16 %v241, %v240
    %vm258 = vcmp.lt.s32.totalorder %v114, 15
    %vm259 = vcmp.lt.s32.totalorder %v115, 15
    %vm260 = vcmp.lt.s32.totalorder %v116, 15
    %vm261 = vcmp.lt.s32.totalorder %v117, 15
    %vm262 = vcmp.lt.s32.totalorder %v118, 15
    %vm263 = vcmp.lt.s32.totalorder %v119, 15
    %vm264 = vcmp.lt.s32.totalorder %v120, 15
    %vm265 = vcmp.lt.s32.totalorder %v121, 15
    %vm266 = vcmp.lt.s32.totalorder %v122, 15
    %vm267 = vcmp.lt.s32.totalorder %v123, 15
    %vm268 = vcmp.lt.s32.totalorder %v124, 15
    %vm269 = vcmp.lt.s32.totalorder %v125, 15
    %vm270 = vcmp.lt.s32.totalorder %v126, 15
    %vm271 = vcmp.lt.s32.totalorder %v127, 15
    %vm272 = vcmp.lt.s32.totalorder %v128, 15
    %vm273 = vcmp.lt.s32.totalorder %v129, 15
    %vm274 = vcmp.lt.s32.totalorder %v130, 15
    %vm275 = vcmp.lt.s32.totalorder %v131, 15
    %vm276 = vcmp.lt.s32.totalorder %v132, 15
    %vm277 = vcmp.lt.s32.totalorder %v133, 15
    %vm278 = vcmp.lt.s32.totalorder %v134, 15
    %vm279 = vcmp.lt.s32.totalorder %v135, 15
    %vm280 = vcmp.lt.s32.totalorder %v136, 15
    %vm281 = vcmp.lt.s32.totalorder %v137, 15
    %vm282 = vcmp.lt.s32.totalorder %v138, 15
    %vm283 = vcmp.lt.s32.totalorder %v139, 15
    %vm284 = vcmp.lt.s32.totalorder %v140, 15
    %vm285 = vcmp.lt.s32.totalorder %v141, 15
    %vm286 = vcmp.lt.s32.totalorder %v142, 15
    %vm287 = vcmp.lt.s32.totalorder %v143, 15
    %vm288 = vcmp.lt.s32.totalorder %v144, 15
    %vm289 = vcmp.lt.s32.totalorder %v145, 15
    %v290 = vsel %vm258, 1, 0
    %v291 = vsel %vm259, 1, 0
    %v292 = vsel %vm260, 1, 0
    %v293 = vsel %vm261, 1, 0
    %v294 = vsel %vm262, 1, 0
    %v295 = vsel %vm263, 1, 0
    %v296 = vsel %vm264, 1, 0
    %v297 = vsel %vm265, 1, 0
    %v298 = vsel %vm266, 1, 0
    %v299 = vsel %vm267, 1, 0
    %v300 = vsel %vm268, 1, 0
    %v301 = vsel %vm269, 1, 0
    %v302 = vsel %vm270, 1, 0
    %v303 = vsel %vm271, 1, 0
    %v304 = vsel %vm272, 1, 0
    %v305 = vsel %vm273, 1, 0
    %v306 = vsel %vm274, 1, 0
    %v307 = vsel %vm275, 1, 0
    %v308 = vsel %vm276, 1, 0
    %v309 = vsel %vm277, 1, 0
    %v310 = vsel %vm278, 1, 0
    %v311 = vsel %vm279, 1, 0
    %v312 = vsel %vm280, 1, 0
    %v313 = vsel %vm281, 1, 0
    %v314 = vsel %vm282, 1, 0
    %v315 = vsel %vm283, 1, 0
    %v316 = vsel %vm284, 1, 0
    %v317 = vsel %vm285, 1, 0
    %v318 = vsel %vm286, 1, 0
    %v319 = vsel %vm287, 1, 0
    %v320 = vsel %vm288, 1, 0
    %v321 = vsel %vm289, 1, 0
    %v322 = vcvt.s32.f32 %v290
    %v323 = vcvt.s32.f32 %v291
    %v324 = vcvt.s32.f32 %v292
    %v325 = vcvt.s32.f32 %v293
    %v326 = vcvt.s32.f32 %v294
    %v327 = vcvt.s32.f32 %v295
    %v328 = vcvt.s32.f32 %v296
    %v329 = vcvt.s32.f32 %v297
    %v330 = vcvt.s32.f32 %v298
    %v331 = vcvt.s32.f32 %v299
    %v332 = vcvt.s32.f32 %v300
    %v333 = vcvt.s32.f32 %v301
    %v334 = vcvt.s32.f32 %v302
    %v335 = vcvt.s32.f32 %v303
    %v336 = vcvt.s32.f32 %v304
    %v337 = vcvt.s32.f32 %v305
    %v338 = vcvt.s32.f32 %v306
    %v339 = vcvt.s32.f32 %v307
    %v340 = vcvt.s32.f32 %v308
    %v341 = vcvt.s32.f32 %v309
    %v342 = vcvt.s32.f32 %v310
    %v343 = vcvt.s32.f32 %v311
    %v344 = vcvt.s32.f32 %v312
    %v345 = vcvt.s32.f32 %v313
    %v346 = vcvt.s32.f32 %v314
    %v347 = vcvt.s32.f32 %v315
    %v348 = vcvt.s32.f32 %v316
    %v349 = vcvt.s32.f32 %v317
    %v350 = vcvt.s32.f32 %v318
    %v351 = vcvt.s32.f32 %v319
    %v352 = vcvt.s32.f32 %v320
    %v353 = vcvt.s32.f32 %v321
    %v354 = vpack.c.bf16 %v323, %v322
    %v355 = vpack.c.bf16 %v325, %v324
    %v356 = vpack.c.bf16 %v327, %v326
    %v357 = vpack.c.bf16 %v329, %v328
    %v358 = vpack.c.bf16 %v331, %v330
    %v359 = vpack.c.bf16 %v333, %v332
    %v360 = vpack.c.bf16 %v335, %v334
    %v361 = vpack.c.bf16 %v337, %v336
    %v362 = vpack.c.bf16 %v339, %v338
    %v363 = vpack.c.bf16 %v341, %v340
    %v364 = vpack.c.bf16 %v343, %v342
    %v365 = vpack.c.bf16 %v345, %v344
    %v366 = vpack.c.bf16 %v347, %v346
    %v367 = vpack.c.bf16 %v349, %v348
    %v368 = vpack.c.bf16 %v351, %v350
    %v369 = vpack.c.bf16 %v353, %v352
    %v370 = vpack.c.bf16 %v17, %v16
    %v371 = vpack.c.bf16 %v19, %v18
    %v372 = vpack.c.bf16 %v21, %v20
    %v373 = vpack.c.bf16 %v23, %v22
    %v374 = vpack.c.bf16 %v25, %v24
    %v375 = vpack.c.bf16 %v27, %v26
    %v376 = vpack.c.bf16 %v29, %v28
    %v377 = vpack.c.bf16 %v31, %v30
    %v378 = vpack.c.bf16 %v33, %v32
    %v379 = vpack.c.bf16 %v35, %v34
    %v380 = vpack.c.bf16 %v37, %v36
    %v381 = vpack.c.bf16 %v39, %v38
    %v382 = vpack.c.bf16 %v41, %v40
    %v383 = vpack.c.bf16 %v43, %v42
    %v384 = vpack.c.bf16 %v45, %v44
    %v385 = vpack.c.bf16 %v47, %v46
    %vm386 = vsmask.f32 256
    %v388 = vshrl.u32 %v370, 16
    %v390 = vrot.slane %v388, 7
    %v391 = vshll.u32 %v370, 16
    %v393 = vor.u32 %v390, %v391
    %v395 = vshrl.u32 %v371, 16
    %v397 = vrot.slane %v395, 7
    %v398 = vshll.u32 %v371, 16
    %v400 = vor.u32 %v397, %v398
    %v401 = vsel %vm386, %v390, %v400
    %v403 = vshrl.u32 %v372, 16
    %v405 = vrot.slane %v403, 7
    %v406 = vshll.u32 %v372, 16
    %v408 = vor.u32 %v405, %v406
    %v409 = vsel %vm386, %v397, %v408
    %v411 = vshrl.u32 %v373, 16
    %v413 = vrot.slane %v411, 7
    %v414 = vshll.u32 %v373, 16
    %v416 = vor.u32 %v413, %v414
    %v417 = vsel %vm386, %v405, %v416
    %v419 = vshrl.u32 %v374, 16
    %v421 = vrot.slane %v419, 7
    %v422 = vshll.u32 %v374, 16
    %v424 = vor.u32 %v421, %v422
    %v425 = vsel %vm386, %v413, %v424
    %v427 = vshrl.u32 %v375, 16
    %v429 = vrot.slane %v427, 7
    %v430 = vshll.u32 %v375, 16
    %v432 = vor.u32 %v429, %v430
    %v433 = vsel %vm386, %v421, %v432
    %v435 = vshrl.u32 %v376, 16
    %v437 = vrot.slane %v435, 7
    %v438 = vshll.u32 %v376, 16
    %v440 = vor.u32 %v437, %v438
    %v441 = vsel %vm386, %v429, %v440
    %v443 = vshrl.u32 %v377, 16
    %v445 = vrot.slane %v443, 7
    %v446 = vshll.u32 %v377, 16
    %v448 = vor.u32 %v445, %v446
    %v449 = vsel %vm386, %v437, %v448
    %v451 = vshrl.u32 %v378, 16
    %v453 = vrot.slane %v451, 7
    %v454 = vshll.u32 %v378, 16
    %v456 = vor.u32 %v453, %v454
    %v457 = vsel %vm386, %v445, %v456
    %v459 = vshrl.u32 %v379, 16
    %v461 = vrot.slane %v459, 7
    %v462 = vshll.u32 %v379, 16
    %v464 = vor.u32 %v461, %v462
    %v465 = vsel %vm386, %v453, %v464
    %v467 = vshrl.u32 %v380, 16
    %v469 = vrot.slane %v467, 7
    %v470 = vshll.u32 %v380, 16
    %v472 = vor.u32 %v469, %v470
    %v473 = vsel %vm386, %v461, %v472
    %v475 = vshrl.u32 %v381, 16
    %v477 = vrot.slane %v475, 7
    %v478 = vshll.u32 %v381, 16
    %v480 = vor.u32 %v477, %v478
    %v481 = vsel %vm386, %v469, %v480
    %v483 = vshrl.u32 %v382, 16
    %v485 = vrot.slane %v483, 7
    %v486 = vshll.u32 %v382, 16
    %v488 = vor.u32 %v485, %v486
    %v489 = vsel %vm386, %v477, %v488
    %v491 = vshrl.u32 %v383, 16
    %v493 = vrot.slane %v491, 7
    %v494 = vshll.u32 %v383, 16
    %v496 = vor.u32 %v493, %v494
    %v497 = vsel %vm386, %v485, %v496
    %v499 = vshrl.u32 %v384, 16
    %v501 = vrot.slane %v499, 7
    %v502 = vshll.u32 %v384, 16
    %v504 = vor.u32 %v501, %v502
    %v505 = vsel %vm386, %v493, %v504
    %v507 = vshrl.u32 %v385, 16
    %v509 = vrot.slane %v507, 7
    %v510 = vshll.u32 %v385, 16
    %v512 = vor.u32 %v509, %v510
    %v513 = vsel %vm386, %v501, %v512
    %vm516 = vcmask 1040384
    %vm517 = vmand %vm516, %vm386
    %v518 = vsel %vm517, 0, %v393
    %v519 = vsel %vm517, %v509, 0
    %v520 = vmul.bf16 %v370, %v242
    %v521 = vmul.bf16 %v371, %v243
    %v522 = vmul.bf16 %v372, %v244
    %v523 = vmul.bf16 %v373, %v245
    %v524 = vmul.bf16 %v374, %v246
    %v525 = vmul.bf16 %v375, %v247
    %v526 = vmul.bf16 %v376, %v248
    %v527 = vmul.bf16 %v377, %v249
    %v528 = vmul.bf16 %v378, %v250
    %v529 = vmul.bf16 %v379, %v251
    %v530 = vmul.bf16 %v380, %v252
    %v531 = vmul.bf16 %v381, %v253
    %v532 = vmul.bf16 %v382, %v254
    %v533 = vmul.bf16 %v383, %v255
    %v534 = vmul.bf16 %v384, %v256
    %v535 = vmul.bf16 %v385, %v257
    %v537 = vshrl.u32 %v520, 16
    %v539 = vrot.slane %v537, 7
    %v540 = vshll.u32 %v520, 16
    %v542 = vor.u32 %v539, %v540
    %v544 = vshrl.u32 %v521, 16
    %v546 = vrot.slane %v544, 7
    %v547 = vshll.u32 %v521, 16
    %v549 = vor.u32 %v546, %v547
    %v550 = vsel %vm386, %v539, %v549
    %v552 = vshrl.u32 %v522, 16
    %v554 = vrot.slane %v552, 7
    %v555 = vshll.u32 %v522, 16
    %v557 = vor.u32 %v554, %v555
    %v558 = vsel %vm386, %v546, %v557
    %v560 = vshrl.u32 %v523, 16
    %v562 = vrot.slane %v560, 7
    %v563 = vshll.u32 %v523, 16
    %v565 = vor.u32 %v562, %v563
    %v566 = vsel %vm386, %v554, %v565
    %v568 = vshrl.u32 %v524, 16
    %v570 = vrot.slane %v568, 7
    %v571 = vshll.u32 %v524, 16
    %v573 = vor.u32 %v570, %v571
    %v574 = vsel %vm386, %v562, %v573
    %v576 = vshrl.u32 %v525, 16
    %v578 = vrot.slane %v576, 7
    %v579 = vshll.u32 %v525, 16
    %v581 = vor.u32 %v578, %v579
    %v582 = vsel %vm386, %v570, %v581
    %v584 = vshrl.u32 %v526, 16
    %v586 = vrot.slane %v584, 7
    %v587 = vshll.u32 %v526, 16
    %v589 = vor.u32 %v586, %v587
    %v590 = vsel %vm386, %v578, %v589
    %v592 = vshrl.u32 %v527, 16
    %v594 = vrot.slane %v592, 7
    %v595 = vshll.u32 %v527, 16
    %v597 = vor.u32 %v594, %v595
    %v598 = vsel %vm386, %v586, %v597
    %v600 = vshrl.u32 %v528, 16
    %v602 = vrot.slane %v600, 7
    %v603 = vshll.u32 %v528, 16
    %v605 = vor.u32 %v602, %v603
    %v606 = vsel %vm386, %v594, %v605
    %v608 = vshrl.u32 %v529, 16
    %v610 = vrot.slane %v608, 7
    %v611 = vshll.u32 %v529, 16
    %v613 = vor.u32 %v610, %v611
    %v614 = vsel %vm386, %v602, %v613
    %v616 = vshrl.u32 %v530, 16
    %v618 = vrot.slane %v616, 7
    %v619 = vshll.u32 %v530, 16
    %v621 = vor.u32 %v618, %v619
    %v622 = vsel %vm386, %v610, %v621
    %v624 = vshrl.u32 %v531, 16
    %v626 = vrot.slane %v624, 7
    %v627 = vshll.u32 %v531, 16
    %v629 = vor.u32 %v626, %v627
    %v630 = vsel %vm386, %v618, %v629
    %v632 = vshrl.u32 %v532, 16
    %v634 = vrot.slane %v632, 7
    %v635 = vshll.u32 %v532, 16
    %v637 = vor.u32 %v634, %v635
    %v638 = vsel %vm386, %v626, %v637
    %v640 = vshrl.u32 %v533, 16
    %v642 = vrot.slane %v640, 7
    %v643 = vshll.u32 %v533, 16
    %v645 = vor.u32 %v642, %v643
    %v646 = vsel %vm386, %v634, %v645
    %v648 = vshrl.u32 %v534, 16
    %v650 = vrot.slane %v648, 7
    %v651 = vshll.u32 %v534, 16
    %v653 = vor.u32 %v650, %v651
    %v654 = vsel %vm386, %v642, %v653
    %v656 = vshrl.u32 %v535, 16
    %v658 = vrot.slane %v656, 7
    %v659 = vshll.u32 %v535, 16
    %v661 = vor.u32 %v658, %v659
    %v662 = vsel %vm386, %v650, %v661
    %v665 = vsel %vm517, 0, %v542
    %v666 = vsel %vm517, %v658, 0
    %v667 = vmul.bf16 %v370, %v354
    %v668 = vmul.bf16 %v371, %v355
    %v669 = vmul.bf16 %v372, %v356
    %v670 = vmul.bf16 %v373, %v357
    %v671 = vmul.bf16 %v374, %v358
    %v672 = vmul.bf16 %v375, %v359
    %v673 = vmul.bf16 %v376, %v360
    %v674 = vmul.bf16 %v377, %v361
    %v675 = vmul.bf16 %v378, %v362
    %v676 = vmul.bf16 %v379, %v363
    %v677 = vmul.bf16 %v380, %v364
    %v678 = vmul.bf16 %v381, %v365
    %v679 = vmul.bf16 %v382, %v366
    %v680 = vmul.bf16 %v383, %v367
    %v681 = vmul.bf16 %v384, %v368
    %v682 = vmul.bf16 %v385, %v369
    %v684 = vshrl.u32 %v667, 16
    %v686 = vrot.slane %v684, 7
    %v687 = vshll.u32 %v667, 16
    %v689 = vor.u32 %v686, %v687
    %v691 = vshrl.u32 %v668, 16
    %v693 = vrot.slane %v691, 7
    %v694 = vshll.u32 %v668, 16
    %v696 = vor.u32 %v693, %v694
    %v697 = vsel %vm386, %v686, %v696
    %v699 = vshrl.u32 %v669, 16
    %v701 = vrot.slane %v699, 7
    %v702 = vshll.u32 %v669, 16
    %v704 = vor.u32 %v701, %v702
    %v705 = vsel %vm386, %v693, %v704
    %v707 = vshrl.u32 %v670, 16
    %v709 = vrot.slane %v707, 7
    %v710 = vshll.u32 %v670, 16
    %v712 = vor.u32 %v709, %v710
    %v713 = vsel %vm386, %v701, %v712
    %v715 = vshrl.u32 %v671, 16
    %v717 = vrot.slane %v715, 7
    %v718 = vshll.u32 %v671, 16
    %v720 = vor.u32 %v717, %v718
    %v721 = vsel %vm386, %v709, %v720
    %v723 = vshrl.u32 %v672, 16
    %v725 = vrot.slane %v723, 7
    %v726 = vshll.u32 %v672, 16
    %v728 = vor.u32 %v725, %v726
    %v729 = vsel %vm386, %v717, %v728
    %v731 = vshrl.u32 %v673, 16
    %v733 = vrot.slane %v731, 7
    %v734 = vshll.u32 %v673, 16
    %v736 = vor.u32 %v733, %v734
    %v737 = vsel %vm386, %v725, %v736
    %v739 = vshrl.u32 %v674, 16
    %v741 = vrot.slane %v739, 7
    %v742 = vshll.u32 %v674, 16
    %v744 = vor.u32 %v741, %v742
    %v745 = vsel %vm386, %v733, %v744
    %v747 = vshrl.u32 %v675, 16
    %v749 = vrot.slane %v747, 7
    %v750 = vshll.u32 %v675, 16
    %v752 = vor.u32 %v749, %v750
    %v753 = vsel %vm386, %v741, %v752
    %v755 = vshrl.u32 %v676, 16
    %v757 = vrot.slane %v755, 7
    %v758 = vshll.u32 %v676, 16
    %v760 = vor.u32 %v757, %v758
    %v761 = vsel %vm386, %v749, %v760
    %v763 = vshrl.u32 %v677, 16
    %v765 = vrot.slane %v763, 7
    %v766 = vshll.u32 %v677, 16
    %v768 = vor.u32 %v765, %v766
    %v769 = vsel %vm386, %v757, %v768
    %v771 = vshrl.u32 %v678, 16
    %v773 = vrot.slane %v771, 7
    %v774 = vshll.u32 %v678, 16
    %v776 = vor.u32 %v773, %v774
    %v777 = vsel %vm386, %v765, %v776
    %v779 = vshrl.u32 %v679, 16
    %v781 = vrot.slane %v779, 7
    %v782 = vshll.u32 %v679, 16
    %v784 = vor.u32 %v781, %v782
    %v785 = vsel %vm386, %v773, %v784
    %v787 = vshrl.u32 %v680, 16
    %v789 = vrot.slane %v787, 7
    %v790 = vshll.u32 %v680, 16
    %v792 = vor.u32 %v789, %v790
    %v793 = vsel %vm386, %v781, %v792
    %v795 = vshrl.u32 %v681, 16
    %v797 = vrot.slane %v795, 7
    %v798 = vshll.u32 %v681, 16
    %v800 = vor.u32 %v797, %v798
    %v801 = vsel %vm386, %v789, %v800
    %v803 = vshrl.u32 %v682, 16
    %v805 = vrot.slane %v803, 7
    %v806 = vshll.u32 %v682, 16
    %v808 = vor.u32 %v805, %v806
    %v809 = vsel %vm386, %v797, %v808
    %v812 = vsel %vm517, 0, %v689
    %v813 = vsel %vm517, %v805, 0
    %v816 = vunpack.c.l.b16 0
    %v817 = vunpack.c.h.b16 0
    %v818 = vunpack.c.l.b16 %v812
    %v819 = vunpack.c.h.b16 %v812
    %v820 = vunpack.c.l.b16 %v697
    %v821 = vunpack.c.h.b16 %v697
    %v822 = vunpack.c.l.b16 %v705
    %v823 = vunpack.c.h.b16 %v705
    %v824 = vunpack.c.l.b16 %v713
    %v825 = vunpack.c.h.b16 %v713
    %v826 = vunpack.c.l.b16 %v721
    %v827 = vunpack.c.h.b16 %v721
    %v828 = vunpack.c.l.b16 %v729
    %v829 = vunpack.c.h.b16 %v729
    %v830 = vunpack.c.l.b16 %v737
    %v831 = vunpack.c.h.b16 %v737
    %v832 = vunpack.c.l.b16 %v745
    %v833 = vunpack.c.h.b16 %v745
    %v834 = vunpack.c.l.b16 %v753
    %v835 = vunpack.c.h.b16 %v753
    %v836 = vunpack.c.l.b16 %v761
    %v837 = vunpack.c.h.b16 %v761
    %v838 = vunpack.c.l.b16 %v769
    %v839 = vunpack.c.h.b16 %v769
    %v840 = vunpack.c.l.b16 %v777
    %v841 = vunpack.c.h.b16 %v777
    %v842 = vunpack.c.l.b16 %v785
    %v843 = vunpack.c.h.b16 %v785
    %v844 = vunpack.c.l.b16 %v793
    %v845 = vunpack.c.h.b16 %v793
    %v846 = vunpack.c.l.b16 %v801
    %v847 = vunpack.c.h.b16 %v801
    %v848 = vpack.c.b16 %v816, %v816
    %v849 = vpack.c.b16 %v817, %v817
    %v850 = vpack.c.b16 %v818, %v818
    %v851 = vpack.c.b16 %v819, %v819
    %v852 = vpack.c.b16 %v820, %v820
    %v853 = vpack.c.b16 %v821, %v821
    %v854 = vpack.c.b16 %v822, %v822
    %v855 = vpack.c.b16 %v823, %v823
    %v856 = vpack.c.b16 %v824, %v824
    %v857 = vpack.c.b16 %v825, %v825
    %v858 = vpack.c.b16 %v826, %v826
    %v859 = vpack.c.b16 %v827, %v827
    %v860 = vpack.c.b16 %v828, %v828
    %v861 = vpack.c.b16 %v829, %v829
    %v862 = vpack.c.b16 %v830, %v830
    %v863 = vpack.c.b16 %v831, %v831
    %v864 = vpack.c.b16 %v832, %v832
    %v865 = vpack.c.b16 %v833, %v833
    %v866 = vpack.c.b16 %v834, %v834
    %v867 = vpack.c.b16 %v835, %v835
    %v868 = vpack.c.b16 %v836, %v836
    %v869 = vpack.c.b16 %v837, %v837
    %v870 = vpack.c.b16 %v838, %v838
    %v871 = vpack.c.b16 %v839, %v839
    %v872 = vpack.c.b16 %v840, %v840
    %v873 = vpack.c.b16 %v841, %v841
    %v874 = vpack.c.b16 %v842, %v842
    %v875 = vpack.c.b16 %v843, %v843
    %v876 = vpack.c.b16 %v844, %v844
    %v877 = vpack.c.b16 %v845, %v845
    %v878 = vpack.c.b16 %v846, %v846
    %v879 = vpack.c.b16 %v847, %v847
    %vm912 = vcmask 27648
    %913 = vst.msk [vmem:[#allocation2] sm:$0xf] %vm912, %v848
    %914 = vst.msk [vmem:[#allocation2 + $0x4] sm:$0xf] %vm912, %v849
    %915 = vst.msk [vmem:[#allocation2 + $0x8] sm:$0xf] %vm912, %v850
    %916 = vst.msk [vmem:[#allocation2 + $0xc] sm:$0xf] %vm912, %v851
    %917 = vst.msk [vmem:[#allocation2 + $0x10] sm:$0xf] %vm912, %v852
    %918 = vst.msk [vmem:[#allocation2 + $0x14] sm:$0xf] %vm912, %v853
    %919 = vst.msk [vmem:[#allocation2 + $0x18] sm:$0xf] %vm912, %v854
    %920 = vst.msk [vmem:[#allocation2 + $0x1c] sm:$0xf] %vm912, %v855
    %921 = vst.msk [vmem:[#allocation2 + $0x20] sm:$0xf] %vm912, %v856
    %922 = vst.msk [vmem:[#allocation2 + $0x24] sm:$0xf] %vm912, %v857
    %923 = vst.msk [vmem:[#allocation2 + $0x28] sm:$0xf] %vm912, %v858
    %924 = vst.msk [vmem:[#allocation2 + $0x2c] sm:$0xf] %vm912, %v859
    %925 = vst.msk [vmem:[#allocation2 + $0x30] sm:$0xf] %vm912, %v860
    %926 = vst.msk [vmem:[#allocation2 + $0x34] sm:$0xf] %vm912, %v861
    %927 = vst.msk [vmem:[#allocation2 + $0x38] sm:$0xf] %vm912, %v862
    %928 = vst.msk [vmem:[#allocation2 + $0x3c] sm:$0xf] %vm912, %v863
    %929 = vst.msk [vmem:[#allocation2 + $0x40] sm:$0xf] %vm912, %v864
    %930 = vst.msk [vmem:[#allocation2 + $0x44] sm:$0xf] %vm912, %v865
    %931 = vst.msk [vmem:[#allocation2 + $0x48] sm:$0xf] %vm912, %v866
    %932 = vst.msk [vmem:[#allocation2 + $0x4c] sm:$0xf] %vm912, %v867
    %933 = vst.msk [vmem:[#allocation2 + $0x50] sm:$0xf] %vm912, %v868
    %934 = vst.msk [vmem:[#allocation2 + $0x54] sm:$0xf] %vm912, %v869
    %935 = vst.msk [vmem:[#allocation2 + $0x58] sm:$0xf] %vm912, %v870
    %936 = vst.msk [vmem:[#allocation2 + $0x5c] sm:$0xf] %vm912, %v871
    %937 = vst.msk [vmem:[#allocation2 + $0x60] sm:$0xf] %vm912, %v872
    %938 = vst.msk [vmem:[#allocation2 + $0x64] sm:$0xf] %vm912, %v873
    %939 = vst.msk [vmem:[#allocation2 + $0x68] sm:$0xf] %vm912, %v874
    %940 = vst.msk [vmem:[#allocation2 + $0x6c] sm:$0xf] %vm912, %v875
    %941 = vst.msk [vmem:[#allocation2 + $0x70] sm:$0xf] %vm912, %v876
    %942 = vst.msk [vmem:[#allocation2 + $0x74] sm:$0xf] %vm912, %v877
    %943 = vst.msk [vmem:[#allocation2 + $0x78] sm:$0xf] %vm912, %v878
    %944 = vst.msk [vmem:[#allocation2 + $0x7c] sm:$0xf] %vm912, %v879
    %v946 = vunpack.c.l.b16 %v518
    %v947 = vunpack.c.h.b16 %v518
    %v948 = vunpack.c.l.b16 %v401
    %v949 = vunpack.c.h.b16 %v401
    %v950 = vunpack.c.l.b16 %v409
    %v951 = vunpack.c.h.b16 %v409
    %v952 = vunpack.c.l.b16 %v417
    %v953 = vunpack.c.h.b16 %v417
    %v954 = vunpack.c.l.b16 %v425
    %v955 = vunpack.c.h.b16 %v425
    %v956 = vunpack.c.l.b16 %v433
    %v957 = vunpack.c.h.b16 %v433
    %v958 = vunpack.c.l.b16 %v441
    %v959 = vunpack.c.h.b16 %v441
    %v960 = vunpack.c.l.b16 %v449
    %v961 = vunpack.c.h.b16 %v449
    %v962 = vunpack.c.l.b16 %v457
    %v963 = vunpack.c.h.b16 %v457
    %v964 = vunpack.c.l.b16 %v465
    %v965 = vunpack.c.h.b16 %v465
    %v966 = vunpack.c.l.b16 %v473
    %v967 = vunpack.c.h.b16 %v473
    %v968 = vunpack.c.l.b16 %v481
    %v969 = vunpack.c.h.b16 %v481
    %v970 = vunpack.c.l.b16 %v489
    %v971 = vunpack.c.h.b16 %v489
    %v972 = vunpack.c.l.b16 %v497
    %v973 = vunpack.c.h.b16 %v497
    %v974 = vunpack.c.l.b16 %v505
    %v975 = vunpack.c.h.b16 %v505
    %v976 = vunpack.c.l.b16 %v513
    %v977 = vpack.c.b16 %v946, %v946
    %v978 = vpack.c.b16 %v947, %v947
    %v979 = vpack.c.b16 %v948, %v948
    %v980 = vpack.c.b16 %v949, %v949
    %v981 = vpack.c.b16 %v950, %v950
    %v982 = vpack.c.b16 %v951, %v951
    %v983 = vpack.c.b16 %v952, %v952
    %v984 = vpack.c.b16 %v953, %v953
    %v985 = vpack.c.b16 %v954, %v954
    %v986 = vpack.c.b16 %v955, %v955
    %v987 = vpack.c.b16 %v956, %v956
    %v988 = vpack.c.b16 %v957, %v957
    %v989 = vpack.c.b16 %v958, %v958
    %v990 = vpack.c.b16 %v959, %v959
    %v991 = vpack.c.b16 %v960, %v960
    %v992 = vpack.c.b16 %v961, %v961
    %v993 = vpack.c.b16 %v962, %v962
    %v994 = vpack.c.b16 %v963, %v963
    %v995 = vpack.c.b16 %v964, %v964
    %v996 = vpack.c.b16 %v965, %v965
    %v997 = vpack.c.b16 %v966, %v966
    %v998 = vpack.c.b16 %v967, %v967
    %v999 = vpack.c.b16 %v968, %v968
    %v1000 = vpack.c.b16 %v969, %v969
    %v1001 = vpack.c.b16 %v970, %v970
    %v1002 = vpack.c.b16 %v971, %v971
    %v1003 = vpack.c.b16 %v972, %v972
    %v1004 = vpack.c.b16 %v973, %v973
    %v1005 = vpack.c.b16 %v974, %v974
    %v1006 = vpack.c.b16 %v975, %v975
    %v1007 = vpack.c.b16 %v976, %v976
    %vm1008 = vsmask.f32 3328
    %vm1009 = vsmask.f32 7440
    %vm1010 = vmor %vm1008, %vm1009
    %v1012 = vshrl.u32 %v848, 16
    %v1014 = vrot.slane %v1012, 4
    %v1015 = vshll.u32 %v848, 16
    %v1017 = vrot.slane %v1015, 5
    %v1018 = vor.u32 %v1014, %v1017
    %v1019 = vrot.slane %v1018, 4
    %v1021 = vshll.u32 %v849, 16
    %v1023 = vrot.slane %v1021, 5
    %v1024 = vsel %vm1010, %v1019, %v1023
    %v1025 = vshrl.u32 %v849, 16
    %v1027 = vrot.slane %v1025, 4
    %v1028 = vor.u32 %v1027, %v1023
    %v1029 = vrot.slane %v1028, 4
    %v1031 = vshll.u32 %v977, 16
    %v1033 = vrot.slane %v1031, 5
    %v1034 = vsel %vm1010, %v1029, %v1033
    %v1035 = vshrl.u32 %v977, 16
    %v1037 = vrot.slane %v1035, 4
    %v1038 = vor.u32 %v1037, %v1033
    %v1039 = vrot.slane %v1038, 4
    %v1041 = vshll.u32 %v978, 16
    %v1043 = vrot.slane %v1041, 5
    %v1044 = vsel %vm1010, %v1039, %v1043
    %v1045 = vshrl.u32 %v978, 16
    %v1047 = vrot.slane %v1045, 4
    %v1048 = vor.u32 %v1047, %v1043
    %v1049 = vrot.slane %v1048, 4
    %v1051 = vshll.u32 %v979, 16
    %v1053 = vrot.slane %v1051, 5
    %v1054 = vsel %vm1010, %v1049, %v1053
    %v1055 = vshrl.u32 %v979, 16
    %v1057 = vrot.slane %v1055, 4
    %v1058 = vor.u32 %v1057, %v1053
    %v1059 = vrot.slane %v1058, 4
    %v1061 = vshll.u32 %v980, 16
    %v1063 = vrot.slane %v1061, 5
    %v1064 = vsel %vm1010, %v1059, %v1063
    %v1065 = vshrl.u32 %v980, 16
    %v1067 = vrot.slane %v1065, 4
    %v1068 = vor.u32 %v1067, %v1063
    %v1069 = vrot.slane %v1068, 4
    %v1071 = vshll.u32 %v981, 16
    %v1073 = vrot.slane %v1071, 5
    %v1074 = vsel %vm1010, %v1069, %v1073
    %v1075 = vshrl.u32 %v981, 16
    %v1077 = vrot.slane %v1075, 4
    %v1078 = vor.u32 %v1077, %v1073
    %v1079 = vrot.slane %v1078, 4
    %v1081 = vshll.u32 %v982, 16
    %v1083 = vrot.slane %v1081, 5
    %v1084 = vsel %vm1010, %v1079, %v1083
    %v1085 = vshrl.u32 %v982, 16
    %v1087 = vrot.slane %v1085, 4
    %v1088 = vor.u32 %v1087, %v1083
    %v1089 = vrot.slane %v1088, 4
    %v1091 = vshll.u32 %v983, 16
    %v1093 = vrot.slane %v1091, 5
    %v1094 = vsel %vm1010, %v1089, %v1093
    %v1095 = vshrl.u32 %v983, 16
    %v1097 = vrot.slane %v1095, 4
    %v1098 = vor.u32 %v1097, %v1093
    %v1099 = vrot.slane %v1098, 4
    %v1101 = vshll.u32 %v984, 16
    %v1103 = vrot.slane %v1101, 5
    %v1104 = vsel %vm1010, %v1099, %v1103
    %v1105 = vshrl.u32 %v984, 16
    %v1107 = vrot.slane %v1105, 4
    %v1108 = vor.u32 %v1107, %v1103
    %v1109 = vrot.slane %v1108, 4
    %v1111 = vshll.u32 %v985, 16
    %v1113 = vrot.slane %v1111, 5
    %v1114 = vsel %vm1010, %v1109, %v1113
    %v1115 = vshrl.u32 %v985, 16
    %v1117 = vrot.slane %v1115, 4
    %v1118 = vor.u32 %v1117, %v1113
    %v1119 = vrot.slane %v1118, 4
    %v1121 = vshll.u32 %v986, 16
    %v1123 = vrot.slane %v1121, 5
    %v1124 = vsel %vm1010, %v1119, %v1123
    %v1125 = vshrl.u32 %v986, 16
    %v1127 = vrot.slane %v1125, 4
    %v1128 = vor.u32 %v1127, %v1123
    %v1129 = vrot.slane %v1128, 4
    %v1131 = vshll.u32 %v987, 16
    %v1133 = vrot.slane %v1131, 5
    %v1134 = vsel %vm1010, %v1129, %v1133
    %v1135 = vshrl.u32 %v987, 16
    %v1137 = vrot.slane %v1135, 4
    %v1138 = vor.u32 %v1137, %v1133
    %v1139 = vrot.slane %v1138, 4
    %v1141 = vshll.u32 %v988, 16
    %v1143 = vrot.slane %v1141, 5
    %v1144 = vsel %vm1010, %v1139, %v1143
    %v1145 = vshrl.u32 %v988, 16
    %v1147 = vrot.slane %v1145, 4
    %v1148 = vor.u32 %v1147, %v1143
    %v1149 = vrot.slane %v1148, 4
    %v1151 = vshll.u32 %v989, 16
    %v1153 = vrot.slane %v1151, 5
    %v1154 = vsel %vm1010, %v1149, %v1153
    %v1155 = vshrl.u32 %v989, 16
    %v1157 = vrot.slane %v1155, 4
    %v1158 = vor.u32 %v1157, %v1153
    %v1159 = vrot.slane %v1158, 4
    %v1161 = vshll.u32 %v990, 16
    %v1163 = vrot.slane %v1161, 5
    %v1164 = vsel %vm1010, %v1159, %v1163
    %v1165 = vshrl.u32 %v990, 16
    %v1167 = vrot.slane %v1165, 4
    %v1168 = vor.u32 %v1167, %v1163
    %v1169 = vrot.slane %v1168, 4
    %v1171 = vshll.u32 %v991, 16
    %v1173 = vrot.slane %v1171, 5
    %v1174 = vsel %vm1010, %v1169, %v1173
    %v1175 = vshrl.u32 %v991, 16
    %v1177 = vrot.slane %v1175, 4
    %v1178 = vor.u32 %v1177, %v1173
    %v1179 = vrot.slane %v1178, 4
    %v1181 = vshll.u32 %v992, 16
    %v1183 = vrot.slane %v1181, 5
    %v1184 = vsel %vm1010, %v1179, %v1183
    %v1185 = vshrl.u32 %v992, 16
    %v1187 = vrot.slane %v1185, 4
    %v1188 = vor.u32 %v1187, %v1183
    %v1189 = vrot.slane %v1188, 4
    %v1191 = vshll.u32 %v993, 16
    %v1193 = vrot.slane %v1191, 5
    %v1194 = vsel %vm1010, %v1189, %v1193
    %v1195 = vshrl.u32 %v993, 16
    %v1197 = vrot.slane %v1195, 4
    %v1198 = vor.u32 %v1197, %v1193
    %v1199 = vrot.slane %v1198, 4
    %v1201 = vshll.u32 %v994, 16
    %v1203 = vrot.slane %v1201, 5
    %v1204 = vsel %vm1010, %v1199, %v1203
    %v1205 = vshrl.u32 %v994, 16
    %v1207 = vrot.slane %v1205, 4
    %v1208 = vor.u32 %v1207, %v1203
    %v1209 = vrot.slane %v1208, 4
    %v1211 = vshll.u32 %v995, 16
    %v1213 = vrot.slane %v1211, 5
    %v1214 = vsel %vm1010, %v1209, %v1213
    %v1215 = vshrl.u32 %v995, 16
    %v1217 = vrot.slane %v1215, 4
    %v1218 = vor.u32 %v1217, %v1213
    %v1219 = vrot.slane %v1218, 4
    %v1221 = vshll.u32 %v996, 16
    %v1223 = vrot.slane %v1221, 5
    %v1224 = vsel %vm1010, %v1219, %v1223
    %v1225 = vshrl.u32 %v996, 16
    %v1227 = vrot.slane %v1225, 4
    %v1228 = vor.u32 %v1227, %v1223
    %v1229 = vrot.slane %v1228, 4
    %v1231 = vshll.u32 %v997, 16
    %v1233 = vrot.slane %v1231, 5
    %v1234 = vsel %vm1010, %v1229, %v1233
    %v1235 = vshrl.u32 %v997, 16
    %v1237 = vrot.slane %v1235, 4
    %v1238 = vor.u32 %v1237, %v1233
    %v1239 = vrot.slane %v1238, 4
    %v1241 = vshll.u32 %v998, 16
    %v1243 = vrot.slane %v1241, 5
    %v1244 = vsel %vm1010, %v1239, %v1243
    %v1245 = vshrl.u32 %v998, 16
    %v1247 = vrot.slane %v1245, 4
    %v1248 = vor.u32 %v1247, %v1243
    %v1249 = vrot.slane %v1248, 4
    %v1251 = vshll.u32 %v999, 16
    %v1253 = vrot.slane %v1251, 5
    %v1254 = vsel %vm1010, %v1249, %v1253
    %v1255 = vshrl.u32 %v999, 16
    %v1257 = vrot.slane %v1255, 4
    %v1258 = vor.u32 %v1257, %v1253
    %v1259 = vrot.slane %v1258, 4
    %v1261 = vshll.u32 %v1000, 16
    %v1263 = vrot.slane %v1261, 5
    %v1264 = vsel %vm1010, %v1259, %v1263
    %v1265 = vshrl.u32 %v1000, 16
    %v1267 = vrot.slane %v1265, 4
    %v1268 = vor.u32 %v1267, %v1263
    %v1269 = vrot.slane %v1268, 4
    %v1271 = vshll.u32 %v1001, 16
    %v1273 = vrot.slane %v1271, 5
    %v1274 = vsel %vm1010, %v1269, %v1273
    %v1275 = vshrl.u32 %v1001, 16
    %v1277 = vrot.slane %v1275, 4
    %v1278 = vor.u32 %v1277, %v1273
    %v1279 = vrot.slane %v1278, 4
    %v1281 = vshll.u32 %v1002, 16
    %v1283 = vrot.slane %v1281, 5
    %v1284 = vsel %vm1010, %v1279, %v1283
    %v1285 = vshrl.u32 %v1002, 16
    %v1287 = vrot.slane %v1285, 4
    %v1288 = vor.u32 %v1287, %v1283
    %v1289 = vrot.slane %v1288, 4
    %v1291 = vshll.u32 %v1003, 16
    %v1293 = vrot.slane %v1291, 5
    %v1294 = vsel %vm1010, %v1289, %v1293
    %v1295 = vshrl.u32 %v1003, 16
    %v1297 = vrot.slane %v1295, 4
    %v1298 = vor.u32 %v1297, %v1293
    %v1299 = vrot.slane %v1298, 4
    %v1301 = vshll.u32 %v1004, 16
    %v1303 = vrot.slane %v1301, 5
    %v1304 = vsel %vm1010, %v1299, %v1303
    %v1305 = vshrl.u32 %v1004, 16
    %v1307 = vrot.slane %v1305, 4
    %v1308 = vor.u32 %v1307, %v1303
    %v1309 = vrot.slane %v1308, 4
    %v1311 = vshll.u32 %v1005, 16
    %v1313 = vrot.slane %v1311, 5
    %v1314 = vsel %vm1010, %v1309, %v1313
    %v1315 = vshrl.u32 %v1005, 16
    %v1317 = vrot.slane %v1315, 4
    %v1318 = vor.u32 %v1317, %v1313
    %v1319 = vrot.slane %v1318, 4
    %v1321 = vshll.u32 %v1006, 16
    %v1323 = vrot.slane %v1321, 5
    %v1324 = vsel %vm1010, %v1319, %v1323
    %v1325 = vshrl.u32 %v1006, 16
    %v1327 = vrot.slane %v1325, 4
    %v1328 = vor.u32 %v1327, %v1323
    %v1329 = vrot.slane %v1328, 4
    %v1331 = vshll.u32 %v1007, 16
    %v1333 = vrot.slane %v1331, 5
    %v1334 = vsel %vm1010, %v1329, %v1333
    %1335 = vrot.lane.b32.xlu0 %v1024, 4
    %v1336 = vpop.permute.xlu0 %1335
    %1337 = vrot.lane.b32.xlu0 %v1034, 4
    %v1338 = vpop.permute.xlu0 %1337
    %1339 = vrot.lane.b32.xlu0 %v1044, 4
    %v1340 = vpop.permute.xlu0 %1339
    %1341 = vrot.lane.b32.xlu0 %v1054, 4
    %v1342 = vpop.permute.xlu0 %1341
    %1343 = vrot.lane.b32.xlu0 %v1064, 4
    %v1344 = vpop.permute.xlu0 %1343
    %1345 = vrot.lane.b32.xlu0 %v1074, 4
    %v1346 = vpop.permute.xlu0 %1345
    %1347 = vrot.lane.b32.xlu0 %v1084, 4
    %v1348 = vpop.permute.xlu0 %1347
    %1349 = vrot.lane.b32.xlu0 %v1094, 4
    %v1350 = vpop.permute.xlu0 %1349
    %1351 = vrot.lane.b32.xlu0 %v1104, 4
    %v1352 = vpop.permute.xlu0 %1351
    %1353 = vrot.lane.b32.xlu0 %v1114, 4
    %v1354 = vpop.permute.xlu0 %1353
    %1355 = vrot.lane.b32.xlu0 %v1124, 4
    %v1356 = vpop.permute.xlu0 %1355
    %1357 = vrot.lane.b32.xlu0 %v1134, 4
    %v1358 = vpop.permute.xlu0 %1357
    %1359 = vrot.lane.b32.xlu0 %v1144, 4
    %v1360 = vpop.permute.xlu0 %1359
    %1361 = vrot.lane.b32.xlu0 %v1154, 4
    %v1362 = vpop.permute.xlu0 %1361
    %1363 = vrot.lane.b32.xlu0 %v1164, 4
    %v1364 = vpop.permute.xlu0 %1363
    %1365 = vrot.lane.b32.xlu0 %v1174, 4
    %v1366 = vpop.permute.xlu0 %1365
    %1367 = vrot.lane.b32.xlu0 %v1184, 4
    %v1368 = vpop.permute.xlu0 %1367
    %1369 = vrot.lane.b32.xlu0 %v1194, 4
    %v1370 = vpop.permute.xlu0 %1369
    %1371 = vrot.lane.b32.xlu0 %v1204, 4
    %v1372 = vpop.permute.xlu0 %1371
    %1373 = vrot.lane.b32.xlu0 %v1214, 4
    %v1374 = vpop.permute.xlu0 %1373
    %1375 = vrot.lane.b32.xlu0 %v1224, 4
    %v1376 = vpop.permute.xlu0 %1375
    %1377 = vrot.lane.b32.xlu0 %v1234, 4
    %v1378 = vpop.permute.xlu0 %1377
    %1379 = vrot.lane.b32.xlu0 %v1244, 4
    %v1380 = vpop.permute.xlu0 %1379
    %1381 = vrot.lane.b32.xlu0 %v1254, 4
    %v1382 = vpop.permute.xlu0 %1381
    %1383 = vrot.lane.b32.xlu0 %v1264, 4
    %v1384 = vpop.permute.xlu0 %1383
    %1385 = vrot.lane.b32.xlu0 %v1274, 4
    %v1386 = vpop.permute.xlu0 %1385
    %1387 = vrot.lane.b32.xlu0 %v1284, 4
    %v1388 = vpop.permute.xlu0 %1387
    %1389 = vrot.lane.b32.xlu0 %v1294, 4
    %v1390 = vpop.permute.xlu0 %1389
    %1391 = vrot.lane.b32.xlu0 %v1304, 4
    %v1392 = vpop.permute.xlu0 %1391
    %1393 = vrot.lane.b32.xlu0 %v1314, 4
    %v1394 = vpop.permute.xlu0 %1393
    %1395 = vrot.lane.b32.xlu0 %v1324, 4
    %v1396 = vpop.permute.xlu0 %1395
    %1397 = vrot.lane.b32.xlu0 %v1334, 4
    %v1398 = vpop.permute.xlu0 %1397
    %vm1431 = vcmask 60448
    %1432 = vst.msk [vmem:[#allocation2] sm:$0xf] %vm1431, %v1336
    %1433 = vst.msk [vmem:[#allocation2 + $0x4] sm:$0xf] %vm1431, %v1338
    %1434 = vst.msk [vmem:[#allocation2 + $0x8] sm:$0xf] %vm1431, %v1340
    %1435 = vst.msk [vmem:[#allocation2 + $0xc] sm:$0xf] %vm1431, %v1342
    %1436 = vst.msk [vmem:[#allocation2 + $0x10] sm:$0xf] %vm1431, %v1344
    %1437 = vst.msk [vmem:[#allocation2 + $0x14] sm:$0xf] %vm1431, %v1346
    %1438 = vst.msk [vmem:[#allocation2 + $0x18] sm:$0xf] %vm1431, %v1348
    %1439 = vst.msk [vmem:[#allocation2 + $0x1c] sm:$0xf] %vm1431, %v1350
    %1440 = vst.msk [vmem:[#allocation2 + $0x20] sm:$0xf] %vm1431, %v1352
    %1441 = vst.msk [vmem:[#allocation2 + $0x24] sm:$0xf] %vm1431, %v1354
    %1442 = vst.msk [vmem:[#allocation2 + $0x28] sm:$0xf] %vm1431, %v1356
    %1443 = vst.msk [vmem:[#allocation2 + $0x2c] sm:$0xf] %vm1431, %v1358
    %1444 = vst.msk [vmem:[#allocation2 + $0x30] sm:$0xf] %vm1431, %v1360
    %1445 = vst.msk [vmem:[#allocation2 + $0x34] sm:$0xf] %vm1431, %v1362
    %1446 = vst.msk [vmem:[#allocation2 + $0x38] sm:$0xf] %vm1431, %v1364
    %1447 = vst.msk [vmem:[#allocation2 + $0x3c] sm:$0xf] %vm1431, %v1366
    %1448 = vst.msk [vmem:[#allocation2 + $0x40] sm:$0xf] %vm1431, %v1368
    %1449 = vst.msk [vmem:[#allocation2 + $0x44] sm:$0xf] %vm1431, %v1370
    %1450 = vst.msk [vmem:[#allocation2 + $0x48] sm:$0xf] %vm1431, %v1372
    %1451 = vst.msk [vmem:[#allocation2 + $0x4c] sm:$0xf] %vm1431, %v1374
    %1452 = vst.msk [vmem:[#allocation2 + $0x50] sm:$0xf] %vm1431, %v1376
    %1453 = vst.msk [vmem:[#allocation2 + $0x54] sm:$0xf] %vm1431, %v1378
    %1454 = vst.msk [vmem:[#allocation2 + $0x58] sm:$0xf] %vm1431, %v1380
    %1455 = vst.msk [vmem:[#allocation2 + $0x5c] sm:$0xf] %vm1431, %v1382
    %1456 = vst.msk [vmem:[#allocation2 + $0x60] sm:$0xf] %vm1431, %v1384
    %1457 = vst.msk [vmem:[#allocation2 + $0x64] sm:$0xf] %vm1431, %v1386
    %1458 = vst.msk [vmem:[#allocation2 + $0x68] sm:$0xf] %vm1431, %v1388
    %1459 = vst.msk [vmem:[#allocation2 + $0x6c] sm:$0xf] %vm1431, %v1390
    %1460 = vst.msk [vmem:[#allocation2 + $0x70] sm:$0xf] %vm1431, %v1392
    %1461 = vst.msk [vmem:[#allocation2 + $0x74] sm:$0xf] %vm1431, %v1394
    %1462 = vst.msk [vmem:[#allocation2 + $0x78] sm:$0xf] %vm1431, %v1396
    %1463 = vst.msk [vmem:[#allocation2 + $0x7c] sm:$0xf] %vm1431, %v1398
    %v1465 = vunpack.c.l.b16 %v665
    %v1466 = vunpack.c.h.b16 %v665
    %v1467 = vunpack.c.l.b16 %v550
    %v1468 = vunpack.c.h.b16 %v550
    %v1469 = vunpack.c.l.b16 %v558
    %v1470 = vunpack.c.h.b16 %v558
    %v1471 = vunpack.c.l.b16 %v566
    %v1472 = vunpack.c.h.b16 %v566
    %v1473 = vunpack.c.l.b16 %v574
    %v1474 = vunpack.c.h.b16 %v574
    %v1475 = vunpack.c.l.b16 %v582
    %v1476 = vunpack.c.h.b16 %v582
    %v1477 = vunpack.c.l.b16 %v590
    %v1478 = vunpack.c.h.b16 %v590
    %v1479 = vunpack.c.l.b16 %v598
    %v1480 = vunpack.c.h.b16 %v598
    %v1481 = vunpack.c.l.b16 %v606
    %v1482 = vunpack.c.h.b16 %v606
    %v1483 = vunpack.c.l.b16 %v614
    %v1484 = vunpack.c.h.b16 %v614
    %v1485 = vunpack.c.l.b16 %v622
    %v1486 = vunpack.c.h.b16 %v622
    %v1487 = vunpack.c.l.b16 %v630
    %v1488 = vunpack.c.h.b16 %v630
    %v1489 = vunpack.c.l.b16 %v638
    %v1490 = vunpack.c.h.b16 %v638
    %v1491 = vunpack.c.l.b16 %v646
    %v1492 = vunpack.c.h.b16 %v646
    %v1493 = vunpack.c.l.b16 %v654
    %v1494 = vunpack.c.h.b16 %v654
    %v1495 = vunpack.c.l.b16 %v662
    %v1496 = vpack.c.b16 %v1465, %v1465
    %v1497 = vpack.c.b16 %v1466, %v1466
    %v1498 = vpack.c.b16 %v1467, %v1467
    %v1499 = vpack.c.b16 %v1468, %v1468
    %v1500 = vpack.c.b16 %v1469, %v1469
    %v1501 = vpack.c.b16 %v1470, %v1470
    %v1502 = vpack.c.b16 %v1471, %v1471
    %v1503 = vpack.c.b16 %v1472, %v1472
    %v1504 = vpack.c.b16 %v1473, %v1473
    %v1505 = vpack.c.b16 %v1474, %v1474
    %v1506 = vpack.c.b16 %v1475, %v1475
    %v1507 = vpack.c.b16 %v1476, %v1476
    %v1508 = vpack.c.b16 %v1477, %v1477
    %v1509 = vpack.c.b16 %v1478, %v1478
    %v1510 = vpack.c.b16 %v1479, %v1479
    %v1511 = vpack.c.b16 %v1480, %v1480
    %v1512 = vpack.c.b16 %v1481, %v1481
    %v1513 = vpack.c.b16 %v1482, %v1482
    %v1514 = vpack.c.b16 %v1483, %v1483
    %v1515 = vpack.c.b16 %v1484, %v1484
    %v1516 = vpack.c.b16 %v1485, %v1485
    %v1517 = vpack.c.b16 %v1486, %v1486
    %v1518 = vpack.c.b16 %v1487, %v1487
    %v1519 = vpack.c.b16 %v1488, %v1488
    %v1520 = vpack.c.b16 %v1489, %v1489
    %v1521 = vpack.c.b16 %v1490, %v1490
    %v1522 = vpack.c.b16 %v1491, %v1491
    %v1523 = vpack.c.b16 %v1492, %v1492
    %v1524 = vpack.c.b16 %v1493, %v1493
    %v1525 = vpack.c.b16 %v1494, %v1494
    %v1526 = vpack.c.b16 %v1495, %v1495
    %vm1527 = vcmask 1042432
    %vm1528 = vcmask 1046532
    %vm1529 = vmor %vm1527, %vm1528
    %v1530 = vrot.slane %v848, 5
    %v1531 = vrot.slane %v1530, 4
    %v1532 = vrot.slane %v849, 5
    %v1533 = vsel %vm1529, %v1531, %v1532
    %v1534 = vrot.slane %v1532, 4
    %v1535 = vrot.slane %v1496, 5
    %v1536 = vsel %vm1529, %v1534, %v1535
    %v1537 = vrot.slane %v1535, 4
    %v1538 = vrot.slane %v1497, 5
    %v1539 = vsel %vm1529, %v1537, %v1538
    %v1540 = vrot.slane %v1538, 4
    %v1541 = vrot.slane %v1498, 5
    %v1542 = vsel %vm1529, %v1540, %v1541
    %v1543 = vrot.slane %v1541, 4
    %v1544 = vrot.slane %v1499, 5
    %v1545 = vsel %vm1529, %v1543, %v1544
    %v1546 = vrot.slane %v1544, 4
    %v1547 = vrot.slane %v1500, 5
    %v1548 = vsel %vm1529, %v1546, %v1547
    %v1549 = vrot.slane %v1547, 4
    %v1550 = vrot.slane %v1501, 5
    %v1551 = vsel %vm1529, %v1549, %v1550
    %v1552 = vrot.slane %v1550, 4
    %v1553 = vrot.slane %v1502, 5
    %v1554 = vsel %vm1529, %v1552, %v1553
    %v1555 = vrot.slane %v1553, 4
    %v1556 = vrot.slane %v1503, 5
    %v1557 = vsel %vm1529, %v1555, %v1556
    %v1558 = vrot.slane %v1556, 4
    %v1559 = vrot.slane %v1504, 5
    %v1560 = vsel %vm1529, %v1558, %v1559
    %v1561 = vrot.slane %v1559, 4
    %v1562 = vrot.slane %v1505, 5
    %v1563 = vsel %vm1529, %v1561, %v1562
    %v1564 = vrot.slane %v1562, 4
    %v1565 = vrot.slane %v1506, 5
    %v1566 = vsel %vm1529, %v1564, %v1565
    %v1567 = vrot.slane %v1565, 4
    %v1568 = vrot.slane %v1507, 5
    %v1569 = vsel %vm1529, %v1567, %v1568
    %v1570 = vrot.slane %v1568, 4
    %v1571 = vrot.slane %v1508, 5
    %v1572 = vsel %vm1529, %v1570, %v1571
    %v1573 = vrot.slane %v1571, 4
    %v1574 = vrot.slane %v1509, 5
    %v1575 = vsel %vm1529, %v1573, %v1574
    %v1576 = vrot.slane %v1574, 4
    %v1577 = vrot.slane %v1510, 5
    %v1578 = vsel %vm1529, %v1576, %v1577
    %v1579 = vrot.slane %v1577, 4
    %v1580 = vrot.slane %v1511, 5
    %v1581 = vsel %vm1529, %v1579, %v1580
    %v1582 = vrot.slane %v1580, 4
    %v1583 = vrot.slane %v1512, 5
    %v1584 = vsel %vm1529, %v1582, %v1583
    %v1585 = vrot.slane %v1583, 4
    %v1586 = vrot.slane %v1513, 5
    %v1587 = vsel %vm1529, %v1585, %v1586
    %v1588 = vrot.slane %v1586, 4
    %v1589 = vrot.slane %v1514, 5
    %v1590 = vsel %vm1529, %v1588, %v1589
    %v1591 = vrot.slane %v1589, 4
    %v1592 = vrot.slane %v1515, 5
    %v1593 = vsel %vm1529, %v1591, %v1592
    %v1594 = vrot.slane %v1592, 4
    %v1595 = vrot.slane %v1516, 5
    %v1596 = vsel %vm1529, %v1594, %v1595
    %v1597 = vrot.slane %v1595, 4
    %v1598 = vrot.slane %v1517, 5
    %v1599 = vsel %vm1529, %v1597, %v1598
    %v1600 = vrot.slane %v1598, 4
    %v1601 = vrot.slane %v1518, 5
    %v1602 = vsel %vm1529, %v1600, %v1601
    %v1603 = vrot.slane %v1601, 4
    %v1604 = vrot.slane %v1519, 5
    %v1605 = vsel %vm1529, %v1603, %v1604
    %v1606 = vrot.slane %v1604, 4
    %v1607 = vrot.slane %v1520, 5
    %v1608 = vsel %vm1529, %v1606, %v1607
    %v1609 = vrot.slane %v1607, 4
    %v1610 = vrot.slane %v1521, 5
    %v1611 = vsel %vm1529, %v1609, %v1610
    %v1612 = vrot.slane %v1610, 4
    %v1613 = vrot.slane %v1522, 5
    %v1614 = vsel %vm1529, %v1612, %v1613
    %v1615 = vrot.slane %v1613, 4
    %v1616 = vrot.slane %v1523, 5
    %v1617 = vsel %vm1529, %v1615, %v1616
    %v1618 = vrot.slane %v1616, 4
    %v1619 = vrot.slane %v1524, 5
    %v1620 = vsel %vm1529, %v1618, %v1619
    %v1621 = vrot.slane %v1619, 4
    %v1622 = vrot.slane %v1525, 5
    %v1623 = vsel %vm1529, %v1621, %v1622
    %v1624 = vrot.slane %v1622, 4
    %v1625 = vrot.slane %v1526, 5
    %v1626 = vsel %vm1529, %v1624, %v1625
    %1627 = vrot.lane.b32.xlu0 %v1533, 8
    %v1628 = vpop.permute.xlu0 %1627
    %1629 = vrot.lane.b32.xlu0 %v1536, 8
    %v1630 = vpop.permute.xlu0 %1629
    %1631 = vrot.lane.b32.xlu0 %v1539, 8
    %v1632 = vpop.permute.xlu0 %1631
    %1633 = vrot.lane.b32.xlu0 %v1542, 8
    %v1634 = vpop.permute.xlu0 %1633
    %1635 = vrot.lane.b32.xlu0 %v1545, 8
    %v1636 = vpop.permute.xlu0 %1635
    %1637 = vrot.lane.b32.xlu0 %v1548, 8
    %v1638 = vpop.permute.xlu0 %1637
    %1639 = vrot.lane.b32.xlu0 %v1551, 8
    %v1640 = vpop.permute.xlu0 %1639
    %1641 = vrot.lane.b32.xlu0 %v1554, 8
    %v1642 = vpop.permute.xlu0 %1641
    %1643 = vrot.lane.b32.xlu0 %v1557, 8
    %v1644 = vpop.permute.xlu0 %1643
    %1645 = vrot.lane.b32.xlu0 %v1560, 8
    %v1646 = vpop.permute.xlu0 %1645
    %1647 = vrot.lane.b32.xlu0 %v1563, 8
    %v1648 = vpop.permute.xlu0 %1647
    %1649 = vrot.lane.b32.xlu0 %v1566, 8
    %v1650 = vpop.permute.xlu0 %1649
    %1651 = vrot.lane.b32.xlu0 %v1569, 8
    %v1652 = vpop.permute.xlu0 %1651
    %1653 = vrot.lane.b32.xlu0 %v1572, 8
    %v1654 = vpop.permute.xlu0 %1653
    %1655 = vrot.lane.b32.xlu0 %v1575, 8
    %v1656 = vpop.permute.xlu0 %1655
    %1657 = vrot.lane.b32.xlu0 %v1578, 8
    %v1658 = vpop.permute.xlu0 %1657
    %1659 = vrot.lane.b32.xlu0 %v1581, 8
    %v1660 = vpop.permute.xlu0 %1659
    %1661 = vrot.lane.b32.xlu0 %v1584, 8
    %v1662 = vpop.permute.xlu0 %1661
    %1663 = vrot.lane.b32.xlu0 %v1587, 8
    %v1664 = vpop.permute.xlu0 %1663
    %1665 = vrot.lane.b32.xlu0 %v1590, 8
    %v1666 = vpop.permute.xlu0 %1665
    %1667 = vrot.lane.b32.xlu0 %v1593, 8
    %v1668 = vpop.permute.xlu0 %1667
    %1669 = vrot.lane.b32.xlu0 %v1596, 8
    %v1670 = vpop.permute.xlu0 %1669
    %1671 = vrot.lane.b32.xlu0 %v1599, 8
    %v1672 = vpop.permute.xlu0 %1671
    %1673 = vrot.lane.b32.xlu0 %v1602, 8
    %v1674 = vpop.permute.xlu0 %1673
    %1675 = vrot.lane.b32.xlu0 %v1605, 8
    %v1676 = vpop.permute.xlu0 %1675
    %1677 = vrot.lane.b32.xlu0 %v1608, 8
    %v1678 = vpop.permute.xlu0 %1677
    %1679 = vrot.lane.b32.xlu0 %v1611, 8
    %v1680 = vpop.permute.xlu0 %1679
    %1681 = vrot.lane.b32.xlu0 %v1614, 8
    %v1682 = vpop.permute.xlu0 %1681
    %1683 = vrot.lane.b32.xlu0 %v1617, 8
    %v1684 = vpop.permute.xlu0 %1683
    %1685 = vrot.lane.b32.xlu0 %v1620, 8
    %v1686 = vpop.permute.xlu0 %1685
    %1687 = vrot.lane.b32.xlu0 %v1623, 8
    %v1688 = vpop.permute.xlu0 %1687
    %1689 = vrot.lane.b32.xlu0 %v1626, 8
    %v1690 = vpop.permute.xlu0 %1689
    %vm1723 = vcmask 93248
    %1724 = vst.msk [vmem:[#allocation2] sm:$0xf] %vm1723, %v1628
    %1725 = vst.msk [vmem:[#allocation2 + $0x4] sm:$0xf] %vm1723, %v1630
    %1726 = vst.msk [vmem:[#allocation2 + $0x8] sm:$0xf] %vm1723, %v1632
    %1727 = vst.msk [vmem:[#allocation2 + $0xc] sm:$0xf] %vm1723, %v1634
    %1728 = vst.msk [vmem:[#allocation2 + $0x10] sm:$0xf] %vm1723, %v1636
    %1729 = vst.msk [vmem:[#allocation2 + $0x14] sm:$0xf] %vm1723, %v1638
    %1730 = vst.msk [vmem:[#allocation2 + $0x18] sm:$0xf] %vm1723, %v1640
    %1731 = vst.msk [vmem:[#allocation2 + $0x1c] sm:$0xf] %vm1723, %v1642
    %1732 = vst.msk [vmem:[#allocation2 + $0x20] sm:$0xf] %vm1723, %v1644
    %1733 = vst.msk [vmem:[#allocation2 + $0x24] sm:$0xf] %vm1723, %v1646
    %1734 = vst.msk [vmem:[#allocation2 + $0x28] sm:$0xf] %vm1723, %v1648
    %1735 = vst.msk [vmem:[#allocation2 + $0x2c] sm:$0xf] %vm1723, %v1650
    %1736 = vst.msk [vmem:[#allocation2 + $0x30] sm:$0xf] %vm1723, %v1652
    %1737 = vst.msk [vmem:[#allocation2 + $0x34] sm:$0xf] %vm1723, %v1654
    %1738 = vst.msk [vmem:[#allocation2 + $0x38] sm:$0xf] %vm1723, %v1656
    %1739 = vst.msk [vmem:[#allocation2 + $0x3c] sm:$0xf] %vm1723, %v1658
    %1740 = vst.msk [vmem:[#allocation2 + $0x40] sm:$0xf] %vm1723, %v1660
    %1741 = vst.msk [vmem:[#allocation2 + $0x44] sm:$0xf] %vm1723, %v1662
    %1742 = vst.msk [vmem:[#allocation2 + $0x48] sm:$0xf] %vm1723, %v1664
    %1743 = vst.msk [vmem:[#allocation2 + $0x4c] sm:$0xf] %vm1723, %v1666
    %1744 = vst.msk [vmem:[#allocation2 + $0x50] sm:$0xf] %vm1723, %v1668
    %1745 = vst.msk [vmem:[#allocation2 + $0x54] sm:$0xf] %vm1723, %v1670
    %1746 = vst.msk [vmem:[#allocation2 + $0x58] sm:$0xf] %vm1723, %v1672
    %1747 = vst.msk [vmem:[#allocation2 + $0x5c] sm:$0xf] %vm1723, %v1674
    %1748 = vst.msk [vmem:[#allocation2 + $0x60] sm:$0xf] %vm1723, %v1676
    %1749 = vst.msk [vmem:[#allocation2 + $0x64] sm:$0xf] %vm1723, %v1678
    %1750 = vst.msk [vmem:[#allocation2 + $0x68] sm:$0xf] %vm1723, %v1680
    %1751 = vst.msk [vmem:[#allocation2 + $0x6c] sm:$0xf] %vm1723, %v1682
    %1752 = vst.msk [vmem:[#allocation2 + $0x70] sm:$0xf] %vm1723, %v1684
    %1753 = vst.msk [vmem:[#allocation2 + $0x74] sm:$0xf] %vm1723, %v1686
    %1754 = vst.msk [vmem:[#allocation2 + $0x78] sm:$0xf] %vm1723, %v1688
    %1755 = vst.msk [vmem:[#allocation2 + $0x7c] sm:$0xf] %vm1723, %v1690
    %v1756 = vunpack.c.l.b16 %v809
    %v1757 = vunpack.c.h.b16 %v809
    %v1758 = vpack.c.b16 %v1756, %v1756
    %v1759 = vpack.c.b16 %v1757, %v1757
    %1760 = vrot.lane.b32.xlu0 %v850, 12
    %v1761 = vpop.permute.xlu0 %1760
    %1762 = vrot.lane.b32.xlu0 %v851, 12
    %v1763 = vpop.permute.xlu0 %1762
    %1764 = vrot.lane.b32.xlu0 %v852, 12
    %v1765 = vpop.permute.xlu0 %1764
    %1766 = vrot.lane.b32.xlu0 %v853, 12
    %v1767 = vpop.permute.xlu0 %1766
    %1768 = vrot.lane.b32.xlu0 %v854, 12
    %v1769 = vpop.permute.xlu0 %1768
    %1770 = vrot.lane.b32.xlu0 %v855, 12
    %v1771 = vpop.permute.xlu0 %1770
    %1772 = vrot.lane.b32.xlu0 %v856, 12
    %v1773 = vpop.permute.xlu0 %1772
    %1774 = vrot.lane.b32.xlu0 %v857, 12
    %v1775 = vpop.permute.xlu0 %1774
    %1776 = vrot.lane.b32.xlu0 %v858, 12
    %v1777 = vpop.permute.xlu0 %1776
    %1778 = vrot.lane.b32.xlu0 %v859, 12
    %v1779 = vpop.permute.xlu0 %1778
    %1780 = vrot.lane.b32.xlu0 %v860, 12
    %v1781 = vpop.permute.xlu0 %1780
    %1782 = vrot.lane.b32.xlu0 %v861, 12
    %v1783 = vpop.permute.xlu0 %1782
    %1784 = vrot.lane.b32.xlu0 %v862, 12
    %v1785 = vpop.permute.xlu0 %1784
    %1786 = vrot.lane.b32.xlu0 %v863, 12
    %v1787 = vpop.permute.xlu0 %1786
    %1788 = vrot.lane.b32.xlu0 %v864, 12
    %v1789 = vpop.permute.xlu0 %1788
    %1790 = vrot.lane.b32.xlu0 %v865, 12
    %v1791 = vpop.permute.xlu0 %1790
    %1792 = vrot.lane.b32.xlu0 %v866, 12
    %v1793 = vpop.permute.xlu0 %1792
    %1794 = vrot.lane.b32.xlu0 %v867, 12
    %v1795 = vpop.permute.xlu0 %1794
    %1796 = vrot.lane.b32.xlu0 %v868, 12
    %v1797 = vpop.permute.xlu0 %1796
    %1798 = vrot.lane.b32.xlu0 %v869, 12
    %v1799 = vpop.permute.xlu0 %1798
    %1800 = vrot.lane.b32.xlu0 %v870, 12
    %v1801 = vpop.permute.xlu0 %1800
    %1802 = vrot.lane.b32.xlu0 %v871, 12
    %v1803 = vpop.permute.xlu0 %1802
    %1804 = vrot.lane.b32.xlu0 %v872, 12
    %v1805 = vpop.permute.xlu0 %1804
    %1806 = vrot.lane.b32.xlu0 %v873, 12
    %v1807 = vpop.permute.xlu0 %1806
    %1808 = vrot.lane.b32.xlu0 %v874, 12
    %v1809 = vpop.permute.xlu0 %1808
    %1810 = vrot.lane.b32.xlu0 %v875, 12
    %v1811 = vpop.permute.xlu0 %1810
    %1812 = vrot.lane.b32.xlu0 %v876, 12
    %v1813 = vpop.permute.xlu0 %1812
    %1814 = vrot.lane.b32.xlu0 %v877, 12
    %v1815 = vpop.permute.xlu0 %1814
    %1816 = vrot.lane.b32.xlu0 %v878, 12
    %v1817 = vpop.permute.xlu0 %1816
    %1818 = vrot.lane.b32.xlu0 %v879, 12
    %v1819 = vpop.permute.xlu0 %1818
    %1820 = vrot.lane.b32.xlu0 %v1758, 12
    %v1821 = vpop.permute.xlu0 %1820
    %1822 = vrot.lane.b32.xlu0 %v1759, 12
    %v1823 = vpop.permute.xlu0 %1822
    %vm1856 = vcmask 126048
    %1857 = vst.msk [vmem:[#allocation2] sm:$0xf] %vm1856, %v1761
    %1858 = vst.msk [vmem:[#allocation2 + $0x4] sm:$0xf] %vm1856, %v1763
    %1859 = vst.msk [vmem:[#allocation2 + $0x8] sm:$0xf] %vm1856, %v1765
    %1860 = vst.msk [vmem:[#allocation2 + $0xc] sm:$0xf] %vm1856, %v1767
    %1861 = vst.msk [vmem:[#allocation2 + $0x10] sm:$0xf] %vm1856, %v1769
    %1862 = vst.msk [vmem:[#allocation2 + $0x14] sm:$0xf] %vm1856, %v1771
    %1863 = vst.msk [vmem:[#allocation2 + $0x18] sm:$0xf] %vm1856, %v1773
    %1864 = vst.msk [vmem:[#allocation2 + $0x1c] sm:$0xf] %vm1856, %v1775
    %1865 = vst.msk [vmem:[#allocation2 + $0x20] sm:$0xf] %vm1856, %v1777
    %1866 = vst.msk [vmem:[#allocation2 + $0x24] sm:$0xf] %vm1856, %v1779
    %1867 = vst.msk [vmem:[#allocation2 + $0x28] sm:$0xf] %vm1856, %v1781
    %1868 = vst.msk [vmem:[#allocation2 + $0x2c] sm:$0xf] %vm1856, %v1783
    %1869 = vst.msk [vmem:[#allocation2 + $0x30] sm:$0xf] %vm1856, %v1785
    %1870 = vst.msk [vmem:[#allocation2 + $0x34] sm:$0xf] %vm1856, %v1787
    %1871 = vst.msk [vmem:[#allocation2 + $0x38] sm:$0xf] %vm1856, %v1789
    %1872 = vst.msk [vmem:[#allocation2 + $0x3c] sm:$0xf] %vm1856, %v1791
    %1873 = vst.msk [vmem:[#allocation2 + $0x40] sm:$0xf] %vm1856, %v1793
    %1874 = vst.msk [vmem:[#allocation2 + $0x44] sm:$0xf] %vm1856, %v1795
    %1875 = vst.msk [vmem:[#allocation2 + $0x48] sm:$0xf] %vm1856, %v1797
    %1876 = vst.msk [vmem:[#allocation2 + $0x4c] sm:$0xf] %vm1856, %v1799
    %1877 = vst.msk [vmem:[#allocation2 + $0x50] sm:$0xf] %vm1856, %v1801
    %1878 = vst.msk [vmem:[#allocation2 + $0x54] sm:$0xf] %vm1856, %v1803
    %1879 = vst.msk [vmem:[#allocation2 + $0x58] sm:$0xf] %vm1856, %v1805
    %1880 = vst.msk [vmem:[#allocation2 + $0x5c] sm:$0xf] %vm1856, %v1807
    %1881 = vst.msk [vmem:[#allocation2 + $0x60] sm:$0xf] %vm1856, %v1809
    %1882 = vst.msk [vmem:[#allocation2 + $0x64] sm:$0xf] %vm1856, %v1811
    %1883 = vst.msk [vmem:[#allocation2 + $0x68] sm:$0xf] %vm1856, %v1813
    %1884 = vst.msk [vmem:[#allocation2 + $0x6c] sm:$0xf] %vm1856, %v1815
    %1885 = vst.msk [vmem:[#allocation2 + $0x70] sm:$0xf] %vm1856, %v1817
    %1886 = vst.msk [vmem:[#allocation2 + $0x74] sm:$0xf] %vm1856, %v1819
    %1887 = vst.msk [vmem:[#allocation2 + $0x78] sm:$0xf] %vm1856, %v1821
    %1888 = vst.msk [vmem:[#allocation2 + $0x7c] sm:$0xf] %vm1856, %v1823
    %v1890 = vunpack.c.h.b16 %v513
    %v1891 = vunpack.c.l.b16 %v519
    %v1892 = vpack.c.b16 %v1890, %v1890
    %v1893 = vpack.c.b16 %v1891, %v1891
    %v1894 = vshrl.u32 %v1007, 16
    %v1896 = vrot.slane %v1894, 4
    %v1897 = vor.u32 %v1896, %v1333
    %v1898 = vrot.slane %v1897, 4
    %v1900 = vshll.u32 %v1892, 16
    %v1902 = vrot.slane %v1900, 5
    %v1903 = vsel %vm1010, %v1898, %v1902
    %v1904 = vshrl.u32 %v1892, 16
    %v1906 = vrot.slane %v1904, 4
    %v1907 = vor.u32 %v1906, %v1902
    %v1908 = vrot.slane %v1907, 4
    %v1910 = vshll.u32 %v1893, 16
    %v1912 = vrot.slane %v1910, 5
    %v1913 = vsel %vm1010, %v1908, %v1912
    %1914 = vrot.lane.b32.xlu0 %v1044, 16
    %v1915 = vpop.permute.xlu0 %1914
    %1916 = vrot.lane.b32.xlu0 %v1054, 16
    %v1917 = vpop.permute.xlu0 %1916
    %1918 = vrot.lane.b32.xlu0 %v1064, 16
    %v1919 = vpop.permute.xlu0 %1918
    %1920 = vrot.lane.b32.xlu0 %v1074, 16
    %v1921 = vpop.permute.xlu0 %1920
    %1922 = vrot.lane.b32.xlu0 %v1084, 16
    %v1923 = vpop.permute.xlu0 %1922
    %1924 = vrot.lane.b32.xlu0 %v1094, 16
    %v1925 = vpop.permute.xlu0 %1924
    %1926 = vrot.lane.b32.xlu0 %v1104, 16
    %v1927 = vpop.permute.xlu0 %1926
    %1928 = vrot.lane.b32.xlu0 %v1114, 16
    %v1929 = vpop.permute.xlu0 %1928
    %1930 = vrot.lane.b32.xlu0 %v1124, 16
    %v1931 = vpop.permute.xlu0 %1930
    %1932 = vrot.lane.b32.xlu0 %v1134, 16
    %v1933 = vpop.permute.xlu0 %1932
    %1934 = vrot.lane.b32.xlu0 %v1144, 16
    %v1935 = vpop.permute.xlu0 %1934
    %1936 = vrot.lane.b32.xlu0 %v1154, 16
    %v1937 = vpop.permute.xlu0 %1936
    %1938 = vrot.lane.b32.xlu0 %v1164, 16
    %v1939 = vpop.permute.xlu0 %1938
    %1940 = vrot.lane.b32.xlu0 %v1174, 16
    %v1941 = vpop.permute.xlu0 %1940
    %1942 = vrot.lane.b32.xlu0 %v1184, 16
    %v1943 = vpop.permute.xlu0 %1942
    %1944 = vrot.lane.b32.xlu0 %v1194, 16
    %v1945 = vpop.permute.xlu0 %1944
    %1946 = vrot.lane.b32.xlu0 %v1204, 16
    %v1947 = vpop.permute.xlu0 %1946
    %1948 = vrot.lane.b32.xlu0 %v1214, 16
    %v1949 = vpop.permute.xlu0 %1948
    %1950 = vrot.lane.b32.xlu0 %v1224, 16
    %v1951 = vpop.permute.xlu0 %1950
    %1952 = vrot.lane.b32.xlu0 %v1234, 16
    %v1953 = vpop.permute.xlu0 %1952
    %1954 = vrot.lane.b32.xlu0 %v1244, 16
    %v1955 = vpop.permute.xlu0 %1954
    %1956 = vrot.lane.b32.xlu0 %v1254, 16
    %v1957 = vpop.permute.xlu0 %1956
    %1958 = vrot.lane.b32.xlu0 %v1264, 16
    %v1959 = vpop.permute.xlu0 %1958
    %1960 = vrot.lane.b32.xlu0 %v1274, 16
    %v1961 = vpop.permute.xlu0 %1960
    %1962 = vrot.lane.b32.xlu0 %v1284, 16
    %v1963 = vpop.permute.xlu0 %1962
    %1964 = vrot.lane.b32.xlu0 %v1294, 16
    %v1965 = vpop.permute.xlu0 %1964
    %1966 = vrot.lane.b32.xlu0 %v1304, 16
    %v1967 = vpop.permute.xlu0 %1966
    %1968 = vrot.lane.b32.xlu0 %v1314, 16
    %v1969 = vpop.permute.xlu0 %1968
    %1970 = vrot.lane.b32.xlu0 %v1324, 16
    %v1971 = vpop.permute.xlu0 %1970
    %1972 = vrot.lane.b32.xlu0 %v1334, 16
    %v1973 = vpop.permute.xlu0 %1972
    %1974 = vrot.lane.b32.xlu0 %v1903, 16
    %v1975 = vpop.permute.xlu0 %1974
    %1976 = vrot.lane.b32.xlu0 %v1913, 16
    %v1977 = vpop.permute.xlu0 %1976
    %vm2010 = vcmask 158848
    %2011 = vst.msk [vmem:[#allocation2] sm:$0xf] %vm2010, %v1915
    %2012 = vst.msk [vmem:[#allocation2 + $0x4] sm:$0xf] %vm2010, %v1917
    %2013 = vst.msk [vmem:[#allocation2 + $0x8] sm:$0xf] %vm2010, %v1919
    %2014 = vst.msk [vmem:[#allocation2 + $0xc] sm:$0xf] %vm2010, %v1921
    %2015 = vst.msk [vmem:[#allocation2 + $0x10] sm:$0xf] %vm2010, %v1923
    %2016 = vst.msk [vmem:[#allocation2 + $0x14] sm:$0xf] %vm2010, %v1925
    %2017 = vst.msk [vmem:[#allocation2 + $0x18] sm:$0xf] %vm2010, %v1927
    %2018 = vst.msk [vmem:[#allocation2 + $0x1c] sm:$0xf] %vm2010, %v1929
    %2019 = vst.msk [vmem:[#allocation2 + $0x20] sm:$0xf] %vm2010, %v1931
    %2020 = vst.msk [vmem:[#allocation2 + $0x24] sm:$0xf] %vm2010, %v1933
    %2021 = vst.msk [vmem:[#allocation2 + $0x28] sm:$0xf] %vm2010, %v1935
    %2022 = vst.msk [vmem:[#allocation2 + $0x2c] sm:$0xf] %vm2010, %v1937
    %2023 = vst.msk [vmem:[#allocation2 + $0x30] sm:$0xf] %vm2010, %v1939
    %2024 = vst.msk [vmem:[#allocation2 + $0x34] sm:$0xf] %vm2010, %v1941
    %2025 = vst.msk [vmem:[#allocation2 + $0x38] sm:$0xf] %vm2010, %v1943
    %2026 = vst.msk [vmem:[#allocation2 + $0x3c] sm:$0xf] %vm2010, %v1945
    %2027 = vst.msk [vmem:[#allocation2 + $0x40] sm:$0xf] %vm2010, %v1947
    %2028 = vst.msk [vmem:[#allocation2 + $0x44] sm:$0xf] %vm2010, %v1949
    %2029 = vst.msk [vmem:[#allocation2 + $0x48] sm:$0xf] %vm2010, %v1951
    %2030 = vst.msk [vmem:[#allocation2 + $0x4c] sm:$0xf] %vm2010, %v1953
    %2031 = vst.msk [vmem:[#allocation2 + $0x50] sm:$0xf] %vm2010, %v1955
    %2032 = vst.msk [vmem:[#allocation2 + $0x54] sm:$0xf] %vm2010, %v1957
    %2033 = vst.msk [vmem:[#allocation2 + $0x58] sm:$0xf] %vm2010, %v1959
    %2034 = vst.msk [vmem:[#allocation2 + $0x5c] sm:$0xf] %vm2010, %v1961
    %2035 = vst.msk [vmem:[#allocation2 + $0x60] sm:$0xf] %vm2010, %v1963
    %2036 = vst.msk [vmem:[#allocation2 + $0x64] sm:$0xf] %vm2010, %v1965
    %2037 = vst.msk [vmem:[#allocation2 + $0x68] sm:$0xf] %vm2010, %v1967
    %2038 = vst.msk [vmem:[#allocation2 + $0x6c] sm:$0xf] %vm2010, %v1969
    %2039 = vst.msk [vmem:[#allocation2 + $0x70] sm:$0xf] %vm2010, %v1971
    %2040 = vst.msk [vmem:[#allocation2 + $0x74] sm:$0xf] %vm2010, %v1973
    %2041 = vst.msk [vmem:[#allocation2 + $0x78] sm:$0xf] %vm2010, %v1975
    %2042 = vst.msk [vmem:[#allocation2 + $0x7c] sm:$0xf] %vm2010, %v1977
    %v2044 = vunpack.c.h.b16 %v662
    %v2045 = vunpack.c.l.b16 %v666
    %v2046 = vpack.c.b16 %v2044, %v2044
    %v2047 = vpack.c.b16 %v2045, %v2045
    %v2048 = vrot.slane %v1625, 4
    %v2049 = vrot.slane %v2046, 5
    %v2050 = vsel %vm1529, %v2048, %v2049
    %v2051 = vrot.slane %v2049, 4
    %v2052 = vrot.slane %v2047, 5
    %v2053 = vsel %vm1529, %v2051, %v2052
    %2054 = vrot.lane.b32.xlu0 %v1539, 20
    %v2055 = vpop.permute.xlu0 %2054
    %2056 = vrot.lane.b32.xlu0 %v1542, 20
    %v2057 = vpop.permute.xlu0 %2056
    %2058 = vrot.lane.b32.xlu0 %v1545, 20
    %v2059 = vpop.permute.xlu0 %2058
    %2060 = vrot.lane.b32.xlu0 %v1548, 20
    %v2061 = vpop.permute.xlu0 %2060
    %2062 = vrot.lane.b32.xlu0 %v1551, 20
    %v2063 = vpop.permute.xlu0 %2062
    %2064 = vrot.lane.b32.xlu0 %v1554, 20
    %v2065 = vpop.permute.xlu0 %2064
    %2066 = vrot.lane.b32.xlu0 %v1557, 20
    %v2067 = vpop.permute.xlu0 %2066
    %2068 = vrot.lane.b32.xlu0 %v1560, 20
    %v2069 = vpop.permute.xlu0 %2068
    %2070 = vrot.lane.b32.xlu0 %v1563, 20
    %v2071 = vpop.permute.xlu0 %2070
    %2072 = vrot.lane.b32.xlu0 %v1566, 20
    %v2073 = vpop.permute.xlu0 %2072
    %2074 = vrot.lane.b32.xlu0 %v1569, 20
    %v2075 = vpop.permute.xlu0 %2074
    %2076 = vrot.lane.b32.xlu0 %v1572, 20
    %v2077 = vpop.permute.xlu0 %2076
    %2078 = vrot.lane.b32.xlu0 %v1575, 20
    %v2079 = vpop.permute.xlu0 %2078
    %2080 = vrot.lane.b32.xlu0 %v1578, 20
    %v2081 = vpop.permute.xlu0 %2080
    %2082 = vrot.lane.b32.xlu0 %v1581, 20
    %v2083 = vpop.permute.xlu0 %2082
    %2084 = vrot.lane.b32.xlu0 %v1584, 20
    %v2085 = vpop.permute.xlu0 %2084
    %2086 = vrot.lane.b32.xlu0 %v1587, 20
    %v2087 = vpop.permute.xlu0 %2086
    %2088 = vrot.lane.b32.xlu0 %v1590, 20
    %v2089 = vpop.permute.xlu0 %2088
    %2090 = vrot.lane.b32.xlu0 %v1593, 20
    %v2091 = vpop.permute.xlu0 %2090
    %2092 = vrot.lane.b32.xlu0 %v1596, 20
    %v2093 = vpop.permute.xlu0 %2092
    %2094 = vrot.lane.b32.xlu0 %v1599, 20
    %v2095 = vpop.permute.xlu0 %2094
    %2096 = vrot.lane.b32.xlu0 %v1602, 20
    %v2097 = vpop.permute.xlu0 %2096
    %2098 = vrot.lane.b32.xlu0 %v1605, 20
    %v2099 = vpop.permute.xlu0 %2098
    %2100 = vrot.lane.b32.xlu0 %v1608, 20
    %v2101 = vpop.permute.xlu0 %2100
    %2102 = vrot.lane.b32.xlu0 %v1611, 20
    %v2103 = vpop.permute.xlu0 %2102
    %2104 = vrot.lane.b32.xlu0 %v1614, 20
    %v2105 = vpop.permute.xlu0 %2104
    %2106 = vrot.lane.b32.xlu0 %v1617, 20
    %v2107 = vpop.permute.xlu0 %2106
    %2108 = vrot.lane.b32.xlu0 %v1620, 20
    %v2109 = vpop.permute.xlu0 %2108
    %2110 = vrot.lane.b32.xlu0 %v1623, 20
    %v2111 = vpop.permute.xlu0 %2110
    %2112 = vrot.lane.b32.xlu0 %v1626, 20
    %v2113 = vpop.permute.xlu0 %2112
    %2114 = vrot.lane.b32.xlu0 %v2050, 20
    %v2115 = vpop.permute.xlu0 %2114
    %2116 = vrot.lane.b32.xlu0 %v2053, 20
    %v2117 = vpop.permute.xlu0 %2116
    %vm2150 = vcmask 191648
    %2151 = vst.msk [vmem:[#allocation2] sm:$0xf] %vm2150, %v2055
    %2152 = vst.msk [vmem:[#allocation2 + $0x4] sm:$0xf] %vm2150, %v2057
    %2153 = vst.msk [vmem:[#allocation2 + $0x8] sm:$0xf] %vm2150, %v2059
    %2154 = vst.msk [vmem:[#allocation2 + $0xc] sm:$0xf] %vm2150, %v2061
    %2155 = vst.msk [vmem:[#allocation2 + $0x10] sm:$0xf] %vm2150, %v2063
    %2156 = vst.msk [vmem:[#allocation2 + $0x14] sm:$0xf] %vm2150, %v2065
    %2157 = vst.msk [vmem:[#allocation2 + $0x18] sm:$0xf] %vm2150, %v2067
    %2158 = vst.msk [vmem:[#allocation2 + $0x1c] sm:$0xf] %vm2150, %v2069
    %2159 = vst.msk [vmem:[#allocation2 + $0x20] sm:$0xf] %vm2150, %v2071
    %2160 = vst.msk [vmem:[#allocation2 + $0x24] sm:$0xf] %vm2150, %v2073
    %2161 = vst.msk [vmem:[#allocation2 + $0x28] sm:$0xf] %vm2150, %v2075
    %2162 = vst.msk [vmem:[#allocation2 + $0x2c] sm:$0xf] %vm2150, %v2077
    %2163 = vst.msk [vmem:[#allocation2 + $0x30] sm:$0xf] %vm2150, %v2079
    %2164 = vst.msk [vmem:[#allocation2 + $0x34] sm:$0xf] %vm2150, %v2081
    %2165 = vst.msk [vmem:[#allocation2 + $0x38] sm:$0xf] %vm2150, %v2083
    %2166 = vst.msk [vmem:[#allocation2 + $0x3c] sm:$0xf] %vm2150, %v2085
    %2167 = vst.msk [vmem:[#allocation2 + $0x40] sm:$0xf] %vm2150, %v2087
    %2168 = vst.msk [vmem:[#allocation2 + $0x44] sm:$0xf] %vm2150, %v2089
    %2169 = vst.msk [vmem:[#allocation2 + $0x48] sm:$0xf] %vm2150, %v2091
    %2170 = vst.msk [vmem:[#allocation2 + $0x4c] sm:$0xf] %vm2150, %v2093
    %2171 = vst.msk [vmem:[#allocation2 + $0x50] sm:$0xf] %vm2150, %v2095
    %2172 = vst.msk [vmem:[#allocation2 + $0x54] sm:$0xf] %vm2150, %v2097
    %2173 = vst.msk [vmem:[#allocation2 + $0x58] sm:$0xf] %vm2150, %v2099
    %2174 = vst.msk [vmem:[#allocation2 + $0x5c] sm:$0xf] %vm2150, %v2101
    %2175 = vst.msk [vmem:[#allocation2 + $0x60] sm:$0xf] %vm2150, %v2103
    %2176 = vst.msk [vmem:[#allocation2 + $0x64] sm:$0xf] %vm2150, %v2105
    %2177 = vst.msk [vmem:[#allocation2 + $0x68] sm:$0xf] %vm2150, %v2107
    %2178 = vst.msk [vmem:[#allocation2 + $0x6c] sm:$0xf] %vm2150, %v2109
    %2179 = vst.msk [vmem:[#allocation2 + $0x70] sm:$0xf] %vm2150, %v2111
    %2180 = vst.msk [vmem:[#allocation2 + $0x74] sm:$0xf] %vm2150, %v2113
    %2181 = vst.msk [vmem:[#allocation2 + $0x78] sm:$0xf] %vm2150, %v2115
    %2182 = vst.msk [vmem:[#allocation2 + $0x7c] sm:$0xf] %vm2150, %v2117
    %v2184 = vunpack.c.l.b16 %v813
    %v2185 = vunpack.c.h.b16 %v813
    %v2186 = vpack.c.b16 %v2184, %v2184
    %v2187 = vpack.c.b16 %v2185, %v2185
    %2188 = vrot.lane.b32.xlu0 %v852, 24
    %v2189 = vpop.permute.xlu0 %2188
    %2190 = vrot.lane.b32.xlu0 %v853, 24
    %v2191 = vpop.permute.xlu0 %2190
    %2192 = vrot.lane.b32.xlu0 %v854, 24
    %v2193 = vpop.permute.xlu0 %2192
    %2194 = vrot.lane.b32.xlu0 %v855, 24
    %v2195 = vpop.permute.xlu0 %2194
    %2196 = vrot.lane.b32.xlu0 %v856, 24
    %v2197 = vpop.permute.xlu0 %2196
    %2198 = vrot.lane.b32.xlu0 %v857, 24
    %v2199 = vpop.permute.xlu0 %2198
    %2200 = vrot.lane.b32.xlu0 %v858, 24
    %v2201 = vpop.permute.xlu0 %2200
    %2202 = vrot.lane.b32.xlu0 %v859, 24
    %v2203 = vpop.permute.xlu0 %2202
    %2204 = vrot.lane.b32.xlu0 %v860, 24
    %v2205 = vpop.permute.xlu0 %2204
    %2206 = vrot.lane.b32.xlu0 %v861, 24
    %v2207 = vpop.permute.xlu0 %2206
    %2208 = vrot.lane.b32.xlu0 %v862, 24
    %v2209 = vpop.permute.xlu0 %2208
    %2210 = vrot.lane.b32.xlu0 %v863, 24
    %v2211 = vpop.permute.xlu0 %2210
    %2212 = vrot.lane.b32.xlu0 %v864, 24
    %v2213 = vpop.permute.xlu0 %2212
    %2214 = vrot.lane.b32.xlu0 %v865, 24
    %v2215 = vpop.permute.xlu0 %2214
    %2216 = vrot.lane.b32.xlu0 %v866, 24
    %v2217 = vpop.permute.xlu0 %2216
    %2218 = vrot.lane.b32.xlu0 %v867, 24
    %v2219 = vpop.permute.xlu0 %2218
    %2220 = vrot.lane.b32.xlu0 %v868, 24
    %v2221 = vpop.permute.xlu0 %2220
    %2222 = vrot.lane.b32.xlu0 %v869, 24
    %v2223 = vpop.permute.xlu0 %2222
    %2224 = vrot.lane.b32.xlu0 %v870, 24
    %v2225 = vpop.permute.xlu0 %2224
    %2226 = vrot.lane.b32.xlu0 %v871, 24
    %v2227 = vpop.permute.xlu0 %2226
    %2228 = vrot.lane.b32.xlu0 %v872, 24
    %v2229 = vpop.permute.xlu0 %2228
    %2230 = vrot.lane.b32.xlu0 %v873, 24
    %v2231 = vpop.permute.xlu0 %2230
    %2232 = vrot.lane.b32.xlu0 %v874, 24
    %v2233 = vpop.permute.xlu0 %2232
    %2234 = vrot.lane.b32.xlu0 %v875, 24
    %v2235 = vpop.permute.xlu0 %2234
    %2236 = vrot.lane.b32.xlu0 %v876, 24
    %v2237 = vpop.permute.xlu0 %2236
    %2238 = vrot.lane.b32.xlu0 %v877, 24
    %v2239 = vpop.permute.xlu0 %2238
    %2240 = vrot.lane.b32.xlu0 %v878, 24
    %v2241 = vpop.permute.xlu0 %2240
    %2242 = vrot.lane.b32.xlu0 %v879, 24
    %v2243 = vpop.permute.xlu0 %2242
    %2244 = vrot.lane.b32.xlu0 %v1758, 24
    %v2245 = vpop.permute.xlu0 %2244
    %2246 = vrot.lane.b32.xlu0 %v1759, 24
    %v2247 = vpop.permute.xlu0 %2246
    %2248 = vrot.lane.b32.xlu0 %v2186, 24
    %v2249 = vpop.permute.xlu0 %2248
    %2250 = vrot.lane.b32.xlu0 %v2187, 24
    %v2251 = vpop.permute.xlu0 %2250
    %vm2284 = vcmask 224448
    %2285 = vst.msk [vmem:[#allocation2] sm:$0xf] %vm2284, %v2189
    %2286 = vst.msk [vmem:[#allocation2 + $0x4] sm:$0xf] %vm2284, %v2191
    %2287 = vst.msk [vmem:[#allocation2 + $0x8] sm:$0xf] %vm2284, %v2193
    %2288 = vst.msk [vmem:[#allocation2 + $0xc] sm:$0xf] %vm2284, %v2195
    %2289 = vst.msk [vmem:[#allocation2 + $0x10] sm:$0xf] %vm2284, %v2197
    %2290 = vst.msk [vmem:[#allocation2 + $0x14] sm:$0xf] %vm2284, %v2199
    %2291 = vst.msk [vmem:[#allocation2 + $0x18] sm:$0xf] %vm2284, %v2201
    %2292 = vst.msk [vmem:[#allocation2 + $0x1c] sm:$0xf] %vm2284, %v2203
    %2293 = vst.msk [vmem:[#allocation2 + $0x20] sm:$0xf] %vm2284, %v2205
    %2294 = vst.msk [vmem:[#allocation2 + $0x24] sm:$0xf] %vm2284, %v2207
    %2295 = vst.msk [vmem:[#allocation2 + $0x28] sm:$0xf] %vm2284, %v2209
    %2296 = vst.msk [vmem:[#allocation2 + $0x2c] sm:$0xf] %vm2284, %v2211
    %2297 = vst.msk [vmem:[#allocation2 + $0x30] sm:$0xf] %vm2284, %v2213
    %2298 = vst.msk [vmem:[#allocation2 + $0x34] sm:$0xf] %vm2284, %v2215
    %2299 = vst.msk [vmem:[#allocation2 + $0x38] sm:$0xf] %vm2284, %v2217
    %2300 = vst.msk [vmem:[#allocation2 + $0x3c] sm:$0xf] %vm2284, %v2219
    %2301 = vst.msk [vmem:[#allocation2 + $0x40] sm:$0xf] %vm2284, %v2221
    %2302 = vst.msk [vmem:[#allocation2 + $0x44] sm:$0xf] %vm2284, %v2223
    %2303 = vst.msk [vmem:[#allocation2 + $0x48] sm:$0xf] %vm2284, %v2225
    %2304 = vst.msk [vmem:[#allocation2 + $0x4c] sm:$0xf] %vm2284, %v2227
    %2305 = vst.msk [vmem:[#allocation2 + $0x50] sm:$0xf] %vm2284, %v2229
    %2306 = vst.msk [vmem:[#allocation2 + $0x54] sm:$0xf] %vm2284, %v2231
    %2307 = vst.msk [vmem:[#allocation2 + $0x58] sm:$0xf] %vm2284, %v2233
    %2308 = vst.msk [vmem:[#allocation2 + $0x5c] sm:$0xf] %vm2284, %v2235
    %2309 = vst.msk [vmem:[#allocation2 + $0x60] sm:$0xf] %vm2284, %v2237
    %2310 = vst.msk [vmem:[#allocation2 + $0x64] sm:$0xf] %vm2284, %v2239
    %2311 = vst.msk [vmem:[#allocation2 + $0x68] sm:$0xf] %vm2284, %v2241
    %2312 = vst.msk [vmem:[#allocation2 + $0x6c] sm:$0xf] %vm2284, %v2243
    %2313 = vst.msk [vmem:[#allocation2 + $0x70] sm:$0xf] %vm2284, %v2245
    %2314 = vst.msk [vmem:[#allocation2 + $0x74] sm:$0xf] %vm2284, %v2247
    %2315 = vst.msk [vmem:[#allocation2 + $0x78] sm:$0xf] %vm2284, %v2249
    %2316 = vst.msk [vmem:[#allocation2 + $0x7c] sm:$0xf] %vm2284, %v2251
    %v2317 = vunpack.c.h.b16 %v519
    %v2318 = vpack.c.b16 %v2317, %v2317
    %v2319 = vshrl.u32 %v1893, 16
    %v2321 = vrot.slane %v2319, 4
    %v2322 = vor.u32 %v2321, %v1912
    %v2323 = vrot.slane %v2322, 4
    %v2325 = vshll.u32 %v2318, 16
    %v2327 = vrot.slane %v2325, 5
    %v2328 = vsel %vm1010, %v2323, %v2327
    %v2329 = vshrl.u32 %v2318, 16
    %v2331 = vrot.slane %v2329, 4
    %v2332 = vor.u32 %v2331, %v2327
    %v2333 = vrot.slane %v2332, 4
    %v2334 = vsel %vm1010, %v2333, %v1017
    %2335 = vrot.lane.b32.xlu0 %v1064, 28
    %v2336 = vpop.permute.xlu0 %2335
    %2337 = vrot.lane.b32.xlu0 %v1074, 28
    %v2338 = vpop.permute.xlu0 %2337
    %2339 = vrot.lane.b32.xlu0 %v1084, 28
    %v2340 = vpop.permute.xlu0 %2339
    %2341 = vrot.lane.b32.xlu0 %v1094, 28
    %v2342 = vpop.permute.xlu0 %2341
    %2343 = vrot.lane.b32.xlu0 %v1104, 28
    %v2344 = vpop.permute.xlu0 %2343
    %2345 = vrot.lane.b32.xlu0 %v1114, 28
    %v2346 = vpop.permute.xlu0 %2345
    %2347 = vrot.lane.b32.xlu0 %v1124, 28
    %v2348 = vpop.permute.xlu0 %2347
    %2349 = vrot.lane.b32.xlu0 %v1134, 28
    %v2350 = vpop.permute.xlu0 %2349
    %2351 = vrot.lane.b32.xlu0 %v1144, 28
    %v2352 = vpop.permute.xlu0 %2351
    %2353 = vrot.lane.b32.xlu0 %v1154, 28
    %v2354 = vpop.permute.xlu0 %2353
    %2355 = vrot.lane.b32.xlu0 %v1164, 28
    %v2356 = vpop.permute.xlu0 %2355
    %2357 = vrot.lane.b32.xlu0 %v1174, 28
    %v2358 = vpop.permute.xlu0 %2357
    %2359 = vrot.lane.b32.xlu0 %v1184, 28
    %v2360 = vpop.permute.xlu0 %2359
    %2361 = vrot.lane.b32.xlu0 %v1194, 28
    %v2362 = vpop.permute.xlu0 %2361
    %2363 = vrot.lane.b32.xlu0 %v1204, 28
    %v2364 = vpop.permute.xlu0 %2363
    %2365 = vrot.lane.b32.xlu0 %v1214, 28
    %v2366 = vpop.permute.xlu0 %2365
    %2367 = vrot.lane.b32.xlu0 %v1224, 28
    %v2368 = vpop.permute.xlu0 %2367
    %2369 = vrot.lane.b32.xlu0 %v1234, 28
    %v2370 = vpop.permute.xlu0 %2369
    %2371 = vrot.lane.b32.xlu0 %v1244, 28
    %v2372 = vpop.permute.xlu0 %2371
    %2373 = vrot.lane.b32.xlu0 %v1254, 28
    %v2374 = vpop.permute.xlu0 %2373
    %2375 = vrot.lane.b32.xlu0 %v1264, 28
    %v2376 = vpop.permute.xlu0 %2375
    %2377 = vrot.lane.b32.xlu0 %v1274, 28
    %v2378 = vpop.permute.xlu0 %2377
    %2379 = vrot.lane.b32.xlu0 %v1284, 28
    %v2380 = vpop.permute.xlu0 %2379
    %2381 = vrot.lane.b32.xlu0 %v1294, 28
    %v2382 = vpop.permute.xlu0 %2381
    %2383 = vrot.lane.b32.xlu0 %v1304, 28
    %v2384 = vpop.permute.xlu0 %2383
    %2385 = vrot.lane.b32.xlu0 %v1314, 28
    %v2386 = vpop.permute.xlu0 %2385
    %2387 = vrot.lane.b32.xlu0 %v1324, 28
    %v2388 = vpop.permute.xlu0 %2387
    %2389 = vrot.lane.b32.xlu0 %v1334, 28
    %v2390 = vpop.permute.xlu0 %2389
    %2391 = vrot.lane.b32.xlu0 %v1903, 28
    %v2392 = vpop.permute.xlu0 %2391
    %2393 = vrot.lane.b32.xlu0 %v1913, 28
    %v2394 = vpop.permute.xlu0 %2393
    %2395 = vrot.lane.b32.xlu0 %v2328, 28
    %v2396 = vpop.permute.xlu0 %2395
    %2397 = vrot.lane.b32.xlu0 %v2334, 28
    %v2398 = vpop.permute.xlu0 %2397
    %vm2431 = vcmask 257248
    %2432 = vst.msk [vmem:[#allocation2] sm:$0xf] %vm2431, %v2336
    %2433 = vst.msk [vmem:[#allocation2 + $0x4] sm:$0xf] %vm2431, %v2338
    %2434 = vst.msk [vmem:[#allocation2 + $0x8] sm:$0xf] %vm2431, %v2340
    %2435 = vst.msk [vmem:[#allocation2 + $0xc] sm:$0xf] %vm2431, %v2342
    %2436 = vst.msk [vmem:[#allocation2 + $0x10] sm:$0xf] %vm2431, %v2344
    %2437 = vst.msk [vmem:[#allocation2 + $0x14] sm:$0xf] %vm2431, %v2346
    %2438 = vst.msk [vmem:[#allocation2 + $0x18] sm:$0xf] %vm2431, %v2348
    %2439 = vst.msk [vmem:[#allocation2 + $0x1c] sm:$0xf] %vm2431, %v2350
    %2440 = vst.msk [vmem:[#allocation2 + $0x20] sm:$0xf] %vm2431, %v2352
    %2441 = vst.msk [vmem:[#allocation2 + $0x24] sm:$0xf] %vm2431, %v2354
    %2442 = vst.msk [vmem:[#allocation2 + $0x28] sm:$0xf] %vm2431, %v2356
    %2443 = vst.msk [vmem:[#allocation2 + $0x2c] sm:$0xf] %vm2431, %v2358
    %2444 = vst.msk [vmem:[#allocation2 + $0x30] sm:$0xf] %vm2431, %v2360
    %2445 = vst.msk [vmem:[#allocation2 + $0x34] sm:$0xf] %vm2431, %v2362
    %2446 = vst.msk [vmem:[#allocation2 + $0x38] sm:$0xf] %vm2431, %v2364
    %2447 = vst.msk [vmem:[#allocation2 + $0x3c] sm:$0xf] %vm2431, %v2366
    %2448 = vst.msk [vmem:[#allocation2 + $0x40] sm:$0xf] %vm2431, %v2368
    %2449 = vst.msk [vmem:[#allocation2 + $0x44] sm:$0xf] %vm2431, %v2370
    %2450 = vst.msk [vmem:[#allocation2 + $0x48] sm:$0xf] %vm2431, %v2372
    %2451 = vst.msk [vmem:[#allocation2 + $0x4c] sm:$0xf] %vm2431, %v2374
    %2452 = vst.msk [vmem:[#allocation2 + $0x50] sm:$0xf] %vm2431, %v2376
    %2453 = vst.msk [vmem:[#allocation2 + $0x54] sm:$0xf] %vm2431, %v2378
    %2454 = vst.msk [vmem:[#allocation2 + $0x58] sm:$0xf] %vm2431, %v2380
    %2455 = vst.msk [vmem:[#allocation2 + $0x5c] sm:$0xf] %vm2431, %v2382
    %2456 = vst.msk [vmem:[#allocation2 + $0x60] sm:$0xf] %vm2431, %v2384
    %2457 = vst.msk [vmem:[#allocation2 + $0x64] sm:$0xf] %vm2431, %v2386
    %2458 = vst.msk [vmem:[#allocation2 + $0x68] sm:$0xf] %vm2431, %v2388
    %2459 = vst.msk [vmem:[#allocation2 + $0x6c] sm:$0xf] %vm2431, %v2390
    %2460 = vst.msk [vmem:[#allocation2 + $0x70] sm:$0xf] %vm2431, %v2392
    %2461 = vst.msk [vmem:[#allocation2 + $0x74] sm:$0xf] %vm2431, %v2394
    %2462 = vst.msk [vmem:[#allocation2 + $0x78] sm:$0xf] %vm2431, %v2396
    %2463 = vst.msk [vmem:[#allocation2 + $0x7c] sm:$0xf] %vm2431, %v2398
    %v2464 = vunpack.c.h.b16 %v666
    %v2465 = vpack.c.b16 %v2464, %v2464
    %v2466 = vrot.slane %v2052, 4
    %v2467 = vrot.slane %v2465, 5
    %v2468 = vsel %vm1529, %v2466, %v2467
    %v2469 = vrot.slane %v2467, 4
    %v2470 = vsel %vm1529, %v2469, %v1530
    %2471 = vrot.lane.b32.xlu0 %v1545, 32
    %v2472 = vpop.permute.xlu0 %2471
    %2473 = vrot.lane.b32.xlu0 %v1548, 32
    %v2474 = vpop.permute.xlu0 %2473
    %2475 = vrot.lane.b32.xlu0 %v1551, 32
    %v2476 = vpop.permute.xlu0 %2475
    %2477 = vrot.lane.b32.xlu0 %v1554, 32
    %v2478 = vpop.permute.xlu0 %2477
    %2479 = vrot.lane.b32.xlu0 %v1557, 32
    %v2480 = vpop.permute.xlu0 %2479
    %2481 = vrot.lane.b32.xlu0 %v1560, 32
    %v2482 = vpop.permute.xlu0 %2481
    %2483 = vrot.lane.b32.xlu0 %v1563, 32
    %v2484 = vpop.permute.xlu0 %2483
    %2485 = vrot.lane.b32.xlu0 %v1566, 32
    %v2486 = vpop.permute.xlu0 %2485
    %2487 = vrot.lane.b32.xlu0 %v1569, 32
    %v2488 = vpop.permute.xlu0 %2487
    %2489 = vrot.lane.b32.xlu0 %v1572, 32
    %v2490 = vpop.permute.xlu0 %2489
    %2491 = vrot.lane.b32.xlu0 %v1575, 32
    %v2492 = vpop.permute.xlu0 %2491
    %2493 = vrot.lane.b32.xlu0 %v1578, 32
    %v2494 = vpop.permute.xlu0 %2493
    %2495 = vrot.lane.b32.xlu0 %v1581, 32
    %v2496 = vpop.permute.xlu0 %2495
    %2497 = vrot.lane.b32.xlu0 %v1584, 32
    %v2498 = vpop.permute.xlu0 %2497
    %2499 = vrot.lane.b32.xlu0 %v1587, 32
    %v2500 = vpop.permute.xlu0 %2499
    %2501 = vrot.lane.b32.xlu0 %v1590, 32
    %v2502 = vpop.permute.xlu0 %2501
    %2503 = vrot.lane.b32.xlu0 %v1593, 32
    %v2504 = vpop.permute.xlu0 %2503
    %2505 = vrot.lane.b32.xlu0 %v1596, 32
    %v2506 = vpop.permute.xlu0 %2505
    %2507 = vrot.lane.b32.xlu0 %v1599, 32
    %v2508 = vpop.permute.xlu0 %2507
    %2509 = vrot.lane.b32.xlu0 %v1602, 32
    %v2510 = vpop.permute.xlu0 %2509
    %2511 = vrot.lane.b32.xlu0 %v1605, 32
    %v2512 = vpop.permute.xlu0 %2511
    %2513 = vrot.lane.b32.xlu0 %v1608, 32
    %v2514 = vpop.permute.xlu0 %2513
    %2515 = vrot.lane.b32.xlu0 %v1611, 32
    %v2516 = vpop.permute.xlu0 %2515
    %2517 = vrot.lane.b32.xlu0 %v1614, 32
    %v2518 = vpop.permute.xlu0 %2517
    %2519 = vrot.lane.b32.xlu0 %v1617, 32
    %v2520 = vpop.permute.xlu0 %2519
    %2521 = vrot.lane.b32.xlu0 %v1620, 32
    %v2522 = vpop.permute.xlu0 %2521
    %2523 = vrot.lane.b32.xlu0 %v1623, 32
    %v2524 = vpop.permute.xlu0 %2523
    %2525 = vrot.lane.b32.xlu0 %v1626, 32
    %v2526 = vpop.permute.xlu0 %2525
    %2527 = vrot.lane.b32.xlu0 %v2050, 32
    %v2528 = vpop.permute.xlu0 %2527
    %2529 = vrot.lane.b32.xlu0 %v2053, 32
    %v2530 = vpop.permute.xlu0 %2529
    %2531 = vrot.lane.b32.xlu0 %v2468, 32
    %v2532 = vpop.permute.xlu0 %2531
    %2533 = vrot.lane.b32.xlu0 %v2470, 32
    %v2534 = vpop.permute.xlu0 %2533
    %vm2567 = vcmask 290048
    %2568 = vst.msk [vmem:[#allocation2] sm:$0xf] %vm2567, %v2472
    %2569 = vst.msk [vmem:[#allocation2 + $0x4] sm:$0xf] %vm2567, %v2474
    %2570 = vst.msk [vmem:[#allocation2 + $0x8] sm:$0xf] %vm2567, %v2476
    %2571 = vst.msk [vmem:[#allocation2 + $0xc] sm:$0xf] %vm2567, %v2478
    %2572 = vst.msk [vmem:[#allocation2 + $0x10] sm:$0xf] %vm2567, %v2480
    %2573 = vst.msk [vmem:[#allocation2 + $0x14] sm:$0xf] %vm2567, %v2482
    %2574 = vst.msk [vmem:[#allocation2 + $0x18] sm:$0xf] %vm2567, %v2484
    %2575 = vst.msk [vmem:[#allocation2 + $0x1c] sm:$0xf] %vm2567, %v2486
    %2576 = vst.msk [vmem:[#allocation2 + $0x20] sm:$0xf] %vm2567, %v2488
    %2577 = vst.msk [vmem:[#allocation2 + $0x24] sm:$0xf] %vm2567, %v2490
    %2578 = vst.msk [vmem:[#allocation2 + $0x28] sm:$0xf] %vm2567, %v2492
    %2579 = vst.msk [vmem:[#allocation2 + $0x2c] sm:$0xf] %vm2567, %v2494
    %2580 = vst.msk [vmem:[#allocation2 + $0x30] sm:$0xf] %vm2567, %v2496
    %2581 = vst.msk [vmem:[#allocation2 + $0x34] sm:$0xf] %vm2567, %v2498
    %2582 = vst.msk [vmem:[#allocation2 + $0x38] sm:$0xf] %vm2567, %v2500
    %2583 = vst.msk [vmem:[#allocation2 + $0x3c] sm:$0xf] %vm2567, %v2502
    %2584 = vst.msk [vmem:[#allocation2 + $0x40] sm:$0xf] %vm2567, %v2504
    %2585 = vst.msk [vmem:[#allocation2 + $0x44] sm:$0xf] %vm2567, %v2506
    %2586 = vst.msk [vmem:[#allocation2 + $0x48] sm:$0xf] %vm2567, %v2508
    %2587 = vst.msk [vmem:[#allocation2 + $0x4c] sm:$0xf] %vm2567, %v2510
    %2588 = vst.msk [vmem:[#allocation2 + $0x50] sm:$0xf] %vm2567, %v2512
    %2589 = vst.msk [vmem:[#allocation2 + $0x54] sm:$0xf] %vm2567, %v2514
    %2590 = vst.msk [vmem:[#allocation2 + $0x58] sm:$0xf] %vm2567, %v2516
    %2591 = vst.msk [vmem:[#allocation2 + $0x5c] sm:$0xf] %vm2567, %v2518
    %2592 = vst.msk [vmem:[#allocation2 + $0x60] sm:$0xf] %vm2567, %v2520
    %2593 = vst.msk [vmem:[#allocation2 + $0x64] sm:$0xf] %vm2567, %v2522
    %2594 = vst.msk [vmem:[#allocation2 + $0x68] sm:$0xf] %vm2567, %v2524
    %2595 = vst.msk [vmem:[#allocation2 + $0x6c] sm:$0xf] %vm2567, %v2526
    %2596 = vst.msk [vmem:[#allocation2 + $0x70] sm:$0xf] %vm2567, %v2528
    %2597 = vst.msk [vmem:[#allocation2 + $0x74] sm:$0xf] %vm2567, %v2530
    %2598 = vst.msk [vmem:[#allocation2 + $0x78] sm:$0xf] %vm2567, %v2532
    %2599 = vst.msk [vmem:[#allocation2 + $0x7c] sm:$0xf] %vm2567, %v2534
    %v2600 = vpack.c.bf16 %v50, %v49
    %v2601 = vpack.c.bf16 %v52, %v51
    %v2602 = vpack.c.bf16 %v54, %v53
    %v2603 = vpack.c.bf16 %v56, %v55
    %v2604 = vpack.c.bf16 %v58, %v57
    %v2605 = vpack.c.bf16 %v60, %v59
    %v2606 = vpack.c.bf16 %v62, %v61
    %v2607 = vpack.c.bf16 %v64, %v63
    %v2608 = vpack.c.bf16 %v66, %v65
    %v2609 = vpack.c.bf16 %v68, %v67
    %v2610 = vpack.c.bf16 %v70, %v69
    %v2611 = vpack.c.bf16 %v72, %v71
    %v2612 = vpack.c.bf16 %v74, %v73
    %v2613 = vpack.c.bf16 %v76, %v75
    %v2614 = vpack.c.bf16 %v78, %v77
    %v2615 = vpack.c.bf16 %v80, %v79
    %v2617 = vshrl.u32 %v2600, 16
    %v2619 = vrot.slane %v2617, 7
    %v2620 = vshll.u32 %v2600, 16
    %v2622 = vor.u32 %v2619, %v2620
    %v2624 = vshrl.u32 %v2601, 16
    %v2626 = vrot.slane %v2624, 7
    %v2627 = vshll.u32 %v2601, 16
    %v2629 = vor.u32 %v2626, %v2627
    %v2630 = vsel %vm386, %v2619, %v2629
    %v2632 = vshrl.u32 %v2602, 16
    %v2634 = vrot.slane %v2632, 7
    %v2635 = vshll.u32 %v2602, 16
    %v2637 = vor.u32 %v2634, %v2635
    %v2638 = vsel %vm386, %v2626, %v2637
    %v2640 = vshrl.u32 %v2603, 16
    %v2642 = vrot.slane %v2640, 7
    %v2643 = vshll.u32 %v2603, 16
    %v2645 = vor.u32 %v2642, %v2643
    %v2646 = vsel %vm386, %v2634, %v2645
    %v2648 = vshrl.u32 %v2604, 16
    %v2650 = vrot.slane %v2648, 7
    %v2651 = vshll.u32 %v2604, 16
    %v2653 = vor.u32 %v2650, %v2651
    %v2654 = vsel %vm386, %v2642, %v2653
    %v2656 = vshrl.u32 %v2605, 16
    %v2658 = vrot.slane %v2656, 7
    %v2659 = vshll.u32 %v2605, 16
    %v2661 = vor.u32 %v2658, %v2659
    %v2662 = vsel %vm386, %v2650, %v2661
    %v2664 = vshrl.u32 %v2606, 16
    %v2666 = vrot.slane %v2664, 7
    %v2667 = vshll.u32 %v2606, 16
    %v2669 = vor.u32 %v2666, %v2667
    %v2670 = vsel %vm386, %v2658, %v2669
    %v2672 = vshrl.u32 %v2607, 16
    %v2674 = vrot.slane %v2672, 7
    %v2675 = vshll.u32 %v2607, 16
    %v2677 = vor.u32 %v2674, %v2675
    %v2678 = vsel %vm386, %v2666, %v2677
    %v2680 = vshrl.u32 %v2608, 16
    %v2682 = vrot.slane %v2680, 7
    %v2683 = vshll.u32 %v2608, 16
    %v2685 = vor.u32 %v2682, %v2683
    %v2686 = vsel %vm386, %v2674, %v2685
    %v2688 = vshrl.u32 %v2609, 16
    %v2690 = vrot.slane %v2688, 7
    %v2691 = vshll.u32 %v2609, 16
    %v2693 = vor.u32 %v2690, %v2691
    %v2694 = vsel %vm386, %v2682, %v2693
    %v2696 = vshrl.u32 %v2610, 16
    %v2698 = vrot.slane %v2696, 7
    %v2699 = vshll.u32 %v2610, 16
    %v2701 = vor.u32 %v2698, %v2699
    %v2702 = vsel %vm386, %v2690, %v2701
    %v2704 = vshrl.u32 %v2611, 16
    %v2706 = vrot.slane %v2704, 7
    %v2707 = vshll.u32 %v2611, 16
    %v2709 = vor.u32 %v2706, %v2707
    %v2710 = vsel %vm386, %v2698, %v2709
    %v2712 = vshrl.u32 %v2612, 16
    %v2714 = vrot.slane %v2712, 7
    %v2715 = vshll.u32 %v2612, 16
    %v2717 = vor.u32 %v2714, %v2715
    %v2718 = vsel %vm386, %v2706, %v2717
    %v2720 = vshrl.u32 %v2613, 16
    %v2722 = vrot.slane %v2720, 7
    %v2723 = vshll.u32 %v2613, 16
    %v2725 = vor.u32 %v2722, %v2723
    %v2726 = vsel %vm386, %v2714, %v2725
    %v2728 = vshrl.u32 %v2614, 16
    %v2730 = vrot.slane %v2728, 7
    %v2731 = vshll.u32 %v2614, 16
    %v2733 = vor.u32 %v2730, %v2731
    %v2734 = vsel %vm386, %v2722, %v2733
    %v2736 = vshrl.u32 %v2615, 16
    %v2738 = vrot.slane %v2736, 7
    %v2739 = vshll.u32 %v2615, 16
    %v2741 = vor.u32 %v2738, %v2739
    %v2742 = vsel %vm386, %v2730, %v2741
    %v2745 = vsel %vm517, 0, %v2622
    %v2746 = vsel %vm517, %v2738, 0
    %v2747 = vmul.bf16 %v2600, %v242
    %v2748 = vmul.bf16 %v2601, %v243
    %v2749 = vmul.bf16 %v2602, %v244
    %v2750 = vmul.bf16 %v2603, %v245
    %v2751 = vmul.bf16 %v2604, %v246
    %v2752 = vmul.bf16 %v2605, %v247
    %v2753 = vmul.bf16 %v2606, %v248
    %v2754 = vmul.bf16 %v2607, %v249
    %v2755 = vmul.bf16 %v2608, %v250
    %v2756 = vmul.bf16 %v2609, %v251
    %v2757 = vmul.bf16 %v2610, %v252
    %v2758 = vmul.bf16 %v2611, %v253
    %v2759 = vmul.bf16 %v2612, %v254
    %v2760 = vmul.bf16 %v2613, %v255
    %v2761 = vmul.bf16 %v2614, %v256
    %v2762 = vmul.bf16 %v2615, %v257
    %v2764 = vshrl.u32 %v2747, 16
    %v2766 = vrot.slane %v2764, 7
    %v2767 = vshll.u32 %v2747, 16
    %v2769 = vor.u32 %v2766, %v2767
    %v2771 = vshrl.u32 %v2748, 16
    %v2773 = vrot.slane %v2771, 7
    %v2774 = vshll.u32 %v2748, 16
    %v2776 = vor.u32 %v2773, %v2774
    %v2777 = vsel %vm386, %v2766, %v2776
    %v2779 = vshrl.u32 %v2749, 16
    %v2781 = vrot.slane %v2779, 7
    %v2782 = vshll.u32 %v2749, 16
    %v2784 = vor.u32 %v2781, %v2782
    %v2785 = vsel %vm386, %v2773, %v2784
    %v2787 = vshrl.u32 %v2750, 16
    %v2789 = vrot.slane %v2787, 7
    %v2790 = vshll.u32 %v2750, 16
    %v2792 = vor.u32 %v2789, %v2790
    %v2793 = vsel %vm386, %v2781, %v2792
    %v2795 = vshrl.u32 %v2751, 16
    %v2797 = vrot.slane %v2795, 7
    %v2798 = vshll.u32 %v2751, 16
    %v2800 = vor.u32 %v2797, %v2798
    %v2801 = vsel %vm386, %v2789, %v2800
    %v2803 = vshrl.u32 %v2752, 16
    %v2805 = vrot.slane %v2803, 7
    %v2806 = vshll.u32 %v2752, 16
    %v2808 = vor.u32 %v2805, %v2806
    %v2809 = vsel %vm386, %v2797, %v2808
    %v2811 = vshrl.u32 %v2753, 16
    %v2813 = vrot.slane %v2811, 7
    %v2814 = vshll.u32 %v2753, 16
    %v2816 = vor.u32 %v2813, %v2814
    %v2817 = vsel %vm386, %v2805, %v2816
    %v2819 = vshrl.u32 %v2754, 16
    %v2821 = vrot.slane %v2819, 7
    %v2822 = vshll.u32 %v2754, 16
    %v2824 = vor.u32 %v2821, %v2822
    %v2825 = vsel %vm386, %v2813, %v2824
    %v2827 = vshrl.u32 %v2755, 16
    %v2829 = vrot.slane %v2827, 7
    %v2830 = vshll.u32 %v2755, 16
    %v2832 = vor.u32 %v2829, %v2830
    %v2833 = vsel %vm386, %v2821, %v2832
    %v2835 = vshrl.u32 %v2756, 16
    %v2837 = vrot.slane %v2835, 7
    %v2838 = vshll.u32 %v2756, 16
    %v2840 = vor.u32 %v2837, %v2838
    %v2841 = vsel %vm386, %v2829, %v2840
    %v2843 = vshrl.u32 %v2757, 16
    %v2845 = vrot.slane %v2843, 7
    %v2846 = vshll.u32 %v2757, 16
    %v2848 = vor.u32 %v2845, %v2846
    %v2849 = vsel %vm386, %v2837, %v2848
    %v2851 = vshrl.u32 %v2758, 16
    %v2853 = vrot.slane %v2851, 7
    %v2854 = vshll.u32 %v2758, 16
    %v2856 = vor.u32 %v2853, %v2854
    %v2857 = vsel %vm386, %v2845, %v2856
    %v2859 = vshrl.u32 %v2759, 16
    %v2861 = vrot.slane %v2859, 7
    %v2862 = vshll.u32 %v2759, 16
    %v2864 = vor.u32 %v2861, %v2862
    %v2865 = vsel %vm386, %v2853, %v2864
    %v2867 = vshrl.u32 %v2760, 16
    %v2869 = vrot.slane %v2867, 7
    %v2870 = vshll.u32 %v2760, 16
    %v2872 = vor.u32 %v2869, %v2870
    %v2873 = vsel %vm386, %v2861, %v2872
    %v2875 = vshrl.u32 %v2761, 16
    %v2877 = vrot.slane %v2875, 7
    %v2878 = vshll.u32 %v2761, 16
    %v2880 = vor.u32 %v2877, %v2878
    %v2881 = vsel %vm386, %v2869, %v2880
    %v2883 = vshrl.u32 %v2762, 16
    %v2885 = vrot.slane %v2883, 7
    %v2886 = vshll.u32 %v2762, 16
    %v2888 = vor.u32 %v2885, %v2886
    %v2889 = vsel %vm386, %v2877, %v2888
    %v2892 = vsel %vm517, 0, %v2769
    %v2893 = vsel %vm517, %v2885, 0
    %v2894 = vmul.bf16 %v2600, %v354
    %v2895 = vmul.bf16 %v2601, %v355
    %v2896 = vmul.bf16 %v2602, %v356
    %v2897 = vmul.bf16 %v2603, %v357
    %v2898 = vmul.bf16 %v2604, %v358
    %v2899 = vmul.bf16 %v2605, %v359
    %v2900 = vmul.bf16 %v2606, %v360
    %v2901 = vmul.bf16 %v2607, %v361
    %v2902 = vmul.bf16 %v2608, %v362
    %v2903 = vmul.bf16 %v2609, %v363
    %v2904 = vmul.bf16 %v2610, %v364
    %v2905 = vmul.bf16 %v2611, %v365
    %v2906 = vmul.bf16 %v2612, %v366
    %v2907 = vmul.bf16 %v2613, %v367
    %v2908 = vmul.bf16 %v2614, %v368
    %v2909 = vmul.bf16 %v2615, %v369
    %v2911 = vshrl.u32 %v2894, 16
    %v2913 = vrot.slane %v2911, 7
    %v2914 = vshll.u32 %v2894, 16
    %v2916 = vor.u32 %v2913, %v2914
    %v2918 = vshrl.u32 %v2895, 16
    %v2920 = vrot.slane %v2918, 7
    %v2921 = vshll.u32 %v2895, 16
    %v2923 = vor.u32 %v2920, %v2921
    %v2924 = vsel %vm386, %v2913, %v2923
    %v2926 = vshrl.u32 %v2896, 16
    %v2928 = vrot.slane %v2926, 7
    %v2929 = vshll.u32 %v2896, 16
    %v2931 = vor.u32 %v2928, %v2929
    %v2932 = vsel %vm386, %v2920, %v2931
    %v2934 = vshrl.u32 %v2897, 16
    %v2936 = vrot.slane %v2934, 7
    %v2937 = vshll.u32 %v2897, 16
    %v2939 = vor.u32 %v2936, %v2937
    %v2940 = vsel %vm386, %v2928, %v2939
    %v2942 = vshrl.u32 %v2898, 16
    %v2944 = vrot.slane %v2942, 7
    %v2945 = vshll.u32 %v2898, 16
    %v2947 = vor.u32 %v2944, %v2945
    %v2948 = vsel %vm386, %v2936, %v2947
    %v2950 = vshrl.u32 %v2899, 16
    %v2952 = vrot.slane %v2950, 7
    %v2953 = vshll.u32 %v2899, 16
    %v2955 = vor.u32 %v2952, %v2953
    %v2956 = vsel %vm386, %v2944, %v2955
    %v2958 = vshrl.u32 %v2900, 16
    %v2960 = vrot.slane %v2958, 7
    %v2961 = vshll.u32 %v2900, 16
    %v2963 = vor.u32 %v2960, %v2961
    %v2964 = vsel %vm386, %v2952, %v2963
    %v2966 = vshrl.u32 %v2901, 16
    %v2968 = vrot.slane %v2966, 7
    %v2969 = vshll.u32 %v2901, 16
    %v2971 = vor.u32 %v2968, %v2969
    %v2972 = vsel %vm386, %v2960, %v2971
    %v2974 = vshrl.u32 %v2902, 16
    %v2976 = vrot.slane %v2974, 7
    %v2977 = vshll.u32 %v2902, 16
    %v2979 = vor.u32 %v2976, %v2977
    %v2980 = vsel %vm386, %v2968, %v2979
    %v2982 = vshrl.u32 %v2903, 16
    %v2984 = vrot.slane %v2982, 7
    %v2985 = vshll.u32 %v2903, 16
    %v2987 = vor.u32 %v2984, %v2985
    %v2988 = vsel %vm386, %v2976, %v2987
    %v2990 = vshrl.u32 %v2904, 16
    %v2992 = vrot.slane %v2990, 7
    %v2993 = vshll.u32 %v2904, 16
    %v2995 = vor.u32 %v2992, %v2993
    %v2996 = vsel %vm386, %v2984, %v2995
    %v2998 = vshrl.u32 %v2905, 16
    %v3000 = vrot.slane %v2998, 7
    %v3001 = vshll.u32 %v2905, 16
    %v3003 = vor.u32 %v3000, %v3001
    %v3004 = vsel %vm386, %v2992, %v3003
    %v3006 = vshrl.u32 %v2906, 16
    %v3008 = vrot.slane %v3006, 7
    %v3009 = vshll.u32 %v2906, 16
    %v3011 = vor.u32 %v3008, %v3009
    %v3012 = vsel %vm386, %v3000, %v3011
    %v3014 = vshrl.u32 %v2907, 16
    %v3016 = vrot.slane %v3014, 7
    %v3017 = vshll.u32 %v2907, 16
    %v3019 = vor.u32 %v3016, %v3017
    %v3020 = vsel %vm386, %v3008, %v3019
    %v3022 = vshrl.u32 %v2908, 16
    %v3024 = vrot.slane %v3022, 7
    %v3025 = vshll.u32 %v2908, 16
    %v3027 = vor.u32 %v3024, %v3025
    %v3028 = vsel %vm386, %v3016, %v3027
    %v3030 = vshrl.u32 %v2909, 16
    %v3032 = vrot.slane %v3030, 7
    %v3033 = vshll.u32 %v2909, 16
    %v3035 = vor.u32 %v3032, %v3033
    %v3036 = vsel %vm386, %v3024, %v3035
    %v3039 = vsel %vm517, 0, %v2916
    %v3040 = vsel %vm517, %v3032, 0
    %v3042 = vunpack.c.l.b16 %v3039
    %v3043 = vunpack.c.h.b16 %v3039
    %v3044 = vunpack.c.l.b16 %v2924
    %v3045 = vunpack.c.h.b16 %v2924
    %v3046 = vunpack.c.l.b16 %v2932
    %v3047 = vunpack.c.h.b16 %v2932
    %v3048 = vunpack.c.l.b16 %v2940
    %v3049 = vunpack.c.h.b16 %v2940
    %v3050 = vunpack.c.l.b16 %v2948
    %v3051 = vunpack.c.h.b16 %v2948
    %v3052 = vunpack.c.l.b16 %v2956
    %v3053 = vunpack.c.h.b16 %v2956
    %v3054 = vunpack.c.l.b16 %v2964
    %v3055 = vunpack.c.h.b16 %v2964
    %v3056 = vunpack.c.l.b16 %v2972
    %v3057 = vunpack.c.h.b16 %v2972
    %v3058 = vunpack.c.l.b16 %v2980
    %v3059 = vunpack.c.h.b16 %v2980
    %v3060 = vunpack.c.l.b16 %v2988
    %v3061 = vunpack.c.h.b16 %v2988
    %v3062 = vunpack.c.l.b16 %v2996
    %v3063 = vunpack.c.h.b16 %v2996
    %v3064 = vunpack.c.l.b16 %v3004
    %v3065 = vunpack.c.h.b16 %v3004
    %v3066 = vunpack.c.l.b16 %v3012
    %v3067 = vunpack.c.h.b16 %v3012
    %v3068 = vunpack.c.l.b16 %v3020
    %v3069 = vunpack.c.h.b16 %v3020
    %v3070 = vunpack.c.l.b16 %v3028
    %v3071 = vunpack.c.h.b16 %v3028
    %v3072 = vpack.c.b16 %v3042, %v3042
    %v3073 = vpack.c.b16 %v3043, %v3043
    %v3074 = vpack.c.b16 %v3044, %v3044
    %v3075 = vpack.c.b16 %v3045, %v3045
    %v3076 = vpack.c.b16 %v3046, %v3046
    %v3077 = vpack.c.b16 %v3047, %v3047
    %v3078 = vpack.c.b16 %v3048, %v3048
    %v3079 = vpack.c.b16 %v3049, %v3049
    %v3080 = vpack.c.b16 %v3050, %v3050
    %v3081 = vpack.c.b16 %v3051, %v3051
    %v3082 = vpack.c.b16 %v3052, %v3052
    %v3083 = vpack.c.b16 %v3053, %v3053
    %v3084 = vpack.c.b16 %v3054, %v3054
    %v3085 = vpack.c.b16 %v3055, %v3055
    %v3086 = vpack.c.b16 %v3056, %v3056
    %v3087 = vpack.c.b16 %v3057, %v3057
    %v3088 = vpack.c.b16 %v3058, %v3058
    %v3089 = vpack.c.b16 %v3059, %v3059
    %v3090 = vpack.c.b16 %v3060, %v3060
    %v3091 = vpack.c.b16 %v3061, %v3061
    %v3092 = vpack.c.b16 %v3062, %v3062
    %v3093 = vpack.c.b16 %v3063, %v3063
    %v3094 = vpack.c.b16 %v3064, %v3064
    %v3095 = vpack.c.b16 %v3065, %v3065
    %v3096 = vpack.c.b16 %v3066, %v3066
    %v3097 = vpack.c.b16 %v3067, %v3067
    %v3098 = vpack.c.b16 %v3068, %v3068
    %v3099 = vpack.c.b16 %v3069, %v3069
    %v3100 = vpack.c.b16 %v3070, %v3070
    %v3101 = vpack.c.b16 %v3071, %v3071
    %3132 = vst.msk [vmem:[#allocation2 + $0x80] sm:$0xf] %vm912, %v848
    %3133 = vst.msk [vmem:[#allocation2 + $0x84] sm:$0xf] %vm912, %v849
    %3134 = vst.msk [vmem:[#allocation2 + $0x88] sm:$0xf] %vm912, %v3072
    %3135 = vst.msk [vmem:[#allocation2 + $0x8c] sm:$0xf] %vm912, %v3073
    %3136 = vst.msk [vmem:[#allocation2 + $0x90] sm:$0xf] %vm912, %v3074
    %3137 = vst.msk [vmem:[#allocation2 + $0x94] sm:$0xf] %vm912, %v3075
    %3138 = vst.msk [vmem:[#allocation2 + $0x98] sm:$0xf] %vm912, %v3076
    %3139 = vst.msk [vmem:[#allocation2 + $0x9c] sm:$0xf] %vm912, %v3077
    %3140 = vst.msk [vmem:[#allocation2 + $0xa0] sm:$0xf] %vm912, %v3078
    %3141 = vst.msk [vmem:[#allocation2 + $0xa4] sm:$0xf] %vm912, %v3079
    %3142 = vst.msk [vmem:[#allocation2 + $0xa8] sm:$0xf] %vm912, %v3080
    %3143 = vst.msk [vmem:[#allocation2 + $0xac] sm:$0xf] %vm912, %v3081
    %3144 = vst.msk [vmem:[#allocation2 + $0xb0] sm:$0xf] %vm912, %v3082
    %3145 = vst.msk [vmem:[#allocation2 + $0xb4] sm:$0xf] %vm912, %v3083
    %3146 = vst.msk [vmem:[#allocation2 + $0xb8] sm:$0xf] %vm912, %v3084
    %3147 = vst.msk [vmem:[#allocation2 + $0xbc] sm:$0xf] %vm912, %v3085
    %3148 = vst.msk [vmem:[#allocation2 + $0xc0] sm:$0xf] %vm912, %v3086
    %3149 = vst.msk [vmem:[#allocation2 + $0xc4] sm:$0xf] %vm912, %v3087
    %3150 = vst.msk [vmem:[#allocation2 + $0xc8] sm:$0xf] %vm912, %v3088
    %3151 = vst.msk [vmem:[#allocation2 + $0xcc] sm:$0xf] %vm912, %v3089
    %3152 = vst.msk [vmem:[#allocation2 + $0xd0] sm:$0xf] %vm912, %v3090
    %3153 = vst.msk [vmem:[#allocation2 + $0xd4] sm:$0xf] %vm912, %v3091
    %3154 = vst.msk [vmem:[#allocation2 + $0xd8] sm:$0xf] %vm912, %v3092
    %3155 = vst.msk [vmem:[#allocation2 + $0xdc] sm:$0xf] %vm912, %v3093
    %3156 = vst.msk [vmem:[#allocation2 + $0xe0] sm:$0xf] %vm912, %v3094
    %3157 = vst.msk [vmem:[#allocation2 + $0xe4] sm:$0xf] %vm912, %v3095
    %3158 = vst.msk [vmem:[#allocation2 + $0xe8] sm:$0xf] %vm912, %v3096
    %3159 = vst.msk [vmem:[#allocation2 + $0xec] sm:$0xf] %vm912, %v3097
    %3160 = vst.msk [vmem:[#allocation2 + $0xf0] sm:$0xf] %vm912, %v3098
    %3161 = vst.msk [vmem:[#allocation2 + $0xf4] sm:$0xf] %vm912, %v3099
    %3162 = vst.msk [vmem:[#allocation2 + $0xf8] sm:$0xf] %vm912, %v3100
    %3163 = vst.msk [vmem:[#allocation2 + $0xfc] sm:$0xf] %vm912, %v3101
    %v3165 = vunpack.c.l.b16 %v2745
    %v3166 = vunpack.c.h.b16 %v2745
    %v3167 = vunpack.c.l.b16 %v2630
    %v3168 = vunpack.c.h.b16 %v2630
    %v3169 = vunpack.c.l.b16 %v2638
    %v3170 = vunpack.c.h.b16 %v2638
    %v3171 = vunpack.c.l.b16 %v2646
    %v3172 = vunpack.c.h.b16 %v2646
    %v3173 = vunpack.c.l.b16 %v2654
    %v3174 = vunpack.c.h.b16 %v2654
    %v3175 = vunpack.c.l.b16 %v2662
    %v3176 = vunpack.c.h.b16 %v2662
    %v3177 = vunpack.c.l.b16 %v2670
    %v3178 = vunpack.c.h.b16 %v2670
    %v3179 = vunpack.c.l.b16 %v2678
    %v3180 = vunpack.c.h.b16 %v2678
    %v3181 = vunpack.c.l.b16 %v2686
    %v3182 = vunpack.c.h.b16 %v2686
    %v3183 = vunpack.c.l.b16 %v2694
    %v3184 = vunpack.c.h.b16 %v2694
    %v3185 = vunpack.c.l.b16 %v2702
    %v3186 = vunpack.c.h.b16 %v2702
    %v3187 = vunpack.c.l.b16 %v2710
    %v3188 = vunpack.c.h.b16 %v2710
    %v3189 = vunpack.c.l.b16 %v2718
    %v3190 = vunpack.c.h.b16 %v2718
    %v3191 = vunpack.c.l.b16 %v2726
    %v3192 = vunpack.c.h.b16 %v2726
    %v3193 = vunpack.c.l.b16 %v2734
    %v3194 = vunpack.c.h.b16 %v2734
    %v3195 = vunpack.c.l.b16 %v2742
    %v3196 = vpack.c.b16 %v3165, %v3165
    %v3197 = vpack.c.b16 %v3166, %v3166
    %v3198 = vpack.c.b16 %v3167, %v3167
    %v3199 = vpack.c.b16 %v3168, %v3168
    %v3200 = vpack.c.b16 %v3169, %v3169
    %v3201 = vpack.c.b16 %v3170, %v3170
    %v3202 = vpack.c.b16 %v3171, %v3171
    %v3203 = vpack.c.b16 %v3172, %v3172
    %v3204 = vpack.c.b16 %v3173, %v3173
    %v3205 = vpack.c.b16 %v3174, %v3174
    %v3206 = vpack.c.b16 %v3175, %v3175
    %v3207 = vpack.c.b16 %v3176, %v3176
    %v3208 = vpack.c.b16 %v3177, %v3177
    %v3209 = vpack.c.b16 %v3178, %v3178
    %v3210 = vpack.c.b16 %v3179, %v3179
    %v3211 = vpack.c.b16 %v3180, %v3180
    %v3212 = vpack.c.b16 %v3181, %v3181
    %v3213 = vpack.c.b16 %v3182, %v3182
    %v3214 = vpack.c.b16 %v3183, %v3183
    %v3215 = vpack.c.b16 %v3184, %v3184
    %v3216 = vpack.c.b16 %v3185, %v3185
    %v3217 = vpack.c.b16 %v3186, %v3186
    %v3218 = vpack.c.b16 %v3187, %v3187
    %v3219 = vpack.c.b16 %v3188, %v3188
    %v3220 = vpack.c.b16 %v3189, %v3189
    %v3221 = vpack.c.b16 %v3190, %v3190
    %v3222 = vpack.c.b16 %v3191, %v3191
    %v3223 = vpack.c.b16 %v3192, %v3192
    %v3224 = vpack.c.b16 %v3193, %v3193
    %v3225 = vpack.c.b16 %v3194, %v3194
    %v3226 = vpack.c.b16 %v3195, %v3195
    %v3228 = vshll.u32 %v3196, 16
    %v3230 = vrot.slane %v3228, 5
    %v3231 = vsel %vm1010, %v1029, %v3230
    %v3232 = vshrl.u32 %v3196, 16
    %v3234 = vrot.slane %v3232, 4
    %v3235 = vor.u32 %v3234, %v3230
    %v3236 = vrot.slane %v3235, 4
    %v3238 = vshll.u32 %v3197, 16
    %v3240 = vrot.slane %v3238, 5
    %v3241 = vsel %vm1010, %v3236, %v3240
    %v3242 = vshrl.u32 %v3197, 16
    %v3244 = vrot.slane %v3242, 4
    %v3245 = vor.u32 %v3244, %v3240
    %v3246 = vrot.slane %v3245, 4
    %v3248 = vshll.u32 %v3198, 16
    %v3250 = vrot.slane %v3248, 5
    %v3251 = vsel %vm1010, %v3246, %v3250
    %v3252 = vshrl.u32 %v3198, 16
    %v3254 = vrot.slane %v3252, 4
    %v3255 = vor.u32 %v3254, %v3250
    %v3256 = vrot.slane %v3255, 4
    %v3258 = vshll.u32 %v3199, 16
    %v3260 = vrot.slane %v3258, 5
    %v3261 = vsel %vm1010, %v3256, %v3260
    %v3262 = vshrl.u32 %v3199, 16
    %v3264 = vrot.slane %v3262, 4
    %v3265 = vor.u32 %v3264, %v3260
    %v3266 = vrot.slane %v3265, 4
    %v3268 = vshll.u32 %v3200, 16
    %v3270 = vrot.slane %v3268, 5
    %v3271 = vsel %vm1010, %v3266, %v3270
    %v3272 = vshrl.u32 %v3200, 16
    %v3274 = vrot.slane %v3272, 4
    %v3275 = vor.u32 %v3274, %v3270
    %v3276 = vrot.slane %v3275, 4
    %v3278 = vshll.u32 %v3201, 16
    %v3280 = vrot.slane %v3278, 5
    %v3281 = vsel %vm1010, %v3276, %v3280
    %v3282 = vshrl.u32 %v3201, 16
    %v3284 = vrot.slane %v3282, 4
    %v3285 = vor.u32 %v3284, %v3280
    %v3286 = vrot.slane %v3285, 4
    %v3288 = vshll.u32 %v3202, 16
    %v3290 = vrot.slane %v3288, 5
    %v3291 = vsel %vm1010, %v3286, %v3290
    %v3292 = vshrl.u32 %v3202, 16
    %v3294 = vrot.slane %v3292, 4
    %v3295 = vor.u32 %v3294, %v3290
    %v3296 = vrot.slane %v3295, 4
    %v3298 = vshll.u32 %v3203, 16
    %v3300 = vrot.slane %v3298, 5
    %v3301 = vsel %vm1010, %v3296, %v3300
    %v3302 = vshrl.u32 %v3203, 16
    %v3304 = vrot.slane %v3302, 4
    %v3305 = vor.u32 %v3304, %v3300
    %v3306 = vrot.slane %v3305, 4
    %v3308 = vshll.u32 %v3204, 16
    %v3310 = vrot.slane %v3308, 5
    %v3311 = vsel %vm1010, %v3306, %v3310
    %v3312 = vshrl.u32 %v3204, 16
    %v3314 = vrot.slane %v3312, 4
    %v3315 = vor.u32 %v3314, %v3310
    %v3316 = vrot.slane %v3315, 4
    %v3318 = vshll.u32 %v3205, 16
    %v3320 = vrot.slane %v3318, 5
    %v3321 = vsel %vm1010, %v3316, %v3320
    %v3322 = vshrl.u32 %v3205, 16
    %v3324 = vrot.slane %v3322, 4
    %v3325 = vor.u32 %v3324, %v3320
    %v3326 = vrot.slane %v3325, 4
    %v3328 = vshll.u32 %v3206, 16
    %v3330 = vrot.slane %v3328, 5
    %v3331 = vsel %vm1010, %v3326, %v3330
    %v3332 = vshrl.u32 %v3206, 16
    %v3334 = vrot.slane %v3332, 4
    %v3335 = vor.u32 %v3334, %v3330
    %v3336 = vrot.slane %v3335, 4
    %v3338 = vshll.u32 %v3207, 16
    %v3340 = vrot.slane %v3338, 5
    %v3341 = vsel %vm1010, %v3336, %v3340
    %v3342 = vshrl.u32 %v3207, 16
    %v3344 = vrot.slane %v3342, 4
    %v3345 = vor.u32 %v3344, %v3340
    %v3346 = vrot.slane %v3345, 4
    %v3348 = vshll.u32 %v3208, 16
    %v3350 = vrot.slane %v3348, 5
    %v3351 = vsel %vm1010, %v3346, %v3350
    %v3352 = vshrl.u32 %v3208, 16
    %v3354 = vrot.slane %v3352, 4
    %v3355 = vor.u32 %v3354, %v3350
    %v3356 = vrot.slane %v3355, 4
    %v3358 = vshll.u32 %v3209, 16
    %v3360 = vrot.slane %v3358, 5
    %v3361 = vsel %vm1010, %v3356, %v3360
    %v3362 = vshrl.u32 %v3209, 16
    %v3364 = vrot.slane %v3362, 4
    %v3365 = vor.u32 %v3364, %v3360
    %v3366 = vrot.slane %v3365, 4
    %v3368 = vshll.u32 %v3210, 16
    %v3370 = vrot.slane %v3368, 5
    %v3371 = vsel %vm1010, %v3366, %v3370
    %v3372 = vshrl.u32 %v3210, 16
    %v3374 = vrot.slane %v3372, 4
    %v3375 = vor.u32 %v3374, %v3370
    %v3376 = vrot.slane %v3375, 4
    %v3378 = vshll.u32 %v3211, 16
    %v3380 = vrot.slane %v3378, 5
    %v3381 = vsel %vm1010, %v3376, %v3380
    %v3382 = vshrl.u32 %v3211, 16
    %v3384 = vrot.slane %v3382, 4
    %v3385 = vor.u32 %v3384, %v3380
    %v3386 = vrot.slane %v3385, 4
    %v3388 = vshll.u32 %v3212, 16
    %v3390 = vrot.slane %v3388, 5
    %v3391 = vsel %vm1010, %v3386, %v3390
    %v3392 = vshrl.u32 %v3212, 16
    %v3394 = vrot.slane %v3392, 4
    %v3395 = vor.u32 %v3394, %v3390
    %v3396 = vrot.slane %v3395, 4
    %v3398 = vshll.u32 %v3213, 16
    %v3400 = vrot.slane %v3398, 5
    %v3401 = vsel %vm1010, %v3396, %v3400
    %v3402 = vshrl.u32 %v3213, 16
    %v3404 = vrot.slane %v3402, 4
    %v3405 = vor.u32 %v3404, %v3400
    %v3406 = vrot.slane %v3405, 4
    %v3408 = vshll.u32 %v3214, 16
    %v3410 = vrot.slane %v3408, 5
    %v3411 = vsel %vm1010, %v3406, %v3410
    %v3412 = vshrl.u32 %v3214, 16
    %v3414 = vrot.slane %v3412, 4
    %v3415 = vor.u32 %v3414, %v3410
    %v3416 = vrot.slane %v3415, 4
    %v3418 = vshll.u32 %v3215, 16
    %v3420 = vrot.slane %v3418, 5
    %v3421 = vsel %vm1010, %v3416, %v3420
    %v3422 = vshrl.u32 %v3215, 16
    %v3424 = vrot.slane %v3422, 4
    %v3425 = vor.u32 %v3424, %v3420
    %v3426 = vrot.slane %v3425, 4
    %v3428 = vshll.u32 %v3216, 16
    %v3430 = vrot.slane %v3428, 5
    %v3431 = vsel %vm1010, %v3426, %v3430
    %v3432 = vshrl.u32 %v3216, 16
    %v3434 = vrot.slane %v3432, 4
    %v3435 = vor.u32 %v3434, %v3430
    %v3436 = vrot.slane %v3435, 4
    %v3438 = vshll.u32 %v3217, 16
    %v3440 = vrot.slane %v3438, 5
    %v3441 = vsel %vm1010, %v3436, %v3440
    %v3442 = vshrl.u32 %v3217, 16
    %v3444 = vrot.slane %v3442, 4
    %v3445 = vor.u32 %v3444, %v3440
    %v3446 = vrot.slane %v3445, 4
    %v3448 = vshll.u32 %v3218, 16
    %v3450 = vrot.slane %v3448, 5
    %v3451 = vsel %vm1010, %v3446, %v3450
    %v3452 = vshrl.u32 %v3218, 16
    %v3454 = vrot.slane %v3452, 4
    %v3455 = vor.u32 %v3454, %v3450
    %v3456 = vrot.slane %v3455, 4
    %v3458 = vshll.u32 %v3219, 16
    %v3460 = vrot.slane %v3458, 5
    %v3461 = vsel %vm1010, %v3456, %v3460
    %v3462 = vshrl.u32 %v3219, 16
    %v3464 = vrot.slane %v3462, 4
    %v3465 = vor.u32 %v3464, %v3460
    %v3466 = vrot.slane %v3465, 4
    %v3468 = vshll.u32 %v3220, 16
    %v3470 = vrot.slane %v3468, 5
    %v3471 = vsel %vm1010, %v3466, %v3470
    %v3472 = vshrl.u32 %v3220, 16
    %v3474 = vrot.slane %v3472, 4
    %v3475 = vor.u32 %v3474, %v3470
    %v3476 = vrot.slane %v3475, 4
    %v3478 = vshll.u32 %v3221, 16
    %v3480 = vrot.slane %v3478, 5
    %v3481 = vsel %vm1010, %v3476, %v3480
    %v3482 = vshrl.u32 %v3221, 16
    %v3484 = vrot.slane %v3482, 4
    %v3485 = vor.u32 %v3484, %v3480
    %v3486 = vrot.slane %v3485, 4
    %v3488 = vshll.u32 %v3222, 16
    %v3490 = vrot.slane %v3488, 5
    %v3491 = vsel %vm1010, %v3486, %v3490
    %v3492 = vshrl.u32 %v3222, 16
    %v3494 = vrot.slane %v3492, 4
    %v3495 = vor.u32 %v3494, %v3490
    %v3496 = vrot.slane %v3495, 4
    %v3498 = vshll.u32 %v3223, 16
    %v3500 = vrot.slane %v3498, 5
    %v3501 = vsel %vm1010, %v3496, %v3500
    %v3502 = vshrl.u32 %v3223, 16
    %v3504 = vrot.slane %v3502, 4
    %v3505 = vor.u32 %v3504, %v3500
    %v3506 = vrot.slane %v3505, 4
    %v3508 = vshll.u32 %v3224, 16
    %v3510 = vrot.slane %v3508, 5
    %v3511 = vsel %vm1010, %v3506, %v3510
    %v3512 = vshrl.u32 %v3224, 16
    %v3514 = vrot.slane %v3512, 4
    %v3515 = vor.u32 %v3514, %v3510
    %v3516 = vrot.slane %v3515, 4
    %v3518 = vshll.u32 %v3225, 16
    %v3520 = vrot.slane %v3518, 5
    %v3521 = vsel %vm1010, %v3516, %v3520
    %v3522 = vshrl.u32 %v3225, 16
    %v3524 = vrot.slane %v3522, 4
    %v3525 = vor.u32 %v3524, %v3520
    %v3526 = vrot.slane %v3525, 4
    %v3528 = vshll.u32 %v3226, 16
    %v3530 = vrot.slane %v3528, 5
    %v3531 = vsel %vm1010, %v3526, %v3530
    %3532 = vrot.lane.b32.xlu0 %v3231, 4
    %v3533 = vpop.permute.xlu0 %3532
    %3534 = vrot.lane.b32.xlu0 %v3241, 4
    %v3535 = vpop.permute.xlu0 %3534
    %3536 = vrot.lane.b32.xlu0 %v3251, 4
    %v3537 = vpop.permute.xlu0 %3536
    %3538 = vrot.lane.b32.xlu0 %v3261, 4
    %v3539 = vpop.permute.xlu0 %3538
    %3540 = vrot.lane.b32.xlu0 %v3271, 4
    %v3541 = vpop.permute.xlu0 %3540
    %3542 = vrot.lane.b32.xlu0 %v3281, 4
    %v3543 = vpop.permute.xlu0 %3542
    %3544 = vrot.lane.b32.xlu0 %v3291, 4
    %v3545 = vpop.permute.xlu0 %3544
    %3546 = vrot.lane.b32.xlu0 %v3301, 4
    %v3547 = vpop.permute.xlu0 %3546
    %3548 = vrot.lane.b32.xlu0 %v3311, 4
    %v3549 = vpop.permute.xlu0 %3548
    %3550 = vrot.lane.b32.xlu0 %v3321, 4
    %v3551 = vpop.permute.xlu0 %3550
    %3552 = vrot.lane.b32.xlu0 %v3331, 4
    %v3553 = vpop.permute.xlu0 %3552
    %3554 = vrot.lane.b32.xlu0 %v3341, 4
    %v3555 = vpop.permute.xlu0 %3554
    %3556 = vrot.lane.b32.xlu0 %v3351, 4
    %v3557 = vpop.permute.xlu0 %3556
    %3558 = vrot.lane.b32.xlu0 %v3361, 4
    %v3559 = vpop.permute.xlu0 %3558
    %3560 = vrot.lane.b32.xlu0 %v3371, 4
    %v3561 = vpop.permute.xlu0 %3560
    %3562 = vrot.lane.b32.xlu0 %v3381, 4
    %v3563 = vpop.permute.xlu0 %3562
    %3564 = vrot.lane.b32.xlu0 %v3391, 4
    %v3565 = vpop.permute.xlu0 %3564
    %3566 = vrot.lane.b32.xlu0 %v3401, 4
    %v3567 = vpop.permute.xlu0 %3566
    %3568 = vrot.lane.b32.xlu0 %v3411, 4
    %v3569 = vpop.permute.xlu0 %3568
    %3570 = vrot.lane.b32.xlu0 %v3421, 4
    %v3571 = vpop.permute.xlu0 %3570
    %3572 = vrot.lane.b32.xlu0 %v3431, 4
    %v3573 = vpop.permute.xlu0 %3572
    %3574 = vrot.lane.b32.xlu0 %v3441, 4
    %v3575 = vpop.permute.xlu0 %3574
    %3576 = vrot.lane.b32.xlu0 %v3451, 4
    %v3577 = vpop.permute.xlu0 %3576
    %3578 = vrot.lane.b32.xlu0 %v3461, 4
    %v3579 = vpop.permute.xlu0 %3578
    %3580 = vrot.lane.b32.xlu0 %v3471, 4
    %v3581 = vpop.permute.xlu0 %3580
    %3582 = vrot.lane.b32.xlu0 %v3481, 4
    %v3583 = vpop.permute.xlu0 %3582
    %3584 = vrot.lane.b32.xlu0 %v3491, 4
    %v3585 = vpop.permute.xlu0 %3584
    %3586 = vrot.lane.b32.xlu0 %v3501, 4
    %v3587 = vpop.permute.xlu0 %3586
    %3588 = vrot.lane.b32.xlu0 %v3511, 4
    %v3589 = vpop.permute.xlu0 %3588
    %3590 = vrot.lane.b32.xlu0 %v3521, 4
    %v3591 = vpop.permute.xlu0 %3590
    %3592 = vrot.lane.b32.xlu0 %v3531, 4
    %v3593 = vpop.permute.xlu0 %3592
    %3625 = vst.msk [vmem:[#allocation2 + $0x80] sm:$0xf] %vm1431, %v1336
    %3626 = vst.msk [vmem:[#allocation2 + $0x84] sm:$0xf] %vm1431, %v3533
    %3627 = vst.msk [vmem:[#allocation2 + $0x88] sm:$0xf] %vm1431, %v3535
    %3628 = vst.msk [vmem:[#allocation2 + $0x8c] sm:$0xf] %vm1431, %v3537
    %3629 = vst.msk [vmem:[#allocation2 + $0x90] sm:$0xf] %vm1431, %v3539
    %3630 = vst.msk [vmem:[#allocation2 + $0x94] sm:$0xf] %vm1431, %v3541
    %3631 = vst.msk [vmem:[#allocation2 + $0x98] sm:$0xf] %vm1431, %v3543
    %3632 = vst.msk [vmem:[#allocation2 + $0x9c] sm:$0xf] %vm1431, %v3545
    %3633 = vst.msk [vmem:[#allocation2 + $0xa0] sm:$0xf] %vm1431, %v3547
    %3634 = vst.msk [vmem:[#allocation2 + $0xa4] sm:$0xf] %vm1431, %v3549
    %3635 = vst.msk [vmem:[#allocation2 + $0xa8] sm:$0xf] %vm1431, %v3551
    %3636 = vst.msk [vmem:[#allocation2 + $0xac] sm:$0xf] %vm1431, %v3553
    %3637 = vst.msk [vmem:[#allocation2 + $0xb0] sm:$0xf] %vm1431, %v3555
    %3638 = vst.msk [vmem:[#allocation2 + $0xb4] sm:$0xf] %vm1431, %v3557
    %3639 = vst.msk [vmem:[#allocation2 + $0xb8] sm:$0xf] %vm1431, %v3559
    %3640 = vst.msk [vmem:[#allocation2 + $0xbc] sm:$0xf] %vm1431, %v3561
    %3641 = vst.msk [vmem:[#allocation2 + $0xc0] sm:$0xf] %vm1431, %v3563
    %3642 = vst.msk [vmem:[#allocation2 + $0xc4] sm:$0xf] %vm1431, %v3565
    %3643 = vst.msk [vmem:[#allocation2 + $0xc8] sm:$0xf] %vm1431, %v3567
    %3644 = vst.msk [vmem:[#allocation2 + $0xcc] sm:$0xf] %vm1431, %v3569
    %3645 = vst.msk [vmem:[#allocation2 + $0xd0] sm:$0xf] %vm1431, %v3571
    %3646 = vst.msk [vmem:[#allocation2 + $0xd4] sm:$0xf] %vm1431, %v3573
    %3647 = vst.msk [vmem:[#allocation2 + $0xd8] sm:$0xf] %vm1431, %v3575
    %3648 = vst.msk [vmem:[#allocation2 + $0xdc] sm:$0xf] %vm1431, %v3577
    %3649 = vst.msk [vmem:[#allocation2 + $0xe0] sm:$0xf] %vm1431, %v3579
    %3650 = vst.msk [vmem:[#allocation2 + $0xe4] sm:$0xf] %vm1431, %v3581
    %3651 = vst.msk [vmem:[#allocation2 + $0xe8] sm:$0xf] %vm1431, %v3583
    %3652 = vst.msk [vmem:[#allocation2 + $0xec] sm:$0xf] %vm1431, %v3585
    %3653 = vst.msk [vmem:[#allocation2 + $0xf0] sm:$0xf] %vm1431, %v3587
    %3654 = vst.msk [vmem:[#allocation2 + $0xf4] sm:$0xf] %vm1431, %v3589
    %3655 = vst.msk [vmem:[#allocation2 + $0xf8] sm:$0xf] %vm1431, %v3591
    %3656 = vst.msk [vmem:[#allocation2 + $0xfc] sm:$0xf] %vm1431, %v3593
    %v3658 = vunpack.c.l.b16 %v2892
    %v3659 = vunpack.c.h.b16 %v2892
    %v3660 = vunpack.c.l.b16 %v2777
    %v3661 = vunpack.c.h.b16 %v2777
    %v3662 = vunpack.c.l.b16 %v2785
    %v3663 = vunpack.c.h.b16 %v2785
    %v3664 = vunpack.c.l.b16 %v2793
    %v3665 = vunpack.c.h.b16 %v2793
    %v3666 = vunpack.c.l.b16 %v2801
    %v3667 = vunpack.c.h.b16 %v2801
    %v3668 = vunpack.c.l.b16 %v2809
    %v3669 = vunpack.c.h.b16 %v2809
    %v3670 = vunpack.c.l.b16 %v2817
    %v3671 = vunpack.c.h.b16 %v2817
    %v3672 = vunpack.c.l.b16 %v2825
    %v3673 = vunpack.c.h.b16 %v2825
    %v3674 = vunpack.c.l.b16 %v2833
    %v3675 = vunpack.c.h.b16 %v2833
    %v3676 = vunpack.c.l.b16 %v2841
    %v3677 = vunpack.c.h.b16 %v2841
    %v3678 = vunpack.c.l.b16 %v2849
    %v3679 = vunpack.c.h.b16 %v2849
    %v3680 = vunpack.c.l.b16 %v2857
    %v3681 = vunpack.c.h.b16 %v2857
    %v3682 = vunpack.c.l.b16 %v2865
    %v3683 = vunpack.c.h.b16 %v2865
    %v3684 = vunpack.c.l.b16 %v2873
    %v3685 = vunpack.c.h.b16 %v2873
    %v3686 = vunpack.c.l.b16 %v2881
    %v3687 = vunpack.c.h.b16 %v2881
    %v3688 = vunpack.c.l.b16 %v2889
    %v3689 = vpack.c.b16 %v3658, %v3658
    %v3690 = vpack.c.b16 %v3659, %v3659
    %v3691 = vpack.c.b16 %v3660, %v3660
    %v3692 = vpack.c.b16 %v3661, %v3661
    %v3693 = vpack.c.b16 %v3662, %v3662
    %v3694 = vpack.c.b16 %v3663, %v3663
    %v3695 = vpack.c.b16 %v3664, %v3664
    %v3696 = vpack.c.b16 %v3665, %v3665
    %v3697 = vpack.c.b16 %v3666, %v3666
    %v3698 = vpack.c.b16 %v3667, %v3667
    %v3699 = vpack.c.b16 %v3668, %v3668
    %v3700 = vpack.c.b16 %v3669, %v3669
    %v3701 = vpack.c.b16 %v3670, %v3670
    %v3702 = vpack.c.b16 %v3671, %v3671
    %v3703 = vpack.c.b16 %v3672, %v3672
    %v3704 = vpack.c.b16 %v3673, %v3673
    %v3705 = vpack.c.b16 %v3674, %v3674
    %v3706 = vpack.c.b16 %v3675, %v3675
    %v3707 = vpack.c.b16 %v3676, %v3676
    %v3708 = vpack.c.b16 %v3677, %v3677
    %v3709 = vpack.c.b16 %v3678, %v3678
    %v3710 = vpack.c.b16 %v3679, %v3679
    %v3711 = vpack.c.b16 %v3680, %v3680
    %v3712 = vpack.c.b16 %v3681, %v3681
    %v3713 = vpack.c.b16 %v3682, %v3682
    %v3714 = vpack.c.b16 %v3683, %v3683
    %v3715 = vpack.c.b16 %v3684, %v3684
    %v3716 = vpack.c.b16 %v3685, %v3685
    %v3717 = vpack.c.b16 %v3686, %v3686
    %v3718 = vpack.c.b16 %v3687, %v3687
    %v3719 = vpack.c.b16 %v3688, %v3688
    %v3720 = vrot.slane %v3689, 5
    %v3721 = vsel %vm1529, %v1534, %v3720
    %v3722 = vrot.slane %v3720, 4
    %v3723 = vrot.slane %v3690, 5
    %v3724 = vsel %vm1529, %v3722, %v3723
    %v3725 = vrot.slane %v3723, 4
    %v3726 = vrot.slane %v3691, 5
    %v3727 = vsel %vm1529, %v3725, %v3726
    %v3728 = vrot.slane %v3726, 4
    %v3729 = vrot.slane %v3692, 5
    %v3730 = vsel %vm1529, %v3728, %v3729
    %v3731 = vrot.slane %v3729, 4
    %v3732 = vrot.slane %v3693, 5
    %v3733 = vsel %vm1529, %v3731, %v3732
    %v3734 = vrot.slane %v3732, 4
    %v3735 = vrot.slane %v3694, 5
    %v3736 = vsel %vm1529, %v3734, %v3735
    %v3737 = vrot.slane %v3735, 4
    %v3738 = vrot.slane %v3695, 5
    %v3739 = vsel %vm1529, %v3737, %v3738
    %v3740 = vrot.slane %v3738, 4
    %v3741 = vrot.slane %v3696, 5
    %v3742 = vsel %vm1529, %v3740, %v3741
    %v3743 = vrot.slane %v3741, 4
    %v3744 = vrot.slane %v3697, 5
    %v3745 = vsel %vm1529, %v3743, %v3744
    %v3746 = vrot.slane %v3744, 4
    %v3747 = vrot.slane %v3698, 5
    %v3748 = vsel %vm1529, %v3746, %v3747
    %v3749 = vrot.slane %v3747, 4
    %v3750 = vrot.slane %v3699, 5
    %v3751 = vsel %vm1529, %v3749, %v3750
    %v3752 = vrot.slane %v3750, 4
    %v3753 = vrot.slane %v3700, 5
    %v3754 = vsel %vm1529, %v3752, %v3753
    %v3755 = vrot.slane %v3753, 4
    %v3756 = vrot.slane %v3701, 5
    %v3757 = vsel %vm1529, %v3755, %v3756
    %v3758 = vrot.slane %v3756, 4
    %v3759 = vrot.slane %v3702, 5
    %v3760 = vsel %vm1529, %v3758, %v3759
    %v3761 = vrot.slane %v3759, 4
    %v3762 = vrot.slane %v3703, 5
    %v3763 = vsel %vm1529, %v3761, %v3762
    %v3764 = vrot.slane %v3762, 4
    %v3765 = vrot.slane %v3704, 5
    %v3766 = vsel %vm1529, %v3764, %v3765
    %v3767 = vrot.slane %v3765, 4
    %v3768 = vrot.slane %v3705, 5
    %v3769 = vsel %vm1529, %v3767, %v3768
    %v3770 = vrot.slane %v3768, 4
    %v3771 = vrot.slane %v3706, 5
    %v3772 = vsel %vm1529, %v3770, %v3771
    %v3773 = vrot.slane %v3771, 4
    %v3774 = vrot.slane %v3707, 5
    %v3775 = vsel %vm1529, %v3773, %v3774
    %v3776 = vrot.slane %v3774, 4
    %v3777 = vrot.slane %v3708, 5
    %v3778 = vsel %vm1529, %v3776, %v3777
    %v3779 = vrot.slane %v3777, 4
    %v3780 = vrot.slane %v3709, 5
    %v3781 = vsel %vm1529, %v3779, %v3780
    %v3782 = vrot.slane %v3780, 4
    %v3783 = vrot.slane %v3710, 5
    %v3784 = vsel %vm1529, %v3782, %v3783
    %v3785 = vrot.slane %v3783, 4
    %v3786 = vrot.slane %v3711, 5
    %v3787 = vsel %vm1529, %v3785, %v3786
    %v3788 = vrot.slane %v3786, 4
    %v3789 = vrot.slane %v3712, 5
    %v3790 = vsel %vm1529, %v3788, %v3789
    %v3791 = vrot.slane %v3789, 4
    %v3792 = vrot.slane %v3713, 5
    %v3793 = vsel %vm1529, %v3791, %v3792
    %v3794 = vrot.slane %v3792, 4
    %v3795 = vrot.slane %v3714, 5
    %v3796 = vsel %vm1529, %v3794, %v3795
    %v3797 = vrot.slane %v3795, 4
    %v3798 = vrot.slane %v3715, 5
    %v3799 = vsel %vm1529, %v3797, %v3798
    %v3800 = vrot.slane %v3798, 4
    %v3801 = vrot.slane %v3716, 5
    %v3802 = vsel %vm1529, %v3800, %v3801
    %v3803 = vrot.slane %v3801, 4
    %v3804 = vrot.slane %v3717, 5
    %v3805 = vsel %vm1529, %v3803, %v3804
    %v3806 = vrot.slane %v3804, 4
    %v3807 = vrot.slane %v3718, 5
    %v3808 = vsel %vm1529, %v3806, %v3807
    %v3809 = vrot.slane %v3807, 4
    %v3810 = vrot.slane %v3719, 5
    %v3811 = vsel %vm1529, %v3809, %v3810
    %3812 = vrot.lane.b32.xlu0 %v3721, 8
    %v3813 = vpop.permute.xlu0 %3812
    %3814 = vrot.lane.b32.xlu0 %v3724, 8
    %v3815 = vpop.permute.xlu0 %3814
    %3816 = vrot.lane.b32.xlu0 %v3727, 8
    %v3817 = vpop.permute.xlu0 %3816
    %3818 = vrot.lane.b32.xlu0 %v3730, 8
    %v3819 = vpop.permute.xlu0 %3818
    %3820 = vrot.lane.b32.xlu0 %v3733, 8
    %v3821 = vpop.permute.xlu0 %3820
    %3822 = vrot.lane.b32.xlu0 %v3736, 8
    %v3823 = vpop.permute.xlu0 %3822
    %3824 = vrot.lane.b32.xlu0 %v3739, 8
    %v3825 = vpop.permute.xlu0 %3824
    %3826 = vrot.lane.b32.xlu0 %v3742, 8
    %v3827 = vpop.permute.xlu0 %3826
    %3828 = vrot.lane.b32.xlu0 %v3745, 8
    %v3829 = vpop.permute.xlu0 %3828
    %3830 = vrot.lane.b32.xlu0 %v3748, 8
    %v3831 = vpop.permute.xlu0 %3830
    %3832 = vrot.lane.b32.xlu0 %v3751, 8
    %v3833 = vpop.permute.xlu0 %3832
    %3834 = vrot.lane.b32.xlu0 %v3754, 8
    %v3835 = vpop.permute.xlu0 %3834
    %3836 = vrot.lane.b32.xlu0 %v3757, 8
    %v3837 = vpop.permute.xlu0 %3836
    %3838 = vrot.lane.b32.xlu0 %v3760, 8
    %v3839 = vpop.permute.xlu0 %3838
    %3840 = vrot.lane.b32.xlu0 %v3763, 8
    %v3841 = vpop.permute.xlu0 %3840
    %3842 = vrot.lane.b32.xlu0 %v3766, 8
    %v3843 = vpop.permute.xlu0 %3842
    %3844 = vrot.lane.b32.xlu0 %v3769, 8
    %v3845 = vpop.permute.xlu0 %3844
    %3846 = vrot.lane.b32.xlu0 %v3772, 8
    %v3847 = vpop.permute.xlu0 %3846
    %3848 = vrot.lane.b32.xlu0 %v3775, 8
    %v3849 = vpop.permute.xlu0 %3848
    %3850 = vrot.lane.b32.xlu0 %v3778, 8
    %v3851 = vpop.permute.xlu0 %3850
    %3852 = vrot.lane.b32.xlu0 %v3781, 8
    %v3853 = vpop.permute.xlu0 %3852
    %3854 = vrot.lane.b32.xlu0 %v3784, 8
    %v3855 = vpop.permute.xlu0 %3854
    %3856 = vrot.lane.b32.xlu0 %v3787, 8
    %v3857 = vpop.permute.xlu0 %3856
    %3858 = vrot.lane.b32.xlu0 %v3790, 8
    %v3859 = vpop.permute.xlu0 %3858
    %3860 = vrot.lane.b32.xlu0 %v3793, 8
    %v3861 = vpop.permute.xlu0 %3860
    %3862 = vrot.lane.b32.xlu0 %v3796, 8
    %v3863 = vpop.permute.xlu0 %3862
    %3864 = vrot.lane.b32.xlu0 %v3799, 8
    %v3865 = vpop.permute.xlu0 %3864
    %3866 = vrot.lane.b32.xlu0 %v3802, 8
    %v3867 = vpop.permute.xlu0 %3866
    %3868 = vrot.lane.b32.xlu0 %v3805, 8
    %v3869 = vpop.permute.xlu0 %3868
    %3870 = vrot.lane.b32.xlu0 %v3808, 8
    %v3871 = vpop.permute.xlu0 %3870
    %3872 = vrot.lane.b32.xlu0 %v3811, 8
    %v3873 = vpop.permute.xlu0 %3872
    %3905 = vst.msk [vmem:[#allocation2 + $0x80] sm:$0xf] %vm1723, %v1628
    %3906 = vst.msk [vmem:[#allocation2 + $0x84] sm:$0xf] %vm1723, %v3813
    %3907 = vst.msk [vmem:[#allocation2 + $0x88] sm:$0xf] %vm1723, %v3815
    %3908 = vst.msk [vmem:[#allocation2 + $0x8c] sm:$0xf] %vm1723, %v3817
    %3909 = vst.msk [vmem:[#allocation2 + $0x90] sm:$0xf] %vm1723, %v3819
    %3910 = vst.msk [vmem:[#allocation2 + $0x94] sm:$0xf] %vm1723, %v3821
    %3911 = vst.msk [vmem:[#allocation2 + $0x98] sm:$0xf] %vm1723, %v3823
    %3912 = vst.msk [vmem:[#allocation2 + $0x9c] sm:$0xf] %vm1723, %v3825
    %3913 = vst.msk [vmem:[#allocation2 + $0xa0] sm:$0xf] %vm1723, %v3827
    %3914 = vst.msk [vmem:[#allocation2 + $0xa4] sm:$0xf] %vm1723, %v3829
    %3915 = vst.msk [vmem:[#allocation2 + $0xa8] sm:$0xf] %vm1723, %v3831
    %3916 = vst.msk [vmem:[#allocation2 + $0xac] sm:$0xf] %vm1723, %v3833
    %3917 = vst.msk [vmem:[#allocation2 + $0xb0] sm:$0xf] %vm1723, %v3835
    %3918 = vst.msk [vmem:[#allocation2 + $0xb4] sm:$0xf] %vm1723, %v3837
    %3919 = vst.msk [vmem:[#allocation2 + $0xb8] sm:$0xf] %vm1723, %v3839
    %3920 = vst.msk [vmem:[#allocation2 + $0xbc] sm:$0xf] %vm1723, %v3841
    %3921 = vst.msk [vmem:[#allocation2 + $0xc0] sm:$0xf] %vm1723, %v3843
    %3922 = vst.msk [vmem:[#allocation2 + $0xc4] sm:$0xf] %vm1723, %v3845
    %3923 = vst.msk [vmem:[#allocation2 + $0xc8] sm:$0xf] %vm1723, %v3847
    %3924 = vst.msk [vmem:[#allocation2 + $0xcc] sm:$0xf] %vm1723, %v3849
    %3925 = vst.msk [vmem:[#allocation2 + $0xd0] sm:$0xf] %vm1723, %v3851
    %3926 = vst.msk [vmem:[#allocation2 + $0xd4] sm:$0xf] %vm1723, %v3853
    %3927 = vst.msk [vmem:[#allocation2 + $0xd8] sm:$0xf] %vm1723, %v3855
    %3928 = vst.msk [vmem:[#allocation2 + $0xdc] sm:$0xf] %vm1723, %v3857
    %3929 = vst.msk [vmem:[#allocation2 + $0xe0] sm:$0xf] %vm1723, %v3859
    %3930 = vst.msk [vmem:[#allocation2 + $0xe4] sm:$0xf] %vm1723, %v3861
    %3931 = vst.msk [vmem:[#allocation2 + $0xe8] sm:$0xf] %vm1723, %v3863
    %3932 = vst.msk [vmem:[#allocation2 + $0xec] sm:$0xf] %vm1723, %v3865
    %3933 = vst.msk [vmem:[#allocation2 + $0xf0] sm:$0xf] %vm1723, %v3867
    %3934 = vst.msk [vmem:[#allocation2 + $0xf4] sm:$0xf] %vm1723, %v3869
    %3935 = vst.msk [vmem:[#allocation2 + $0xf8] sm:$0xf] %vm1723, %v3871
    %3936 = vst.msk [vmem:[#allocation2 + $0xfc] sm:$0xf] %vm1723, %v3873
    %v3937 = vunpack.c.l.b16 %v3036
    %v3938 = vunpack.c.h.b16 %v3036
    %v3939 = vpack.c.b16 %v3937, %v3937
    %v3940 = vpack.c.b16 %v3938, %v3938
    %3941 = vrot.lane.b32.xlu0 %v3072, 12
    %v3942 = vpop.permute.xlu0 %3941
    %3943 = vrot.lane.b32.xlu0 %v3073, 12
    %v3944 = vpop.permute.xlu0 %3943
    %3945 = vrot.lane.b32.xlu0 %v3074, 12
    %v3946 = vpop.permute.xlu0 %3945
    %3947 = vrot.lane.b32.xlu0 %v3075, 12
    %v3948 = vpop.permute.xlu0 %3947
    %3949 = vrot.lane.b32.xlu0 %v3076, 12
    %v3950 = vpop.permute.xlu0 %3949
    %3951 = vrot.lane.b32.xlu0 %v3077, 12
    %v3952 = vpop.permute.xlu0 %3951
    %3953 = vrot.lane.b32.xlu0 %v3078, 12
    %v3954 = vpop.permute.xlu0 %3953
    %3955 = vrot.lane.b32.xlu0 %v3079, 12
    %v3956 = vpop.permute.xlu0 %3955
    %3957 = vrot.lane.b32.xlu0 %v3080, 12
    %v3958 = vpop.permute.xlu0 %3957
    %3959 = vrot.lane.b32.xlu0 %v3081, 12
    %v3960 = vpop.permute.xlu0 %3959
    %3961 = vrot.lane.b32.xlu0 %v3082, 12
    %v3962 = vpop.permute.xlu0 %3961
    %3963 = vrot.lane.b32.xlu0 %v3083, 12
    %v3964 = vpop.permute.xlu0 %3963
    %3965 = vrot.lane.b32.xlu0 %v3084, 12
    %v3966 = vpop.permute.xlu0 %3965
    %3967 = vrot.lane.b32.xlu0 %v3085, 12
    %v3968 = vpop.permute.xlu0 %3967
    %3969 = vrot.lane.b32.xlu0 %v3086, 12
    %v3970 = vpop.permute.xlu0 %3969
    %3971 = vrot.lane.b32.xlu0 %v3087, 12
    %v3972 = vpop.permute.xlu0 %3971
    %3973 = vrot.lane.b32.xlu0 %v3088, 12
    %v3974 = vpop.permute.xlu0 %3973
    %3975 = vrot.lane.b32.xlu0 %v3089, 12
    %v3976 = vpop.permute.xlu0 %3975
    %3977 = vrot.lane.b32.xlu0 %v3090, 12
    %v3978 = vpop.permute.xlu0 %3977
    %3979 = vrot.lane.b32.xlu0 %v3091, 12
    %v3980 = vpop.permute.xlu0 %3979
    %3981 = vrot.lane.b32.xlu0 %v3092, 12
    %v3982 = vpop.permute.xlu0 %3981
    %3983 = vrot.lane.b32.xlu0 %v3093, 12
    %v3984 = vpop.permute.xlu0 %3983
    %3985 = vrot.lane.b32.xlu0 %v3094, 12
    %v3986 = vpop.permute.xlu0 %3985
    %3987 = vrot.lane.b32.xlu0 %v3095, 12
    %v3988 = vpop.permute.xlu0 %3987
    %3989 = vrot.lane.b32.xlu0 %v3096, 12
    %v3990 = vpop.permute.xlu0 %3989
    %3991 = vrot.lane.b32.xlu0 %v3097, 12
    %v3992 = vpop.permute.xlu0 %3991
    %3993 = vrot.lane.b32.xlu0 %v3098, 12
    %v3994 = vpop.permute.xlu0 %3993
    %3995 = vrot.lane.b32.xlu0 %v3099, 12
    %v3996 = vpop.permute.xlu0 %3995
    %3997 = vrot.lane.b32.xlu0 %v3100, 12
    %v3998 = vpop.permute.xlu0 %3997
    %3999 = vrot.lane.b32.xlu0 %v3101, 12
    %v4000 = vpop.permute.xlu0 %3999
    %4001 = vrot.lane.b32.xlu0 %v3939, 12
    %v4002 = vpop.permute.xlu0 %4001
    %4003 = vrot.lane.b32.xlu0 %v3940, 12
    %v4004 = vpop.permute.xlu0 %4003
    %4037 = vst.msk [vmem:[#allocation2 + $0x80] sm:$0xf] %vm1856, %v3942
    %4038 = vst.msk [vmem:[#allocation2 + $0x84] sm:$0xf] %vm1856, %v3944
    %4039 = vst.msk [vmem:[#allocation2 + $0x88] sm:$0xf] %vm1856, %v3946
    %4040 = vst.msk [vmem:[#allocation2 + $0x8c] sm:$0xf] %vm1856, %v3948
    %4041 = vst.msk [vmem:[#allocation2 + $0x90] sm:$0xf] %vm1856, %v3950
    %4042 = vst.msk [vmem:[#allocation2 + $0x94] sm:$0xf] %vm1856, %v3952
    %4043 = vst.msk [vmem:[#allocation2 + $0x98] sm:$0xf] %vm1856, %v3954
    %4044 = vst.msk [vmem:[#allocation2 + $0x9c] sm:$0xf] %vm1856, %v3956
    %4045 = vst.msk [vmem:[#allocation2 + $0xa0] sm:$0xf] %vm1856, %v3958
    %4046 = vst.msk [vmem:[#allocation2 + $0xa4] sm:$0xf] %vm1856, %v3960
    %4047 = vst.msk [vmem:[#allocation2 + $0xa8] sm:$0xf] %vm1856, %v3962
    %4048 = vst.msk [vmem:[#allocation2 + $0xac] sm:$0xf] %vm1856, %v3964
    %4049 = vst.msk [vmem:[#allocation2 + $0xb0] sm:$0xf] %vm1856, %v3966
    %4050 = vst.msk [vmem:[#allocation2 + $0xb4] sm:$0xf] %vm1856, %v3968
    %4051 = vst.msk [vmem:[#allocation2 + $0xb8] sm:$0xf] %vm1856, %v3970
    %4052 = vst.msk [vmem:[#allocation2 + $0xbc] sm:$0xf] %vm1856, %v3972
    %4053 = vst.msk [vmem:[#allocation2 + $0xc0] sm:$0xf] %vm1856, %v3974
    %4054 = vst.msk [vmem:[#allocation2 + $0xc4] sm:$0xf] %vm1856, %v3976
    %4055 = vst.msk [vmem:[#allocation2 + $0xc8] sm:$0xf] %vm1856, %v3978
    %4056 = vst.msk [vmem:[#allocation2 + $0xcc] sm:$0xf] %vm1856, %v3980
    %4057 = vst.msk [vmem:[#allocation2 + $0xd0] sm:$0xf] %vm1856, %v3982
    %4058 = vst.msk [vmem:[#allocation2 + $0xd4] sm:$0xf] %vm1856, %v3984
    %4059 = vst.msk [vmem:[#allocation2 + $0xd8] sm:$0xf] %vm1856, %v3986
    %4060 = vst.msk [vmem:[#allocation2 + $0xdc] sm:$0xf] %vm1856, %v3988
    %4061 = vst.msk [vmem:[#allocation2 + $0xe0] sm:$0xf] %vm1856, %v3990
    %4062 = vst.msk [vmem:[#allocation2 + $0xe4] sm:$0xf] %vm1856, %v3992
    %4063 = vst.msk [vmem:[#allocation2 + $0xe8] sm:$0xf] %vm1856, %v3994
    %4064 = vst.msk [vmem:[#allocation2 + $0xec] sm:$0xf] %vm1856, %v3996
    %4065 = vst.msk [vmem:[#allocation2 + $0xf0] sm:$0xf] %vm1856, %v3998
    %4066 = vst.msk [vmem:[#allocation2 + $0xf4] sm:$0xf] %vm1856, %v4000
    %4067 = vst.msk [vmem:[#allocation2 + $0xf8] sm:$0xf] %vm1856, %v4002
    %4068 = vst.msk [vmem:[#allocation2 + $0xfc] sm:$0xf] %vm1856, %v4004
    %v4070 = vunpack.c.h.b16 %v2742
    %v4071 = vunpack.c.l.b16 %v2746
    %v4072 = vpack.c.b16 %v4070, %v4070
    %v4073 = vpack.c.b16 %v4071, %v4071
    %v4074 = vshrl.u32 %v3226, 16
    %v4076 = vrot.slane %v4074, 4
    %v4077 = vor.u32 %v4076, %v3530
    %v4078 = vrot.slane %v4077, 4
    %v4080 = vshll.u32 %v4072, 16
    %v4082 = vrot.slane %v4080, 5
    %v4083 = vsel %vm1010, %v4078, %v4082
    %v4084 = vshrl.u32 %v4072, 16
    %v4086 = vrot.slane %v4084, 4
    %v4087 = vor.u32 %v4086, %v4082
    %v4088 = vrot.slane %v4087, 4
    %v4090 = vshll.u32 %v4073, 16
    %v4092 = vrot.slane %v4090, 5
    %v4093 = vsel %vm1010, %v4088, %v4092
    %4094 = vrot.lane.b32.xlu0 %v3241, 16
    %v4095 = vpop.permute.xlu0 %4094
    %4096 = vrot.lane.b32.xlu0 %v3251, 16
    %v4097 = vpop.permute.xlu0 %4096
    %4098 = vrot.lane.b32.xlu0 %v3261, 16
    %v4099 = vpop.permute.xlu0 %4098
    %4100 = vrot.lane.b32.xlu0 %v3271, 16
    %v4101 = vpop.permute.xlu0 %4100
    %4102 = vrot.lane.b32.xlu0 %v3281, 16
    %v4103 = vpop.permute.xlu0 %4102
    %4104 = vrot.lane.b32.xlu0 %v3291, 16
    %v4105 = vpop.permute.xlu0 %4104
    %4106 = vrot.lane.b32.xlu0 %v3301, 16
    %v4107 = vpop.permute.xlu0 %4106
    %4108 = vrot.lane.b32.xlu0 %v3311, 16
    %v4109 = vpop.permute.xlu0 %4108
    %4110 = vrot.lane.b32.xlu0 %v3321, 16
    %v4111 = vpop.permute.xlu0 %4110
    %4112 = vrot.lane.b32.xlu0 %v3331, 16
    %v4113 = vpop.permute.xlu0 %4112
    %4114 = vrot.lane.b32.xlu0 %v3341, 16
    %v4115 = vpop.permute.xlu0 %4114
    %4116 = vrot.lane.b32.xlu0 %v3351, 16
    %v4117 = vpop.permute.xlu0 %4116
    %4118 = vrot.lane.b32.xlu0 %v3361, 16
    %v4119 = vpop.permute.xlu0 %4118
    %4120 = vrot.lane.b32.xlu0 %v3371, 16
    %v4121 = vpop.permute.xlu0 %4120
    %4122 = vrot.lane.b32.xlu0 %v3381, 16
    %v4123 = vpop.permute.xlu0 %4122
    %4124 = vrot.lane.b32.xlu0 %v3391, 16
    %v4125 = vpop.permute.xlu0 %4124
    %4126 = vrot.lane.b32.xlu0 %v3401, 16
    %v4127 = vpop.permute.xlu0 %4126
    %4128 = vrot.lane.b32.xlu0 %v3411, 16
    %v4129 = vpop.permute.xlu0 %4128
    %4130 = vrot.lane.b32.xlu0 %v3421, 16
    %v4131 = vpop.permute.xlu0 %4130
    %4132 = vrot.lane.b32.xlu0 %v3431, 16
    %v4133 = vpop.permute.xlu0 %4132
    %4134 = vrot.lane.b32.xlu0 %v3441, 16
    %v4135 = vpop.permute.xlu0 %4134
    %4136 = vrot.lane.b32.xlu0 %v3451, 16
    %v4137 = vpop.permute.xlu0 %4136
    %4138 = vrot.lane.b32.xlu0 %v3461, 16
    %v4139 = vpop.permute.xlu0 %4138
    %4140 = vrot.lane.b32.xlu0 %v3471, 16
    %v4141 = vpop.permute.xlu0 %4140
    %4142 = vrot.lane.b32.xlu0 %v3481, 16
    %v4143 = vpop.permute.xlu0 %4142
    %4144 = vrot.lane.b32.xlu0 %v3491, 16
    %v4145 = vpop.permute.xlu0 %4144
    %4146 = vrot.lane.b32.xlu0 %v3501, 16
    %v4147 = vpop.permute.xlu0 %4146
    %4148 = vrot.lane.b32.xlu0 %v3511, 16
    %v4149 = vpop.permute.xlu0 %4148
    %4150 = vrot.lane.b32.xlu0 %v3521, 16
    %v4151 = vpop.permute.xlu0 %4150
    %4152 = vrot.lane.b32.xlu0 %v3531, 16
    %v4153 = vpop.permute.xlu0 %4152
    %4154 = vrot.lane.b32.xlu0 %v4083, 16
    %v4155 = vpop.permute.xlu0 %4154
    %4156 = vrot.lane.b32.xlu0 %v4093, 16
    %v4157 = vpop.permute.xlu0 %4156
    %4190 = vst.msk [vmem:[#allocation2 + $0x80] sm:$0xf] %vm2010, %v4095
    %4191 = vst.msk [vmem:[#allocation2 + $0x84] sm:$0xf] %vm2010, %v4097
    %4192 = vst.msk [vmem:[#allocation2 + $0x88] sm:$0xf] %vm2010, %v4099
    %4193 = vst.msk [vmem:[#allocation2 + $0x8c] sm:$0xf] %vm2010, %v4101
    %4194 = vst.msk [vmem:[#allocation2 + $0x90] sm:$0xf] %vm2010, %v4103
    %4195 = vst.msk [vmem:[#allocation2 + $0x94] sm:$0xf] %vm2010, %v4105
    %4196 = vst.msk [vmem:[#allocation2 + $0x98] sm:$0xf] %vm2010, %v4107
    %4197 = vst.msk [vmem:[#allocation2 + $0x9c] sm:$0xf] %vm2010, %v4109
    %4198 = vst.msk [vmem:[#allocation2 + $0xa0] sm:$0xf] %vm2010, %v4111
    %4199 = vst.msk [vmem:[#allocation2 + $0xa4] sm:$0xf] %vm2010, %v4113
    %4200 = vst.msk [vmem:[#allocation2 + $0xa8] sm:$0xf] %vm2010, %v4115
    %4201 = vst.msk [vmem:[#allocation2 + $0xac] sm:$0xf] %vm2010, %v4117
    %4202 = vst.msk [vmem:[#allocation2 + $0xb0] sm:$0xf] %vm2010, %v4119
    %4203 = vst.msk [vmem:[#allocation2 + $0xb4] sm:$0xf] %vm2010, %v4121
    %4204 = vst.msk [vmem:[#allocation2 + $0xb8] sm:$0xf] %vm2010, %v4123
    %4205 = vst.msk [vmem:[#allocation2 + $0xbc] sm:$0xf] %vm2010, %v4125
    %4206 = vst.msk [vmem:[#allocation2 + $0xc0] sm:$0xf] %vm2010, %v4127
    %4207 = vst.msk [vmem:[#allocation2 + $0xc4] sm:$0xf] %vm2010, %v4129
    %4208 = vst.msk [vmem:[#allocation2 + $0xc8] sm:$0xf] %vm2010, %v4131
    %4209 = vst.msk [vmem:[#allocation2 + $0xcc] sm:$0xf] %vm2010, %v4133
    %4210 = vst.msk [vmem:[#allocation2 + $0xd0] sm:$0xf] %vm2010, %v4135
    %4211 = vst.msk [vmem:[#allocation2 + $0xd4] sm:$0xf] %vm2010, %v4137
    %4212 = vst.msk [vmem:[#allocation2 + $0xd8] sm:$0xf] %vm2010, %v4139
    %4213 = vst.msk [vmem:[#allocation2 + $0xdc] sm:$0xf] %vm2010, %v4141
    %4214 = vst.msk [vmem:[#allocation2 + $0xe0] sm:$0xf] %vm2010, %v4143
    %4215 = vst.msk [vmem:[#allocation2 + $0xe4] sm:$0xf] %vm2010, %v4145
    %4216 = vst.msk [vmem:[#allocation2 + $0xe8] sm:$0xf] %vm2010, %v4147
    %4217 = vst.msk [vmem:[#allocation2 + $0xec] sm:$0xf] %vm2010, %v4149
    %4218 = vst.msk [vmem:[#allocation2 + $0xf0] sm:$0xf] %vm2010, %v4151
    %4219 = vst.msk [vmem:[#allocation2 + $0xf4] sm:$0xf] %vm2010, %v4153
    %4220 = vst.msk [vmem:[#allocation2 + $0xf8] sm:$0xf] %vm2010, %v4155
    %4221 = vst.msk [vmem:[#allocation2 + $0xfc] sm:$0xf] %vm2010, %v4157
    %v4223 = vunpack.c.h.b16 %v2889
    %v4224 = vunpack.c.l.b16 %v2893
    %v4225 = vpack.c.b16 %v4223, %v4223
    %v4226 = vpack.c.b16 %v4224, %v4224
    %v4227 = vrot.slane %v3810, 4
    %v4228 = vrot.slane %v4225, 5
    %v4229 = vsel %vm1529, %v4227, %v4228
    %v4230 = vrot.slane %v4228, 4
    %v4231 = vrot.slane %v4226, 5
    %v4232 = vsel %vm1529, %v4230, %v4231
    %4233 = vrot.lane.b32.xlu0 %v3724, 20
    %v4234 = vpop.permute.xlu0 %4233
    %4235 = vrot.lane.b32.xlu0 %v3727, 20
    %v4236 = vpop.permute.xlu0 %4235
    %4237 = vrot.lane.b32.xlu0 %v3730, 20
    %v4238 = vpop.permute.xlu0 %4237
    %4239 = vrot.lane.b32.xlu0 %v3733, 20
    %v4240 = vpop.permute.xlu0 %4239
    %4241 = vrot.lane.b32.xlu0 %v3736, 20
    %v4242 = vpop.permute.xlu0 %4241
    %4243 = vrot.lane.b32.xlu0 %v3739, 20
    %v4244 = vpop.permute.xlu0 %4243
    %4245 = vrot.lane.b32.xlu0 %v3742, 20
    %v4246 = vpop.permute.xlu0 %4245
    %4247 = vrot.lane.b32.xlu0 %v3745, 20
    %v4248 = vpop.permute.xlu0 %4247
    %4249 = vrot.lane.b32.xlu0 %v3748, 20
    %v4250 = vpop.permute.xlu0 %4249
    %4251 = vrot.lane.b32.xlu0 %v3751, 20
    %v4252 = vpop.permute.xlu0 %4251
    %4253 = vrot.lane.b32.xlu0 %v3754, 20
    %v4254 = vpop.permute.xlu0 %4253
    %4255 = vrot.lane.b32.xlu0 %v3757, 20
    %v4256 = vpop.permute.xlu0 %4255
    %4257 = vrot.lane.b32.xlu0 %v3760, 20
    %v4258 = vpop.permute.xlu0 %4257
    %4259 = vrot.lane.b32.xlu0 %v3763, 20
    %v4260 = vpop.permute.xlu0 %4259
    %4261 = vrot.lane.b32.xlu0 %v3766, 20
    %v4262 = vpop.permute.xlu0 %4261
    %4263 = vrot.lane.b32.xlu0 %v3769, 20
    %v4264 = vpop.permute.xlu0 %4263
    %4265 = vrot.lane.b32.xlu0 %v3772, 20
    %v4266 = vpop.permute.xlu0 %4265
    %4267 = vrot.lane.b32.xlu0 %v3775, 20
    %v4268 = vpop.permute.xlu0 %4267
    %4269 = vrot.lane.b32.xlu0 %v3778, 20
    %v4270 = vpop.permute.xlu0 %4269
    %4271 = vrot.lane.b32.xlu0 %v3781, 20
    %v4272 = vpop.permute.xlu0 %4271
    %4273 = vrot.lane.b32.xlu0 %v3784, 20
    %v4274 = vpop.permute.xlu0 %4273
    %4275 = vrot.lane.b32.xlu0 %v3787, 20
    %v4276 = vpop.permute.xlu0 %4275
    %4277 = vrot.lane.b32.xlu0 %v3790, 20
    %v4278 = vpop.permute.xlu0 %4277
    %4279 = vrot.lane.b32.xlu0 %v3793, 20
    %v4280 = vpop.permute.xlu0 %4279
    %4281 = vrot.lane.b32.xlu0 %v3796, 20
    %v4282 = vpop.permute.xlu0 %4281
    %4283 = vrot.lane.b32.xlu0 %v3799, 20
    %v4284 = vpop.permute.xlu0 %4283
    %4285 = vrot.lane.b32.xlu0 %v3802, 20
    %v4286 = vpop.permute.xlu0 %4285
    %4287 = vrot.lane.b32.xlu0 %v3805, 20
    %v4288 = vpop.permute.xlu0 %4287
    %4289 = vrot.lane.b32.xlu0 %v3808, 20
    %v4290 = vpop.permute.xlu0 %4289
    %4291 = vrot.lane.b32.xlu0 %v3811, 20
    %v4292 = vpop.permute.xlu0 %4291
    %4293 = vrot.lane.b32.xlu0 %v4229, 20
    %v4294 = vpop.permute.xlu0 %4293
    %4295 = vrot.lane.b32.xlu0 %v4232, 20
    %v4296 = vpop.permute.xlu0 %4295
    %4329 = vst.msk [vmem:[#allocation2 + $0x80] sm:$0xf] %vm2150, %v4234
    %4330 = vst.msk [vmem:[#allocation2 + $0x84] sm:$0xf] %vm2150, %v4236
    %4331 = vst.msk [vmem:[#allocation2 + $0x88] sm:$0xf] %vm2150, %v4238
    %4332 = vst.msk [vmem:[#allocation2 + $0x8c] sm:$0xf] %vm2150, %v4240
    %4333 = vst.msk [vmem:[#allocation2 + $0x90] sm:$0xf] %vm2150, %v4242
    %4334 = vst.msk [vmem:[#allocation2 + $0x94] sm:$0xf] %vm2150, %v4244
    %4335 = vst.msk [vmem:[#allocation2 + $0x98] sm:$0xf] %vm2150, %v4246
    %4336 = vst.msk [vmem:[#allocation2 + $0x9c] sm:$0xf] %vm2150, %v4248
    %4337 = vst.msk [vmem:[#allocation2 + $0xa0] sm:$0xf] %vm2150, %v4250
    %4338 = vst.msk [vmem:[#allocation2 + $0xa4] sm:$0xf] %vm2150, %v4252
    %4339 = vst.msk [vmem:[#allocation2 + $0xa8] sm:$0xf] %vm2150, %v4254
    %4340 = vst.msk [vmem:[#allocation2 + $0xac] sm:$0xf] %vm2150, %v4256
    %4341 = vst.msk [vmem:[#allocation2 + $0xb0] sm:$0xf] %vm2150, %v4258
    %4342 = vst.msk [vmem:[#allocation2 + $0xb4] sm:$0xf] %vm2150, %v4260
    %4343 = vst.msk [vmem:[#allocation2 + $0xb8] sm:$0xf] %vm2150, %v4262
    %4344 = vst.msk [vmem:[#allocation2 + $0xbc] sm:$0xf] %vm2150, %v4264
    %4345 = vst.msk [vmem:[#allocation2 + $0xc0] sm:$0xf] %vm2150, %v4266
    %4346 = vst.msk [vmem:[#allocation2 + $0xc4] sm:$0xf] %vm2150, %v4268
    %4347 = vst.msk [vmem:[#allocation2 + $0xc8] sm:$0xf] %vm2150, %v4270
    %4348 = vst.msk [vmem:[#allocation2 + $0xcc] sm:$0xf] %vm2150, %v4272
    %4349 = vst.msk [vmem:[#allocation2 + $0xd0] sm:$0xf] %vm2150, %v4274
    %4350 = vst.msk [vmem:[#allocation2 + $0xd4] sm:$0xf] %vm2150, %v4276
    %4351 = vst.msk [vmem:[#allocation2 + $0xd8] sm:$0xf] %vm2150, %v4278
    %4352 = vst.msk [vmem:[#allocation2 + $0xdc] sm:$0xf] %vm2150, %v4280
    %4353 = vst.msk [vmem:[#allocation2 + $0xe0] sm:$0xf] %vm2150, %v4282
    %4354 = vst.msk [vmem:[#allocation2 + $0xe4] sm:$0xf] %vm2150, %v4284
    %4355 = vst.msk [vmem:[#allocation2 + $0xe8] sm:$0xf] %vm2150, %v4286
    %4356 = vst.msk [vmem:[#allocation2 + $0xec] sm:$0xf] %vm2150, %v4288
    %4357 = vst.msk [vmem:[#allocation2 + $0xf0] sm:$0xf] %vm2150, %v4290
    %4358 = vst.msk [vmem:[#allocation2 + $0xf4] sm:$0xf] %vm2150, %v4292
    %4359 = vst.msk [vmem:[#allocation2 + $0xf8] sm:$0xf] %vm2150, %v4294
    %4360 = vst.msk [vmem:[#allocation2 + $0xfc] sm:$0xf] %vm2150, %v4296
    %v4362 = vunpack.c.l.b16 %v3040
    %v4363 = vunpack.c.h.b16 %v3040
    %v4364 = vpack.c.b16 %v4362, %v4362
    %v4365 = vpack.c.b16 %v4363, %v4363
    %4366 = vrot.lane.b32.xlu0 %v3074, 24
    %v4367 = vpop.permute.xlu0 %4366
    %4368 = vrot.lane.b32.xlu0 %v3075, 24
    %v4369 = vpop.permute.xlu0 %4368
    %4370 = vrot.lane.b32.xlu0 %v3076, 24
    %v4371 = vpop.permute.xlu0 %4370
    %4372 = vrot.lane.b32.xlu0 %v3077, 24
    %v4373 = vpop.permute.xlu0 %4372
    %4374 = vrot.lane.b32.xlu0 %v3078, 24
    %v4375 = vpop.permute.xlu0 %4374
    %4376 = vrot.lane.b32.xlu0 %v3079, 24
    %v4377 = vpop.permute.xlu0 %4376
    %4378 = vrot.lane.b32.xlu0 %v3080, 24
    %v4379 = vpop.permute.xlu0 %4378
    %4380 = vrot.lane.b32.xlu0 %v3081, 24
    %v4381 = vpop.permute.xlu0 %4380
    %4382 = vrot.lane.b32.xlu0 %v3082, 24
    %v4383 = vpop.permute.xlu0 %4382
    %4384 = vrot.lane.b32.xlu0 %v3083, 24
    %v4385 = vpop.permute.xlu0 %4384
    %4386 = vrot.lane.b32.xlu0 %v3084, 24
    %v4387 = vpop.permute.xlu0 %4386
    %4388 = vrot.lane.b32.xlu0 %v3085, 24
    %v4389 = vpop.permute.xlu0 %4388
    %4390 = vrot.lane.b32.xlu0 %v3086, 24
    %v4391 = vpop.permute.xlu0 %4390
    %4392 = vrot.lane.b32.xlu0 %v3087, 24
    %v4393 = vpop.permute.xlu0 %4392
    %4394 = vrot.lane.b32.xlu0 %v3088, 24
    %v4395 = vpop.permute.xlu0 %4394
    %4396 = vrot.lane.b32.xlu0 %v3089, 24
    %v4397 = vpop.permute.xlu0 %4396
    %4398 = vrot.lane.b32.xlu0 %v3090, 24
    %v4399 = vpop.permute.xlu0 %4398
    %4400 = vrot.lane.b32.xlu0 %v3091, 24
    %v4401 = vpop.permute.xlu0 %4400
    %4402 = vrot.lane.b32.xlu0 %v3092, 24
    %v4403 = vpop.permute.xlu0 %4402
    %4404 = vrot.lane.b32.xlu0 %v3093, 24
    %v4405 = vpop.permute.xlu0 %4404
    %4406 = vrot.lane.b32.xlu0 %v3094, 24
    %v4407 = vpop.permute.xlu0 %4406
    %4408 = vrot.lane.b32.xlu0 %v3095, 24
    %v4409 = vpop.permute.xlu0 %4408
    %4410 = vrot.lane.b32.xlu0 %v3096, 24
    %v4411 = vpop.permute.xlu0 %4410
    %4412 = vrot.lane.b32.xlu0 %v3097, 24
    %v4413 = vpop.permute.xlu0 %4412
    %4414 = vrot.lane.b32.xlu0 %v3098, 24
    %v4415 = vpop.permute.xlu0 %4414
    %4416 = vrot.lane.b32.xlu0 %v3099, 24
    %v4417 = vpop.permute.xlu0 %4416
    %4418 = vrot.lane.b32.xlu0 %v3100, 24
    %v4419 = vpop.permute.xlu0 %4418
    %4420 = vrot.lane.b32.xlu0 %v3101, 24
    %v4421 = vpop.permute.xlu0 %4420
    %4422 = vrot.lane.b32.xlu0 %v3939, 24
    %v4423 = vpop.permute.xlu0 %4422
    %4424 = vrot.lane.b32.xlu0 %v3940, 24
    %v4425 = vpop.permute.xlu0 %4424
    %4426 = vrot.lane.b32.xlu0 %v4364, 24
    %v4427 = vpop.permute.xlu0 %4426
    %4428 = vrot.lane.b32.xlu0 %v4365, 24
    %v4429 = vpop.permute.xlu0 %4428
    %4462 = vst.msk [vmem:[#allocation2 + $0x80] sm:$0xf] %vm2284, %v4367
    %4463 = vst.msk [vmem:[#allocation2 + $0x84] sm:$0xf] %vm2284, %v4369
    %4464 = vst.msk [vmem:[#allocation2 + $0x88] sm:$0xf] %vm2284, %v4371
    %4465 = vst.msk [vmem:[#allocation2 + $0x8c] sm:$0xf] %vm2284, %v4373
    %4466 = vst.msk [vmem:[#allocation2 + $0x90] sm:$0xf] %vm2284, %v4375
    %4467 = vst.msk [vmem:[#allocation2 + $0x94] sm:$0xf] %vm2284, %v4377
    %4468 = vst.msk [vmem:[#allocation2 + $0x98] sm:$0xf] %vm2284, %v4379
    %4469 = vst.msk [vmem:[#allocation2 + $0x9c] sm:$0xf] %vm2284, %v4381
    %4470 = vst.msk [vmem:[#allocation2 + $0xa0] sm:$0xf] %vm2284, %v4383
    %4471 = vst.msk [vmem:[#allocation2 + $0xa4] sm:$0xf] %vm2284, %v4385
    %4472 = vst.msk [vmem:[#allocation2 + $0xa8] sm:$0xf] %vm2284, %v4387
    %4473 = vst.msk [vmem:[#allocation2 + $0xac] sm:$0xf] %vm2284, %v4389
    %4474 = vst.msk [vmem:[#allocation2 + $0xb0] sm:$0xf] %vm2284, %v4391
    %4475 = vst.msk [vmem:[#allocation2 + $0xb4] sm:$0xf] %vm2284, %v4393
    %4476 = vst.msk [vmem:[#allocation2 + $0xb8] sm:$0xf] %vm2284, %v4395
    %4477 = vst.msk [vmem:[#allocation2 + $0xbc] sm:$0xf] %vm2284, %v4397
    %4478 = vst.msk [vmem:[#allocation2 + $0xc0] sm:$0xf] %vm2284, %v4399
    %4479 = vst.msk [vmem:[#allocation2 + $0xc4] sm:$0xf] %vm2284, %v4401
    %4480 = vst.msk [vmem:[#allocation2 + $0xc8] sm:$0xf] %vm2284, %v4403
    %4481 = vst.msk [vmem:[#allocation2 + $0xcc] sm:$0xf] %vm2284, %v4405
    %4482 = vst.msk [vmem:[#allocation2 + $0xd0] sm:$0xf] %vm2284, %v4407
    %4483 = vst.msk [vmem:[#allocation2 + $0xd4] sm:$0xf] %vm2284, %v4409
    %4484 = vst.msk [vmem:[#allocation2 + $0xd8] sm:$0xf] %vm2284, %v4411
    %4485 = vst.msk [vmem:[#allocation2 + $0xdc] sm:$0xf] %vm2284, %v4413
    %4486 = vst.msk [vmem:[#allocation2 + $0xe0] sm:$0xf] %vm2284, %v4415
    %4487 = vst.msk [vmem:[#allocation2 + $0xe4] sm:$0xf] %vm2284, %v4417
    %4488 = vst.msk [vmem:[#allocation2 + $0xe8] sm:$0xf] %vm2284, %v4419
    %4489 = vst.msk [vmem:[#allocation2 + $0xec] sm:$0xf] %vm2284, %v4421
    %4490 = vst.msk [vmem:[#allocation2 + $0xf0] sm:$0xf] %vm2284, %v4423
    %4491 = vst.msk [vmem:[#allocation2 + $0xf4] sm:$0xf] %vm2284, %v4425
    %4492 = vst.msk [vmem:[#allocation2 + $0xf8] sm:$0xf] %vm2284, %v4427
    %4493 = vst.msk [vmem:[#allocation2 + $0xfc] sm:$0xf] %vm2284, %v4429
    %v4494 = vunpack.c.h.b16 %v2746
    %v4495 = vpack.c.b16 %v4494, %v4494
    %v4496 = vshrl.u32 %v4073, 16
    %v4498 = vrot.slane %v4496, 4
    %v4499 = vor.u32 %v4498, %v4092
    %v4500 = vrot.slane %v4499, 4
    %v4502 = vshll.u32 %v4495, 16
    %v4504 = vrot.slane %v4502, 5
    %v4505 = vsel %vm1010, %v4500, %v4504
    %v4506 = vshrl.u32 %v4495, 16
    %v4508 = vrot.slane %v4506, 4
    %v4509 = vor.u32 %v4508, %v4504
    %v4510 = vrot.slane %v4509, 4
    %v4511 = vsel %vm1010, %v4510, %v1017
    %4512 = vrot.lane.b32.xlu0 %v3261, 28
    %v4513 = vpop.permute.xlu0 %4512
    %4514 = vrot.lane.b32.xlu0 %v3271, 28
    %v4515 = vpop.permute.xlu0 %4514
    %4516 = vrot.lane.b32.xlu0 %v3281, 28
    %v4517 = vpop.permute.xlu0 %4516
    %4518 = vrot.lane.b32.xlu0 %v3291, 28
    %v4519 = vpop.permute.xlu0 %4518
    %4520 = vrot.lane.b32.xlu0 %v3301, 28
    %v4521 = vpop.permute.xlu0 %4520
    %4522 = vrot.lane.b32.xlu0 %v3311, 28
    %v4523 = vpop.permute.xlu0 %4522
    %4524 = vrot.lane.b32.xlu0 %v3321, 28
    %v4525 = vpop.permute.xlu0 %4524
    %4526 = vrot.lane.b32.xlu0 %v3331, 28
    %v4527 = vpop.permute.xlu0 %4526
    %4528 = vrot.lane.b32.xlu0 %v3341, 28
    %v4529 = vpop.permute.xlu0 %4528
    %4530 = vrot.lane.b32.xlu0 %v3351, 28
    %v4531 = vpop.permute.xlu0 %4530
    %4532 = vrot.lane.b32.xlu0 %v3361, 28
    %v4533 = vpop.permute.xlu0 %4532
    %4534 = vrot.lane.b32.xlu0 %v3371, 28
    %v4535 = vpop.permute.xlu0 %4534
    %4536 = vrot.lane.b32.xlu0 %v3381, 28
    %v4537 = vpop.permute.xlu0 %4536
    %4538 = vrot.lane.b32.xlu0 %v3391, 28
    %v4539 = vpop.permute.xlu0 %4538
    %4540 = vrot.lane.b32.xlu0 %v3401, 28
    %v4541 = vpop.permute.xlu0 %4540
    %4542 = vrot.lane.b32.xlu0 %v3411, 28
    %v4543 = vpop.permute.xlu0 %4542
    %4544 = vrot.lane.b32.xlu0 %v3421, 28
    %v4545 = vpop.permute.xlu0 %4544
    %4546 = vrot.lane.b32.xlu0 %v3431, 28
    %v4547 = vpop.permute.xlu0 %4546
    %4548 = vrot.lane.b32.xlu0 %v3441, 28
    %v4549 = vpop.permute.xlu0 %4548
    %4550 = vrot.lane.b32.xlu0 %v3451, 28
    %v4551 = vpop.permute.xlu0 %4550
    %4552 = vrot.lane.b32.xlu0 %v3461, 28
    %v4553 = vpop.permute.xlu0 %4552
    %4554 = vrot.lane.b32.xlu0 %v3471, 28
    %v4555 = vpop.permute.xlu0 %4554
    %4556 = vrot.lane.b32.xlu0 %v3481, 28
    %v4557 = vpop.permute.xlu0 %4556
    %4558 = vrot.lane.b32.xlu0 %v3491, 28
    %v4559 = vpop.permute.xlu0 %4558
    %4560 = vrot.lane.b32.xlu0 %v3501, 28
    %v4561 = vpop.permute.xlu0 %4560
    %4562 = vrot.lane.b32.xlu0 %v3511, 28
    %v4563 = vpop.permute.xlu0 %4562
    %4564 = vrot.lane.b32.xlu0 %v3521, 28
    %v4565 = vpop.permute.xlu0 %4564
    %4566 = vrot.lane.b32.xlu0 %v3531, 28
    %v4567 = vpop.permute.xlu0 %4566
    %4568 = vrot.lane.b32.xlu0 %v4083, 28
    %v4569 = vpop.permute.xlu0 %4568
    %4570 = vrot.lane.b32.xlu0 %v4093, 28
    %v4571 = vpop.permute.xlu0 %4570
    %4572 = vrot.lane.b32.xlu0 %v4505, 28
    %v4573 = vpop.permute.xlu0 %4572
    %4574 = vrot.lane.b32.xlu0 %v4511, 28
    %v4575 = vpop.permute.xlu0 %4574
    %4608 = vst.msk [vmem:[#allocation2 + $0x80] sm:$0xf] %vm2431, %v4513
    %4609 = vst.msk [vmem:[#allocation2 + $0x84] sm:$0xf] %vm2431, %v4515
    %4610 = vst.msk [vmem:[#allocation2 + $0x88] sm:$0xf] %vm2431, %v4517
    %4611 = vst.msk [vmem:[#allocation2 + $0x8c] sm:$0xf] %vm2431, %v4519
    %4612 = vst.msk [vmem:[#allocation2 + $0x90] sm:$0xf] %vm2431, %v4521
    %4613 = vst.msk [vmem:[#allocation2 + $0x94] sm:$0xf] %vm2431, %v4523
    %4614 = vst.msk [vmem:[#allocation2 + $0x98] sm:$0xf] %vm2431, %v4525
    %4615 = vst.msk [vmem:[#allocation2 + $0x9c] sm:$0xf] %vm2431, %v4527
    %4616 = vst.msk [vmem:[#allocation2 + $0xa0] sm:$0xf] %vm2431, %v4529
    %4617 = vst.msk [vmem:[#allocation2 + $0xa4] sm:$0xf] %vm2431, %v4531
    %4618 = vst.msk [vmem:[#allocation2 + $0xa8] sm:$0xf] %vm2431, %v4533
    %4619 = vst.msk [vmem:[#allocation2 + $0xac] sm:$0xf] %vm2431, %v4535
    %4620 = vst.msk [vmem:[#allocation2 + $0xb0] sm:$0xf] %vm2431, %v4537
    %4621 = vst.msk [vmem:[#allocation2 + $0xb4] sm:$0xf] %vm2431, %v4539
    %4622 = vst.msk [vmem:[#allocation2 + $0xb8] sm:$0xf] %vm2431, %v4541
    %4623 = vst.msk [vmem:[#allocation2 + $0xbc] sm:$0xf] %vm2431, %v4543
    %4624 = vst.msk [vmem:[#allocation2 + $0xc0] sm:$0xf] %vm2431, %v4545
    %4625 = vst.msk [vmem:[#allocation2 + $0xc4] sm:$0xf] %vm2431, %v4547
    %4626 = vst.msk [vmem:[#allocation2 + $0xc8] sm:$0xf] %vm2431, %v4549
    %4627 = vst.msk [vmem:[#allocation2 + $0xcc] sm:$0xf] %vm2431, %v4551
    %4628 = vst.msk [vmem:[#allocation2 + $0xd0] sm:$0xf] %vm2431, %v4553
    %4629 = vst.msk [vmem:[#allocation2 + $0xd4] sm:$0xf] %vm2431, %v4555
    %4630 = vst.msk [vmem:[#allocation2 + $0xd8] sm:$0xf] %vm2431, %v4557
    %4631 = vst.msk [vmem:[#allocation2 + $0xdc] sm:$0xf] %vm2431, %v4559
    %4632 = vst.msk [vmem:[#allocation2 + $0xe0] sm:$0xf] %vm2431, %v4561
    %4633 = vst.msk [vmem:[#allocation2 + $0xe4] sm:$0xf] %vm2431, %v4563
    %4634 = vst.msk [vmem:[#allocation2 + $0xe8] sm:$0xf] %vm2431, %v4565
    %4635 = vst.msk [vmem:[#allocation2 + $0xec] sm:$0xf] %vm2431, %v4567
    %4636 = vst.msk [vmem:[#allocation2 + $0xf0] sm:$0xf] %vm2431, %v4569
    %4637 = vst.msk [vmem:[#allocation2 + $0xf4] sm:$0xf] %vm2431, %v4571
    %4638 = vst.msk [vmem:[#allocation2 + $0xf8] sm:$0xf] %vm2431, %v4573
    %4639 = vst.msk [vmem:[#allocation2 + $0xfc] sm:$0xf] %vm2431, %v4575
    %v4640 = vunpack.c.h.b16 %v2893
    %v4641 = vpack.c.b16 %v4640, %v4640
    %v4642 = vrot.slane %v4231, 4
    %v4643 = vrot.slane %v4641, 5
    %v4644 = vsel %vm1529, %v4642, %v4643
    %v4645 = vrot.slane %v4643, 4
    %v4646 = vsel %vm1529, %v4645, %v1530
    %4647 = vrot.lane.b32.xlu0 %v3730, 32
    %v4648 = vpop.permute.xlu0 %4647
    %4649 = vrot.lane.b32.xlu0 %v3733, 32
    %v4650 = vpop.permute.xlu0 %4649
    %4651 = vrot.lane.b32.xlu0 %v3736, 32
    %v4652 = vpop.permute.xlu0 %4651
    %4653 = vrot.lane.b32.xlu0 %v3739, 32
    %v4654 = vpop.permute.xlu0 %4653
    %4655 = vrot.lane.b32.xlu0 %v3742, 32
    %v4656 = vpop.permute.xlu0 %4655
    %4657 = vrot.lane.b32.xlu0 %v3745, 32
    %v4658 = vpop.permute.xlu0 %4657
    %4659 = vrot.lane.b32.xlu0 %v3748, 32
    %v4660 = vpop.permute.xlu0 %4659
    %4661 = vrot.lane.b32.xlu0 %v3751, 32
    %v4662 = vpop.permute.xlu0 %4661
    %4663 = vrot.lane.b32.xlu0 %v3754, 32
    %v4664 = vpop.permute.xlu0 %4663
    %4665 = vrot.lane.b32.xlu0 %v3757, 32
    %v4666 = vpop.permute.xlu0 %4665
    %4667 = vrot.lane.b32.xlu0 %v3760, 32
    %v4668 = vpop.permute.xlu0 %4667
    %4669 = vrot.lane.b32.xlu0 %v3763, 32
    %v4670 = vpop.permute.xlu0 %4669
    %4671 = vrot.lane.b32.xlu0 %v3766, 32
    %v4672 = vpop.permute.xlu0 %4671
    %4673 = vrot.lane.b32.xlu0 %v3769, 32
    %v4674 = vpop.permute.xlu0 %4673
    %4675 = vrot.lane.b32.xlu0 %v3772, 32
    %v4676 = vpop.permute.xlu0 %4675
    %4677 = vrot.lane.b32.xlu0 %v3775, 32
    %v4678 = vpop.permute.xlu0 %4677
    %4679 = vrot.lane.b32.xlu0 %v3778, 32
    %v4680 = vpop.permute.xlu0 %4679
    %4681 = vrot.lane.b32.xlu0 %v3781, 32
    %v4682 = vpop.permute.xlu0 %4681
    %4683 = vrot.lane.b32.xlu0 %v3784, 32
    %v4684 = vpop.permute.xlu0 %4683
    %4685 = vrot.lane.b32.xlu0 %v3787, 32
    %v4686 = vpop.permute.xlu0 %4685
    %4687 = vrot.lane.b32.xlu0 %v3790, 32
    %v4688 = vpop.permute.xlu0 %4687
    %4689 = vrot.lane.b32.xlu0 %v3793, 32
    %v4690 = vpop.permute.xlu0 %4689
    %4691 = vrot.lane.b32.xlu0 %v3796, 32
    %v4692 = vpop.permute.xlu0 %4691
    %4693 = vrot.lane.b32.xlu0 %v3799, 32
    %v4694 = vpop.permute.xlu0 %4693
    %4695 = vrot.lane.b32.xlu0 %v3802, 32
    %v4696 = vpop.permute.xlu0 %4695
    %4697 = vrot.lane.b32.xlu0 %v3805, 32
    %v4698 = vpop.permute.xlu0 %4697
    %4699 = vrot.lane.b32.xlu0 %v3808, 32
    %v4700 = vpop.permute.xlu0 %4699
    %4701 = vrot.lane.b32.xlu0 %v3811, 32
    %v4702 = vpop.permute.xlu0 %4701
    %4703 = vrot.lane.b32.xlu0 %v4229, 32
    %v4704 = vpop.permute.xlu0 %4703
    %4705 = vrot.lane.b32.xlu0 %v4232, 32
    %v4706 = vpop.permute.xlu0 %4705
    %4707 = vrot.lane.b32.xlu0 %v4644, 32
    %v4708 = vpop.permute.xlu0 %4707
    %4709 = vrot.lane.b32.xlu0 %v4646, 32
    %v4710 = vpop.permute.xlu0 %4709
    %4743 = vst.msk [vmem:[#allocation2 + $0x80] sm:$0xf] %vm2567, %v4648
    %4744 = vst.msk [vmem:[#allocation2 + $0x84] sm:$0xf] %vm2567, %v4650
    %4745 = vst.msk [vmem:[#allocation2 + $0x88] sm:$0xf] %vm2567, %v4652
    %4746 = vst.msk [vmem:[#allocation2 + $0x8c] sm:$0xf] %vm2567, %v4654
    %4747 = vst.msk [vmem:[#allocation2 + $0x90] sm:$0xf] %vm2567, %v4656
    %4748 = vst.msk [vmem:[#allocation2 + $0x94] sm:$0xf] %vm2567, %v4658
    %4749 = vst.msk [vmem:[#allocation2 + $0x98] sm:$0xf] %vm2567, %v4660
    %4750 = vst.msk [vmem:[#allocation2 + $0x9c] sm:$0xf] %vm2567, %v4662
    %4751 = vst.msk [vmem:[#allocation2 + $0xa0] sm:$0xf] %vm2567, %v4664
    %4752 = vst.msk [vmem:[#allocation2 + $0xa4] sm:$0xf] %vm2567, %v4666
    %4753 = vst.msk [vmem:[#allocation2 + $0xa8] sm:$0xf] %vm2567, %v4668
    %4754 = vst.msk [vmem:[#allocation2 + $0xac] sm:$0xf] %vm2567, %v4670
    %4755 = vst.msk [vmem:[#allocation2 + $0xb0] sm:$0xf] %vm2567, %v4672
    %4756 = vst.msk [vmem:[#allocation2 + $0xb4] sm:$0xf] %vm2567, %v4674
    %4757 = vst.msk [vmem:[#allocation2 + $0xb8] sm:$0xf] %vm2567, %v4676
    %4758 = vst.msk [vmem:[#allocation2 + $0xbc] sm:$0xf] %vm2567, %v4678
    %4759 = vst.msk [vmem:[#allocation2 + $0xc0] sm:$0xf] %vm2567, %v4680
    %4760 = vst.msk [vmem:[#allocation2 + $0xc4] sm:$0xf] %vm2567, %v4682
    %4761 = vst.msk [vmem:[#allocation2 + $0xc8] sm:$0xf] %vm2567, %v4684
    %4762 = vst.msk [vmem:[#allocation2 + $0xcc] sm:$0xf] %vm2567, %v4686
    %4763 = vst.msk [vmem:[#allocation2 + $0xd0] sm:$0xf] %vm2567, %v4688
    %4764 = vst.msk [vmem:[#allocation2 + $0xd4] sm:$0xf] %vm2567, %v4690
    %4765 = vst.msk [vmem:[#allocation2 + $0xd8] sm:$0xf] %vm2567, %v4692
    %4766 = vst.msk [vmem:[#allocation2 + $0xdc] sm:$0xf] %vm2567, %v4694
    %4767 = vst.msk [vmem:[#allocation2 + $0xe0] sm:$0xf] %vm2567, %v4696
    %4768 = vst.msk [vmem:[#allocation2 + $0xe4] sm:$0xf] %vm2567, %v4698
    %4769 = vst.msk [vmem:[#allocation2 + $0xe8] sm:$0xf] %vm2567, %v4700
    %4770 = vst.msk [vmem:[#allocation2 + $0xec] sm:$0xf] %vm2567, %v4702
    %4771 = vst.msk [vmem:[#allocation2 + $0xf0] sm:$0xf] %vm2567, %v4704
    %4772 = vst.msk [vmem:[#allocation2 + $0xf4] sm:$0xf] %vm2567, %v4706
    %4773 = vst.msk [vmem:[#allocation2 + $0xf8] sm:$0xf] %vm2567, %v4708
    %4774 = vst.msk [vmem:[#allocation2 + $0xfc] sm:$0xf] %vm2567, %v4710
    %v4775 = vld [vmem:[%s1] sm:$0xf]
    %v4776 = vld [vmem:[%s1 + $0x4] sm:$0xf]
    %v4777 = vld [vmem:[%s1 + $0x8] sm:$0xf]
    %v4778 = vld [vmem:[%s1 + $0xc] sm:$0xf]
    %v4779 = vld [vmem:[%s1 + $0x10] sm:$0x3]
    %v4780 = vld [vmem:[%s2] sm:$0x1]
    %v4781 = vld [vmem:[#allocation2] sm:$0xf]
    %v4782 = vld [vmem:[#allocation2 + $0x4] sm:$0xf]
    %v4783 = vld [vmem:[#allocation2 + $0x8] sm:$0xf]
    %v4784 = vld [vmem:[#allocation2 + $0xc] sm:$0xf]
    %v4785 = vld [vmem:[#allocation2 + $0x10] sm:$0xf]
    %v4786 = vld [vmem:[#allocation2 + $0x14] sm:$0xf]
    %v4787 = vld [vmem:[#allocation2 + $0x18] sm:$0xf]
    %v4788 = vld [vmem:[#allocation2 + $0x1c] sm:$0xf]
    %v4789 = vld [vmem:[#allocation2 + $0x20] sm:$0xf]
    %v4790 = vld [vmem:[#allocation2 + $0x24] sm:$0xf]
    %v4791 = vld [vmem:[#allocation2 + $0x28] sm:$0xf]
    %v4792 = vld [vmem:[#allocation2 + $0x2c] sm:$0xf]
    %v4793 = vld [vmem:[#allocation2 + $0x30] sm:$0xf]
    %v4794 = vld [vmem:[#allocation2 + $0x34] sm:$0xf]
    %v4795 = vld [vmem:[#allocation2 + $0x38] sm:$0xf]
    %v4796 = vld [vmem:[#allocation2 + $0x3c] sm:$0xf]
    %v4797 = vld [vmem:[#allocation2 + $0x40] sm:$0xf]
    %v4798 = vld [vmem:[#allocation2 + $0x44] sm:$0xf]
    %v4799 = vld [vmem:[#allocation2 + $0x48] sm:$0xf]
    %v4800 = vld [vmem:[#allocation2 + $0x4c] sm:$0xf]
    %v4801 = vld [vmem:[#allocation2 + $0x50] sm:$0xf]
    %v4802 = vld [vmem:[#allocation2 + $0x54] sm:$0xf]
    %v4803 = vld [vmem:[#allocation2 + $0x58] sm:$0xf]
    %v4804 = vld [vmem:[#allocation2 + $0x5c] sm:$0xf]
    %v4805 = vld [vmem:[#allocation2 + $0x60] sm:$0xf]
    %v4806 = vld [vmem:[#allocation2 + $0x64] sm:$0xf]
    %v4807 = vld [vmem:[#allocation2 + $0x68] sm:$0xf]
    %v4808 = vld [vmem:[#allocation2 + $0x6c] sm:$0xf]
    %v4809 = vld [vmem:[#allocation2 + $0x70] sm:$0xf]
    %v4810 = vld [vmem:[#allocation2 + $0x74] sm:$0xf]
    %v4811 = vld [vmem:[#allocation2 + $0x78] sm:$0xf]
    %v4812 = vld [vmem:[#allocation2 + $0x7c] sm:$0xf]
    %v4813 = vld [vmem:[#allocation2 + $0x80] sm:$0xf]
    %v4814 = vld [vmem:[#allocation2 + $0x84] sm:$0xf]
    %v4815 = vld [vmem:[#allocation2 + $0x88] sm:$0xf]
    %v4816 = vld [vmem:[#allocation2 + $0x8c] sm:$0xf]
    %v4817 = vld [vmem:[#allocation2 + $0x90] sm:$0xf]
    %v4818 = vld [vmem:[#allocation2 + $0x94] sm:$0xf]
    %v4819 = vld [vmem:[#allocation2 + $0x98] sm:$0xf]
    %v4820 = vld [vmem:[#allocation2 + $0x9c] sm:$0xf]
    %v4821 = vld [vmem:[#allocation2 + $0xa0] sm:$0xf]
    %v4822 = vld [vmem:[#allocation2 + $0xa4] sm:$0xf]
    %v4823 = vld [vmem:[#allocation2 + $0xa8] sm:$0xf]
    %v4824 = vld [vmem:[#allocation2 + $0xac] sm:$0xf]
    %v4825 = vld [vmem:[#allocation2 + $0xb0] sm:$0xf]
    %v4826 = vld [vmem:[#allocation2 + $0xb4] sm:$0xf]
    %v4827 = vld [vmem:[#allocation2 + $0xb8] sm:$0xf]
    %v4828 = vld [vmem:[#allocation2 + $0xbc] sm:$0xf]
    %v4829 = vld [vmem:[#allocation2 + $0xc0] sm:$0xf]
    %v4830 = vld [vmem:[#allocation2 + $0xc4] sm:$0xf]
    %v4831 = vld [vmem:[#allocation2 + $0xc8] sm:$0xf]
    %v4832 = vld [vmem:[#allocation2 + $0xcc] sm:$0xf]
    %v4833 = vld [vmem:[#allocation2 + $0xd0] sm:$0xf]
    %v4834 = vld [vmem:[#allocation2 + $0xd4] sm:$0xf]
    %v4835 = vld [vmem:[#allocation2 + $0xd8] sm:$0xf]
    %v4836 = vld [vmem:[#allocation2 + $0xdc] sm:$0xf]
    %v4837 = vld [vmem:[#allocation2 + $0xe0] sm:$0xf]
    %v4838 = vld [vmem:[#allocation2 + $0xe4] sm:$0xf]
    %v4839 = vld [vmem:[#allocation2 + $0xe8] sm:$0xf]
    %v4840 = vld [vmem:[#allocation2 + $0xec] sm:$0xf]
    %v4841 = vld [vmem:[#allocation2 + $0xf0] sm:$0xf]
    %v4842 = vld [vmem:[#allocation2 + $0xf4] sm:$0xf]
    %v4843 = vld [vmem:[#allocation2 + $0xf8] sm:$0xf]
    %v4844 = vld [vmem:[#allocation2 + $0xfc] sm:$0xf]
    %v4845 = vlaneseq
    %v4846 = vshrl.u32 %v4845, 7
    %v4847 = vsub.s32 0, %v4846
    %v4848 = vrot.slane %v4780, %v4847
    %v4913 = vunpack.c.l.b16 %v4781
    %v4914 = vunpack.c.l.b16 %v4782
    %v4915 = vunpack.c.l.b16 %v4783
    %v4916 = vunpack.c.l.b16 %v4784
    %v4917 = vunpack.c.l.b16 %v4785
    %v4918 = vunpack.c.l.b16 %v4786
    %v4919 = vunpack.c.l.b16 %v4787
    %v4920 = vunpack.c.l.b16 %v4788
    %v4921 = vunpack.c.l.b16 %v4789
    %v4922 = vunpack.c.l.b16 %v4790
    %v4923 = vunpack.c.l.b16 %v4791
    %v4924 = vunpack.c.l.b16 %v4792
    %v4925 = vunpack.c.l.b16 %v4793
    %v4926 = vunpack.c.l.b16 %v4794
    %v4927 = vunpack.c.l.b16 %v4795
    %v4928 = vunpack.c.l.b16 %v4796
    %v4929 = vunpack.c.l.b16 %v4797
    %v4930 = vunpack.c.l.b16 %v4798
    %v4931 = vunpack.c.l.b16 %v4799
    %v4932 = vunpack.c.l.b16 %v4800
    %v4933 = vunpack.c.l.b16 %v4801
    %v4934 = vunpack.c.l.b16 %v4802
    %v4935 = vunpack.c.l.b16 %v4803
    %v4936 = vunpack.c.l.b16 %v4804
    %v4937 = vunpack.c.l.b16 %v4805
    %v4938 = vunpack.c.l.b16 %v4806
    %v4939 = vunpack.c.l.b16 %v4807
    %v4940 = vunpack.c.l.b16 %v4808
    %v4941 = vunpack.c.l.b16 %v4809
    %v4942 = vunpack.c.l.b16 %v4810
    %v4943 = vunpack.c.l.b16 %v4811
    %v4944 = vunpack.c.l.b16 %v4812
    %v4945 = vunpack.c.l.b16 %v4813
    %v4946 = vunpack.c.l.b16 %v4814
    %v4947 = vunpack.c.l.b16 %v4815
    %v4948 = vunpack.c.l.b16 %v4816
    %v4949 = vunpack.c.l.b16 %v4817
    %v4950 = vunpack.c.l.b16 %v4818
    %v4951 = vunpack.c.l.b16 %v4819
    %v4952 = vunpack.c.l.b16 %v4820
    %v4953 = vunpack.c.l.b16 %v4821
    %v4954 = vunpack.c.l.b16 %v4822
    %v4955 = vunpack.c.l.b16 %v4823
    %v4956 = vunpack.c.l.b16 %v4824
    %v4957 = vunpack.c.l.b16 %v4825
    %v4958 = vunpack.c.l.b16 %v4826
    %v4959 = vunpack.c.l.b16 %v4827
    %v4960 = vunpack.c.l.b16 %v4828
    %v4961 = vunpack.c.l.b16 %v4829
    %v4962 = vunpack.c.l.b16 %v4830
    %v4963 = vunpack.c.l.b16 %v4831
    %v4964 = vunpack.c.l.b16 %v4832
    %v4965 = vunpack.c.l.b16 %v4833
    %v4966 = vunpack.c.l.b16 %v4834
    %v4967 = vunpack.c.l.b16 %v4835
    %v4968 = vunpack.c.l.b16 %v4836
    %v4969 = vunpack.c.l.b16 %v4837
    %v4970 = vunpack.c.l.b16 %v4838
    %v4971 = vunpack.c.l.b16 %v4839
    %v4972 = vunpack.c.l.b16 %v4840
    %v4973 = vunpack.c.l.b16 %v4841
    %v4974 = vunpack.c.l.b16 %v4842
    %v4975 = vunpack.c.l.b16 %v4843
    %v4976 = vunpack.c.l.b16 %v4844
    %v4977 = vpack.c.b16 %v4914, %v4913
    %v4978 = vpack.c.b16 %v4916, %v4915
    %v4979 = vpack.c.b16 %v4918, %v4917
    %v4980 = vpack.c.b16 %v4920, %v4919
    %v4981 = vpack.c.b16 %v4922, %v4921
    %v4982 = vpack.c.b16 %v4924, %v4923
    %v4983 = vpack.c.b16 %v4926, %v4925
    %v4984 = vpack.c.b16 %v4928, %v4927
    %v4985 = vpack.c.b16 %v4930, %v4929
    %v4986 = vpack.c.b16 %v4932, %v4931
    %v4987 = vpack.c.b16 %v4934, %v4933
    %v4988 = vpack.c.b16 %v4936, %v4935
    %v4989 = vpack.c.b16 %v4938, %v4937
    %v4990 = vpack.c.b16 %v4940, %v4939
    %v4991 = vpack.c.b16 %v4942, %v4941
    %v4992 = vpack.c.b16 %v4944, %v4943
    %v4993 = vpack.c.b16 %v4946, %v4945
    %v4994 = vpack.c.b16 %v4948, %v4947
    %v4995 = vpack.c.b16 %v4950, %v4949
    %v4996 = vpack.c.b16 %v4952, %v4951
    %v4997 = vpack.c.b16 %v4954, %v4953
    %v4998 = vpack.c.b16 %v4956, %v4955
    %v4999 = vpack.c.b16 %v4958, %v4957
    %v5000 = vpack.c.b16 %v4960, %v4959
    %v5001 = vpack.c.b16 %v4962, %v4961
    %v5002 = vpack.c.b16 %v4964, %v4963
    %v5003 = vpack.c.b16 %v4966, %v4965
    %v5004 = vpack.c.b16 %v4968, %v4967
    %v5005 = vpack.c.b16 %v4970, %v4969
    %v5006 = vpack.c.b16 %v4972, %v4971
    %v5007 = vpack.c.b16 %v4974, %v4973
    %v5008 = vpack.c.b16 %v4976, %v4975
    %v5014 = vunpack.c.l.b16 %v4775
    %v5015 = vunpack.c.l.b16 %v4776
    %v5016 = vunpack.c.l.b16 %v4777
    %v5017 = vunpack.c.l.b16 %v4778
    %v5018 = vunpack.c.l.b16 %v4779
    %v5019 = vpack.c.b16 %v5015, %v5014
    %v5020 = vpack.c.b16 %v5017, %v5016
    %v5021 = vpack.c.b16 %v5018, %v5018
    %vm5024 = vcmask 293888
    %v5026 = vsel %vm5024, %v4977, 0
    %v5029 = vsel %vm5024, %v4978, 0
    %v5032 = vsel %vm5024, %v4979, 0
    %v5035 = vsel %vm5024, %v4980, 0
    %v5038 = vsel %vm5024, %v4981, 0
    %v5041 = vsel %vm5024, %v4982, 0
    %v5044 = vsel %vm5024, %v4983, 0
    %v5047 = vsel %vm5024, %v4984, 0
    %v5050 = vsel %vm5024, %v4985, 0
    %v5053 = vsel %vm5024, %v4986, 0
    %v5056 = vsel %vm5024, %v4987, 0
    %v5059 = vsel %vm5024, %v4988, 0
    %v5062 = vsel %vm5024, %v4989, 0
    %v5065 = vsel %vm5024, %v4990, 0
    %v5068 = vsel %vm5024, %v4991, 0
    %v5071 = vsel %vm5024, %v4992, 0
    %v5074 = vsel %vm5024, %v4993, 0
    %v5077 = vsel %vm5024, %v4994, 0
    %v5080 = vsel %vm5024, %v4995, 0
    %v5083 = vsel %vm5024, %v4996, 0
    %v5086 = vsel %vm5024, %v4997, 0
    %v5089 = vsel %vm5024, %v4998, 0
    %v5092 = vsel %vm5024, %v4999, 0
    %v5095 = vsel %vm5024, %v5000, 0
    %v5098 = vsel %vm5024, %v5001, 0
    %v5101 = vsel %vm5024, %v5002, 0
    %v5104 = vsel %vm5024, %v5003, 0
    %v5107 = vsel %vm5024, %v5004, 0
    %v5110 = vsel %vm5024, %v5005, 0
    %v5113 = vsel %vm5024, %v5006, 0
    %v5116 = vsel %vm5024, %v5007, 0
    %v5119 = vsel %vm5024, %v5008, 0
    %vm5121 = vcmask 1041408
    %v5123 = vsel %vm5121, %v5021, 0
    %5125 = vmatprep.subr.bf16.mxu0 0
    %5126 = vmatpush1.bf16.msra.mxu0 0
    %5127 = vmatprep.subr.bf16.mxu0 0
    %5128 = vmatpush1.bf16.msra.mxu0 0
    %5129 = vmatprep.subr.bf16.mxu0 0
    %5130 = vmatpush1.bf16.msra.mxu0 0
    %5131 = vmatprep.subr.bf16.mxu0 0
    %5132 = vmatpush1.bf16.msra.mxu0 0
    %5133 = vmatprep.subr.bf16.mxu0 0
    %5134 = vmatpush1.bf16.msra.mxu0 0
    %5135 = vmatprep.subr.bf16.mxu0 0
    %5136 = vmatpush1.bf16.msra.mxu0 %v5123
    %5137 = vmatprep.subr.bf16.mxu0 0
    %5138 = vmatpush1.bf16.msra.mxu0 %v5020
    %5139 = vmatprep.subr.bf16.mxu0 0
    %5140 = vmatpush1.bf16.msra.mxu0 %v5019
    %5141 = vmatprep.subr.bf16.mxu0 0
    %5142 = vmatpush2.bf16.msra.mxu0 0
    %5143 = vmatprep.subr.bf16.mxu0 0
    %5144 = vmatpush2.bf16.msra.mxu0 0
    %5145 = vmatprep.subr.bf16.mxu0 0
    %5146 = vmatpush2.bf16.msra.mxu0 0
    %5147 = vmatprep.subr.bf16.mxu0 0
    %5148 = vmatpush2.bf16.msra.mxu0 0
    %5149 = vmatprep.subr.bf16.mxu0 0
    %5150 = vmatpush2.bf16.msra.mxu0 0
    %5151 = vmatprep.subr.bf16.mxu0 0
    %5152 = vmatpush2.bf16.msra.mxu0 0
    %5153 = vmatprep.subr.bf16.mxu0 0
    %5154 = vmatpush2.bf16.msra.mxu0 0
    %5155 = vmatprep.subr.bf16.mxu0 0
    %5156 = vmatpush2.bf16.msra.mxu0 0
    %5157 = vmatprep.mubr.bf16.mxu0 0
    %5158 = vmatmul.mubr.bf16.gmra.mxu0 %v5026
    %v5159 = vpop.f32.mrf.mxu0
    %v5160 = vadd.f32 %v4848, %v5159
    %v5161 = vpop.f32.mrf.mxu0
    %v5162 = vpop.f32.mrf.mxu0
    %v5163 = vadd.f32 %v4848, %v5162
    %v5164 = vpop.f32.mrf.mxu0
    %5165 = vmatprep.mubr.bf16.mxu0 0
    %5166 = vmatmul.mubr.bf16.gmra.mxu0 %v5029
    %v5167 = vpop.f32.mrf.mxu0
    %v5168 = vadd.f32 %v4848, %v5167
    %v5169 = vpop.f32.mrf.mxu0
    %v5170 = vpop.f32.mrf.mxu0
    %v5171 = vadd.f32 %v4848, %v5170
    %v5172 = vpop.f32.mrf.mxu0
    %5173 = vmatprep.mubr.bf16.mxu0 0
    %5174 = vmatmul.mubr.bf16.gmra.mxu0 %v5032
    %v5175 = vpop.f32.mrf.mxu0
    %v5176 = vadd.f32 %v4848, %v5175
    %v5177 = vpop.f32.mrf.mxu0
    %v5178 = vpop.f32.mrf.mxu0
    %v5179 = vadd.f32 %v4848, %v5178
    %v5180 = vpop.f32.mrf.mxu0
    %5181 = vmatprep.mubr.bf16.mxu0 0
    %5182 = vmatmul.mubr.bf16.gmra.mxu0 %v5035
    %v5183 = vpop.f32.mrf.mxu0
    %v5184 = vadd.f32 %v4848, %v5183
    %v5185 = vpop.f32.mrf.mxu0
    %v5186 = vpop.f32.mrf.mxu0
    %v5187 = vadd.f32 %v4848, %v5186
    %v5188 = vpop.f32.mrf.mxu0
    %5189 = vmatprep.mubr.bf16.mxu0 0
    %5190 = vmatmul.mubr.bf16.gmra.mxu0 %v5038
    %v5191 = vpop.f32.mrf.mxu0
    %v5192 = vadd.f32 %v4848, %v5191
    %v5193 = vpop.f32.mrf.mxu0
    %v5194 = vpop.f32.mrf.mxu0
    %v5195 = vadd.f32 %v4848, %v5194
    %v5196 = vpop.f32.mrf.mxu0
    %5197 = vmatprep.mubr.bf16.mxu0 0
    %5198 = vmatmul.mubr.bf16.gmra.mxu0 %v5041
    %v5199 = vpop.f32.mrf.mxu0
    %v5200 = vadd.f32 %v4848, %v5199
    %v5201 = vpop.f32.mrf.mxu0
    %v5202 = vpop.f32.mrf.mxu0
    %v5203 = vadd.f32 %v4848, %v5202
    %v5204 = vpop.f32.mrf.mxu0
    %5205 = vmatprep.mubr.bf16.mxu0 0
    %5206 = vmatmul.mubr.bf16.gmra.mxu0 %v5044
    %v5207 = vpop.f32.mrf.mxu0
    %v5208 = vadd.f32 %v4848, %v5207
    %v5209 = vpop.f32.mrf.mxu0
    %v5210 = vpop.f32.mrf.mxu0
    %v5211 = vadd.f32 %v4848, %v5210
    %v5212 = vpop.f32.mrf.mxu0
    %5213 = vmatprep.mubr.bf16.mxu0 0
    %5214 = vmatmul.mubr.bf16.gmra.mxu0 %v5047
    %v5215 = vpop.f32.mrf.mxu0
    %v5216 = vadd.f32 %v4848, %v5215
    %v5217 = vpop.f32.mrf.mxu0
    %v5218 = vpop.f32.mrf.mxu0
    %v5219 = vadd.f32 %v4848, %v5218
    %v5220 = vpop.f32.mrf.mxu0
    %5221 = vmatprep.mubr.bf16.mxu0 0
    %5222 = vmatmul.mubr.bf16.gmra.mxu0 %v5050
    %v5223 = vpop.f32.mrf.mxu0
    %v5224 = vadd.f32 %v4848, %v5223
    %v5225 = vpop.f32.mrf.mxu0
    %v5226 = vpop.f32.mrf.mxu0
    %v5227 = vadd.f32 %v4848, %v5226
    %v5228 = vpop.f32.mrf.mxu0
    %5229 = vmatprep.mubr.bf16.mxu0 0
    %5230 = vmatmul.mubr.bf16.gmra.mxu0 %v5053
    %v5231 = vpop.f32.mrf.mxu0
    %v5232 = vadd.f32 %v4848, %v5231
    %v5233 = vpop.f32.mrf.mxu0
    %v5234 = vpop.f32.mrf.mxu0
    %v5235 = vadd.f32 %v4848, %v5234
    %v5236 = vpop.f32.mrf.mxu0
    %5237 = vmatprep.mubr.bf16.mxu0 0
    %5238 = vmatmul.mubr.bf16.gmra.mxu0 %v5056
    %v5239 = vpop.f32.mrf.mxu0
    %v5240 = vadd.f32 %v4848, %v5239
    %v5241 = vpop.f32.mrf.mxu0
    %v5242 = vpop.f32.mrf.mxu0
    %v5243 = vadd.f32 %v4848, %v5242
    %v5244 = vpop.f32.mrf.mxu0
    %5245 = vmatprep.mubr.bf16.mxu0 0
    %5246 = vmatmul.mubr.bf16.gmra.mxu0 %v5059
    %v5247 = vpop.f32.mrf.mxu0
    %v5248 = vadd.f32 %v4848, %v5247
    %v5249 = vpop.f32.mrf.mxu0
    %v5250 = vpop.f32.mrf.mxu0
    %v5251 = vadd.f32 %v4848, %v5250
    %v5252 = vpop.f32.mrf.mxu0
    %5253 = vmatprep.mubr.bf16.mxu0 0
    %5254 = vmatmul.mubr.bf16.gmra.mxu0 %v5062
    %v5255 = vpop.f32.mrf.mxu0
    %v5256 = vadd.f32 %v4848, %v5255
    %v5257 = vpop.f32.mrf.mxu0
    %v5258 = vpop.f32.mrf.mxu0
    %v5259 = vadd.f32 %v4848, %v5258
    %v5260 = vpop.f32.mrf.mxu0
    %5261 = vmatprep.mubr.bf16.mxu0 0
    %5262 = vmatmul.mubr.bf16.gmra.mxu0 %v5065
    %v5263 = vpop.f32.mrf.mxu0
    %v5264 = vadd.f32 %v4848, %v5263
    %v5265 = vpop.f32.mrf.mxu0
    %v5266 = vpop.f32.mrf.mxu0
    %v5267 = vadd.f32 %v4848, %v5266
    %v5268 = vpop.f32.mrf.mxu0
    %5269 = vmatprep.mubr.bf16.mxu0 0
    %5270 = vmatmul.mubr.bf16.gmra.mxu0 %v5068
    %v5271 = vpop.f32.mrf.mxu0
    %v5272 = vadd.f32 %v4848, %v5271
    %v5273 = vpop.f32.mrf.mxu0
    %v5274 = vpop.f32.mrf.mxu0
    %v5275 = vadd.f32 %v4848, %v5274
    %v5276 = vpop.f32.mrf.mxu0
    %5277 = vmatprep.mubr.bf16.mxu0 0
    %5278 = vmatmul.mubr.bf16.gmra.mxu0 %v5071
    %v5279 = vpop.f32.mrf.mxu0
    %v5280 = vadd.f32 %v4848, %v5279
    %v5281 = vpop.f32.mrf.mxu0
    %v5282 = vpop.f32.mrf.mxu0
    %v5283 = vadd.f32 %v4848, %v5282
    %v5284 = vpop.f32.mrf.mxu0
    %5285 = vmatprep.mubr.bf16.mxu0 0
    %5286 = vmatmul.mubr.bf16.gmra.mxu0 %v5074
    %v5287 = vpop.f32.mrf.mxu0
    %v5288 = vadd.f32 %v4848, %v5287
    %v5289 = vpop.f32.mrf.mxu0
    %v5290 = vpop.f32.mrf.mxu0
    %v5291 = vadd.f32 %v4848, %v5290
    %v5292 = vpop.f32.mrf.mxu0
    %5293 = vmatprep.mubr.bf16.mxu0 0
    %5294 = vmatmul.mubr.bf16.gmra.mxu0 %v5077
    %v5295 = vpop.f32.mrf.mxu0
    %v5296 = vadd.f32 %v4848, %v5295
    %v5297 = vpop.f32.mrf.mxu0
    %v5298 = vpop.f32.mrf.mxu0
    %v5299 = vadd.f32 %v4848, %v5298
    %v5300 = vpop.f32.mrf.mxu0
    %5301 = vmatprep.mubr.bf16.mxu0 0
    %5302 = vmatmul.mubr.bf16.gmra.mxu0 %v5080
    %v5303 = vpop.f32.mrf.mxu0
    %v5304 = vadd.f32 %v4848, %v5303
    %v5305 = vpop.f32.mrf.mxu0
    %v5306 = vpop.f32.mrf.mxu0
    %v5307 = vadd.f32 %v4848, %v5306
    %v5308 = vpop.f32.mrf.mxu0
    %5309 = vmatprep.mubr.bf16.mxu0 0
    %5310 = vmatmul.mubr.bf16.gmra.mxu0 %v5083
    %v5311 = vpop.f32.mrf.mxu0
    %v5312 = vadd.f32 %v4848, %v5311
    %v5313 = vpop.f32.mrf.mxu0
    %v5314 = vpop.f32.mrf.mxu0
    %v5315 = vadd.f32 %v4848, %v5314
    %v5316 = vpop.f32.mrf.mxu0
    %5317 = vmatprep.mubr.bf16.mxu0 0
    %5318 = vmatmul.mubr.bf16.gmra.mxu0 %v5086
    %v5319 = vpop.f32.mrf.mxu0
    %v5320 = vadd.f32 %v4848, %v5319
    %v5321 = vpop.f32.mrf.mxu0
    %v5322 = vpop.f32.mrf.mxu0
    %v5323 = vadd.f32 %v4848, %v5322
    %v5324 = vpop.f32.mrf.mxu0
    %5325 = vmatprep.mubr.bf16.mxu0 0
    %5326 = vmatmul.mubr.bf16.gmra.mxu0 %v5089
    %v5327 = vpop.f32.mrf.mxu0
    %v5328 = vadd.f32 %v4848, %v5327
    %v5329 = vpop.f32.mrf.mxu0
    %v5330 = vpop.f32.mrf.mxu0
    %v5331 = vadd.f32 %v4848, %v5330
    %v5332 = vpop.f32.mrf.mxu0
    %5333 = vmatprep.mubr.bf16.mxu0 0
    %5334 = vmatmul.mubr.bf16.gmra.mxu0 %v5092
    %v5335 = vpop.f32.mrf.mxu0
    %v5336 = vadd.f32 %v4848, %v5335
    %v5337 = vpop.f32.mrf.mxu0
    %v5338 = vpop.f32.mrf.mxu0
    %v5339 = vadd.f32 %v4848, %v5338
    %v5340 = vpop.f32.mrf.mxu0
    %5341 = vmatprep.mubr.bf16.mxu0 0
    %5342 = vmatmul.mubr.bf16.gmra.mxu0 %v5095
    %v5343 = vpop.f32.mrf.mxu0
    %v5344 = vadd.f32 %v4848, %v5343
    %v5345 = vpop.f32.mrf.mxu0
    %v5346 = vpop.f32.mrf.mxu0
    %v5347 = vadd.f32 %v4848, %v5346
    %v5348 = vpop.f32.mrf.mxu0
    %5349 = vmatprep.mubr.bf16.mxu0 0
    %5350 = vmatmul.mubr.bf16.gmra.mxu0 %v5098
    %v5351 = vpop.f32.mrf.mxu0
    %v5352 = vadd.f32 %v4848, %v5351
    %v5353 = vpop.f32.mrf.mxu0
    %v5354 = vpop.f32.mrf.mxu0
    %v5355 = vadd.f32 %v4848, %v5354
    %v5356 = vpop.f32.mrf.mxu0
    %5357 = vmatprep.mubr.bf16.mxu0 0
    %5358 = vmatmul.mubr.bf16.gmra.mxu0 %v5101
    %v5359 = vpop.f32.mrf.mxu0
    %v5360 = vadd.f32 %v4848, %v5359
    %v5361 = vpop.f32.mrf.mxu0
    %v5362 = vpop.f32.mrf.mxu0
    %v5363 = vadd.f32 %v4848, %v5362
    %v5364 = vpop.f32.mrf.mxu0
    %5365 = vmatprep.mubr.bf16.mxu0 0
    %5366 = vmatmul.mubr.bf16.gmra.mxu0 %v5104
    %v5367 = vpop.f32.mrf.mxu0
    %v5368 = vadd.f32 %v4848, %v5367
    %v5369 = vpop.f32.mrf.mxu0
    %v5370 = vpop.f32.mrf.mxu0
    %v5371 = vadd.f32 %v4848, %v5370
    %v5372 = vpop.f32.mrf.mxu0
    %5373 = vmatprep.mubr.bf16.mxu0 0
    %5374 = vmatmul.mubr.bf16.gmra.mxu0 %v5107
    %v5375 = vpop.f32.mrf.mxu0
    %v5376 = vadd.f32 %v4848, %v5375
    %v5377 = vpop.f32.mrf.mxu0
    %v5378 = vpop.f32.mrf.mxu0
    %v5379 = vadd.f32 %v4848, %v5378
    %v5380 = vpop.f32.mrf.mxu0
    %5381 = vmatprep.mubr.bf16.mxu0 0
    %5382 = vmatmul.mubr.bf16.gmra.mxu0 %v5110
    %v5383 = vpop.f32.mrf.mxu0
    %v5384 = vadd.f32 %v4848, %v5383
    %v5385 = vpop.f32.mrf.mxu0
    %v5386 = vpop.f32.mrf.mxu0
    %v5387 = vadd.f32 %v4848, %v5386
    %v5388 = vpop.f32.mrf.mxu0
    %5389 = vmatprep.mubr.bf16.mxu0 0
    %5390 = vmatmul.mubr.bf16.gmra.mxu0 %v5113
    %v5391 = vpop.f32.mrf.mxu0
    %v5392 = vadd.f32 %v4848, %v5391
    %v5393 = vpop.f32.mrf.mxu0
    %v5394 = vpop.f32.mrf.mxu0
    %v5395 = vadd.f32 %v4848, %v5394
    %v5396 = vpop.f32.mrf.mxu0
    %5397 = vmatprep.mubr.bf16.mxu0 0
    %5398 = vmatmul.mubr.bf16.gmra.mxu0 %v5116
    %v5399 = vpop.f32.mrf.mxu0
    %v5400 = vadd.f32 %v4848, %v5399
    %v5401 = vpop.f32.mrf.mxu0
    %v5402 = vpop.f32.mrf.mxu0
    %v5403 = vadd.f32 %v4848, %v5402
    %v5404 = vpop.f32.mrf.mxu0
    %5405 = vmatprep.mubr.bf16.mxu0 0
    %5406 = vmatmul.mubr.bf16.gmra.mxu0 %v5119
    %v5407 = vpop.f32.mrf.mxu0
    %v5408 = vadd.f32 %v4848, %v5407
    %v5409 = vpop.f32.mrf.mxu0
    %v5410 = vpop.f32.mrf.mxu0
    %v5411 = vadd.f32 %v4848, %v5410
    %v5412 = vpop.f32.mrf.mxu0
    %5413 = vdwg.mxu0
    %v5414 = vmax.f32 %v5160, 0.0
    %v5415 = vmax.f32 %v5163, 0.0
    %v5416 = vmax.f32 %v5168, 0.0
    %v5417 = vmax.f32 %v5171, 0.0
    %v5418 = vmax.f32 %v5176, 0.0
    %v5419 = vmax.f32 %v5179, 0.0
    %v5420 = vmax.f32 %v5184, 0.0
    %v5421 = vmax.f32 %v5187, 0.0
    %v5422 = vmax.f32 %v5192, 0.0
    %v5423 = vmax.f32 %v5195, 0.0
    %v5424 = vmax.f32 %v5200, 0.0
    %v5425 = vmax.f32 %v5203, 0.0
    %v5426 = vmax.f32 %v5208, 0.0
    %v5427 = vmax.f32 %v5211, 0.0
    %v5428 = vmax.f32 %v5216, 0.0
    %v5429 = vmax.f32 %v5219, 0.0
    %v5430 = vmax.f32 %v5224, 0.0
    %v5431 = vmax.f32 %v5227, 0.0
    %v5432 = vmax.f32 %v5232, 0.0
    %v5433 = vmax.f32 %v5235, 0.0
    %v5434 = vmax.f32 %v5240, 0.0
    %v5435 = vmax.f32 %v5243, 0.0
    %v5436 = vmax.f32 %v5248, 0.0
    %v5437 = vmax.f32 %v5251, 0.0
    %v5438 = vmax.f32 %v5256, 0.0
    %v5439 = vmax.f32 %v5259, 0.0
    %v5440 = vmax.f32 %v5264, 0.0
    %v5441 = vmax.f32 %v5267, 0.0
    %v5442 = vmax.f32 %v5272, 0.0
    %v5443 = vmax.f32 %v5275, 0.0
    %v5444 = vmax.f32 %v5280, 0.0
    %v5445 = vmax.f32 %v5283, 0.0
    %v5446 = vmax.f32 %v5288, 0.0
    %v5447 = vmax.f32 %v5291, 0.0
    %v5448 = vmax.f32 %v5296, 0.0
    %v5449 = vmax.f32 %v5299, 0.0
    %v5450 = vmax.f32 %v5304, 0.0
    %v5451 = vmax.f32 %v5307, 0.0
    %v5452 = vmax.f32 %v5312, 0.0
    %v5453 = vmax.f32 %v5315, 0.0
    %v5454 = vmax.f32 %v5320, 0.0
    %v5455 = vmax.f32 %v5323, 0.0
    %v5456 = vmax.f32 %v5328, 0.0
    %v5457 = vmax.f32 %v5331, 0.0
    %v5458 = vmax.f32 %v5336, 0.0
    %v5459 = vmax.f32 %v5339, 0.0
    %v5460 = vmax.f32 %v5344, 0.0
    %v5461 = vmax.f32 %v5347, 0.0
    %v5462 = vmax.f32 %v5352, 0.0
    %v5463 = vmax.f32 %v5355, 0.0
    %v5464 = vmax.f32 %v5360, 0.0
    %v5465 = vmax.f32 %v5363, 0.0
    %v5466 = vmax.f32 %v5368, 0.0
    %v5467 = vmax.f32 %v5371, 0.0
    %v5468 = vmax.f32 %v5376, 0.0
    %v5469 = vmax.f32 %v5379, 0.0
    %v5470 = vmax.f32 %v5384, 0.0
    %v5471 = vmax.f32 %v5387, 0.0
    %v5472 = vmax.f32 %v5392, 0.0
    %v5473 = vmax.f32 %v5395, 0.0
    %v5474 = vmax.f32 %v5400, 0.0
    %v5475 = vmax.f32 %v5403, 0.0
    %v5476 = vmax.f32 %v5408, 0.0
    %v5477 = vmax.f32 %v5411, 0.0
    %v5478 = vlaneseq
    %v5479 = vand.u32 %v5478, 127
    %v5480 = vadd.s32 %v5479, 128
    %v5481 = vshra.s32 %v82, 3
    %v5482 = vshra.s32 %v83, 3
    %v5483 = vshra.s32 %v84, 3
    %v5484 = vshra.s32 %v85, 3
    %v5485 = vshra.s32 %v86, 3
    %v5486 = vshra.s32 %v87, 3
    %v5487 = vshra.s32 %v88, 3
    %v5488 = vshra.s32 %v89, 3
    %v5489 = vmul.u32 %v5481, 32
    %v5490 = vmul.u32 %v5482, 32
    %v5491 = vmul.u32 %v5483, 32
    %v5492 = vmul.u32 %v5484, 32
    %v5493 = vmul.u32 %v5485, 32
    %v5494 = vmul.u32 %v5486, 32
    %v5495 = vmul.u32 %v5487, 32
    %v5496 = vmul.u32 %v5488, 32
    %v5497 = vand.u32 %v82, 7
    %v5498 = vand.u32 %v83, 7
    %v5499 = vand.u32 %v84, 7
    %v5500 = vand.u32 %v85, 7
    %v5501 = vand.u32 %v86, 7
    %v5502 = vand.u32 %v87, 7
    %v5503 = vand.u32 %v88, 7
    %v5504 = vand.u32 %v89, 7
    %v5505 = vmul.u32 %v5497, 2
    %v5506 = vmul.u32 %v5498, 2
    %v5507 = vmul.u32 %v5499, 2
    %v5508 = vmul.u32 %v5500, 2
    %v5509 = vmul.u32 %v5501, 2
    %v5510 = vmul.u32 %v5502, 2
    %v5511 = vmul.u32 %v5503, 2
    %v5512 = vmul.u32 %v5504, 2
    %v5513 = vadd.s32 %v5489, %v5505
    %v5514 = vadd.s32 %v5490, %v5506
    %v5515 = vadd.s32 %v5491, %v5507
    %v5516 = vadd.s32 %v5492, %v5508
    %v5517 = vadd.s32 %v5493, %v5509
    %v5518 = vadd.s32 %v5494, %v5510
    %v5519 = vadd.s32 %v5495, %v5511
    %v5520 = vadd.s32 %v5496, %v5512
    %vm5521 = vcmp.eq.s32.totalorder %v5479, %v5513
    %vm5522 = vcmp.eq.s32.totalorder %v5480, %v5513
    %vm5523 = vcmp.eq.s32.totalorder %v5479, %v5514
    %vm5524 = vcmp.eq.s32.totalorder %v5480, %v5514
    %vm5525 = vcmp.eq.s32.totalorder %v5479, %v5515
    %vm5526 = vcmp.eq.s32.totalorder %v5480, %v5515
    %vm5527 = vcmp.eq.s32.totalorder %v5479, %v5516
    %vm5528 = vcmp.eq.s32.totalorder %v5480, %v5516
    %vm5529 = vcmp.eq.s32.totalorder %v5479, %v5517
    %vm5530 = vcmp.eq.s32.totalorder %v5480, %v5517
    %vm5531 = vcmp.eq.s32.totalorder %v5479, %v5518
    %vm5532 = vcmp.eq.s32.totalorder %v5480, %v5518
    %vm5533 = vcmp.eq.s32.totalorder %v5479, %v5519
    %vm5534 = vcmp.eq.s32.totalorder %v5480, %v5519
    %vm5535 = vcmp.eq.s32.totalorder %v5479, %v5520
    %vm5536 = vcmp.eq.s32.totalorder %v5480, %v5520
    %v5537 = vsel %vm5521, 1, 0
    %v5538 = vsel %vm5522, 1, 0
    %v5539 = vsel %vm5523, 1, 0
    %v5540 = vsel %vm5524, 1, 0
    %v5541 = vsel %vm5525, 1, 0
    %v5542 = vsel %vm5526, 1, 0
    %v5543 = vsel %vm5527, 1, 0
    %v5544 = vsel %vm5528, 1, 0
    %v5545 = vsel %vm5529, 1, 0
    %v5546 = vsel %vm5530, 1, 0
    %v5547 = vsel %vm5531, 1, 0
    %v5548 = vsel %vm5532, 1, 0
    %v5549 = vsel %vm5533, 1, 0
    %v5550 = vsel %vm5534, 1, 0
    %v5551 = vsel %vm5535, 1, 0
    %v5552 = vsel %vm5536, 1, 0
    %v5553 = vcvt.s32.f32 %v5537
    %v5554 = vcvt.s32.f32 %v5538
    %v5555 = vcvt.s32.f32 %v5539
    %v5556 = vcvt.s32.f32 %v5540
    %v5557 = vcvt.s32.f32 %v5541
    %v5558 = vcvt.s32.f32 %v5542
    %v5559 = vcvt.s32.f32 %v5543
    %v5560 = vcvt.s32.f32 %v5544
    %v5561 = vcvt.s32.f32 %v5545
    %v5562 = vcvt.s32.f32 %v5546
    %v5563 = vcvt.s32.f32 %v5547
    %v5564 = vcvt.s32.f32 %v5548
    %v5565 = vcvt.s32.f32 %v5549
    %v5566 = vcvt.s32.f32 %v5550
    %v5567 = vcvt.s32.f32 %v5551
    %v5568 = vcvt.s32.f32 %v5552
    %v5569 = vpack.c.bf16 %v5555, %v5553
    %v5570 = vpack.c.bf16 %v5556, %v5554
    %v5571 = vpack.c.bf16 %v5559, %v5557
    %v5572 = vpack.c.bf16 %v5560, %v5558
    %v5573 = vpack.c.bf16 %v5563, %v5561
    %v5574 = vpack.c.bf16 %v5564, %v5562
    %v5575 = vpack.c.bf16 %v5567, %v5565
    %v5576 = vpack.c.bf16 %v5568, %v5566
    %vm5609 = vcmask 1046528
    %v5610 = vrot.slane %v5414, 1
    %v5611 = vrot.slane %v5415, 1
    %v5612 = vsel %vm5609, %v5610, %v5611
    %v5613 = vrot.slane %v5416, 1
    %v5614 = vsel %vm5609, %v5611, %v5613
    %v5615 = vrot.slane %v5417, 1
    %v5616 = vsel %vm5609, %v5613, %v5615
    %v5617 = vrot.slane %v5418, 1
    %v5618 = vsel %vm5609, %v5615, %v5617
    %v5619 = vrot.slane %v5419, 1
    %v5620 = vsel %vm5609, %v5617, %v5619
    %v5621 = vrot.slane %v5420, 1
    %v5622 = vsel %vm5609, %v5619, %v5621
    %v5623 = vrot.slane %v5421, 1
    %v5624 = vsel %vm5609, %v5621, %v5623
    %v5625 = vrot.slane %v5422, 1
    %v5626 = vsel %vm5609, %v5623, %v5625
    %v5627 = vrot.slane %v5423, 1
    %v5628 = vsel %vm5609, %v5625, %v5627
    %v5629 = vrot.slane %v5424, 1
    %v5630 = vsel %vm5609, %v5627, %v5629
    %v5631 = vrot.slane %v5425, 1
    %v5632 = vsel %vm5609, %v5629, %v5631
    %v5633 = vrot.slane %v5426, 1
    %v5634 = vsel %vm5609, %v5631, %v5633
    %v5635 = vrot.slane %v5427, 1
    %v5636 = vsel %vm5609, %v5633, %v5635
    %v5637 = vrot.slane %v5428, 1
    %v5638 = vsel %vm5609, %v5635, %v5637
    %v5639 = vrot.slane %v5429, 1
    %v5640 = vsel %vm5609, %v5637, %v5639
    %v5641 = vrot.slane %v5430, 1
    %v5642 = vsel %vm5609, %v5639, %v5641
    %v5643 = vrot.slane %v5431, 1
    %v5644 = vsel %vm5609, %v5641, %v5643
    %v5645 = vrot.slane %v5432, 1
    %v5646 = vsel %vm5609, %v5643, %v5645
    %v5647 = vrot.slane %v5433, 1
    %v5648 = vsel %vm5609, %v5645, %v5647
    %v5649 = vrot.slane %v5434, 1
    %v5650 = vsel %vm5609, %v5647, %v5649
    %v5651 = vrot.slane %v5435, 1
    %v5652 = vsel %vm5609, %v5649, %v5651
    %v5653 = vrot.slane %v5436, 1
    %v5654 = vsel %vm5609, %v5651, %v5653
    %v5655 = vrot.slane %v5437, 1
    %v5656 = vsel %vm5609, %v5653, %v5655
    %v5657 = vrot.slane %v5438, 1
    %v5658 = vsel %vm5609, %v5655, %v5657
    %v5659 = vrot.slane %v5439, 1
    %v5660 = vsel %vm5609, %v5657, %v5659
    %v5661 = vrot.slane %v5440, 1
    %v5662 = vsel %vm5609, %v5659, %v5661
    %v5663 = vrot.slane %v5441, 1
    %v5664 = vsel %vm5609, %v5661, %v5663
    %v5665 = vrot.slane %v5442, 1
    %v5666 = vsel %vm5609, %v5663, %v5665
    %v5667 = vrot.slane %v5443, 1
    %v5668 = vsel %vm5609, %v5665, %v5667
    %v5669 = vrot.slane %v5444, 1
    %v5670 = vsel %vm5609, %v5667, %v5669
    %v5671 = vrot.slane %v5445, 1
    %v5672 = vsel %vm5609, %v5669, %v5671
    %v5705 = vsel %vm5609, %v5671, 0.0
    %v5706 = vmax.f32 %v5414, %v5612
    %v5707 = vmax.f32 %v5415, %v5614
    %v5708 = vmax.f32 %v5416, %v5616
    %v5709 = vmax.f32 %v5417, %v5618
    %v5710 = vmax.f32 %v5418, %v5620
    %v5711 = vmax.f32 %v5419, %v5622
    %v5712 = vmax.f32 %v5420, %v5624
    %v5713 = vmax.f32 %v5421, %v5626
    %v5714 = vmax.f32 %v5422, %v5628
    %v5715 = vmax.f32 %v5423, %v5630
    %v5716 = vmax.f32 %v5424, %v5632
    %v5717 = vmax.f32 %v5425, %v5634
    %v5718 = vmax.f32 %v5426, %v5636
    %v5719 = vmax.f32 %v5427, %v5638
    %v5720 = vmax.f32 %v5428, %v5640
    %v5721 = vmax.f32 %v5429, %v5642
    %v5722 = vmax.f32 %v5430, %v5644
    %v5723 = vmax.f32 %v5431, %v5646
    %v5724 = vmax.f32 %v5432, %v5648
    %v5725 = vmax.f32 %v5433, %v5650
    %v5726 = vmax.f32 %v5434, %v5652
    %v5727 = vmax.f32 %v5435, %v5654
    %v5728 = vmax.f32 %v5436, %v5656
    %v5729 = vmax.f32 %v5437, %v5658
    %v5730 = vmax.f32 %v5438, %v5660
    %v5731 = vmax.f32 %v5439, %v5662
    %v5732 = vmax.f32 %v5440, %v5664
    %v5733 = vmax.f32 %v5441, %v5666
    %v5734 = vmax.f32 %v5442, %v5668
    %v5735 = vmax.f32 %v5443, %v5670
    %v5736 = vmax.f32 %v5444, %v5672
    %v5737 = vmax.f32 %v5445, %v5705
    %v5738 = vmax.f32 %v5706, %v5708
    %v5739 = vmax.f32 %v5707, %v5709
    %v5740 = vmax.f32 %v5708, %v5710
    %v5741 = vmax.f32 %v5709, %v5711
    %v5742 = vmax.f32 %v5710, %v5712
    %v5743 = vmax.f32 %v5711, %v5713
    %v5744 = vmax.f32 %v5712, %v5714
    %v5745 = vmax.f32 %v5713, %v5715
    %v5746 = vmax.f32 %v5714, %v5716
    %v5747 = vmax.f32 %v5715, %v5717
    %v5748 = vmax.f32 %v5716, %v5718
    %v5749 = vmax.f32 %v5717, %v5719
    %v5750 = vmax.f32 %v5718, %v5720
    %v5751 = vmax.f32 %v5719, %v5721
    %v5752 = vmax.f32 %v5720, %v5722
    %v5753 = vmax.f32 %v5721, %v5723
    %v5754 = vmax.f32 %v5722, %v5724
    %v5755 = vmax.f32 %v5723, %v5725
    %v5756 = vmax.f32 %v5724, %v5726
    %v5757 = vmax.f32 %v5725, %v5727
    %v5758 = vmax.f32 %v5726, %v5728
    %v5759 = vmax.f32 %v5727, %v5729
    %v5760 = vmax.f32 %v5728, %v5730
    %v5761 = vmax.f32 %v5729, %v5731
    %v5762 = vmax.f32 %v5730, %v5732
    %v5763 = vmax.f32 %v5731, %v5733
    %v5764 = vmax.f32 %v5732, %v5734
    %v5765 = vmax.f32 %v5733, %v5735
    %v5766 = vmax.f32 %v5734, %v5736
    %v5767 = vmax.f32 %v5735, %v5737
    %v5768 = vmax.f32 %v5736, 0.0
    %v5769 = vmax.f32 %v5737, 0.0
    %v5770 = vpack.c.bf16 %v5739, %v5738
    %v5771 = vpack.c.bf16 %v5741, %v5740
    %v5772 = vpack.c.bf16 %v5743, %v5742
    %v5773 = vpack.c.bf16 %v5745, %v5744
    %v5774 = vpack.c.bf16 %v5747, %v5746
    %v5775 = vpack.c.bf16 %v5749, %v5748
    %v5776 = vpack.c.bf16 %v5751, %v5750
    %v5777 = vpack.c.bf16 %v5753, %v5752
    %v5778 = vpack.c.bf16 %v5755, %v5754
    %v5779 = vpack.c.bf16 %v5757, %v5756
    %v5780 = vpack.c.bf16 %v5759, %v5758
    %v5781 = vpack.c.bf16 %v5761, %v5760
    %v5782 = vpack.c.bf16 %v5763, %v5762
    %v5783 = vpack.c.bf16 %v5765, %v5764
    %v5784 = vpack.c.bf16 %v5767, %v5766
    %v5785 = vpack.c.bf16 %v5769, %v5768
    %5786 = vmatprep.subr.bf16.mxu0 0
    %5787 = vmatpush1.bf16.msra.mxu0 %v5777
    %5788 = vmatprep.subr.bf16.mxu0 0
    %5789 = vmatpush1.bf16.msra.mxu0 %v5776
    %5790 = vmatprep.subr.bf16.mxu0 0
    %5791 = vmatpush1.bf16.msra.mxu0 %v5775
    %5792 = vmatprep.subr.bf16.mxu0 0
    %5793 = vmatpush1.bf16.msra.mxu0 %v5774
    %5794 = vmatprep.subr.bf16.mxu0 0
    %5795 = vmatpush1.bf16.msra.mxu0 %v5773
    %5796 = vmatprep.subr.bf16.mxu0 0
    %5797 = vmatpush1.bf16.msra.mxu0 %v5772
    %5798 = vmatprep.subr.bf16.mxu0 0
    %5799 = vmatpush1.bf16.msra.mxu0 %v5771
    %5800 = vmatprep.subr.bf16.mxu0 0
    %5801 = vmatpush1.bf16.msra.mxu0 %v5770
    %5802 = vmatprep.subr.bf16.mxu0 0
    %5803 = vmatpush2.bf16.msra.mxu0 %v5785
    %5804 = vmatprep.subr.bf16.mxu0 0
    %5805 = vmatpush2.bf16.msra.mxu0 %v5784
    %5806 = vmatprep.subr.bf16.mxu0 0
    %5807 = vmatpush2.bf16.msra.mxu0 %v5783
    %5808 = vmatprep.subr.bf16.mxu0 0
    %5809 = vmatpush2.bf16.msra.mxu0 %v5782
    %5810 = vmatprep.subr.bf16.mxu0 0
    %5811 = vmatpush2.bf16.msra.mxu0 %v5781
    %5812 = vmatprep.subr.bf16.mxu0 0
    %5813 = vmatpush2.bf16.msra.mxu0 %v5780
    %5814 = vmatprep.subr.bf16.mxu0 0
    %5815 = vmatpush2.bf16.msra.mxu0 %v5779
    %5816 = vmatprep.subr.bf16.mxu0 0
    %5817 = vmatpush2.bf16.msra.mxu0 %v5778
    %5818 = vmatprep.mubr.bf16.mxu0 %v5570
    %5819 = vmatmul.mubr.bf16.gmra.mxu0 %v5569
    %v5820 = vpop.f32.mrf.mxu0
    %v5821 = vadd.f32 0.0, %v5820
    %v5822 = vpop.f32.mrf.mxu0
    %v5823 = vpop.f32.mrf.mxu0
    %v5824 = vadd.f32 0.0, %v5823
    %v5825 = vpop.f32.mrf.mxu0
    %5826 = vmatprep.mubr.bf16.mxu0 %v5572
    %5827 = vmatmul.mubr.bf16.gmra.mxu0 %v5571
    %v5828 = vpop.f32.mrf.mxu0
    %v5829 = vadd.f32 0.0, %v5828
    %v5830 = vpop.f32.mrf.mxu0
    %v5831 = vpop.f32.mrf.mxu0
    %v5832 = vadd.f32 0.0, %v5831
    %v5833 = vpop.f32.mrf.mxu0
    %5834 = vmatprep.mubr.bf16.mxu0 %v5574
    %5835 = vmatmul.mubr.bf16.gmra.mxu0 %v5573
    %v5836 = vpop.f32.mrf.mxu0
    %v5837 = vadd.f32 0.0, %v5836
    %v5838 = vpop.f32.mrf.mxu0
    %v5839 = vpop.f32.mrf.mxu0
    %v5840 = vadd.f32 0.0, %v5839
    %v5841 = vpop.f32.mrf.mxu0
    %5842 = vmatprep.mubr.bf16.mxu0 %v5576
    %5843 = vmatmul.mubr.bf16.gmra.mxu0 %v5575
    %v5844 = vpop.f32.mrf.mxu0
    %v5845 = vadd.f32 0.0, %v5844
    %v5846 = vpop.f32.mrf.mxu0
    %v5847 = vpop.f32.mrf.mxu0
    %v5848 = vadd.f32 0.0, %v5847
    %v5849 = vpop.f32.mrf.mxu0
    %5850 = vdwg.mxu0
    %v5883 = vrot.slane %v5446, 1
    %v5884 = vrot.slane %v5447, 1
    %v5885 = vsel %vm5609, %v5883, %v5884
    %v5886 = vrot.slane %v5448, 1
    %v5887 = vsel %vm5609, %v5884, %v5886
    %v5888 = vrot.slane %v5449, 1
    %v5889 = vsel %vm5609, %v5886, %v5888
    %v5890 = vrot.slane %v5450, 1
    %v5891 = vsel %vm5609, %v5888, %v5890
    %v5892 = vrot.slane %v5451, 1
    %v5893 = vsel %vm5609, %v5890, %v5892
    %v5894 = vrot.slane %v5452, 1
    %v5895 = vsel %vm5609, %v5892, %v5894
    %v5896 = vrot.slane %v5453, 1
    %v5897 = vsel %vm5609, %v5894, %v5896
    %v5898 = vrot.slane %v5454, 1
    %v5899 = vsel %vm5609, %v5896, %v5898
    %v5900 = vrot.slane %v5455, 1
    %v5901 = vsel %vm5609, %v5898, %v5900
    %v5902 = vrot.slane %v5456, 1
    %v5903 = vsel %vm5609, %v5900, %v5902
    %v5904 = vrot.slane %v5457, 1
    %v5905 = vsel %vm5609, %v5902, %v5904
    %v5906 = vrot.slane %v5458, 1
    %v5907 = vsel %vm5609, %v5904, %v5906
    %v5908 = vrot.slane %v5459, 1
    %v5909 = vsel %vm5609, %v5906, %v5908
    %v5910 = vrot.slane %v5460, 1
    %v5911 = vsel %vm5609, %v5908, %v5910
    %v5912 = vrot.slane %v5461, 1
    %v5913 = vsel %vm5609, %v5910, %v5912
    %v5914 = vrot.slane %v5462, 1
    %v5915 = vsel %vm5609, %v5912, %v5914
    %v5916 = vrot.slane %v5463, 1
    %v5917 = vsel %vm5609, %v5914, %v5916
    %v5918 = vrot.slane %v5464, 1
    %v5919 = vsel %vm5609, %v5916, %v5918
    %v5920 = vrot.slane %v5465, 1
    %v5921 = vsel %vm5609, %v5918, %v5920
    %v5922 = vrot.slane %v5466, 1
    %v5923 = vsel %vm5609, %v5920, %v5922
    %v5924 = vrot.slane %v5467, 1
    %v5925 = vsel %vm5609, %v5922, %v5924
    %v5926 = vrot.slane %v5468, 1
    %v5927 = vsel %vm5609, %v5924, %v5926
    %v5928 = vrot.slane %v5469, 1
    %v5929 = vsel %vm5609, %v5926, %v5928
    %v5930 = vrot.slane %v5470, 1
    %v5931 = vsel %vm5609, %v5928, %v5930
    %v5932 = vrot.slane %v5471, 1
    %v5933 = vsel %vm5609, %v5930, %v5932
    %v5934 = vrot.slane %v5472, 1
    %v5935 = vsel %vm5609, %v5932, %v5934
    %v5936 = vrot.slane %v5473, 1
    %v5937 = vsel %vm5609, %v5934, %v5936
    %v5938 = vrot.slane %v5474, 1
    %v5939 = vsel %vm5609, %v5936, %v5938
    %v5940 = vrot.slane %v5475, 1
    %v5941 = vsel %vm5609, %v5938, %v5940
    %v5942 = vrot.slane %v5476, 1
    %v5943 = vsel %vm5609, %v5940, %v5942
    %v5944 = vrot.slane %v5477, 1
    %v5945 = vsel %vm5609, %v5942, %v5944
    %v5978 = vsel %vm5609, %v5944, 0.0
    %v5979 = vmax.f32 %v5446, %v5885
    %v5980 = vmax.f32 %v5447, %v5887
    %v5981 = vmax.f32 %v5448, %v5889
    %v5982 = vmax.f32 %v5449, %v5891
    %v5983 = vmax.f32 %v5450, %v5893
    %v5984 = vmax.f32 %v5451, %v5895
    %v5985 = vmax.f32 %v5452, %v5897
    %v5986 = vmax.f32 %v5453, %v5899
    %v5987 = vmax.f32 %v5454, %v5901
    %v5988 = vmax.f32 %v5455, %v5903
    %v5989 = vmax.f32 %v5456, %v5905
    %v5990 = vmax.f32 %v5457, %v5907
    %v5991 = vmax.f32 %v5458, %v5909
    %v5992 = vmax.f32 %v5459, %v5911
    %v5993 = vmax.f32 %v5460, %v5913
    %v5994 = vmax.f32 %v5461, %v5915
    %v5995 = vmax.f32 %v5462, %v5917
    %v5996 = vmax.f32 %v5463, %v5919
    %v5997 = vmax.f32 %v5464, %v5921
    %v5998 = vmax.f32 %v5465, %v5923
    %v5999 = vmax.f32 %v5466, %v5925
    %v6000 = vmax.f32 %v5467, %v5927
    %v6001 = vmax.f32 %v5468, %v5929
    %v6002 = vmax.f32 %v5469, %v5931
    %v6003 = vmax.f32 %v5470, %v5933
    %v6004 = vmax.f32 %v5471, %v5935
    %v6005 = vmax.f32 %v5472, %v5937
    %v6006 = vmax.f32 %v5473, %v5939
    %v6007 = vmax.f32 %v5474, %v5941
    %v6008 = vmax.f32 %v5475, %v5943
    %v6009 = vmax.f32 %v5476, %v5945
    %v6010 = vmax.f32 %v5477, %v5978
    %v6011 = vmax.f32 %v5979, %v5981
    %v6012 = vmax.f32 %v5980, %v5982
    %v6013 = vmax.f32 %v5981, %v5983
    %v6014 = vmax.f32 %v5982, %v5984
    %v6015 = vmax.f32 %v5983, %v5985
    %v6016 = vmax.f32 %v5984, %v5986
    %v6017 = vmax.f32 %v5985, %v5987
    %v6018 = vmax.f32 %v5986, %v5988
    %v6019 = vmax.f32 %v5987, %v5989
    %v6020 = vmax.f32 %v5988, %v5990
    %v6021 = vmax.f32 %v5989, %v5991
    %v6022 = vmax.f32 %v5990, %v5992
    %v6023 = vmax.f32 %v5991, %v5993
    %v6024 = vmax.f32 %v5992, %v5994
    %v6025 = vmax.f32 %v5993, %v5995
    %v6026 = vmax.f32 %v5994, %v5996
    %v6027 = vmax.f32 %v5995, %v5997
    %v6028 = vmax.f32 %v5996, %v5998
    %v6029 = vmax.f32 %v5997, %v5999
    %v6030 = vmax.f32 %v5998, %v6000
    %v6031 = vmax.f32 %v5999, %v6001
    %v6032 = vmax.f32 %v6000, %v6002
    %v6033 = vmax.f32 %v6001, %v6003
    %v6034 = vmax.f32 %v6002, %v6004
    %v6035 = vmax.f32 %v6003, %v6005
    %v6036 = vmax.f32 %v6004, %v6006
    %v6037 = vmax.f32 %v6005, %v6007
    %v6038 = vmax.f32 %v6006, %v6008
    %v6039 = vmax.f32 %v6007, %v6009
    %v6040 = vmax.f32 %v6008, %v6010
    %v6041 = vmax.f32 %v6009, 0.0
    %v6042 = vmax.f32 %v6010, 0.0
    %v6043 = vpack.c.bf16 %v6012, %v6011
    %v6044 = vpack.c.bf16 %v6014, %v6013
    %v6045 = vpack.c.bf16 %v6016, %v6015
    %v6046 = vpack.c.bf16 %v6018, %v6017
    %v6047 = vpack.c.bf16 %v6020, %v6019
    %v6048 = vpack.c.bf16 %v6022, %v6021
    %v6049 = vpack.c.bf16 %v6024, %v6023
    %v6050 = vpack.c.bf16 %v6026, %v6025
    %v6051 = vpack.c.bf16 %v6028, %v6027
    %v6052 = vpack.c.bf16 %v6030, %v6029
    %v6053 = vpack.c.bf16 %v6032, %v6031
    %v6054 = vpack.c.bf16 %v6034, %v6033
    %v6055 = vpack.c.bf16 %v6036, %v6035
    %v6056 = vpack.c.bf16 %v6038, %v6037
    %v6057 = vpack.c.bf16 %v6040, %v6039
    %v6058 = vpack.c.bf16 %v6042, %v6041
    %6059 = vmatprep.subr.bf16.mxu0 0
    %6060 = vmatpush1.bf16.msra.mxu0 %v6050
    %6061 = vmatprep.subr.bf16.mxu0 0
    %6062 = vmatpush1.bf16.msra.mxu0 %v6049
    %6063 = vmatprep.subr.bf16.mxu0 0
    %6064 = vmatpush1.bf16.msra.mxu0 %v6048
    %6065 = vmatprep.subr.bf16.mxu0 0
    %6066 = vmatpush1.bf16.msra.mxu0 %v6047
    %6067 = vmatprep.subr.bf16.mxu0 0
    %6068 = vmatpush1.bf16.msra.mxu0 %v6046
    %6069 = vmatprep.subr.bf16.mxu0 0
    %6070 = vmatpush1.bf16.msra.mxu0 %v6045
    %6071 = vmatprep.subr.bf16.mxu0 0
    %6072 = vmatpush1.bf16.msra.mxu0 %v6044
    %6073 = vmatprep.subr.bf16.mxu0 0
    %6074 = vmatpush1.bf16.msra.mxu0 %v6043
    %6075 = vmatprep.subr.bf16.mxu0 0
    %6076 = vmatpush2.bf16.msra.mxu0 %v6058
    %6077 = vmatprep.subr.bf16.mxu0 0
    %6078 = vmatpush2.bf16.msra.mxu0 %v6057
    %6079 = vmatprep.subr.bf16.mxu0 0
    %6080 = vmatpush2.bf16.msra.mxu0 %v6056
    %6081 = vmatprep.subr.bf16.mxu0 0
    %6082 = vmatpush2.bf16.msra.mxu0 %v6055
    %6083 = vmatprep.subr.bf16.mxu0 0
    %6084 = vmatpush2.bf16.msra.mxu0 %v6054
    %6085 = vmatprep.subr.bf16.mxu0 0
    %6086 = vmatpush2.bf16.msra.mxu0 %v6053
    %6087 = vmatprep.subr.bf16.mxu0 0
    %6088 = vmatpush2.bf16.msra.mxu0 %v6052
    %6089 = vmatprep.subr.bf16.mxu0 0
    %6090 = vmatpush2.bf16.msra.mxu0 %v6051
    %6091 = vmatprep.mubr.bf16.mxu0 %v5570
    %6092 = vmatmul.mubr.bf16.gmra.mxu0 %v5569
    %v6093 = vpop.f32.mrf.mxu0
    %v6094 = vadd.f32 0.0, %v6093
    %v6095 = vpop.f32.mrf.mxu0
    %v6096 = vpop.f32.mrf.mxu0
    %v6097 = vadd.f32 0.0, %v6096
    %v6098 = vpop.f32.mrf.mxu0
    %6099 = vmatprep.mubr.bf16.mxu0 %v5572
    %6100 = vmatmul.mubr.bf16.gmra.mxu0 %v5571
    %v6101 = vpop.f32.mrf.mxu0
    %v6102 = vadd.f32 0.0, %v6101
    %v6103 = vpop.f32.mrf.mxu0
    %v6104 = vpop.f32.mrf.mxu0
    %v6105 = vadd.f32 0.0, %v6104
    %v6106 = vpop.f32.mrf.mxu0
    %6107 = vmatprep.mubr.bf16.mxu0 %v5574
    %6108 = vmatmul.mubr.bf16.gmra.mxu0 %v5573
    %v6109 = vpop.f32.mrf.mxu0
    %v6110 = vadd.f32 0.0, %v6109
    %v6111 = vpop.f32.mrf.mxu0
    %v6112 = vpop.f32.mrf.mxu0
    %v6113 = vadd.f32 0.0, %v6112
    %v6114 = vpop.f32.mrf.mxu0
    %6115 = vmatprep.mubr.bf16.mxu0 %v5576
    %6116 = vmatmul.mubr.bf16.gmra.mxu0 %v5575
    %v6117 = vpop.f32.mrf.mxu0
    %v6118 = vadd.f32 0.0, %v6117
    %v6119 = vpop.f32.mrf.mxu0
    %v6120 = vpop.f32.mrf.mxu0
    %v6121 = vadd.f32 0.0, %v6120
    %v6122 = vpop.f32.mrf.mxu0
    %6123 = vdwg.mxu0
    %vm6124 = vcmp.gt.s32.totalorder %v5497, 0
    %vm6125 = vcmp.gt.s32.totalorder %v5498, 0
    %vm6126 = vcmp.gt.s32.totalorder %v5499, 0
    %vm6127 = vcmp.gt.s32.totalorder %v5500, 0
    %vm6128 = vcmp.gt.s32.totalorder %v5501, 0
    %vm6129 = vcmp.gt.s32.totalorder %v5502, 0
    %vm6130 = vcmp.gt.s32.totalorder %v5503, 0
    %vm6131 = vcmp.gt.s32.totalorder %v5504, 0
    %v6132 = vsel %vm6124, 1, 0
    %v6133 = vsel %vm6125, 1, 0
    %v6134 = vsel %vm6126, 1, 0
    %v6135 = vsel %vm6127, 1, 0
    %v6136 = vsel %vm6128, 1, 0
    %v6137 = vsel %vm6129, 1, 0
    %v6138 = vsel %vm6130, 1, 0
    %v6139 = vsel %vm6131, 1, 0
    %v6140 = vcvt.s32.f32 %v6132
    %v6141 = vcvt.s32.f32 %v6133
    %v6142 = vcvt.s32.f32 %v6134
    %v6143 = vcvt.s32.f32 %v6135
    %v6144 = vcvt.s32.f32 %v6136
    %v6145 = vcvt.s32.f32 %v6137
    %v6146 = vcvt.s32.f32 %v6138
    %v6147 = vcvt.s32.f32 %v6139
    %v6148 = vpack.c.bf16 %v6141, %v6140
    %v6149 = vpack.c.bf16 %v6143, %v6142
    %v6150 = vpack.c.bf16 %v6145, %v6144
    %v6151 = vpack.c.bf16 %v6147, %v6146
    %vm6152 = vcmp.lt.s32.totalorder %v5497, 7
    %vm6153 = vcmp.lt.s32.totalorder %v5498, 7
    %vm6154 = vcmp.lt.s32.totalorder %v5499, 7
    %vm6155 = vcmp.lt.s32.totalorder %v5500, 7
    %vm6156 = vcmp.lt.s32.totalorder %v5501, 7
    %vm6157 = vcmp.lt.s32.totalorder %v5502, 7
    %vm6158 = vcmp.lt.s32.totalorder %v5503, 7
    %vm6159 = vcmp.lt.s32.totalorder %v5504, 7
    %v6160 = vsel %vm6152, 1, 0
    %v6161 = vsel %vm6153, 1, 0
    %v6162 = vsel %vm6154, 1, 0
    %v6163 = vsel %vm6155, 1, 0
    %v6164 = vsel %vm6156, 1, 0
    %v6165 = vsel %vm6157, 1, 0
    %v6166 = vsel %vm6158, 1, 0
    %v6167 = vsel %vm6159, 1, 0
    %v6168 = vcvt.s32.f32 %v6160
    %v6169 = vcvt.s32.f32 %v6161
    %v6170 = vcvt.s32.f32 %v6162
    %v6171 = vcvt.s32.f32 %v6163
    %v6172 = vcvt.s32.f32 %v6164
    %v6173 = vcvt.s32.f32 %v6165
    %v6174 = vcvt.s32.f32 %v6166
    %v6175 = vcvt.s32.f32 %v6167
    %v6176 = vpack.c.bf16 %v6169, %v6168
    %v6177 = vpack.c.bf16 %v6171, %v6170
    %v6178 = vpack.c.bf16 %v6173, %v6172
    %v6179 = vpack.c.bf16 %v6175, %v6174
    %v6180 = vpack.c.bf16 %v5824, %v5821
    %v6181 = vpack.c.bf16 %v5832, %v5829
    %v6182 = vpack.c.bf16 %v5840, %v5837
    %v6183 = vpack.c.bf16 %v5848, %v5845
    %vm6184 = vsmask.f32 4352
    %v6186 = vshrl.u32 %v6180, 16
    %v6188 = vrot.slane %v6186, 3
    %v6189 = vshll.u32 %v6180, 16
    %v6191 = vrot.slane %v6189, 4
    %v6192 = vor.u32 %v6188, %v6191
    %v6194 = vshrl.u32 %v6181, 16
    %v6196 = vrot.slane %v6194, 3
    %v6197 = vshll.u32 %v6181, 16
    %v6199 = vrot.slane %v6197, 4
    %v6200 = vor.u32 %v6196, %v6199
    %v6201 = vsel %vm6184, %v6192, %v6200
    %v6203 = vshrl.u32 %v6182, 16
    %v6205 = vrot.slane %v6203, 3
    %v6206 = vshll.u32 %v6182, 16
    %v6208 = vrot.slane %v6206, 4
    %v6209 = vor.u32 %v6205, %v6208
    %v6210 = vsel %vm6184, %v6200, %v6209
    %v6212 = vshrl.u32 %v6183, 16
    %v6214 = vrot.slane %v6212, 3
    %v6215 = vshll.u32 %v6183, 16
    %v6217 = vrot.slane %v6215, 4
    %v6218 = vor.u32 %v6214, %v6217
    %v6219 = vsel %vm6184, %v6209, %v6218
    %vm6222 = vcmask 1044480
    %vm6223 = vmand %vm6222, %vm6184
    %v6224 = vsel %vm6223, 0, %v6192
    %v6225 = vsel %vm6223, %v6218, 0
    %v6226 = vmul.bf16 %v6180, %v6148
    %v6227 = vmul.bf16 %v6181, %v6149
    %v6228 = vmul.bf16 %v6182, %v6150
    %v6229 = vmul.bf16 %v6183, %v6151
    %v6231 = vshrl.u32 %v6226, 16
    %v6233 = vrot.slane %v6231, 3
    %v6234 = vshll.u32 %v6226, 16
    %v6236 = vrot.slane %v6234, 4
    %v6237 = vor.u32 %v6233, %v6236
    %v6239 = vshrl.u32 %v6227, 16
    %v6241 = vrot.slane %v6239, 3
    %v6242 = vshll.u32 %v6227, 16
    %v6244 = vrot.slane %v6242, 4
    %v6245 = vor.u32 %v6241, %v6244
    %v6246 = vsel %vm6184, %v6237, %v6245
    %v6248 = vshrl.u32 %v6228, 16
    %v6250 = vrot.slane %v6248, 3
    %v6251 = vshll.u32 %v6228, 16
    %v6253 = vrot.slane %v6251, 4
    %v6254 = vor.u32 %v6250, %v6253
    %v6255 = vsel %vm6184, %v6245, %v6254
    %v6257 = vshrl.u32 %v6229, 16
    %v6259 = vrot.slane %v6257, 3
    %v6260 = vshll.u32 %v6229, 16
    %v6262 = vrot.slane %v6260, 4
    %v6263 = vor.u32 %v6259, %v6262
    %v6264 = vsel %vm6184, %v6254, %v6263
    %v6267 = vsel %vm6223, 0, %v6237
    %v6268 = vsel %vm6223, %v6263, 0
    %v6269 = vmul.bf16 %v6180, %v6176
    %v6270 = vmul.bf16 %v6181, %v6177
    %v6271 = vmul.bf16 %v6182, %v6178
    %v6272 = vmul.bf16 %v6183, %v6179
    %v6274 = vshrl.u32 %v6269, 16
    %v6276 = vrot.slane %v6274, 3
    %v6277 = vshll.u32 %v6269, 16
    %v6279 = vrot.slane %v6277, 4
    %v6280 = vor.u32 %v6276, %v6279
    %v6282 = vshrl.u32 %v6270, 16
    %v6284 = vrot.slane %v6282, 3
    %v6285 = vshll.u32 %v6270, 16
    %v6287 = vrot.slane %v6285, 4
    %v6288 = vor.u32 %v6284, %v6287
    %v6289 = vsel %vm6184, %v6280, %v6288
    %v6291 = vshrl.u32 %v6271, 16
    %v6293 = vrot.slane %v6291, 3
    %v6294 = vshll.u32 %v6271, 16
    %v6296 = vrot.slane %v6294, 4
    %v6297 = vor.u32 %v6293, %v6296
    %v6298 = vsel %vm6184, %v6288, %v6297
    %v6300 = vshrl.u32 %v6272, 16
    %v6302 = vrot.slane %v6300, 3
    %v6303 = vshll.u32 %v6272, 16
    %v6305 = vrot.slane %v6303, 4
    %v6306 = vor.u32 %v6302, %v6305
    %v6307 = vsel %vm6184, %v6297, %v6306
    %v6310 = vsel %vm6223, 0, %v6280
    %v6311 = vsel %vm6223, %v6306, 0
    %v6313 = vunpack.c.l.b16 %v6310
    %v6314 = vunpack.c.h.b16 %v6310
    %v6315 = vunpack.c.l.b16 %v6289
    %v6316 = vunpack.c.h.b16 %v6289
    %v6317 = vunpack.c.l.b16 %v6298
    %v6318 = vunpack.c.h.b16 %v6298
    %v6319 = vunpack.c.l.b16 %v6307
    %v6320 = vunpack.c.h.b16 %v6307
    %v6321 = vpack.c.b16 %v6313, %v6313
    %v6322 = vpack.c.b16 %v6314, %v6314
    %v6323 = vpack.c.b16 %v6315, %v6315
    %v6324 = vpack.c.b16 %v6316, %v6316
    %v6325 = vpack.c.b16 %v6317, %v6317
    %v6326 = vpack.c.b16 %v6318, %v6318
    %v6327 = vpack.c.b16 %v6319, %v6319
    %v6328 = vpack.c.b16 %v6320, %v6320
    %vm6337 = vcmask 125952
    %6338 = vst.msk [vmem:[#allocation3] sm:$0xf] %vm6337, %v6321
    %6339 = vst.msk [vmem:[#allocation3 + $0x8] sm:$0xf] %vm6337, %v6322
    %6340 = vst.msk [vmem:[#allocation3 + $0x10] sm:$0xf] %vm6337, %v6323
    %6341 = vst.msk [vmem:[#allocation3 + $0x18] sm:$0xf] %vm6337, %v6324
    %6342 = vst.msk [vmem:[#allocation3 + $0x20] sm:$0xf] %vm6337, %v6325
    %6343 = vst.msk [vmem:[#allocation3 + $0x28] sm:$0xf] %vm6337, %v6326
    %6344 = vst.msk [vmem:[#allocation3 + $0x30] sm:$0xf] %vm6337, %v6327
    %6345 = vst.msk [vmem:[#allocation3 + $0x38] sm:$0xf] %vm6337, %v6328
    %v6348 = vunpack.c.l.b16 %v6224
    %v6349 = vunpack.c.h.b16 %v6224
    %v6350 = vunpack.c.l.b16 %v6201
    %v6351 = vunpack.c.h.b16 %v6201
    %v6352 = vunpack.c.l.b16 %v6210
    %v6353 = vunpack.c.h.b16 %v6210
    %v6354 = vunpack.c.l.b16 %v6219
    %v6355 = vunpack.c.h.b16 %v6219
    %v6356 = vunpack.c.l.b16 %v6225
    %v6357 = vpack.c.b16 %v6348, %v6348
    %v6358 = vpack.c.b16 %v6349, %v6349
    %v6359 = vpack.c.b16 %v6350, %v6350
    %v6360 = vpack.c.b16 %v6351, %v6351
    %v6361 = vpack.c.b16 %v6352, %v6352
    %v6362 = vpack.c.b16 %v6353, %v6353
    %v6363 = vpack.c.b16 %v6354, %v6354
    %v6364 = vpack.c.b16 %v6355, %v6355
    %v6365 = vpack.c.b16 %v6356, %v6356
    %v6367 = vshrl.u32 %v6357, 16
    %v6369 = vrot.slane %v6367, 4
    %v6370 = vshll.u32 %v6357, 16
    %v6372 = vrot.slane %v6370, 5
    %v6373 = vor.u32 %v6369, %v6372
    %v6374 = vrot.slane %v6373, 4
    %v6376 = vshll.u32 %v6358, 16
    %v6378 = vrot.slane %v6376, 5
    %v6379 = vsel %vm1010, %v6374, %v6378
    %v6380 = vshrl.u32 %v6358, 16
    %v6382 = vrot.slane %v6380, 4
    %v6383 = vor.u32 %v6382, %v6378
    %v6384 = vrot.slane %v6383, 4
    %v6386 = vshll.u32 %v6359, 16
    %v6388 = vrot.slane %v6386, 5
    %v6389 = vsel %vm1010, %v6384, %v6388
    %v6390 = vshrl.u32 %v6359, 16
    %v6392 = vrot.slane %v6390, 4
    %v6393 = vor.u32 %v6392, %v6388
    %v6394 = vrot.slane %v6393, 4
    %v6396 = vshll.u32 %v6360, 16
    %v6398 = vrot.slane %v6396, 5
    %v6399 = vsel %vm1010, %v6394, %v6398
    %v6400 = vshrl.u32 %v6360, 16
    %v6402 = vrot.slane %v6400, 4
    %v6403 = vor.u32 %v6402, %v6398
    %v6404 = vrot.slane %v6403, 4
    %v6406 = vshll.u32 %v6361, 16
    %v6408 = vrot.slane %v6406, 5
    %v6409 = vsel %vm1010, %v6404, %v6408
    %v6410 = vshrl.u32 %v6361, 16
    %v6412 = vrot.slane %v6410, 4
    %v6413 = vor.u32 %v6412, %v6408
    %v6414 = vrot.slane %v6413, 4
    %v6416 = vshll.u32 %v6362, 16
    %v6418 = vrot.slane %v6416, 5
    %v6419 = vsel %vm1010, %v6414, %v6418
    %v6420 = vshrl.u32 %v6362, 16
    %v6422 = vrot.slane %v6420, 4
    %v6423 = vor.u32 %v6422, %v6418
    %v6424 = vrot.slane %v6423, 4
    %v6426 = vshll.u32 %v6363, 16
    %v6428 = vrot.slane %v6426, 5
    %v6429 = vsel %vm1010, %v6424, %v6428
    %v6430 = vshrl.u32 %v6363, 16
    %v6432 = vrot.slane %v6430, 4
    %v6433 = vor.u32 %v6432, %v6428
    %v6434 = vrot.slane %v6433, 4
    %v6436 = vshll.u32 %v6364, 16
    %v6438 = vrot.slane %v6436, 5
    %v6439 = vsel %vm1010, %v6434, %v6438
    %v6440 = vshrl.u32 %v6364, 16
    %v6442 = vrot.slane %v6440, 4
    %v6443 = vor.u32 %v6442, %v6438
    %v6444 = vrot.slane %v6443, 4
    %v6446 = vshll.u32 %v6365, 16
    %v6448 = vrot.slane %v6446, 5
    %v6449 = vsel %vm1010, %v6444, %v6448
    %6450 = vrot.lane.b32.xlu0 %v6379, 16
    %v6451 = vpop.permute.xlu0 %6450
    %6452 = vrot.lane.b32.xlu0 %v6389, 16
    %v6453 = vpop.permute.xlu0 %6452
    %6454 = vrot.lane.b32.xlu0 %v6399, 16
    %v6455 = vpop.permute.xlu0 %6454
    %6456 = vrot.lane.b32.xlu0 %v6409, 16
    %v6457 = vpop.permute.xlu0 %6456
    %6458 = vrot.lane.b32.xlu0 %v6419, 16
    %v6459 = vpop.permute.xlu0 %6458
    %6460 = vrot.lane.b32.xlu0 %v6429, 16
    %v6461 = vpop.permute.xlu0 %6460
    %6462 = vrot.lane.b32.xlu0 %v6439, 16
    %v6463 = vpop.permute.xlu0 %6462
    %6464 = vrot.lane.b32.xlu0 %v6449, 16
    %v6465 = vpop.permute.xlu0 %6464
    %vm6474 = vcmask 257152
    %6475 = vst.msk [vmem:[#allocation3] sm:$0xf] %vm6474, %v6451
    %6476 = vst.msk [vmem:[#allocation3 + $0x8] sm:$0xf] %vm6474, %v6453
    %6477 = vst.msk [vmem:[#allocation3 + $0x10] sm:$0xf] %vm6474, %v6455
    %6478 = vst.msk [vmem:[#allocation3 + $0x18] sm:$0xf] %vm6474, %v6457
    %6479 = vst.msk [vmem:[#allocation3 + $0x20] sm:$0xf] %vm6474, %v6459
    %6480 = vst.msk [vmem:[#allocation3 + $0x28] sm:$0xf] %vm6474, %v6461
    %6481 = vst.msk [vmem:[#allocation3 + $0x30] sm:$0xf] %vm6474, %v6463
    %6482 = vst.msk [vmem:[#allocation3 + $0x38] sm:$0xf] %vm6474, %v6465
    %v6485 = vunpack.c.l.b16 %v6267
    %v6486 = vunpack.c.h.b16 %v6267
    %v6487 = vunpack.c.l.b16 %v6246
    %v6488 = vunpack.c.h.b16 %v6246
    %v6489 = vunpack.c.l.b16 %v6255
    %v6490 = vunpack.c.h.b16 %v6255
    %v6491 = vunpack.c.l.b16 %v6264
    %v6492 = vunpack.c.h.b16 %v6264
    %v6493 = vunpack.c.l.b16 %v6268
    %v6494 = vpack.c.b16 %v6485, %v6485
    %v6495 = vpack.c.b16 %v6486, %v6486
    %v6496 = vpack.c.b16 %v6487, %v6487
    %v6497 = vpack.c.b16 %v6488, %v6488
    %v6498 = vpack.c.b16 %v6489, %v6489
    %v6499 = vpack.c.b16 %v6490, %v6490
    %v6500 = vpack.c.b16 %v6491, %v6491
    %v6501 = vpack.c.b16 %v6492, %v6492
    %v6502 = vpack.c.b16 %v6493, %v6493
    %v6503 = vrot.slane %v6494, 5
    %v6504 = vrot.slane %v6503, 4
    %v6505 = vrot.slane %v6495, 5
    %v6506 = vsel %vm1529, %v6504, %v6505
    %v6507 = vrot.slane %v6505, 4
    %v6508 = vrot.slane %v6496, 5
    %v6509 = vsel %vm1529, %v6507, %v6508
    %v6510 = vrot.slane %v6508, 4
    %v6511 = vrot.slane %v6497, 5
    %v6512 = vsel %vm1529, %v6510, %v6511
    %v6513 = vrot.slane %v6511, 4
    %v6514 = vrot.slane %v6498, 5
    %v6515 = vsel %vm1529, %v6513, %v6514
    %v6516 = vrot.slane %v6514, 4
    %v6517 = vrot.slane %v6499, 5
    %v6518 = vsel %vm1529, %v6516, %v6517
    %v6519 = vrot.slane %v6517, 4
    %v6520 = vrot.slane %v6500, 5
    %v6521 = vsel %vm1529, %v6519, %v6520
    %v6522 = vrot.slane %v6520, 4
    %v6523 = vrot.slane %v6501, 5
    %v6524 = vsel %vm1529, %v6522, %v6523
    %v6525 = vrot.slane %v6523, 4
    %v6526 = vrot.slane %v6502, 5
    %v6527 = vsel %vm1529, %v6525, %v6526
    %6528 = vrot.lane.b32.xlu0 %v6506, 32
    %v6529 = vpop.permute.xlu0 %6528
    %6530 = vrot.lane.b32.xlu0 %v6509, 32
    %v6531 = vpop.permute.xlu0 %6530
    %6532 = vrot.lane.b32.xlu0 %v6512, 32
    %v6533 = vpop.permute.xlu0 %6532
    %6534 = vrot.lane.b32.xlu0 %v6515, 32
    %v6535 = vpop.permute.xlu0 %6534
    %6536 = vrot.lane.b32.xlu0 %v6518, 32
    %v6537 = vpop.permute.xlu0 %6536
    %6538 = vrot.lane.b32.xlu0 %v6521, 32
    %v6539 = vpop.permute.xlu0 %6538
    %6540 = vrot.lane.b32.xlu0 %v6524, 32
    %v6541 = vpop.permute.xlu0 %6540
    %6542 = vrot.lane.b32.xlu0 %v6527, 32
    %v6543 = vpop.permute.xlu0 %6542
    %vm6552 = vcmask 388352
    %6553 = vst.msk [vmem:[#allocation3] sm:$0xf] %vm6552, %v6529
    %6554 = vst.msk [vmem:[#allocation3 + $0x8] sm:$0xf] %vm6552, %v6531
    %6555 = vst.msk [vmem:[#allocation3 + $0x10] sm:$0xf] %vm6552, %v6533
    %6556 = vst.msk [vmem:[#allocation3 + $0x18] sm:$0xf] %vm6552, %v6535
    %6557 = vst.msk [vmem:[#allocation3 + $0x20] sm:$0xf] %vm6552, %v6537
    %6558 = vst.msk [vmem:[#allocation3 + $0x28] sm:$0xf] %vm6552, %v6539
    %6559 = vst.msk [vmem:[#allocation3 + $0x30] sm:$0xf] %vm6552, %v6541
    %6560 = vst.msk [vmem:[#allocation3 + $0x38] sm:$0xf] %vm6552, %v6543
    %v6562 = vunpack.c.l.b16 %v6311
    %v6563 = vpack.c.b16 %v6562, %v6562
    %6564 = vrot.lane.b32.xlu0 %v6322, 48
    %v6565 = vpop.permute.xlu0 %6564
    %6566 = vrot.lane.b32.xlu0 %v6323, 48
    %v6567 = vpop.permute.xlu0 %6566
    %6568 = vrot.lane.b32.xlu0 %v6324, 48
    %v6569 = vpop.permute.xlu0 %6568
    %6570 = vrot.lane.b32.xlu0 %v6325, 48
    %v6571 = vpop.permute.xlu0 %6570
    %6572 = vrot.lane.b32.xlu0 %v6326, 48
    %v6573 = vpop.permute.xlu0 %6572
    %6574 = vrot.lane.b32.xlu0 %v6327, 48
    %v6575 = vpop.permute.xlu0 %6574
    %6576 = vrot.lane.b32.xlu0 %v6328, 48
    %v6577 = vpop.permute.xlu0 %6576
    %6578 = vrot.lane.b32.xlu0 %v6563, 48
    %v6579 = vpop.permute.xlu0 %6578
    %vm6588 = vcmask 519552
    %6589 = vst.msk [vmem:[#allocation3] sm:$0xf] %vm6588, %v6565
    %6590 = vst.msk [vmem:[#allocation3 + $0x8] sm:$0xf] %vm6588, %v6567
    %6591 = vst.msk [vmem:[#allocation3 + $0x10] sm:$0xf] %vm6588, %v6569
    %6592 = vst.msk [vmem:[#allocation3 + $0x18] sm:$0xf] %vm6588, %v6571
    %6593 = vst.msk [vmem:[#allocation3 + $0x20] sm:$0xf] %vm6588, %v6573
    %6594 = vst.msk [vmem:[#allocation3 + $0x28] sm:$0xf] %vm6588, %v6575
    %6595 = vst.msk [vmem:[#allocation3 + $0x30] sm:$0xf] %vm6588, %v6577
    %6596 = vst.msk [vmem:[#allocation3 + $0x38] sm:$0xf] %vm6588, %v6579
    %v6597 = vunpack.c.h.b16 %v6225
    %v6598 = vpack.c.b16 %v6597, %v6597
    %v6599 = vshrl.u32 %v6365, 16
    %v6601 = vrot.slane %v6599, 4
    %v6602 = vor.u32 %v6601, %v6448
    %v6603 = vrot.slane %v6602, 4
    %v6605 = vshll.u32 %v6598, 16
    %v6607 = vrot.slane %v6605, 5
    %v6608 = vsel %vm1010, %v6603, %v6607
    %6609 = vrot.lane.b32.xlu0 %v6389, 64
    %v6610 = vpop.permute.xlu0 %6609
    %6611 = vrot.lane.b32.xlu0 %v6399, 64
    %v6612 = vpop.permute.xlu0 %6611
    %6613 = vrot.lane.b32.xlu0 %v6409, 64
    %v6614 = vpop.permute.xlu0 %6613
    %6615 = vrot.lane.b32.xlu0 %v6419, 64
    %v6616 = vpop.permute.xlu0 %6615
    %6617 = vrot.lane.b32.xlu0 %v6429, 64
    %v6618 = vpop.permute.xlu0 %6617
    %6619 = vrot.lane.b32.xlu0 %v6439, 64
    %v6620 = vpop.permute.xlu0 %6619
    %6621 = vrot.lane.b32.xlu0 %v6449, 64
    %v6622 = vpop.permute.xlu0 %6621
    %6623 = vrot.lane.b32.xlu0 %v6608, 64
    %v6624 = vpop.permute.xlu0 %6623
    %vm6633 = vcmask 650752
    %6634 = vst.msk [vmem:[#allocation3] sm:$0xf] %vm6633, %v6610
    %6635 = vst.msk [vmem:[#allocation3 + $0x8] sm:$0xf] %vm6633, %v6612
    %6636 = vst.msk [vmem:[#allocation3 + $0x10] sm:$0xf] %vm6633, %v6614
    %6637 = vst.msk [vmem:[#allocation3 + $0x18] sm:$0xf] %vm6633, %v6616
    %6638 = vst.msk [vmem:[#allocation3 + $0x20] sm:$0xf] %vm6633, %v6618
    %6639 = vst.msk [vmem:[#allocation3 + $0x28] sm:$0xf] %vm6633, %v6620
    %6640 = vst.msk [vmem:[#allocation3 + $0x30] sm:$0xf] %vm6633, %v6622
    %6641 = vst.msk [vmem:[#allocation3 + $0x38] sm:$0xf] %vm6633, %v6624
    %v6642 = vunpack.c.h.b16 %v6268
    %v6643 = vpack.c.b16 %v6642, %v6642
    %v6644 = vrot.slane %v6526, 4
    %v6645 = vrot.slane %v6643, 5
    %v6646 = vsel %vm1529, %v6644, %v6645
    %6647 = vrot.lane.b32.xlu0 %v6509, 80
    %v6648 = vpop.permute.xlu0 %6647
    %6649 = vrot.lane.b32.xlu0 %v6512, 80
    %v6650 = vpop.permute.xlu0 %6649
    %6651 = vrot.lane.b32.xlu0 %v6515, 80
    %v6652 = vpop.permute.xlu0 %6651
    %6653 = vrot.lane.b32.xlu0 %v6518, 80
    %v6654 = vpop.permute.xlu0 %6653
    %6655 = vrot.lane.b32.xlu0 %v6521, 80
    %v6656 = vpop.permute.xlu0 %6655
    %6657 = vrot.lane.b32.xlu0 %v6524, 80
    %v6658 = vpop.permute.xlu0 %6657
    %6659 = vrot.lane.b32.xlu0 %v6527, 80
    %v6660 = vpop.permute.xlu0 %6659
    %6661 = vrot.lane.b32.xlu0 %v6646, 80
    %v6662 = vpop.permute.xlu0 %6661
    %vm6671 = vcmask 781952
    %6672 = vst.msk [vmem:[#allocation3] sm:$0xf] %vm6671, %v6648
    %6673 = vst.msk [vmem:[#allocation3 + $0x8] sm:$0xf] %vm6671, %v6650
    %6674 = vst.msk [vmem:[#allocation3 + $0x10] sm:$0xf] %vm6671, %v6652
    %6675 = vst.msk [vmem:[#allocation3 + $0x18] sm:$0xf] %vm6671, %v6654
    %6676 = vst.msk [vmem:[#allocation3 + $0x20] sm:$0xf] %vm6671, %v6656
    %6677 = vst.msk [vmem:[#allocation3 + $0x28] sm:$0xf] %vm6671, %v6658
    %6678 = vst.msk [vmem:[#allocation3 + $0x30] sm:$0xf] %vm6671, %v6660
    %6679 = vst.msk [vmem:[#allocation3 + $0x38] sm:$0xf] %vm6671, %v6662
    %v6680 = vunpack.c.h.b16 %v6311
    %v6681 = vpack.c.b16 %v6680, %v6680
    %6682 = vrot.lane.b32.xlu0 %v6323, 96
    %v6683 = vpop.permute.xlu0 %6682
    %6684 = vrot.lane.b32.xlu0 %v6324, 96
    %v6685 = vpop.permute.xlu0 %6684
    %6686 = vrot.lane.b32.xlu0 %v6325, 96
    %v6687 = vpop.permute.xlu0 %6686
    %6688 = vrot.lane.b32.xlu0 %v6326, 96
    %v6689 = vpop.permute.xlu0 %6688
    %6690 = vrot.lane.b32.xlu0 %v6327, 96
    %v6691 = vpop.permute.xlu0 %6690
    %6692 = vrot.lane.b32.xlu0 %v6328, 96
    %v6693 = vpop.permute.xlu0 %6692
    %6694 = vrot.lane.b32.xlu0 %v6563, 96
    %v6695 = vpop.permute.xlu0 %6694
    %6696 = vrot.lane.b32.xlu0 %v6681, 96
    %v6697 = vpop.permute.xlu0 %6696
    %vm6706 = vcmask 913152
    %6707 = vst.msk [vmem:[#allocation3] sm:$0xf] %vm6706, %v6683
    %6708 = vst.msk [vmem:[#allocation3 + $0x8] sm:$0xf] %vm6706, %v6685
    %6709 = vst.msk [vmem:[#allocation3 + $0x10] sm:$0xf] %vm6706, %v6687
    %6710 = vst.msk [vmem:[#allocation3 + $0x18] sm:$0xf] %vm6706, %v6689
    %6711 = vst.msk [vmem:[#allocation3 + $0x20] sm:$0xf] %vm6706, %v6691
    %6712 = vst.msk [vmem:[#allocation3 + $0x28] sm:$0xf] %vm6706, %v6693
    %6713 = vst.msk [vmem:[#allocation3 + $0x30] sm:$0xf] %vm6706, %v6695
    %6714 = vst.msk [vmem:[#allocation3 + $0x38] sm:$0xf] %vm6706, %v6697
    %v6715 = vshrl.u32 %v6598, 16
    %v6717 = vrot.slane %v6715, 4
    %v6718 = vor.u32 %v6717, %v6607
    %v6719 = vrot.slane %v6718, 4
    %v6720 = vsel %vm1010, %v6719, %v1017
    %6721 = vrot.lane.b32.xlu0 %v6399, 112
    %v6722 = vpop.permute.xlu0 %6721
    %6723 = vrot.lane.b32.xlu0 %v6409, 112
    %v6724 = vpop.permute.xlu0 %6723
    %6725 = vrot.lane.b32.xlu0 %v6419, 112
    %v6726 = vpop.permute.xlu0 %6725
    %6727 = vrot.lane.b32.xlu0 %v6429, 112
    %v6728 = vpop.permute.xlu0 %6727
    %6729 = vrot.lane.b32.xlu0 %v6439, 112
    %v6730 = vpop.permute.xlu0 %6729
    %6731 = vrot.lane.b32.xlu0 %v6449, 112
    %v6732 = vpop.permute.xlu0 %6731
    %6733 = vrot.lane.b32.xlu0 %v6608, 112
    %v6734 = vpop.permute.xlu0 %6733
    %6735 = vrot.lane.b32.xlu0 %v6720, 112
    %v6736 = vpop.permute.xlu0 %6735
    %vm6745 = vcmask 1044352
    %6746 = vst.msk [vmem:[#allocation3] sm:$0xf] %vm6745, %v6722
    %6747 = vst.msk [vmem:[#allocation3 + $0x8] sm:$0xf] %vm6745, %v6724
    %6748 = vst.msk [vmem:[#allocation3 + $0x10] sm:$0xf] %vm6745, %v6726
    %6749 = vst.msk [vmem:[#allocation3 + $0x18] sm:$0xf] %vm6745, %v6728
    %6750 = vst.msk [vmem:[#allocation3 + $0x20] sm:$0xf] %vm6745, %v6730
    %6751 = vst.msk [vmem:[#allocation3 + $0x28] sm:$0xf] %vm6745, %v6732
    %6752 = vst.msk [vmem:[#allocation3 + $0x30] sm:$0xf] %vm6745, %v6734
    %6753 = vst.msk [vmem:[#allocation3 + $0x38] sm:$0xf] %vm6745, %v6736
    %v6754 = vrot.slane %v6645, 4
    %v6755 = vsel %vm1529, %v6754, %v1530
    %6764 = vst.msk [vmem:[#allocation3 + $0x4] sm:$0xf] %vm6337, %v6512
    %6765 = vst.msk [vmem:[#allocation3 + $0xc] sm:$0xf] %vm6337, %v6515
    %6766 = vst.msk [vmem:[#allocation3 + $0x14] sm:$0xf] %vm6337, %v6518
    %6767 = vst.msk [vmem:[#allocation3 + $0x1c] sm:$0xf] %vm6337, %v6521
    %6768 = vst.msk [vmem:[#allocation3 + $0x24] sm:$0xf] %vm6337, %v6524
    %6769 = vst.msk [vmem:[#allocation3 + $0x2c] sm:$0xf] %vm6337, %v6527
    %6770 = vst.msk [vmem:[#allocation3 + $0x34] sm:$0xf] %vm6337, %v6646
    %6771 = vst.msk [vmem:[#allocation3 + $0x3c] sm:$0xf] %vm6337, %v6755
    %v6772 = vpack.c.bf16 %v6097, %v6094
    %v6773 = vpack.c.bf16 %v6105, %v6102
    %v6774 = vpack.c.bf16 %v6113, %v6110
    %v6775 = vpack.c.bf16 %v6121, %v6118
    %v6777 = vshrl.u32 %v6772, 16
    %v6779 = vrot.slane %v6777, 3
    %v6780 = vshll.u32 %v6772, 16
    %v6782 = vrot.slane %v6780, 4
    %v6783 = vor.u32 %v6779, %v6782
    %v6785 = vshrl.u32 %v6773, 16
    %v6787 = vrot.slane %v6785, 3
    %v6788 = vshll.u32 %v6773, 16
    %v6790 = vrot.slane %v6788, 4
    %v6791 = vor.u32 %v6787, %v6790
    %v6792 = vsel %vm6184, %v6783, %v6791
    %v6794 = vshrl.u32 %v6774, 16
    %v6796 = vrot.slane %v6794, 3
    %v6797 = vshll.u32 %v6774, 16
    %v6799 = vrot.slane %v6797, 4
    %v6800 = vor.u32 %v6796, %v6799
    %v6801 = vsel %vm6184, %v6791, %v6800
    %v6803 = vshrl.u32 %v6775, 16
    %v6805 = vrot.slane %v6803, 3
    %v6806 = vshll.u32 %v6775, 16
    %v6808 = vrot.slane %v6806, 4
    %v6809 = vor.u32 %v6805, %v6808
    %v6810 = vsel %vm6184, %v6800, %v6809
    %v6813 = vsel %vm6223, 0, %v6783
    %v6814 = vsel %vm6223, %v6809, 0
    %v6815 = vmul.bf16 %v6772, %v6148
    %v6816 = vmul.bf16 %v6773, %v6149
    %v6817 = vmul.bf16 %v6774, %v6150
    %v6818 = vmul.bf16 %v6775, %v6151
    %v6820 = vshrl.u32 %v6815, 16
    %v6822 = vrot.slane %v6820, 3
    %v6823 = vshll.u32 %v6815, 16
    %v6825 = vrot.slane %v6823, 4
    %v6826 = vor.u32 %v6822, %v6825
    %v6828 = vshrl.u32 %v6816, 16
    %v6830 = vrot.slane %v6828, 3
    %v6831 = vshll.u32 %v6816, 16
    %v6833 = vrot.slane %v6831, 4
    %v6834 = vor.u32 %v6830, %v6833
    %v6835 = vsel %vm6184, %v6826, %v6834
    %v6837 = vshrl.u32 %v6817, 16
    %v6839 = vrot.slane %v6837, 3
    %v6840 = vshll.u32 %v6817, 16
    %v6842 = vrot.slane %v6840, 4
    %v6843 = vor.u32 %v6839, %v6842
    %v6844 = vsel %vm6184, %v6834, %v6843
    %v6846 = vshrl.u32 %v6818, 16
    %v6848 = vrot.slane %v6846, 3
    %v6849 = vshll.u32 %v6818, 16
    %v6851 = vrot.slane %v6849, 4
    %v6852 = vor.u32 %v6848, %v6851
    %v6853 = vsel %vm6184, %v6843, %v6852
    %v6856 = vsel %vm6223, 0, %v6826
    %v6857 = vsel %vm6223, %v6852, 0
    %v6858 = vmul.bf16 %v6772, %v6176
    %v6859 = vmul.bf16 %v6773, %v6177
    %v6860 = vmul.bf16 %v6774, %v6178
    %v6861 = vmul.bf16 %v6775, %v6179
    %v6863 = vshrl.u32 %v6858, 16
    %v6865 = vrot.slane %v6863, 3
    %v6866 = vshll.u32 %v6858, 16
    %v6868 = vrot.slane %v6866, 4
    %v6869 = vor.u32 %v6865, %v6868
    %v6871 = vshrl.u32 %v6859, 16
    %v6873 = vrot.slane %v6871, 3
    %v6874 = vshll.u32 %v6859, 16
    %v6876 = vrot.slane %v6874, 4
    %v6877 = vor.u32 %v6873, %v6876
    %v6878 = vsel %vm6184, %v6869, %v6877
    %v6880 = vshrl.u32 %v6860, 16
    %v6882 = vrot.slane %v6880, 3
    %v6883 = vshll.u32 %v6860, 16
    %v6885 = vrot.slane %v6883, 4
    %v6886 = vor.u32 %v6882, %v6885
    %v6887 = vsel %vm6184, %v6877, %v6886
    %v6889 = vshrl.u32 %v6861, 16
    %v6891 = vrot.slane %v6889, 3
    %v6892 = vshll.u32 %v6861, 16
    %v6894 = vrot.slane %v6892, 4
    %v6895 = vor.u32 %v6891, %v6894
    %v6896 = vsel %vm6184, %v6886, %v6895
    %v6899 = vsel %vm6223, 0, %v6869
    %v6900 = vsel %vm6223, %v6895, 0
    %v6902 = vunpack.c.l.b16 %v6899
    %v6903 = vunpack.c.h.b16 %v6899
    %v6904 = vunpack.c.l.b16 %v6878
    %v6905 = vunpack.c.h.b16 %v6878
    %v6906 = vunpack.c.l.b16 %v6887
    %v6907 = vunpack.c.h.b16 %v6887
    %v6908 = vunpack.c.l.b16 %v6896
    %v6909 = vunpack.c.h.b16 %v6896
    %v6910 = vpack.c.b16 %v6902, %v6902
    %v6911 = vpack.c.b16 %v6903, %v6903
    %v6912 = vpack.c.b16 %v6904, %v6904
    %v6913 = vpack.c.b16 %v6905, %v6905
    %v6914 = vpack.c.b16 %v6906, %v6906
    %v6915 = vpack.c.b16 %v6907, %v6907
    %v6916 = vpack.c.b16 %v6908, %v6908
    %v6917 = vpack.c.b16 %v6909, %v6909
    %6926 = vst.msk [vmem:[#allocation3 + $0x40] sm:$0xf] %vm6337, %v6910
    %6927 = vst.msk [vmem:[#allocation3 + $0x48] sm:$0xf] %vm6337, %v6911
    %6928 = vst.msk [vmem:[#allocation3 + $0x50] sm:$0xf] %vm6337, %v6912
    %6929 = vst.msk [vmem:[#allocation3 + $0x58] sm:$0xf] %vm6337, %v6913
    %6930 = vst.msk [vmem:[#allocation3 + $0x60] sm:$0xf] %vm6337, %v6914
    %6931 = vst.msk [vmem:[#allocation3 + $0x68] sm:$0xf] %vm6337, %v6915
    %6932 = vst.msk [vmem:[#allocation3 + $0x70] sm:$0xf] %vm6337, %v6916
    %6933 = vst.msk [vmem:[#allocation3 + $0x78] sm:$0xf] %vm6337, %v6917
    %v6936 = vunpack.c.l.b16 %v6813
    %v6937 = vunpack.c.h.b16 %v6813
    %v6938 = vunpack.c.l.b16 %v6792
    %v6939 = vunpack.c.h.b16 %v6792
    %v6940 = vunpack.c.l.b16 %v6801
    %v6941 = vunpack.c.h.b16 %v6801
    %v6942 = vunpack.c.l.b16 %v6810
    %v6943 = vunpack.c.h.b16 %v6810
    %v6944 = vunpack.c.l.b16 %v6814
    %v6945 = vpack.c.b16 %v6936, %v6936
    %v6946 = vpack.c.b16 %v6937, %v6937
    %v6947 = vpack.c.b16 %v6938, %v6938
    %v6948 = vpack.c.b16 %v6939, %v6939
    %v6949 = vpack.c.b16 %v6940, %v6940
    %v6950 = vpack.c.b16 %v6941, %v6941
    %v6951 = vpack.c.b16 %v6942, %v6942
    %v6952 = vpack.c.b16 %v6943, %v6943
    %v6953 = vpack.c.b16 %v6944, %v6944
    %v6955 = vshrl.u32 %v6945, 16
    %v6957 = vrot.slane %v6955, 4
    %v6958 = vshll.u32 %v6945, 16
    %v6960 = vrot.slane %v6958, 5
    %v6961 = vor.u32 %v6957, %v6960
    %v6962 = vrot.slane %v6961, 4
    %v6964 = vshll.u32 %v6946, 16
    %v6966 = vrot.slane %v6964, 5
    %v6967 = vsel %vm1010, %v6962, %v6966
    %v6968 = vshrl.u32 %v6946, 16
    %v6970 = vrot.slane %v6968, 4
    %v6971 = vor.u32 %v6970, %v6966
    %v6972 = vrot.slane %v6971, 4
    %v6974 = vshll.u32 %v6947, 16
    %v6976 = vrot.slane %v6974, 5
    %v6977 = vsel %vm1010, %v6972, %v6976
    %v6978 = vshrl.u32 %v6947, 16
    %v6980 = vrot.slane %v6978, 4
    %v6981 = vor.u32 %v6980, %v6976
    %v6982 = vrot.slane %v6981, 4
    %v6984 = vshll.u32 %v6948, 16
    %v6986 = vrot.slane %v6984, 5
    %v6987 = vsel %vm1010, %v6982, %v6986
    %v6988 = vshrl.u32 %v6948, 16
    %v6990 = vrot.slane %v6988, 4
    %v6991 = vor.u32 %v6990, %v6986
    %v6992 = vrot.slane %v6991, 4
    %v6994 = vshll.u32 %v6949, 16
    %v6996 = vrot.slane %v6994, 5
    %v6997 = vsel %vm1010, %v6992, %v6996
    %v6998 = vshrl.u32 %v6949, 16
    %v7000 = vrot.slane %v6998, 4
    %v7001 = vor.u32 %v7000, %v6996
    %v7002 = vrot.slane %v7001, 4
    %v7004 = vshll.u32 %v6950, 16
    %v7006 = vrot.slane %v7004, 5
    %v7007 = vsel %vm1010, %v7002, %v7006
    %v7008 = vshrl.u32 %v6950, 16
    %v7010 = vrot.slane %v7008, 4
    %v7011 = vor.u32 %v7010, %v7006
    %v7012 = vrot.slane %v7011, 4
    %v7014 = vshll.u32 %v6951, 16
    %v7016 = vrot.slane %v7014, 5
    %v7017 = vsel %vm1010, %v7012, %v7016
    %v7018 = vshrl.u32 %v6951, 16
    %v7020 = vrot.slane %v7018, 4
    %v7021 = vor.u32 %v7020, %v7016
    %v7022 = vrot.slane %v7021, 4
    %v7024 = vshll.u32 %v6952, 16
    %v7026 = vrot.slane %v7024, 5
    %v7027 = vsel %vm1010, %v7022, %v7026
    %v7028 = vshrl.u32 %v6952, 16
    %v7030 = vrot.slane %v7028, 4
    %v7031 = vor.u32 %v7030, %v7026
    %v7032 = vrot.slane %v7031, 4
    %v7034 = vshll.u32 %v6953, 16
    %v7036 = vrot.slane %v7034, 5
    %v7037 = vsel %vm1010, %v7032, %v7036
    %7038 = vrot.lane.b32.xlu0 %v6967, 16
    %v7039 = vpop.permute.xlu0 %7038
    %7040 = vrot.lane.b32.xlu0 %v6977, 16
    %v7041 = vpop.permute.xlu0 %7040
    %7042 = vrot.lane.b32.xlu0 %v6987, 16
    %v7043 = vpop.permute.xlu0 %7042
    %7044 = vrot.lane.b32.xlu0 %v6997, 16
    %v7045 = vpop.permute.xlu0 %7044
    %7046 = vrot.lane.b32.xlu0 %v7007, 16
    %v7047 = vpop.permute.xlu0 %7046
    %7048 = vrot.lane.b32.xlu0 %v7017, 16
    %v7049 = vpop.permute.xlu0 %7048
    %7050 = vrot.lane.b32.xlu0 %v7027, 16
    %v7051 = vpop.permute.xlu0 %7050
    %7052 = vrot.lane.b32.xlu0 %v7037, 16
    %v7053 = vpop.permute.xlu0 %7052
    %7062 = vst.msk [vmem:[#allocation3 + $0x40] sm:$0xf] %vm6474, %v7039
    %7063 = vst.msk [vmem:[#allocation3 + $0x48] sm:$0xf] %vm6474, %v7041
    %7064 = vst.msk [vmem:[#allocation3 + $0x50] sm:$0xf] %vm6474, %v7043
    %7065 = vst.msk [vmem:[#allocation3 + $0x58] sm:$0xf] %vm6474, %v7045
    %7066 = vst.msk [vmem:[#allocation3 + $0x60] sm:$0xf] %vm6474, %v7047
    %7067 = vst.msk [vmem:[#allocation3 + $0x68] sm:$0xf] %vm6474, %v7049
    %7068 = vst.msk [vmem:[#allocation3 + $0x70] sm:$0xf] %vm6474, %v7051
    %7069 = vst.msk [vmem:[#allocation3 + $0x78] sm:$0xf] %vm6474, %v7053
    %v7072 = vunpack.c.l.b16 %v6856
    %v7073 = vunpack.c.h.b16 %v6856
    %v7074 = vunpack.c.l.b16 %v6835
    %v7075 = vunpack.c.h.b16 %v6835
    %v7076 = vunpack.c.l.b16 %v6844
    %v7077 = vunpack.c.h.b16 %v6844
    %v7078 = vunpack.c.l.b16 %v6853
    %v7079 = vunpack.c.h.b16 %v6853
    %v7080 = vunpack.c.l.b16 %v6857
    %v7081 = vpack.c.b16 %v7072, %v7072
    %v7082 = vpack.c.b16 %v7073, %v7073
    %v7083 = vpack.c.b16 %v7074, %v7074
    %v7084 = vpack.c.b16 %v7075, %v7075
    %v7085 = vpack.c.b16 %v7076, %v7076
    %v7086 = vpack.c.b16 %v7077, %v7077
    %v7087 = vpack.c.b16 %v7078, %v7078
    %v7088 = vpack.c.b16 %v7079, %v7079
    %v7089 = vpack.c.b16 %v7080, %v7080
    %v7090 = vrot.slane %v7081, 5
    %v7091 = vrot.slane %v7090, 4
    %v7092 = vrot.slane %v7082, 5
    %v7093 = vsel %vm1529, %v7091, %v7092
    %v7094 = vrot.slane %v7092, 4
    %v7095 = vrot.slane %v7083, 5
    %v7096 = vsel %vm1529, %v7094, %v7095
    %v7097 = vrot.slane %v7095, 4
    %v7098 = vrot.slane %v7084, 5
    %v7099 = vsel %vm1529, %v7097, %v7098
    %v7100 = vrot.slane %v7098, 4
    %v7101 = vrot.slane %v7085, 5
    %v7102 = vsel %vm1529, %v7100, %v7101
    %v7103 = vrot.slane %v7101, 4
    %v7104 = vrot.slane %v7086, 5
    %v7105 = vsel %vm1529, %v7103, %v7104
    %v7106 = vrot.slane %v7104, 4
    %v7107 = vrot.slane %v7087, 5
    %v7108 = vsel %vm1529, %v7106, %v7107
    %v7109 = vrot.slane %v7107, 4
    %v7110 = vrot.slane %v7088, 5
    %v7111 = vsel %vm1529, %v7109, %v7110
    %v7112 = vrot.slane %v7110, 4
    %v7113 = vrot.slane %v7089, 5
    %v7114 = vsel %vm1529, %v7112, %v7113
    %7115 = vrot.lane.b32.xlu0 %v7093, 32
    %v7116 = vpop.permute.xlu0 %7115
    %7117 = vrot.lane.b32.xlu0 %v7096, 32
    %v7118 = vpop.permute.xlu0 %7117
    %7119 = vrot.lane.b32.xlu0 %v7099, 32
    %v7120 = vpop.permute.xlu0 %7119
    %7121 = vrot.lane.b32.xlu0 %v7102, 32
    %v7122 = vpop.permute.xlu0 %7121
    %7123 = vrot.lane.b32.xlu0 %v7105, 32
    %v7124 = vpop.permute.xlu0 %7123
    %7125 = vrot.lane.b32.xlu0 %v7108, 32
    %v7126 = vpop.permute.xlu0 %7125
    %7127 = vrot.lane.b32.xlu0 %v7111, 32
    %v7128 = vpop.permute.xlu0 %7127
    %7129 = vrot.lane.b32.xlu0 %v7114, 32
    %v7130 = vpop.permute.xlu0 %7129
    %7139 = vst.msk [vmem:[#allocation3 + $0x40] sm:$0xf] %vm6552, %v7116
    %7140 = vst.msk [vmem:[#allocation3 + $0x48] sm:$0xf] %vm6552, %v7118
    %7141 = vst.msk [vmem:[#allocation3 + $0x50] sm:$0xf] %vm6552, %v7120
    %7142 = vst.msk [vmem:[#allocation3 + $0x58] sm:$0xf] %vm6552, %v7122
    %7143 = vst.msk [vmem:[#allocation3 + $0x60] sm:$0xf] %vm6552, %v7124
    %7144 = vst.msk [vmem:[#allocation3 + $0x68] sm:$0xf] %vm6552, %v7126
    %7145 = vst.msk [vmem:[#allocation3 + $0x70] sm:$0xf] %vm6552, %v7128
    %7146 = vst.msk [vmem:[#allocation3 + $0x78] sm:$0xf] %vm6552, %v7130
    %v7148 = vunpack.c.l.b16 %v6900
    %v7149 = vpack.c.b16 %v7148, %v7148
    %7150 = vrot.lane.b32.xlu0 %v6911, 48
    %v7151 = vpop.permute.xlu0 %7150
    %7152 = vrot.lane.b32.xlu0 %v6912, 48
    %v7153 = vpop.permute.xlu0 %7152
    %7154 = vrot.lane.b32.xlu0 %v6913, 48
    %v7155 = vpop.permute.xlu0 %7154
    %7156 = vrot.lane.b32.xlu0 %v6914, 48
    %v7157 = vpop.permute.xlu0 %7156
    %7158 = vrot.lane.b32.xlu0 %v6915, 48
    %v7159 = vpop.permute.xlu0 %7158
    %7160 = vrot.lane.b32.xlu0 %v6916, 48
    %v7161 = vpop.permute.xlu0 %7160
    %7162 = vrot.lane.b32.xlu0 %v6917, 48
    %v7163 = vpop.permute.xlu0 %7162
    %7164 = vrot.lane.b32.xlu0 %v7149, 48
    %v7165 = vpop.permute.xlu0 %7164
    %7174 = vst.msk [vmem:[#allocation3 + $0x40] sm:$0xf] %vm6588, %v7151
    %7175 = vst.msk [vmem:[#allocation3 + $0x48] sm:$0xf] %vm6588, %v7153
    %7176 = vst.msk [vmem:[#allocation3 + $0x50] sm:$0xf] %vm6588, %v7155
    %7177 = vst.msk [vmem:[#allocation3 + $0x58] sm:$0xf] %vm6588, %v7157
    %7178 = vst.msk [vmem:[#allocation3 + $0x60] sm:$0xf] %vm6588, %v7159
    %7179 = vst.msk [vmem:[#allocation3 + $0x68] sm:$0xf] %vm6588, %v7161
    %7180 = vst.msk [vmem:[#allocation3 + $0x70] sm:$0xf] %vm6588, %v7163
    %7181 = vst.msk [vmem:[#allocation3 + $0x78] sm:$0xf] %vm6588, %v7165
    %v7182 = vunpack.c.h.b16 %v6814
    %v7183 = vpack.c.b16 %v7182, %v7182
    %v7184 = vshrl.u32 %v6953, 16
    %v7186 = vrot.slane %v7184, 4
    %v7187 = vor.u32 %v7186, %v7036
    %v7188 = vrot.slane %v7187, 4
    %v7190 = vshll.u32 %v7183, 16
    %v7192 = vrot.slane %v7190, 5
    %v7193 = vsel %vm1010, %v7188, %v7192
    %7194 = vrot.lane.b32.xlu0 %v6977, 64
    %v7195 = vpop.permute.xlu0 %7194
    %7196 = vrot.lane.b32.xlu0 %v6987, 64
    %v7197 = vpop.permute.xlu0 %7196
    %7198 = vrot.lane.b32.xlu0 %v6997, 64
    %v7199 = vpop.permute.xlu0 %7198
    %7200 = vrot.lane.b32.xlu0 %v7007, 64
    %v7201 = vpop.permute.xlu0 %7200
    %7202 = vrot.lane.b32.xlu0 %v7017, 64
    %v7203 = vpop.permute.xlu0 %7202
    %7204 = vrot.lane.b32.xlu0 %v7027, 64
    %v7205 = vpop.permute.xlu0 %7204
    %7206 = vrot.lane.b32.xlu0 %v7037, 64
    %v7207 = vpop.permute.xlu0 %7206
    %7208 = vrot.lane.b32.xlu0 %v7193, 64
    %v7209 = vpop.permute.xlu0 %7208
    %7218 = vst.msk [vmem:[#allocation3 + $0x40] sm:$0xf] %vm6633, %v7195
    %7219 = vst.msk [vmem:[#allocation3 + $0x48] sm:$0xf] %vm6633, %v7197
    %7220 = vst.msk [vmem:[#allocation3 + $0x50] sm:$0xf] %vm6633, %v7199
    %7221 = vst.msk [vmem:[#allocation3 + $0x58] sm:$0xf] %vm6633, %v7201
    %7222 = vst.msk [vmem:[#allocation3 + $0x60] sm:$0xf] %vm6633, %v7203
    %7223 = vst.msk [vmem:[#allocation3 + $0x68] sm:$0xf] %vm6633, %v7205
    %7224 = vst.msk [vmem:[#allocation3 + $0x70] sm:$0xf] %vm6633, %v7207
    %7225 = vst.msk [vmem:[#allocation3 + $0x78] sm:$0xf] %vm6633, %v7209
    %v7226 = vunpack.c.h.b16 %v6857
    %v7227 = vpack.c.b16 %v7226, %v7226
    %v7228 = vrot.slane %v7113, 4
    %v7229 = vrot.slane %v7227, 5
    %v7230 = vsel %vm1529, %v7228, %v7229
    %7231 = vrot.lane.b32.xlu0 %v7096, 80
    %v7232 = vpop.permute.xlu0 %7231
    %7233 = vrot.lane.b32.xlu0 %v7099, 80
    %v7234 = vpop.permute.xlu0 %7233
    %7235 = vrot.lane.b32.xlu0 %v7102, 80
    %v7236 = vpop.permute.xlu0 %7235
    %7237 = vrot.lane.b32.xlu0 %v7105, 80
    %v7238 = vpop.permute.xlu0 %7237
    %7239 = vrot.lane.b32.xlu0 %v7108, 80
    %v7240 = vpop.permute.xlu0 %7239
    %7241 = vrot.lane.b32.xlu0 %v7111, 80
    %v7242 = vpop.permute.xlu0 %7241
    %7243 = vrot.lane.b32.xlu0 %v7114, 80
    %v7244 = vpop.permute.xlu0 %7243
    %7245 = vrot.lane.b32.xlu0 %v7230, 80
    %v7246 = vpop.permute.xlu0 %7245
    %7255 = vst.msk [vmem:[#allocation3 + $0x40] sm:$0xf] %vm6671, %v7232
    %7256 = vst.msk [vmem:[#allocation3 + $0x48] sm:$0xf] %vm6671, %v7234
    %7257 = vst.msk [vmem:[#allocation3 + $0x50] sm:$0xf] %vm6671, %v7236
    %7258 = vst.msk [vmem:[#allocation3 + $0x58] sm:$0xf] %vm6671, %v7238
    %7259 = vst.msk [vmem:[#allocation3 + $0x60] sm:$0xf] %vm6671, %v7240
    %7260 = vst.msk [vmem:[#allocation3 + $0x68] sm:$0xf] %vm6671, %v7242
    %7261 = vst.msk [vmem:[#allocation3 + $0x70] sm:$0xf] %vm6671, %v7244
    %7262 = vst.msk [vmem:[#allocation3 + $0x78] sm:$0xf] %vm6671, %v7246
    %v7263 = vunpack.c.h.b16 %v6900
    %v7264 = vpack.c.b16 %v7263, %v7263
    %7265 = vrot.lane.b32.xlu0 %v6912, 96
    %v7266 = vpop.permute.xlu0 %7265
    %7267 = vrot.lane.b32.xlu0 %v6913, 96
    %v7268 = vpop.permute.xlu0 %7267
    %7269 = vrot.lane.b32.xlu0 %v6914, 96
    %v7270 = vpop.permute.xlu0 %7269
    %7271 = vrot.lane.b32.xlu0 %v6915, 96
    %v7272 = vpop.permute.xlu0 %7271
    %7273 = vrot.lane.b32.xlu0 %v6916, 96
    %v7274 = vpop.permute.xlu0 %7273
    %7275 = vrot.lane.b32.xlu0 %v6917, 96
    %v7276 = vpop.permute.xlu0 %7275
    %7277 = vrot.lane.b32.xlu0 %v7149, 96
    %v7278 = vpop.permute.xlu0 %7277
    %7279 = vrot.lane.b32.xlu0 %v7264, 96
    %v7280 = vpop.permute.xlu0 %7279
    %7289 = vst.msk [vmem:[#allocation3 + $0x40] sm:$0xf] %vm6706, %v7266
    %7290 = vst.msk [vmem:[#allocation3 + $0x48] sm:$0xf] %vm6706, %v7268
    %7291 = vst.msk [vmem:[#allocation3 + $0x50] sm:$0xf] %vm6706, %v7270
    %7292 = vst.msk [vmem:[#allocation3 + $0x58] sm:$0xf] %vm6706, %v7272
    %7293 = vst.msk [vmem:[#allocation3 + $0x60] sm:$0xf] %vm6706, %v7274
    %7294 = vst.msk [vmem:[#allocation3 + $0x68] sm:$0xf] %vm6706, %v7276
    %7295 = vst.msk [vmem:[#allocation3 + $0x70] sm:$0xf] %vm6706, %v7278
    %7296 = vst.msk [vmem:[#allocation3 + $0x78] sm:$0xf] %vm6706, %v7280
    %v7297 = vshrl.u32 %v7183, 16
    %v7299 = vrot.slane %v7297, 4
    %v7300 = vor.u32 %v7299, %v7192
    %v7301 = vrot.slane %v7300, 4
    %v7302 = vsel %vm1010, %v7301, %v1017
    %7303 = vrot.lane.b32.xlu0 %v6987, 112
    %v7304 = vpop.permute.xlu0 %7303
    %7305 = vrot.lane.b32.xlu0 %v6997, 112
    %v7306 = vpop.permute.xlu0 %7305
    %7307 = vrot.lane.b32.xlu0 %v7007, 112
    %v7308 = vpop.permute.xlu0 %7307
    %7309 = vrot.lane.b32.xlu0 %v7017, 112
    %v7310 = vpop.permute.xlu0 %7309
    %7311 = vrot.lane.b32.xlu0 %v7027, 112
    %v7312 = vpop.permute.xlu0 %7311
    %7313 = vrot.lane.b32.xlu0 %v7037, 112
    %v7314 = vpop.permute.xlu0 %7313
    %7315 = vrot.lane.b32.xlu0 %v7193, 112
    %v7316 = vpop.permute.xlu0 %7315
    %7317 = vrot.lane.b32.xlu0 %v7302, 112
    %v7318 = vpop.permute.xlu0 %7317
    %7327 = vst.msk [vmem:[#allocation3 + $0x40] sm:$0xf] %vm6745, %v7304
    %7328 = vst.msk [vmem:[#allocation3 + $0x48] sm:$0xf] %vm6745, %v7306
    %7329 = vst.msk [vmem:[#allocation3 + $0x50] sm:$0xf] %vm6745, %v7308
    %7330 = vst.msk [vmem:[#allocation3 + $0x58] sm:$0xf] %vm6745, %v7310
    %7331 = vst.msk [vmem:[#allocation3 + $0x60] sm:$0xf] %vm6745, %v7312
    %7332 = vst.msk [vmem:[#allocation3 + $0x68] sm:$0xf] %vm6745, %v7314
    %7333 = vst.msk [vmem:[#allocation3 + $0x70] sm:$0xf] %vm6745, %v7316
    %7334 = vst.msk [vmem:[#allocation3 + $0x78] sm:$0xf] %vm6745, %v7318
    %v7335 = vrot.slane %v7229, 4
    %v7336 = vsel %vm1529, %v7335, %v1530
    %7345 = vst.msk [vmem:[#allocation3 + $0x44] sm:$0xf] %vm6337, %v7099
    %7346 = vst.msk [vmem:[#allocation3 + $0x4c] sm:$0xf] %vm6337, %v7102
    %7347 = vst.msk [vmem:[#allocation3 + $0x54] sm:$0xf] %vm6337, %v7105
    %7348 = vst.msk [vmem:[#allocation3 + $0x5c] sm:$0xf] %vm6337, %v7108
    %7349 = vst.msk [vmem:[#allocation3 + $0x64] sm:$0xf] %vm6337, %v7111
    %7350 = vst.msk [vmem:[#allocation3 + $0x6c] sm:$0xf] %vm6337, %v7114
    %7351 = vst.msk [vmem:[#allocation3 + $0x74] sm:$0xf] %vm6337, %v7230
    %7352 = vst.msk [vmem:[#allocation3 + $0x7c] sm:$0xf] %vm6337, %v7336
    %v7353 = vld [vmem:[%s1 + $0x14] sm:$0xf]
    %v7354 = vld [vmem:[%s1 + $0x18] sm:$0xf]
    %v7355 = vld [vmem:[%s1 + $0x1c] sm:$0xf]
    %v7356 = vld [vmem:[%s1 + $0x20] sm:$0xf]
    %v7357 = vld [vmem:[%s1 + $0x24] sm:$0xf]
    %v7358 = vld [vmem:[%s1 + $0x28] sm:$0xf]
    %v7359 = vld [vmem:[%s1 + $0x2c] sm:$0xf]
    %v7360 = vld [vmem:[%s1 + $0x30] sm:$0xf]
    %v7361 = vld [vmem:[%s1 + $0x34] sm:$0xf]
    %v7362 = vld [vmem:[%s1 + $0x38] sm:$0xf]
    %v7363 = vld [vmem:[%s1 + $0x3c] sm:$0xf]
    %v7364 = vld [vmem:[%s1 + $0x40] sm:$0xf]
    %v7365 = vld [vmem:[%s1 + $0x44] sm:$0xf]
    %v7366 = vld [vmem:[%s1 + $0x48] sm:$0xf]
    %v7367 = vld [vmem:[%s1 + $0x4c] sm:$0xf]
    %v7368 = vld [vmem:[%s1 + $0x50] sm:$0xf]
    %v7369 = vld [vmem:[%s1 + $0x54] sm:$0xf]
    %v7370 = vld [vmem:[%s1 + $0x58] sm:$0xf]
    %v7371 = vld [vmem:[%s2 + $0x8] sm:$0x1]
    %v7372 = vld [vmem:[#allocation3] sm:$0xff]
    %v7373 = vld [vmem:[#allocation3 + $0x8] sm:$0xff]
    %v7374 = vld [vmem:[#allocation3 + $0x10] sm:$0xff]
    %v7375 = vld [vmem:[#allocation3 + $0x18] sm:$0xff]
    %v7376 = vld [vmem:[#allocation3 + $0x20] sm:$0xff]
    %v7377 = vld [vmem:[#allocation3 + $0x28] sm:$0xff]
    %v7378 = vld [vmem:[#allocation3 + $0x30] sm:$0xff]
    %v7379 = vld [vmem:[#allocation3 + $0x38] sm:$0xff]
    %v7380 = vld [vmem:[#allocation3 + $0x40] sm:$0xff]
    %v7381 = vld [vmem:[#allocation3 + $0x48] sm:$0xff]
    %v7382 = vld [vmem:[#allocation3 + $0x50] sm:$0xff]
    %v7383 = vld [vmem:[#allocation3 + $0x58] sm:$0xff]
    %v7384 = vld [vmem:[#allocation3 + $0x60] sm:$0xff]
    %v7385 = vld [vmem:[#allocation3 + $0x68] sm:$0xff]
    %v7386 = vld [vmem:[#allocation3 + $0x70] sm:$0xff]
    %v7387 = vld [vmem:[#allocation3 + $0x78] sm:$0xff]
    %v7388 = vlaneseq
    %v7389 = vshrl.u32 %v7388, 7
    %v7390 = vsub.s32 0, %v7389
    %v7391 = vrot.slane %v7371, %v7390
    %v7408 = vunpack.c.l.b16 %v7372
    %v7409 = vunpack.c.h.b16 %v7372
    %v7410 = vunpack.c.l.b16 %v7373
    %v7411 = vunpack.c.h.b16 %v7373
    %v7412 = vunpack.c.l.b16 %v7374
    %v7413 = vunpack.c.h.b16 %v7374
    %v7414 = vunpack.c.l.b16 %v7375
    %v7415 = vunpack.c.h.b16 %v7375
    %v7416 = vunpack.c.l.b16 %v7376
    %v7417 = vunpack.c.h.b16 %v7376
    %v7418 = vunpack.c.l.b16 %v7377
    %v7419 = vunpack.c.h.b16 %v7377
    %v7420 = vunpack.c.l.b16 %v7378
    %v7421 = vunpack.c.h.b16 %v7378
    %v7422 = vunpack.c.l.b16 %v7379
    %v7423 = vunpack.c.h.b16 %v7379
    %v7424 = vunpack.c.l.b16 %v7380
    %v7425 = vunpack.c.h.b16 %v7380
    %v7426 = vunpack.c.l.b16 %v7381
    %v7427 = vunpack.c.h.b16 %v7381
    %v7428 = vunpack.c.l.b16 %v7382
    %v7429 = vunpack.c.h.b16 %v7382
    %v7430 = vunpack.c.l.b16 %v7383
    %v7431 = vunpack.c.h.b16 %v7383
    %v7432 = vunpack.c.l.b16 %v7384
    %v7433 = vunpack.c.h.b16 %v7384
    %v7434 = vunpack.c.l.b16 %v7385
    %v7435 = vunpack.c.h.b16 %v7385
    %v7436 = vunpack.c.l.b16 %v7386
    %v7437 = vunpack.c.h.b16 %v7386
    %v7438 = vunpack.c.l.b16 %v7387
    %v7439 = vunpack.c.h.b16 %v7387
    %v7440 = vpack.c.b16 %v7410, %v7408
    %v7441 = vpack.c.b16 %v7411, %v7409
    %v7442 = vpack.c.b16 %v7414, %v7412
    %v7443 = vpack.c.b16 %v7415, %v7413
    %v7444 = vpack.c.b16 %v7418, %v7416
    %v7445 = vpack.c.b16 %v7419, %v7417
    %v7446 = vpack.c.b16 %v7422, %v7420
    %v7447 = vpack.c.b16 %v7423, %v7421
    %v7448 = vpack.c.b16 %v7426, %v7424
    %v7449 = vpack.c.b16 %v7427, %v7425
    %v7450 = vpack.c.b16 %v7430, %v7428
    %v7451 = vpack.c.b16 %v7431, %v7429
    %v7452 = vpack.c.b16 %v7434, %v7432
    %v7453 = vpack.c.b16 %v7435, %v7433
    %v7454 = vpack.c.b16 %v7438, %v7436
    %v7455 = vpack.c.b16 %v7439, %v7437
    %v7482 = vunpack.c.l.b16 %v7353
    %v7483 = vunpack.c.l.b16 %v7354
    %v7484 = vunpack.c.l.b16 %v7355
    %v7485 = vunpack.c.l.b16 %v7356
    %v7486 = vunpack.c.l.b16 %v7357
    %v7487 = vunpack.c.l.b16 %v7358
    %v7488 = vunpack.c.l.b16 %v7359
    %v7489 = vunpack.c.l.b16 %v7360
    %v7490 = vunpack.c.l.b16 %v7361
    %v7491 = vunpack.c.l.b16 %v7362
    %v7492 = vunpack.c.l.b16 %v7363
    %v7493 = vunpack.c.l.b16 %v7364
    %v7494 = vunpack.c.l.b16 %v7365
    %v7495 = vunpack.c.l.b16 %v7366
    %v7496 = vunpack.c.l.b16 %v7367
    %v7497 = vunpack.c.l.b16 %v7368
    %v7498 = vunpack.c.l.b16 %v7369
    %v7499 = vunpack.c.l.b16 %v7370
    %v7500 = vpack.c.b16 %v7483, %v7482
    %v7501 = vpack.c.b16 %v7485, %v7484
    %v7502 = vpack.c.b16 %v7487, %v7486
    %v7503 = vpack.c.b16 %v7489, %v7488
    %v7504 = vpack.c.b16 %v7491, %v7490
    %v7505 = vpack.c.b16 %v7493, %v7492
    %v7506 = vpack.c.b16 %v7495, %v7494
    %v7507 = vpack.c.b16 %v7497, %v7496
    %v7508 = vpack.c.b16 %v7499, %v7498
    %vm7518 = vcmask 130048
    %v7520 = vsel %vm7518, %v7441, 0
    %v7523 = vsel %vm7518, %v7443, 0
    %v7526 = vsel %vm7518, %v7445, 0
    %v7529 = vsel %vm7518, %v7447, 0
    %v7532 = vsel %vm7518, %v7449, 0
    %v7535 = vsel %vm7518, %v7451, 0
    %v7538 = vsel %vm7518, %v7453, 0
    %v7541 = vsel %vm7518, %v7455, 0
    %7543 = vmatprep.subr.bf16.mxu0 0
    %7544 = vmatpush1.bf16.msra.mxu0 %v7507
    %7545 = vmatprep.subr.bf16.mxu0 0
    %7546 = vmatpush1.bf16.msra.mxu0 %v7506
    %7547 = vmatprep.subr.bf16.mxu0 0
    %7548 = vmatpush1.bf16.msra.mxu0 %v7505
    %7549 = vmatprep.subr.bf16.mxu0 0
    %7550 = vmatpush1.bf16.msra.mxu0 %v7504
    %7551 = vmatprep.subr.bf16.mxu0 0
    %7552 = vmatpush1.bf16.msra.mxu0 %v7503
    %7553 = vmatprep.subr.bf16.mxu0 0
    %7554 = vmatpush1.bf16.msra.mxu0 %v7502
    %7555 = vmatprep.subr.bf16.mxu0 0
    %7556 = vmatpush1.bf16.msra.mxu0 %v7501
    %7557 = vmatprep.subr.bf16.mxu0 0
    %7558 = vmatpush1.bf16.msra.mxu0 %v7500
    %7559 = vmatprep.subr.bf16.mxu0 0
    %7560 = vmatpush2.bf16.msra.mxu0 0
    %7561 = vmatprep.subr.bf16.mxu0 0
    %7562 = vmatpush2.bf16.msra.mxu0 0
    %7563 = vmatprep.subr.bf16.mxu0 0
    %7564 = vmatpush2.bf16.msra.mxu0 0
    %7565 = vmatprep.subr.bf16.mxu0 0
    %7566 = vmatpush2.bf16.msra.mxu0 0
    %7567 = vmatprep.subr.bf16.mxu0 0
    %7568 = vmatpush2.bf16.msra.mxu0 0
    %7569 = vmatprep.subr.bf16.mxu0 0
    %7570 = vmatpush2.bf16.msra.mxu0 0
    %7571 = vmatprep.subr.bf16.mxu0 0
    %7572 = vmatpush2.bf16.msra.mxu0 0
    %7573 = vmatprep.subr.bf16.mxu0 0
    %7574 = vmatpush2.bf16.msra.mxu0 %v7508
    %7575 = vmatprep.mubr.bf16.mxu0 %v7520
    %7576 = vmatmul.mubr.bf16.gmra.mxu0 %v7440
    %v7577 = vpop.f32.mrf.mxu0
    %v7578 = vadd.f32 %v7391, %v7577
    %v7579 = vpop.f32.mrf.mxu0
    %v7580 = vpop.f32.mrf.mxu0
    %v7581 = vadd.f32 %v7391, %v7580
    %v7582 = vpop.f32.mrf.mxu0
    %7583 = vmatprep.mubr.bf16.mxu0 %v7523
    %7584 = vmatmul.mubr.bf16.gmra.mxu0 %v7442
    %v7585 = vpop.f32.mrf.mxu0
    %v7586 = vadd.f32 %v7391, %v7585
    %v7587 = vpop.f32.mrf.mxu0
    %v7588 = vpop.f32.mrf.mxu0
    %v7589 = vadd.f32 %v7391, %v7588
    %v7590 = vpop.f32.mrf.mxu0
    %7591 = vmatprep.mubr.bf16.mxu0 %v7526
    %7592 = vmatmul.mubr.bf16.gmra.mxu0 %v7444
    %v7593 = vpop.f32.mrf.mxu0
    %v7594 = vadd.f32 %v7391, %v7593
    %v7595 = vpop.f32.mrf.mxu0
    %v7596 = vpop.f32.mrf.mxu0
    %v7597 = vadd.f32 %v7391, %v7596
    %v7598 = vpop.f32.mrf.mxu0
    %7599 = vmatprep.mubr.bf16.mxu0 %v7529
    %7600 = vmatmul.mubr.bf16.gmra.mxu0 %v7446
    %v7601 = vpop.f32.mrf.mxu0
    %v7602 = vadd.f32 %v7391, %v7601
    %v7603 = vpop.f32.mrf.mxu0
    %v7604 = vpop.f32.mrf.mxu0
    %v7605 = vadd.f32 %v7391, %v7604
    %v7606 = vpop.f32.mrf.mxu0
    %7607 = vmatprep.mubr.bf16.mxu0 %v7532
    %7608 = vmatmul.mubr.bf16.gmra.mxu0 %v7448
    %v7609 = vpop.f32.mrf.mxu0
    %v7610 = vadd.f32 %v7391, %v7609
    %v7611 = vpop.f32.mrf.mxu0
    %v7612 = vpop.f32.mrf.mxu0
    %v7613 = vadd.f32 %v7391, %v7612
    %v7614 = vpop.f32.mrf.mxu0
    %7615 = vmatprep.mubr.bf16.mxu0 %v7535
    %7616 = vmatmul.mubr.bf16.gmra.mxu0 %v7450
    %v7617 = vpop.f32.mrf.mxu0
    %v7618 = vadd.f32 %v7391, %v7617
    %v7619 = vpop.f32.mrf.mxu0
    %v7620 = vpop.f32.mrf.mxu0
    %v7621 = vadd.f32 %v7391, %v7620
    %v7622 = vpop.f32.mrf.mxu0
    %7623 = vmatprep.mubr.bf16.mxu0 %v7538
    %7624 = vmatmul.mubr.bf16.gmra.mxu0 %v7452
    %v7625 = vpop.f32.mrf.mxu0
    %v7626 = vadd.f32 %v7391, %v7625
    %v7627 = vpop.f32.mrf.mxu0
    %v7628 = vpop.f32.mrf.mxu0
    %v7629 = vadd.f32 %v7391, %v7628
    %v7630 = vpop.f32.mrf.mxu0
    %7631 = vmatprep.mubr.bf16.mxu0 %v7541
    %7632 = vmatmul.mubr.bf16.gmra.mxu0 %v7454
    %v7633 = vpop.f32.mrf.mxu0
    %v7634 = vadd.f32 %v7391, %v7633
    %v7635 = vpop.f32.mrf.mxu0
    %v7636 = vpop.f32.mrf.mxu0
    %v7637 = vadd.f32 %v7391, %v7636
    %v7638 = vpop.f32.mrf.mxu0
    %7639 = vdwg.mxu0
    %v7640 = vmax.f32 %v7578, 0.0
    %v7641 = vmax.f32 %v7581, 0.0
    %v7642 = vmax.f32 %v7586, 0.0
    %v7643 = vmax.f32 %v7589, 0.0
    %v7644 = vmax.f32 %v7594, 0.0
    %v7645 = vmax.f32 %v7597, 0.0
    %v7646 = vmax.f32 %v7602, 0.0
    %v7647 = vmax.f32 %v7605, 0.0
    %v7648 = vmax.f32 %v7610, 0.0
    %v7649 = vmax.f32 %v7613, 0.0
    %v7650 = vmax.f32 %v7618, 0.0
    %v7651 = vmax.f32 %v7621, 0.0
    %v7652 = vmax.f32 %v7626, 0.0
    %v7653 = vmax.f32 %v7629, 0.0
    %v7654 = vmax.f32 %v7634, 0.0
    %v7655 = vmax.f32 %v7637, 0.0
    %v7656 = vld [vmem:[%s2 + $0x10] sm:$0xff]
    %v7657 = vld [vmem:[%s2 + $0x18] sm:$0x1]
    %v7658 = vld [vmem:[%s2 + $0x20] sm:$0x1]
    %vm7667 = vcmask 1040384
    %v7668 = vrot.slane %v7640, 7
    %v7669 = vrot.slane %v7641, 7
    %v7670 = vsel %vm7667, %v7668, %v7669
    %v7671 = vrot.slane %v7642, 7
    %v7672 = vsel %vm7667, %v7669, %v7671
    %v7673 = vrot.slane %v7643, 7
    %v7674 = vsel %vm7667, %v7671, %v7673
    %v7675 = vrot.slane %v7644, 7
    %v7676 = vsel %vm7667, %v7673, %v7675
    %v7677 = vrot.slane %v7645, 7
    %v7678 = vsel %vm7667, %v7675, %v7677
    %v7679 = vrot.slane %v7646, 7
    %v7680 = vsel %vm7667, %v7677, %v7679
    %v7681 = vrot.slane %v7647, 7
    %v7682 = vsel %vm7667, %v7679, %v7681
    %v7692 = vsel %vm7667, 0.0, %v7668
    %v7693 = vsel %vm7667, %v7681, 0.0
    %v7694 = vmul.f32 %v7640, %v6140
    %v7695 = vmul.f32 %v7641, %v6141
    %v7696 = vmul.f32 %v7642, %v6142
    %v7697 = vmul.f32 %v7643, %v6143
    %v7698 = vmul.f32 %v7644, %v6144
    %v7699 = vmul.f32 %v7645, %v6145
    %v7700 = vmul.f32 %v7646, %v6146
    %v7701 = vmul.f32 %v7647, %v6147
    %v7710 = vrot.slane %v7694, 7
    %v7711 = vrot.slane %v7695, 7
    %v7712 = vsel %vm7667, %v7710, %v7711
    %v7713 = vrot.slane %v7696, 7
    %v7714 = vsel %vm7667, %v7711, %v7713
    %v7715 = vrot.slane %v7697, 7
    %v7716 = vsel %vm7667, %v7713, %v7715
    %v7717 = vrot.slane %v7698, 7
    %v7718 = vsel %vm7667, %v7715, %v7717
    %v7719 = vrot.slane %v7699, 7
    %v7720 = vsel %vm7667, %v7717, %v7719
    %v7721 = vrot.slane %v7700, 7
    %v7722 = vsel %vm7667, %v7719, %v7721
    %v7723 = vrot.slane %v7701, 7
    %v7724 = vsel %vm7667, %v7721, %v7723
    %v7734 = vsel %vm7667, 0.0, %v7710
    %v7735 = vsel %vm7667, %v7723, 0.0
    %v7736 = vmul.f32 %v7640, %v6168
    %v7737 = vmul.f32 %v7641, %v6169
    %v7738 = vmul.f32 %v7642, %v6170
    %v7739 = vmul.f32 %v7643, %v6171
    %v7740 = vmul.f32 %v7644, %v6172
    %v7741 = vmul.f32 %v7645, %v6173
    %v7742 = vmul.f32 %v7646, %v6174
    %v7743 = vmul.f32 %v7647, %v6175
    %v7752 = vrot.slane %v7736, 7
    %v7753 = vrot.slane %v7737, 7
    %v7754 = vsel %vm7667, %v7752, %v7753
    %v7755 = vrot.slane %v7738, 7
    %v7756 = vsel %vm7667, %v7753, %v7755
    %v7757 = vrot.slane %v7739, 7
    %v7758 = vsel %vm7667, %v7755, %v7757
    %v7759 = vrot.slane %v7740, 7
    %v7760 = vsel %vm7667, %v7757, %v7759
    %v7761 = vrot.slane %v7741, 7
    %v7762 = vsel %vm7667, %v7759, %v7761
    %v7763 = vrot.slane %v7742, 7
    %v7764 = vsel %vm7667, %v7761, %v7763
    %v7765 = vrot.slane %v7743, 7
    %v7766 = vsel %vm7667, %v7763, %v7765
    %v7776 = vsel %vm7667, 0.0, %v7752
    %v7777 = vsel %vm7667, %v7765, 0.0
    %v7778 = vlaneseq
    %v7779 = vshrl.u32 %v7778, 7
    %v7780 = vsub.s32 0, %v7779
    %v7781 = vrot.slane %v7656, %v7780
    %v7782 = vmul.f32 %v7781, 0.0
    %v7783 = vmul.f32 %v7776, %v7781
    %v7784 = vmul.f32 %v7754, %v7781
    %v7785 = vmul.f32 %v7756, %v7781
    %v7786 = vmul.f32 %v7758, %v7781
    %v7787 = vmul.f32 %v7760, %v7781
    %v7788 = vmul.f32 %v7762, %v7781
    %v7789 = vmul.f32 %v7764, %v7781
    %v7790 = vadd.f32 %v7782, 0.0
    %v7791 = vadd.f32 %v7783, 0.0
    %v7792 = vadd.f32 %v7784, 0.0
    %v7793 = vadd.f32 %v7785, 0.0
    %v7794 = vadd.f32 %v7786, 0.0
    %v7795 = vadd.f32 %v7787, 0.0
    %v7796 = vadd.f32 %v7788, 0.0
    %v7797 = vadd.f32 %v7789, 0.0
    %v7798 = vlaneseq
    %v7799 = vshrl.u32 %v7798, 7
    %v7800 = vsub.s32 1, %v7799
    %v7801 = vrot.slane %v7656, %v7800
    %v7802 = vmul.f32 %v7801, 0.0
    %v7803 = vmul.f32 %v7692, %v7801
    %v7804 = vmul.f32 %v7670, %v7801
    %v7805 = vmul.f32 %v7672, %v7801
    %v7806 = vmul.f32 %v7674, %v7801
    %v7807 = vmul.f32 %v7676, %v7801
    %v7808 = vmul.f32 %v7678, %v7801
    %v7809 = vmul.f32 %v7680, %v7801
    %v7810 = vmul.f32 %v7682, %v7801
    %v7820 = vrot.slane %v7802, 1
    %v7821 = vrot.slane %v7803, 1
    %v7822 = vsel %vm5609, %v7820, %v7821
    %v7823 = vrot.slane %v7804, 1
    %v7824 = vsel %vm5609, %v7821, %v7823
    %v7825 = vrot.slane %v7805, 1
    %v7826 = vsel %vm5609, %v7823, %v7825
    %v7827 = vrot.slane %v7806, 1
    %v7828 = vsel %vm5609, %v7825, %v7827
    %v7829 = vrot.slane %v7807, 1
    %v7830 = vsel %vm5609, %v7827, %v7829
    %v7831 = vrot.slane %v7808, 1
    %v7832 = vsel %vm5609, %v7829, %v7831
    %v7833 = vrot.slane %v7809, 1
    %v7834 = vsel %vm5609, %v7831, %v7833
    %v7835 = vrot.slane %v7810, 1
    %v7836 = vsel %vm5609, %v7833, %v7835
    %v7845 = vadd.f32 %v7790, %v7822
    %v7846 = vadd.f32 %v7791, %v7824
    %v7847 = vadd.f32 %v7792, %v7826
    %v7848 = vadd.f32 %v7793, %v7828
    %v7849 = vadd.f32 %v7794, %v7830
    %v7850 = vadd.f32 %v7795, %v7832
    %v7851 = vadd.f32 %v7796, %v7834
    %v7852 = vadd.f32 %v7797, %v7836
    %v7853 = vlaneseq
    %v7854 = vshrl.u32 %v7853, 7
    %v7855 = vsub.s32 2, %v7854
    %v7856 = vrot.slane %v7656, %v7855
    %v7857 = vmul.f32 %v7856, 0.0
    %v7858 = vmul.f32 %v7734, %v7856
    %v7859 = vmul.f32 %v7712, %v7856
    %v7860 = vmul.f32 %v7714, %v7856
    %v7861 = vmul.f32 %v7716, %v7856
    %v7862 = vmul.f32 %v7718, %v7856
    %v7863 = vmul.f32 %v7720, %v7856
    %v7864 = vmul.f32 %v7722, %v7856
    %v7865 = vmul.f32 %v7724, %v7856
    %vm7875 = vcmask 1045504
    %v7876 = vrot.slane %v7857, 2
    %v7877 = vrot.slane %v7858, 2
    %v7878 = vsel %vm7875, %v7876, %v7877
    %v7879 = vrot.slane %v7859, 2
    %v7880 = vsel %vm7875, %v7877, %v7879
    %v7881 = vrot.slane %v7860, 2
    %v7882 = vsel %vm7875, %v7879, %v7881
    %v7883 = vrot.slane %v7861, 2
    %v7884 = vsel %vm7875, %v7881, %v7883
    %v7885 = vrot.slane %v7862, 2
    %v7886 = vsel %vm7875, %v7883, %v7885
    %v7887 = vrot.slane %v7863, 2
    %v7888 = vsel %vm7875, %v7885, %v7887
    %v7889 = vrot.slane %v7864, 2
    %v7890 = vsel %vm7875, %v7887, %v7889
    %v7891 = vrot.slane %v7865, 2
    %v7892 = vsel %vm7875, %v7889, %v7891
    %v7901 = vadd.f32 %v7845, %v7878
    %v7902 = vadd.f32 %v7846, %v7880
    %v7903 = vadd.f32 %v7847, %v7882
    %v7904 = vadd.f32 %v7848, %v7884
    %v7905 = vadd.f32 %v7849, %v7886
    %v7906 = vadd.f32 %v7850, %v7888
    %v7907 = vadd.f32 %v7851, %v7890
    %v7908 = vadd.f32 %v7852, %v7892
    %v7909 = vlaneseq
    %v7910 = vshrl.u32 %v7909, 7
    %v7911 = vsub.s32 3, %v7910
    %v7912 = vrot.slane %v7656, %v7911
    %v7913 = vmul.f32 %v7776, %v7912
    %v7914 = vmul.f32 %v7754, %v7912
    %v7915 = vmul.f32 %v7756, %v7912
    %v7916 = vmul.f32 %v7758, %v7912
    %v7917 = vmul.f32 %v7760, %v7912
    %v7918 = vmul.f32 %v7762, %v7912
    %v7919 = vmul.f32 %v7764, %v7912
    %v7920 = vmul.f32 %v7766, %v7912
    %v7921 = vadd.f32 %v7901, %v7913
    %v7922 = vadd.f32 %v7902, %v7914
    %v7923 = vadd.f32 %v7903, %v7915
    %v7924 = vadd.f32 %v7904, %v7916
    %v7925 = vadd.f32 %v7905, %v7917
    %v7926 = vadd.f32 %v7906, %v7918
    %v7927 = vadd.f32 %v7907, %v7919
    %v7928 = vadd.f32 %v7908, %v7920
    %v7929 = vlaneseq
    %v7930 = vshrl.u32 %v7929, 7
    %v7931 = vsub.s32 4, %v7930
    %v7932 = vrot.slane %v7656, %v7931
    %v7933 = vmul.f32 %v7692, %v7932
    %v7934 = vmul.f32 %v7670, %v7932
    %v7935 = vmul.f32 %v7672, %v7932
    %v7936 = vmul.f32 %v7674, %v7932
    %v7937 = vmul.f32 %v7676, %v7932
    %v7938 = vmul.f32 %v7678, %v7932
    %v7939 = vmul.f32 %v7680, %v7932
    %v7940 = vmul.f32 %v7682, %v7932
    %v7941 = vmul.f32 %v7693, %v7932
    %v7951 = vrot.slane %v7933, 1
    %v7952 = vrot.slane %v7934, 1
    %v7953 = vsel %vm5609, %v7951, %v7952
    %v7954 = vrot.slane %v7935, 1
    %v7955 = vsel %vm5609, %v7952, %v7954
    %v7956 = vrot.slane %v7936, 1
    %v7957 = vsel %vm5609, %v7954, %v7956
    %v7958 = vrot.slane %v7937, 1
    %v7959 = vsel %vm5609, %v7956, %v7958
    %v7960 = vrot.slane %v7938, 1
    %v7961 = vsel %vm5609, %v7958, %v7960
    %v7962 = vrot.slane %v7939, 1
    %v7963 = vsel %vm5609, %v7960, %v7962
    %v7964 = vrot.slane %v7940, 1
    %v7965 = vsel %vm5609, %v7962, %v7964
    %v7966 = vrot.slane %v7941, 1
    %v7967 = vsel %vm5609, %v7964, %v7966
    %v7976 = vadd.f32 %v7921, %v7953
    %v7977 = vadd.f32 %v7922, %v7955
    %v7978 = vadd.f32 %v7923, %v7957
    %v7979 = vadd.f32 %v7924, %v7959
    %v7980 = vadd.f32 %v7925, %v7961
    %v7981 = vadd.f32 %v7926, %v7963
    %v7982 = vadd.f32 %v7927, %v7965
    %v7983 = vadd.f32 %v7928, %v7967
    %v7984 = vlaneseq
    %v7985 = vshrl.u32 %v7984, 7
    %v7986 = vsub.s32 5, %v7985
    %v7987 = vrot.slane %v7656, %v7986
    %v7988 = vmul.f32 %v7734, %v7987
    %v7989 = vmul.f32 %v7712, %v7987
    %v7990 = vmul.f32 %v7714, %v7987
    %v7991 = vmul.f32 %v7716, %v7987
    %v7992 = vmul.f32 %v7718, %v7987
    %v7993 = vmul.f32 %v7720, %v7987
    %v7994 = vmul.f32 %v7722, %v7987
    %v7995 = vmul.f32 %v7724, %v7987
    %v7996 = vmul.f32 %v7735, %v7987
    %v8006 = vrot.slane %v7988, 2
    %v8007 = vrot.slane %v7989, 2
    %v8008 = vsel %vm7875, %v8006, %v8007
    %v8009 = vrot.slane %v7990, 2
    %v8010 = vsel %vm7875, %v8007, %v8009
    %v8011 = vrot.slane %v7991, 2
    %v8012 = vsel %vm7875, %v8009, %v8011
    %v8013 = vrot.slane %v7992, 2
    %v8014 = vsel %vm7875, %v8011, %v8013
    %v8015 = vrot.slane %v7993, 2
    %v8016 = vsel %vm7875, %v8013, %v8015
    %v8017 = vrot.slane %v7994, 2
    %v8018 = vsel %vm7875, %v8015, %v8017
    %v8019 = vrot.slane %v7995, 2
    %v8020 = vsel %vm7875, %v8017, %v8019
    %v8021 = vrot.slane %v7996, 2
    %v8022 = vsel %vm7875, %v8019, %v8021
    %v8031 = vadd.f32 %v7976, %v8008
    %v8032 = vadd.f32 %v7977, %v8010
    %v8033 = vadd.f32 %v7978, %v8012
    %v8034 = vadd.f32 %v7979, %v8014
    %v8035 = vadd.f32 %v7980, %v8016
    %v8036 = vadd.f32 %v7981, %v8018
    %v8037 = vadd.f32 %v7982, %v8020
    %v8038 = vadd.f32 %v7983, %v8022
    %v8039 = vlaneseq
    %v8040 = vshrl.u32 %v8039, 7
    %v8041 = vsub.s32 6, %v8040
    %v8042 = vrot.slane %v7656, %v8041
    %v8043 = vmul.f32 %v7754, %v8042
    %v8044 = vmul.f32 %v7756, %v8042
    %v8045 = vmul.f32 %v7758, %v8042
    %v8046 = vmul.f32 %v7760, %v8042
    %v8047 = vmul.f32 %v7762, %v8042
    %v8048 = vmul.f32 %v7764, %v8042
    %v8049 = vmul.f32 %v7766, %v8042
    %v8050 = vmul.f32 %v7777, %v8042
    %v8051 = vadd.f32 %v8031, %v8043
    %v8052 = vadd.f32 %v8032, %v8044
    %v8053 = vadd.f32 %v8033, %v8045
    %v8054 = vadd.f32 %v8034, %v8046
    %v8055 = vadd.f32 %v8035, %v8047
    %v8056 = vadd.f32 %v8036, %v8048
    %v8057 = vadd.f32 %v8037, %v8049
    %v8058 = vadd.f32 %v8038, %v8050
    %v8059 = vlaneseq
    %v8060 = vshrl.u32 %v8059, 7
    %v8061 = vsub.s32 7, %v8060
    %v8062 = vrot.slane %v7656, %v8061
    %v8063 = vmul.f32 %v7670, %v8062
    %v8064 = vmul.f32 %v7672, %v8062
    %v8065 = vmul.f32 %v7674, %v8062
    %v8066 = vmul.f32 %v7676, %v8062
    %v8067 = vmul.f32 %v7678, %v8062
    %v8068 = vmul.f32 %v7680, %v8062
    %v8069 = vmul.f32 %v7682, %v8062
    %v8070 = vmul.f32 %v7693, %v8062
    %v8071 = vmul.f32 %v8062, 0.0
    %v8081 = vrot.slane %v8063, 1
    %v8082 = vrot.slane %v8064, 1
    %v8083 = vsel %vm5609, %v8081, %v8082
    %v8084 = vrot.slane %v8065, 1
    %v8085 = vsel %vm5609, %v8082, %v8084
    %v8086 = vrot.slane %v8066, 1
    %v8087 = vsel %vm5609, %v8084, %v8086
    %v8088 = vrot.slane %v8067, 1
    %v8089 = vsel %vm5609, %v8086, %v8088
    %v8090 = vrot.slane %v8068, 1
    %v8091 = vsel %vm5609, %v8088, %v8090
    %v8092 = vrot.slane %v8069, 1
    %v8093 = vsel %vm5609, %v8090, %v8092
    %v8094 = vrot.slane %v8070, 1
    %v8095 = vsel %vm5609, %v8092, %v8094
    %v8096 = vrot.slane %v8071, 1
    %v8097 = vsel %vm5609, %v8094, %v8096
    %v8106 = vadd.f32 %v8051, %v8083
    %v8107 = vadd.f32 %v8052, %v8085
    %v8108 = vadd.f32 %v8053, %v8087
    %v8109 = vadd.f32 %v8054, %v8089
    %v8110 = vadd.f32 %v8055, %v8091
    %v8111 = vadd.f32 %v8056, %v8093
    %v8112 = vadd.f32 %v8057, %v8095
    %v8113 = vadd.f32 %v8058, %v8097
    %v8114 = vlaneseq
    %v8115 = vshrl.u32 %v8114, 7
    %v8116 = vsub.s32 0, %v8115
    %v8117 = vrot.slane %v7657, %v8116
    %v8118 = vmul.f32 %v7712, %v8117
    %v8119 = vmul.f32 %v7714, %v8117
    %v8120 = vmul.f32 %v7716, %v8117
    %v8121 = vmul.f32 %v7718, %v8117
    %v8122 = vmul.f32 %v7720, %v8117
    %v8123 = vmul.f32 %v7722, %v8117
    %v8124 = vmul.f32 %v7724, %v8117
    %v8125 = vmul.f32 %v7735, %v8117
    %v8126 = vmul.f32 %v8117, 0.0
    %v8136 = vrot.slane %v8118, 2
    %v8137 = vrot.slane %v8119, 2
    %v8138 = vsel %vm7875, %v8136, %v8137
    %v8139 = vrot.slane %v8120, 2
    %v8140 = vsel %vm7875, %v8137, %v8139
    %v8141 = vrot.slane %v8121, 2
    %v8142 = vsel %vm7875, %v8139, %v8141
    %v8143 = vrot.slane %v8122, 2
    %v8144 = vsel %vm7875, %v8141, %v8143
    %v8145 = vrot.slane %v8123, 2
    %v8146 = vsel %vm7875, %v8143, %v8145
    %v8147 = vrot.slane %v8124, 2
    %v8148 = vsel %vm7875, %v8145, %v8147
    %v8149 = vrot.slane %v8125, 2
    %v8150 = vsel %vm7875, %v8147, %v8149
    %v8151 = vrot.slane %v8126, 2
    %v8152 = vsel %vm7875, %v8149, %v8151
    %v8161 = vadd.f32 %v8106, %v8138
    %v8162 = vadd.f32 %v8107, %v8140
    %v8163 = vadd.f32 %v8108, %v8142
    %v8164 = vadd.f32 %v8109, %v8144
    %v8165 = vadd.f32 %v8110, %v8146
    %v8166 = vadd.f32 %v8111, %v8148
    %v8167 = vadd.f32 %v8112, %v8150
    %v8168 = vadd.f32 %v8113, %v8152
    %v8169 = vlaneseq
    %v8170 = vshrl.u32 %v8169, 7
    %v8171 = vsub.s32 0, %v8170
    %v8172 = vrot.slane %v7658, %v8171
    %v8173 = vadd.f32 %v8161, %v8172
    %v8174 = vadd.f32 %v8162, %v8172
    %v8175 = vadd.f32 %v8163, %v8172
    %v8176 = vadd.f32 %v8164, %v8172
    %v8177 = vadd.f32 %v8165, %v8172
    %v8178 = vadd.f32 %v8166, %v8172
    %v8179 = vadd.f32 %v8167, %v8172
    %v8180 = vadd.f32 %v8168, %v8172
    %v8181 = vmax.f32 %v8173, 0.0
    %v8182 = vmax.f32 %v8174, 0.0
    %v8183 = vmax.f32 %v8175, 0.0
    %v8184 = vmax.f32 %v8176, 0.0
    %v8185 = vmax.f32 %v8177, 0.0
    %v8186 = vmax.f32 %v8178, 0.0
    %v8187 = vmax.f32 %v8179, 0.0
    %v8188 = vmax.f32 %v8180, 0.0
    %v8197 = vrot.slane %v7648, 7
    %v8198 = vrot.slane %v7649, 7
    %v8199 = vsel %vm7667, %v8197, %v8198
    %v8200 = vrot.slane %v7650, 7
    %v8201 = vsel %vm7667, %v8198, %v8200
    %v8202 = vrot.slane %v7651, 7
    %v8203 = vsel %vm7667, %v8200, %v8202
    %v8204 = vrot.slane %v7652, 7
    %v8205 = vsel %vm7667, %v8202, %v8204
    %v8206 = vrot.slane %v7653, 7
    %v8207 = vsel %vm7667, %v8204, %v8206
    %v8208 = vrot.slane %v7654, 7
    %v8209 = vsel %vm7667, %v8206, %v8208
    %v8210 = vrot.slane %v7655, 7
    %v8211 = vsel %vm7667, %v8208, %v8210
    %v8221 = vsel %vm7667, 0.0, %v8197
    %v8222 = vsel %vm7667, %v8210, 0.0
    %v8223 = vmul.f32 %v7648, %v6140
    %v8224 = vmul.f32 %v7649, %v6141
    %v8225 = vmul.f32 %v7650, %v6142
    %v8226 = vmul.f32 %v7651, %v6143
    %v8227 = vmul.f32 %v7652, %v6144
    %v8228 = vmul.f32 %v7653, %v6145
    %v8229 = vmul.f32 %v7654, %v6146
    %v8230 = vmul.f32 %v7655, %v6147
    %v8239 = vrot.slane %v8223, 7
    %v8240 = vrot.slane %v8224, 7
    %v8241 = vsel %vm7667, %v8239, %v8240
    %v8242 = vrot.slane %v8225, 7
    %v8243 = vsel %vm7667, %v8240, %v8242
    %v8244 = vrot.slane %v8226, 7
    %v8245 = vsel %vm7667, %v8242, %v8244
    %v8246 = vrot.slane %v8227, 7
    %v8247 = vsel %vm7667, %v8244, %v8246
    %v8248 = vrot.slane %v8228, 7
    %v8249 = vsel %vm7667, %v8246, %v8248
    %v8250 = vrot.slane %v8229, 7
    %v8251 = vsel %vm7667, %v8248, %v8250
    %v8252 = vrot.slane %v8230, 7
    %v8253 = vsel %vm7667, %v8250, %v8252
    %v8263 = vsel %vm7667, 0.0, %v8239
    %v8264 = vsel %vm7667, %v8252, 0.0
    %v8265 = vmul.f32 %v7648, %v6168
    %v8266 = vmul.f32 %v7649, %v6169
    %v8267 = vmul.f32 %v7650, %v6170
    %v8268 = vmul.f32 %v7651, %v6171
    %v8269 = vmul.f32 %v7652, %v6172
    %v8270 = vmul.f32 %v7653, %v6173
    %v8271 = vmul.f32 %v7654, %v6174
    %v8272 = vmul.f32 %v7655, %v6175
    %v8281 = vrot.slane %v8265, 7
    %v8282 = vrot.slane %v8266, 7
    %v8283 = vsel %vm7667, %v8281, %v8282
    %v8284 = vrot.slane %v8267, 7
    %v8285 = vsel %vm7667, %v8282, %v8284
    %v8286 = vrot.slane %v8268, 7
    %v8287 = vsel %vm7667, %v8284, %v8286
    %v8288 = vrot.slane %v8269, 7
    %v8289 = vsel %vm7667, %v8286, %v8288
    %v8290 = vrot.slane %v8270, 7
    %v8291 = vsel %vm7667, %v8288, %v8290
    %v8292 = vrot.slane %v8271, 7
    %v8293 = vsel %vm7667, %v8290, %v8292
    %v8294 = vrot.slane %v8272, 7
    %v8295 = vsel %vm7667, %v8292, %v8294
    %v8305 = vsel %vm7667, 0.0, %v8281
    %v8306 = vsel %vm7667, %v8294, 0.0
    %v8307 = vmul.f32 %v8305, %v7781
    %v8308 = vmul.f32 %v8283, %v7781
    %v8309 = vmul.f32 %v8285, %v7781
    %v8310 = vmul.f32 %v8287, %v7781
    %v8311 = vmul.f32 %v8289, %v7781
    %v8312 = vmul.f32 %v8291, %v7781
    %v8313 = vmul.f32 %v8293, %v7781
    %v8314 = vadd.f32 %v8307, 0.0
    %v8315 = vadd.f32 %v8308, 0.0
    %v8316 = vadd.f32 %v8309, 0.0
    %v8317 = vadd.f32 %v8310, 0.0
    %v8318 = vadd.f32 %v8311, 0.0
    %v8319 = vadd.f32 %v8312, 0.0
    %v8320 = vadd.f32 %v8313, 0.0
    %v8321 = vmul.f32 %v8221, %v7801
    %v8322 = vmul.f32 %v8199, %v7801
    %v8323 = vmul.f32 %v8201, %v7801
    %v8324 = vmul.f32 %v8203, %v7801
    %v8325 = vmul.f32 %v8205, %v7801
    %v8326 = vmul.f32 %v8207, %v7801
    %v8327 = vmul.f32 %v8209, %v7801
    %v8328 = vmul.f32 %v8211, %v7801
    %v8337 = vrot.slane %v8321, 1
    %v8338 = vsel %vm5609, %v7820, %v8337
    %v8339 = vrot.slane %v8322, 1
    %v8340 = vsel %vm5609, %v8337, %v8339
    %v8341 = vrot.slane %v8323, 1
    %v8342 = vsel %vm5609, %v8339, %v8341
    %v8343 = vrot.slane %v8324, 1
    %v8344 = vsel %vm5609, %v8341, %v8343
    %v8345 = vrot.slane %v8325, 1
    %v8346 = vsel %vm5609, %v8343, %v8345
    %v8347 = vrot.slane %v8326, 1
    %v8348 = vsel %vm5609, %v8345, %v8347
    %v8349 = vrot.slane %v8327, 1
    %v8350 = vsel %vm5609, %v8347, %v8349
    %v8351 = vrot.slane %v8328, 1
    %v8352 = vsel %vm5609, %v8349, %v8351
    %v8361 = vadd.f32 %v7790, %v8338
    %v8362 = vadd.f32 %v8314, %v8340
    %v8363 = vadd.f32 %v8315, %v8342
    %v8364 = vadd.f32 %v8316, %v8344
    %v8365 = vadd.f32 %v8317, %v8346
    %v8366 = vadd.f32 %v8318, %v8348
    %v8367 = vadd.f32 %v8319, %v8350
    %v8368 = vadd.f32 %v8320, %v8352
    %v8369 = vmul.f32 %v8263, %v7856
    %v8370 = vmul.f32 %v8241, %v7856
    %v8371 = vmul.f32 %v8243, %v7856
    %v8372 = vmul.f32 %v8245, %v7856
    %v8373 = vmul.f32 %v8247, %v7856
    %v8374 = vmul.f32 %v8249, %v7856
    %v8375 = vmul.f32 %v8251, %v7856
    %v8376 = vmul.f32 %v8253, %v7856
    %v8385 = vrot.slane %v8369, 2
    %v8386 = vsel %vm7875, %v7876, %v8385
    %v8387 = vrot.slane %v8370, 2
    %v8388 = vsel %vm7875, %v8385, %v8387
    %v8389 = vrot.slane %v8371, 2
    %v8390 = vsel %vm7875, %v8387, %v8389
    %v8391 = vrot.slane %v8372, 2
    %v8392 = vsel %vm7875, %v8389, %v8391
    %v8393 = vrot.slane %v8373, 2
    %v8394 = vsel %vm7875, %v8391, %v8393
    %v8395 = vrot.slane %v8374, 2
    %v8396 = vsel %vm7875, %v8393, %v8395
    %v8397 = vrot.slane %v8375, 2
    %v8398 = vsel %vm7875, %v8395, %v8397
    %v8399 = vrot.slane %v8376, 2
    %v8400 = vsel %vm7875, %v8397, %v8399
    %v8409 = vadd.f32 %v8361, %v8386
    %v8410 = vadd.f32 %v8362, %v8388
    %v8411 = vadd.f32 %v8363, %v8390
    %v8412 = vadd.f32 %v8364, %v8392
    %v8413 = vadd.f32 %v8365, %v8394
    %v8414 = vadd.f32 %v8366, %v8396
    %v8415 = vadd.f32 %v8367, %v8398
    %v8416 = vadd.f32 %v8368, %v8400
    %v8417 = vmul.f32 %v8305, %v7912
    %v8418 = vmul.f32 %v8283, %v7912
    %v8419 = vmul.f32 %v8285, %v7912
    %v8420 = vmul.f32 %v8287, %v7912
    %v8421 = vmul.f32 %v8289, %v7912
    %v8422 = vmul.f32 %v8291, %v7912
    %v8423 = vmul.f32 %v8293, %v7912
    %v8424 = vmul.f32 %v8295, %v7912
    %v8425 = vadd.f32 %v8409, %v8417
    %v8426 = vadd.f32 %v8410, %v8418
    %v8427 = vadd.f32 %v8411, %v8419
    %v8428 = vadd.f32 %v8412, %v8420
    %v8429 = vadd.f32 %v8413, %v8421
    %v8430 = vadd.f32 %v8414, %v8422
    %v8431 = vadd.f32 %v8415, %v8423
    %v8432 = vadd.f32 %v8416, %v8424
    %v8433 = vmul.f32 %v8221, %v7932
    %v8434 = vmul.f32 %v8199, %v7932
    %v8435 = vmul.f32 %v8201, %v7932
    %v8436 = vmul.f32 %v8203, %v7932
    %v8437 = vmul.f32 %v8205, %v7932
    %v8438 = vmul.f32 %v8207, %v7932
    %v8439 = vmul.f32 %v8209, %v7932
    %v8440 = vmul.f32 %v8211, %v7932
    %v8441 = vmul.f32 %v8222, %v7932
    %v8451 = vrot.slane %v8433, 1
    %v8452 = vrot.slane %v8434, 1
    %v8453 = vsel %vm5609, %v8451, %v8452
    %v8454 = vrot.slane %v8435, 1
    %v8455 = vsel %vm5609, %v8452, %v8454
    %v8456 = vrot.slane %v8436, 1
    %v8457 = vsel %vm5609, %v8454, %v8456
    %v8458 = vrot.slane %v8437, 1
    %v8459 = vsel %vm5609, %v8456, %v8458
    %v8460 = vrot.slane %v8438, 1
    %v8461 = vsel %vm5609, %v8458, %v8460
    %v8462 = vrot.slane %v8439, 1
    %v8463 = vsel %vm5609, %v8460, %v8462
    %v8464 = vrot.slane %v8440, 1
    %v8465 = vsel %vm5609, %v8462, %v8464
    %v8466 = vrot.slane %v8441, 1
    %v8467 = vsel %vm5609, %v8464, %v8466
    %v8476 = vadd.f32 %v8425, %v8453
    %v8477 = vadd.f32 %v8426, %v8455
    %v8478 = vadd.f32 %v8427, %v8457
    %v8479 = vadd.f32 %v8428, %v8459
    %v8480 = vadd.f32 %v8429, %v8461
    %v8481 = vadd.f32 %v8430, %v8463
    %v8482 = vadd.f32 %v8431, %v8465
    %v8483 = vadd.f32 %v8432, %v8467
    %v8484 = vmul.f32 %v8263, %v7987
    %v8485 = vmul.f32 %v8241, %v7987
    %v8486 = vmul.f32 %v8243, %v7987
    %v8487 = vmul.f32 %v8245, %v7987
    %v8488 = vmul.f32 %v8247, %v7987
    %v8489 = vmul.f32 %v8249, %v7987
    %v8490 = vmul.f32 %v8251, %v7987
    %v8491 = vmul.f32 %v8253, %v7987
    %v8492 = vmul.f32 %v8264, %v7987
    %v8502 = vrot.slane %v8484, 2
    %v8503 = vrot.slane %v8485, 2
    %v8504 = vsel %vm7875, %v8502, %v8503
    %v8505 = vrot.slane %v8486, 2
    %v8506 = vsel %vm7875, %v8503, %v8505
    %v8507 = vrot.slane %v8487, 2
    %v8508 = vsel %vm7875, %v8505, %v8507
    %v8509 = vrot.slane %v8488, 2
    %v8510 = vsel %vm7875, %v8507, %v8509
    %v8511 = vrot.slane %v8489, 2
    %v8512 = vsel %vm7875, %v8509, %v8511
    %v8513 = vrot.slane %v8490, 2
    %v8514 = vsel %vm7875, %v8511, %v8513
    %v8515 = vrot.slane %v8491, 2
    %v8516 = vsel %vm7875, %v8513, %v8515
    %v8517 = vrot.slane %v8492, 2
    %v8518 = vsel %vm7875, %v8515, %v8517
    %v8527 = vadd.f32 %v8476, %v8504
    %v8528 = vadd.f32 %v8477, %v8506
    %v8529 = vadd.f32 %v8478, %v8508
    %v8530 = vadd.f32 %v8479, %v8510
    %v8531 = vadd.f32 %v8480, %v8512
    %v8532 = vadd.f32 %v8481, %v8514
    %v8533 = vadd.f32 %v8482, %v8516
    %v8534 = vadd.f32 %v8483, %v8518
    %v8535 = vmul.f32 %v8283, %v8042
    %v8536 = vmul.f32 %v8285, %v8042
    %v8537 = vmul.f32 %v8287, %v8042
    %v8538 = vmul.f32 %v8289, %v8042
    %v8539 = vmul.f32 %v8291, %v8042
    %v8540 = vmul.f32 %v8293, %v8042
    %v8541 = vmul.f32 %v8295, %v8042
    %v8542 = vmul.f32 %v8306, %v8042
    %v8543 = vadd.f32 %v8527, %v8535
    %v8544 = vadd.f32 %v8528, %v8536
    %v8545 = vadd.f32 %v8529, %v8537
    %v8546 = vadd.f32 %v8530, %v8538
    %v8547 = vadd.f32 %v8531, %v8539
    %v8548 = vadd.f32 %v8532, %v8540
    %v8549 = vadd.f32 %v8533, %v8541
    %v8550 = vadd.f32 %v8534, %v8542
    %v8551 = vmul.f32 %v8199, %v8062
    %v8552 = vmul.f32 %v8201, %v8062
    %v8553 = vmul.f32 %v8203, %v8062
    %v8554 = vmul.f32 %v8205, %v8062
    %v8555 = vmul.f32 %v8207, %v8062
    %v8556 = vmul.f32 %v8209, %v8062
    %v8557 = vmul.f32 %v8211, %v8062
    %v8558 = vmul.f32 %v8222, %v8062
    %v8567 = vrot.slane %v8551, 1
    %v8568 = vrot.slane %v8552, 1
    %v8569 = vsel %vm5609, %v8567, %v8568
    %v8570 = vrot.slane %v8553, 1
    %v8571 = vsel %vm5609, %v8568, %v8570
    %v8572 = vrot.slane %v8554, 1
    %v8573 = vsel %vm5609, %v8570, %v8572
    %v8574 = vrot.slane %v8555, 1
    %v8575 = vsel %vm5609, %v8572, %v8574
    %v8576 = vrot.slane %v8556, 1
    %v8577 = vsel %vm5609, %v8574, %v8576
    %v8578 = vrot.slane %v8557, 1
    %v8579 = vsel %vm5609, %v8576, %v8578
    %v8580 = vrot.slane %v8558, 1
    %v8581 = vsel %vm5609, %v8578, %v8580
    %v8582 = vsel %vm5609, %v8580, %v8096
    %v8591 = vadd.f32 %v8543, %v8569
    %v8592 = vadd.f32 %v8544, %v8571
    %v8593 = vadd.f32 %v8545, %v8573
    %v8594 = vadd.f32 %v8546, %v8575
    %v8595 = vadd.f32 %v8547, %v8577
    %v8596 = vadd.f32 %v8548, %v8579
    %v8597 = vadd.f32 %v8549, %v8581
    %v8598 = vadd.f32 %v8550, %v8582
    %v8599 = vmul.f32 %v8241, %v8117
    %v8600 = vmul.f32 %v8243, %v8117
    %v8601 = vmul.f32 %v8245, %v8117
    %v8602 = vmul.f32 %v8247, %v8117
    %v8603 = vmul.f32 %v8249, %v8117
    %v8604 = vmul.f32 %v8251, %v8117
    %v8605 = vmul.f32 %v8253, %v8117
    %v8606 = vmul.f32 %v8264, %v8117
    %v8615 = vrot.slane %v8599, 2
    %v8616 = vrot.slane %v8600, 2
    %v8617 = vsel %vm7875, %v8615, %v8616
    %v8618 = vrot.slane %v8601, 2
    %v8619 = vsel %vm7875, %v8616, %v8618
    %v8620 = vrot.slane %v8602, 2
    %v8621 = vsel %vm7875, %v8618, %v8620
    %v8622 = vrot.slane %v8603, 2
    %v8623 = vsel %vm7875, %v8620, %v8622
    %v8624 = vrot.slane %v8604, 2
    %v8625 = vsel %vm7875, %v8622, %v8624
    %v8626 = vrot.slane %v8605, 2
    %v8627 = vsel %vm7875, %v8624, %v8626
    %v8628 = vrot.slane %v8606, 2
    %v8629 = vsel %vm7875, %v8626, %v8628
    %v8630 = vsel %vm7875, %v8628, %v8151
    %v8639 = vadd.f32 %v8591, %v8617
    %v8640 = vadd.f32 %v8592, %v8619
    %v8641 = vadd.f32 %v8593, %v8621
    %v8642 = vadd.f32 %v8594, %v8623
    %v8643 = vadd.f32 %v8595, %v8625
    %v8644 = vadd.f32 %v8596, %v8627
    %v8645 = vadd.f32 %v8597, %v8629
    %v8646 = vadd.f32 %v8598, %v8630
    %v8647 = vadd.f32 %v8639, %v8172
    %v8648 = vadd.f32 %v8640, %v8172
    %v8649 = vadd.f32 %v8641, %v8172
    %v8650 = vadd.f32 %v8642, %v8172
    %v8651 = vadd.f32 %v8643, %v8172
    %v8652 = vadd.f32 %v8644, %v8172
    %v8653 = vadd.f32 %v8645, %v8172
    %v8654 = vadd.f32 %v8646, %v8172
    %v8655 = vmax.f32 %v8647, 0.0
    %v8656 = vmax.f32 %v8648, 0.0
    %v8657 = vmax.f32 %v8649, 0.0
    %v8658 = vmax.f32 %v8650, 0.0
    %v8659 = vmax.f32 %v8651, 0.0
    %v8660 = vmax.f32 %v8652, 0.0
    %v8661 = vmax.f32 %v8653, 0.0
    %v8662 = vmax.f32 %v8654, 0.0
    %v8663 = vld [vmem:[%s1 + $0x5c] sm:$0xf]
    %v8664 = vld [vmem:[%s1 + $0x60] sm:$0xf]
    %v8665 = vld [vmem:[%s1 + $0x64] sm:$0xf]
    %v8666 = vld [vmem:[%s1 + $0x68] sm:$0xf]
    %v8667 = vld [vmem:[%s2 + $0x28] sm:$0x1]
    %v8668 = vpack.c.bf16 %v8182, %v8181
    %v8669 = vpack.c.bf16 %v8184, %v8183
    %v8670 = vpack.c.bf16 %v8186, %v8185
    %v8671 = vpack.c.bf16 %v8188, %v8187
    %v8672 = vpack.c.bf16 %v8656, %v8655
    %v8673 = vpack.c.bf16 %v8658, %v8657
    %v8674 = vpack.c.bf16 %v8660, %v8659
    %v8675 = vpack.c.bf16 %v8662, %v8661
    %v8676 = vlaneseq
    %v8677 = vshrl.u32 %v8676, 7
    %v8678 = vsub.s32 0, %v8677
    %v8679 = vrot.slane %v8667, %v8678
    %v8684 = vunpack.c.l.b16 %v8663
    %v8685 = vunpack.c.l.b16 %v8664
    %v8686 = vunpack.c.l.b16 %v8665
    %v8687 = vunpack.c.l.b16 %v8666
    %v8688 = vpack.c.b16 %v8685, %v8684
    %v8689 = vpack.c.b16 %v8687, %v8686
    %vm8692 = vcmask 261120
    %v8694 = vsel %vm8692, %v8668, 0
    %v8697 = vsel %vm8692, %v8669, 0
    %v8700 = vsel %vm8692, %v8670, 0
    %v8703 = vsel %vm8692, %v8671, 0
    %v8706 = vsel %vm8692, %v8672, 0
    %v8709 = vsel %vm8692, %v8673, 0
    %v8712 = vsel %vm8692, %v8674, 0
    %v8715 = vsel %vm8692, %v8675, 0
    %8717 = vmatprep.subr.bf16.mxu0 0
    %8718 = vmatpush1.bf16.msra.mxu0 0
    %8719 = vmatprep.subr.bf16.mxu0 0
    %8720 = vmatpush1.bf16.msra.mxu0 0
    %8721 = vmatprep.subr.bf16.mxu0 0
    %8722 = vmatpush1.bf16.msra.mxu0 0
    %8723 = vmatprep.subr.bf16.mxu0 0
    %8724 = vmatpush1.bf16.msra.mxu0 0
    %8725 = vmatprep.subr.bf16.mxu0 0
    %8726 = vmatpush1.bf16.msra.mxu0 0
    %8727 = vmatprep.subr.bf16.mxu0 0
    %8728 = vmatpush1.bf16.msra.mxu0 0
    %8729 = vmatprep.subr.bf16.mxu0 0
    %8730 = vmatpush1.bf16.msra.mxu0 %v8689
    %8731 = vmatprep.subr.bf16.mxu0 0
    %8732 = vmatpush1.bf16.msra.mxu0 %v8688
    %8733 = vmatprep.subr.bf16.mxu0 0
    %8734 = vmatpush2.bf16.msra.mxu0 0
    %8735 = vmatprep.subr.bf16.mxu0 0
    %8736 = vmatpush2.bf16.msra.mxu0 0
    %8737 = vmatprep.subr.bf16.mxu0 0
    %8738 = vmatpush2.bf16.msra.mxu0 0
    %8739 = vmatprep.subr.bf16.mxu0 0
    %8740 = vmatpush2.bf16.msra.mxu0 0
    %8741 = vmatprep.subr.bf16.mxu0 0
    %8742 = vmatpush2.bf16.msra.mxu0 0
    %8743 = vmatprep.subr.bf16.mxu0 0
    %8744 = vmatpush2.bf16.msra.mxu0 0
    %8745 = vmatprep.subr.bf16.mxu0 0
    %8746 = vmatpush2.bf16.msra.mxu0 0
    %8747 = vmatprep.subr.bf16.mxu0 0
    %8748 = vmatpush2.bf16.msra.mxu0 0
    %8749 = vmatprep.mubr.bf16.mxu0 0
    %8750 = vmatmul.mubr.bf16.gmra.mxu0 %v8694
    %v8751 = vpop.f32.mrf.mxu0
    %v8752 = vadd.f32 %v8679, %v8751
    %v8753 = vpop.f32.mrf.mxu0
    %v8754 = vpop.f32.mrf.mxu0
    %v8755 = vadd.f32 %v8679, %v8754
    %v8756 = vpop.f32.mrf.mxu0
    %8757 = vmatprep.mubr.bf16.mxu0 0
    %8758 = vmatmul.mubr.bf16.gmra.mxu0 %v8697
    %v8759 = vpop.f32.mrf.mxu0
    %v8760 = vadd.f32 %v8679, %v8759
    %v8761 = vpop.f32.mrf.mxu0
    %v8762 = vpop.f32.mrf.mxu0
    %v8763 = vadd.f32 %v8679, %v8762
    %v8764 = vpop.f32.mrf.mxu0
    %8765 = vmatprep.mubr.bf16.mxu0 0
    %8766 = vmatmul.mubr.bf16.gmra.mxu0 %v8700
    %v8767 = vpop.f32.mrf.mxu0
    %v8768 = vadd.f32 %v8679, %v8767
    %v8769 = vpop.f32.mrf.mxu0
    %v8770 = vpop.f32.mrf.mxu0
    %v8771 = vadd.f32 %v8679, %v8770
    %v8772 = vpop.f32.mrf.mxu0
    %8773 = vmatprep.mubr.bf16.mxu0 0
    %8774 = vmatmul.mubr.bf16.gmra.mxu0 %v8703
    %v8775 = vpop.f32.mrf.mxu0
    %v8776 = vadd.f32 %v8679, %v8775
    %v8777 = vpop.f32.mrf.mxu0
    %v8778 = vpop.f32.mrf.mxu0
    %v8779 = vadd.f32 %v8679, %v8778
    %v8780 = vpop.f32.mrf.mxu0
    %8781 = vmatprep.mubr.bf16.mxu0 0
    %8782 = vmatmul.mubr.bf16.gmra.mxu0 %v8706
    %v8783 = vpop.f32.mrf.mxu0
    %v8784 = vadd.f32 %v8679, %v8783
    %v8785 = vpop.f32.mrf.mxu0
    %v8786 = vpop.f32.mrf.mxu0
    %v8787 = vadd.f32 %v8679, %v8786
    %v8788 = vpop.f32.mrf.mxu0
    %8789 = vmatprep.mubr.bf16.mxu0 0
    %8790 = vmatmul.mubr.bf16.gmra.mxu0 %v8709
    %v8791 = vpop.f32.mrf.mxu0
    %v8792 = vadd.f32 %v8679, %v8791
    %v8793 = vpop.f32.mrf.mxu0
    %v8794 = vpop.f32.mrf.mxu0
    %v8795 = vadd.f32 %v8679, %v8794
    %v8796 = vpop.f32.mrf.mxu0
    %8797 = vmatprep.mubr.bf16.mxu0 0
    %8798 = vmatmul.mubr.bf16.gmra.mxu0 %v8712
    %v8799 = vpop.f32.mrf.mxu0
    %v8800 = vadd.f32 %v8679, %v8799
    %v8801 = vpop.f32.mrf.mxu0
    %v8802 = vpop.f32.mrf.mxu0
    %v8803 = vadd.f32 %v8679, %v8802
    %v8804 = vpop.f32.mrf.mxu0
    %8805 = vmatprep.mubr.bf16.mxu0 0
    %8806 = vmatmul.mubr.bf16.gmra.mxu0 %v8715
    %v8807 = vpop.f32.mrf.mxu0
    %v8808 = vadd.f32 %v8679, %v8807
    %v8809 = vpop.f32.mrf.mxu0
    %v8810 = vpop.f32.mrf.mxu0
    %v8811 = vadd.f32 %v8679, %v8810
    %v8812 = vpop.f32.mrf.mxu0
    %8813 = vdwg.mxu0
    %v8814 = vmax.f32 %v8752, 0.0
    %v8815 = vmax.f32 %v8755, 0.0
    %v8816 = vmax.f32 %v8760, 0.0
    %v8817 = vmax.f32 %v8763, 0.0
    %v8818 = vmax.f32 %v8768, 0.0
    %v8819 = vmax.f32 %v8771, 0.0
    %v8820 = vmax.f32 %v8776, 0.0
    %v8821 = vmax.f32 %v8779, 0.0
    %v8822 = vmax.f32 %v8784, 0.0
    %v8823 = vmax.f32 %v8787, 0.0
    %v8824 = vmax.f32 %v8792, 0.0
    %v8825 = vmax.f32 %v8795, 0.0
    %v8826 = vmax.f32 %v8800, 0.0
    %v8827 = vmax.f32 %v8803, 0.0
    %v8828 = vmax.f32 %v8808, 0.0
    %v8829 = vmax.f32 %v8811, 0.0
    %v8830 = vshra.s32 %v82, 2
    %v8831 = vshra.s32 %v83, 2
    %v8832 = vmul.u32 %v8830, 16
    %v8833 = vmul.u32 %v8831, 16
    %v8834 = vand.u32 %v82, 3
    %v8835 = vand.u32 %v83, 3
    %v8836 = vmul.u32 %v8834, 2
    %v8837 = vmul.u32 %v8835, 2
    %v8838 = vadd.s32 %v8832, %v8836
    %v8839 = vadd.s32 %v8833, %v8837
    %vm8840 = vcmp.eq.s32.totalorder %v5479, %v8838
    %vm8841 = vcmp.eq.s32.totalorder %v5479, %v8839
    %v8842 = vsel %vm8840, 1, 0
    %v8843 = vsel %vm8841, 1, 0
    %v8844 = vcvt.s32.f32 %v8842
    %v8845 = vcvt.s32.f32 %v8843
    %v8846 = vpack.c.bf16 %v8845, %v8844
    %v8855 = vrot.slane %v8814, 1
    %v8856 = vrot.slane %v8815, 1
    %v8857 = vsel %vm5609, %v8855, %v8856
    %v8858 = vrot.slane %v8816, 1
    %v8859 = vsel %vm5609, %v8856, %v8858
    %v8860 = vrot.slane %v8817, 1
    %v8861 = vsel %vm5609, %v8858, %v8860
    %v8862 = vrot.slane %v8818, 1
    %v8863 = vsel %vm5609, %v8860, %v8862
    %v8864 = vrot.slane %v8819, 1
    %v8865 = vsel %vm5609, %v8862, %v8864
    %v8866 = vrot.slane %v8820, 1
    %v8867 = vsel %vm5609, %v8864, %v8866
    %v8868 = vrot.slane %v8821, 1
    %v8869 = vsel %vm5609, %v8866, %v8868
    %v8878 = vsel %vm5609, %v8868, 0.0
    %v8879 = vmax.f32 %v8814, %v8857
    %v8880 = vmax.f32 %v8815, %v8859
    %v8881 = vmax.f32 %v8816, %v8861
    %v8882 = vmax.f32 %v8817, %v8863
    %v8883 = vmax.f32 %v8818, %v8865
    %v8884 = vmax.f32 %v8819, %v8867
    %v8885 = vmax.f32 %v8820, %v8869
    %v8886 = vmax.f32 %v8821, %v8878
    %v8887 = vmax.f32 %v8879, %v8880
    %v8888 = vmax.f32 %v8880, %v8881
    %v8889 = vmax.f32 %v8881, %v8882
    %v8890 = vmax.f32 %v8882, %v8883
    %v8891 = vmax.f32 %v8883, %v8884
    %v8892 = vmax.f32 %v8884, %v8885
    %v8893 = vmax.f32 %v8885, %v8886
    %v8894 = vmax.f32 %v8886, 0.0
    %v8895 = vpack.c.bf16 %v8888, %v8887
    %v8896 = vpack.c.bf16 %v8890, %v8889
    %v8897 = vpack.c.bf16 %v8892, %v8891
    %v8898 = vpack.c.bf16 %v8894, %v8893
    %vm8899 = vcmask 523264
    %v8901 = vsel %vm8899, %v8846, 0
    %8903 = vmatprep.subr.bf16.mxu0 0
    %8904 = vmatpush1.bf16.msra.mxu0 0
    %8905 = vmatprep.subr.bf16.mxu0 0
    %8906 = vmatpush1.bf16.msra.mxu0 0
    %8907 = vmatprep.subr.bf16.mxu0 0
    %8908 = vmatpush1.bf16.msra.mxu0 0
    %8909 = vmatprep.subr.bf16.mxu0 0
    %8910 = vmatpush1.bf16.msra.mxu0 0
    %8911 = vmatprep.subr.bf16.mxu0 0
    %8912 = vmatpush1.bf16.msra.mxu0 %v8898
    %8913 = vmatprep.subr.bf16.mxu0 0
    %8914 = vmatpush1.bf16.msra.mxu0 %v8897
    %8915 = vmatprep.subr.bf16.mxu0 0
    %8916 = vmatpush1.bf16.msra.mxu0 %v8896
    %8917 = vmatprep.subr.bf16.mxu0 0
    %8918 = vmatpush1.bf16.msra.mxu0 %v8895
    %8919 = vmatprep.subr.bf16.mxu0 0
    %8920 = vmatpush2.bf16.msra.mxu0 0
    %8921 = vmatprep.subr.bf16.mxu0 0
    %8922 = vmatpush2.bf16.msra.mxu0 0
    %8923 = vmatprep.subr.bf16.mxu0 0
    %8924 = vmatpush2.bf16.msra.mxu0 0
    %8925 = vmatprep.subr.bf16.mxu0 0
    %8926 = vmatpush2.bf16.msra.mxu0 0
    %8927 = vmatprep.subr.bf16.mxu0 0
    %8928 = vmatpush2.bf16.msra.mxu0 0
    %8929 = vmatprep.subr.bf16.mxu0 0
    %8930 = vmatpush2.bf16.msra.mxu0 0
    %8931 = vmatprep.subr.bf16.mxu0 0
    %8932 = vmatpush2.bf16.msra.mxu0 0
    %8933 = vmatprep.subr.bf16.mxu0 0
    %8934 = vmatpush2.bf16.msra.mxu0 0
    %8935 = vmatprep.mubr.bf16.mxu0 0
    %8936 = vmatmul.mubr.bf16.gmra.mxu0 %v8901
    %v8937 = vpop.f32.mrf.mxu0
    %v8938 = vadd.f32 0.0, %v8937
    %v8939 = vpop.f32.mrf.mxu0
    %v8940 = vpop.f32.mrf.mxu0
    %v8941 = vadd.f32 0.0, %v8940
    %v8942 = vpop.f32.mrf.mxu0
    %8943 = vdwg.mxu0
    %v8952 = vrot.slane %v8822, 1
    %v8953 = vrot.slane %v8823, 1
    %v8954 = vsel %vm5609, %v8952, %v8953
    %v8955 = vrot.slane %v8824, 1
    %v8956 = vsel %vm5609, %v8953, %v8955
    %v8957 = vrot.slane %v8825, 1
    %v8958 = vsel %vm5609, %v8955, %v8957
    %v8959 = vrot.slane %v8826, 1
    %v8960 = vsel %vm5609, %v8957, %v8959
    %v8961 = vrot.slane %v8827, 1
    %v8962 = vsel %vm5609, %v8959, %v8961
    %v8963 = vrot.slane %v8828, 1
    %v8964 = vsel %vm5609, %v8961, %v8963
    %v8965 = vrot.slane %v8829, 1
    %v8966 = vsel %vm5609, %v8963, %v8965
    %v8975 = vsel %vm5609, %v8965, 0.0
    %v8976 = vmax.f32 %v8822, %v8954
    %v8977 = vmax.f32 %v8823, %v8956
    %v8978 = vmax.f32 %v8824, %v8958
    %v8979 = vmax.f32 %v8825, %v8960
    %v8980 = vmax.f32 %v8826, %v8962
    %v8981 = vmax.f32 %v8827, %v8964
    %v8982 = vmax.f32 %v8828, %v8966
    %v8983 = vmax.f32 %v8829, %v8975
    %v8984 = vmax.f32 %v8976, %v8977
    %v8985 = vmax.f32 %v8977, %v8978
    %v8986 = vmax.f32 %v8978, %v8979
    %v8987 = vmax.f32 %v8979, %v8980
    %v8988 = vmax.f32 %v8980, %v8981
    %v8989 = vmax.f32 %v8981, %v8982
    %v8990 = vmax.f32 %v8982, %v8983
    %v8991 = vmax.f32 %v8983, 0.0
    %v8992 = vpack.c.bf16 %v8985, %v8984
    %v8993 = vpack.c.bf16 %v8987, %v8986
    %v8994 = vpack.c.bf16 %v8989, %v8988
    %v8995 = vpack.c.bf16 %v8991, %v8990
    %8996 = vmatprep.subr.bf16.mxu0 0
    %8997 = vmatpush1.bf16.msra.mxu0 0
    %8998 = vmatprep.subr.bf16.mxu0 0
    %8999 = vmatpush1.bf16.msra.mxu0 0
    %9000 = vmatprep.subr.bf16.mxu0 0
    %9001 = vmatpush1.bf16.msra.mxu0 0
    %9002 = vmatprep.subr.bf16.mxu0 0
    %9003 = vmatpush1.bf16.msra.mxu0 0
    %9004 = vmatprep.subr.bf16.mxu0 0
    %9005 = vmatpush1.bf16.msra.mxu0 %v8995
    %9006 = vmatprep.subr.bf16.mxu0 0
    %9007 = vmatpush1.bf16.msra.mxu0 %v8994
    %9008 = vmatprep.subr.bf16.mxu0 0
    %9009 = vmatpush1.bf16.msra.mxu0 %v8993
    %9010 = vmatprep.subr.bf16.mxu0 0
    %9011 = vmatpush1.bf16.msra.mxu0 %v8992
    %9012 = vmatprep.subr.bf16.mxu0 0
    %9013 = vmatpush2.bf16.msra.mxu0 0
    %9014 = vmatprep.subr.bf16.mxu0 0
    %9015 = vmatpush2.bf16.msra.mxu0 0
    %9016 = vmatprep.subr.bf16.mxu0 0
    %9017 = vmatpush2.bf16.msra.mxu0 0
    %9018 = vmatprep.subr.bf16.mxu0 0
    %9019 = vmatpush2.bf16.msra.mxu0 0
    %9020 = vmatprep.subr.bf16.mxu0 0
    %9021 = vmatpush2.bf16.msra.mxu0 0
    %9022 = vmatprep.subr.bf16.mxu0 0
    %9023 = vmatpush2.bf16.msra.mxu0 0
    %9024 = vmatprep.subr.bf16.mxu0 0
    %9025 = vmatpush2.bf16.msra.mxu0 0
    %9026 = vmatprep.subr.bf16.mxu0 0
    %9027 = vmatpush2.bf16.msra.mxu0 0
    %9028 = vmatprep.mubr.bf16.mxu0 0
    %9029 = vmatmul.mubr.bf16.gmra.mxu0 %v8901
    %v9030 = vpop.f32.mrf.mxu0
    %v9031 = vadd.f32 0.0, %v9030
    %v9032 = vpop.f32.mrf.mxu0
    %v9033 = vpop.f32.mrf.mxu0
    %v9034 = vadd.f32 0.0, %v9033
    %v9035 = vpop.f32.mrf.mxu0
    %9036 = vdwg.mxu0
    %vm9037 = vcmp.gt.s32.totalorder %v8834, 0
    %vm9038 = vcmp.gt.s32.totalorder %v8835, 0
    %v9039 = vsel %vm9037, 1, 0
    %v9040 = vsel %vm9038, 1, 0
    %v9041 = vcvt.s32.f32 %v9039
    %v9042 = vcvt.s32.f32 %v9040
    %v9043 = vpack.c.bf16 %v9042, %v9041
    %vm9044 = vcmp.lt.s32.totalorder %v8834, 3
    %vm9045 = vcmp.lt.s32.totalorder %v8835, 3
    %v9046 = vsel %vm9044, 1, 0
    %v9047 = vsel %vm9045, 1, 0
    %v9048 = vcvt.s32.f32 %v9046
    %v9049 = vcvt.s32.f32 %v9047
    %v9050 = vpack.c.bf16 %v9049, %v9048
    %v9051 = vpack.c.bf16 %v8941, %v8938
    %v9053 = vshrl.u32 %v9051, 16
    %v9055 = vrot.slane %v9053, 5
    %v9056 = vshll.u32 %v9051, 16
    %v9058 = vrot.slane %v9056, 6
    %v9059 = vor.u32 %v9055, %v9058
    %vm9061 = vsmask.f32 2304
    %vm9062 = vmand %vm1527, %vm9061
    %v9063 = vsel %vm9062, 0, %v9059
    %v9064 = vsel %vm9062, %v9059, 0
    %v9065 = vmul.bf16 %v9051, %v9043
    %v9067 = vshrl.u32 %v9065, 16
    %v9069 = vrot.slane %v9067, 5
    %v9070 = vshll.u32 %v9065, 16
    %v9072 = vrot.slane %v9070, 6
    %v9073 = vor.u32 %v9069, %v9072
    %v9075 = vsel %vm9062, 0, %v9073
    %v9076 = vsel %vm9062, %v9073, 0
    %v9077 = vmul.bf16 %v9051, %v9050
    %v9079 = vshrl.u32 %v9077, 16
    %v9081 = vrot.slane %v9079, 5
    %v9082 = vshll.u32 %v9077, 16
    %v9084 = vrot.slane %v9082, 6
    %v9085 = vor.u32 %v9081, %v9084
    %v9087 = vsel %vm9062, 0, %v9085
    %v9088 = vsel %vm9062, %v9085, 0
    %v9090 = vunpack.c.l.b16 %v9087
    %v9091 = vunpack.c.h.b16 %v9087
    %v9092 = vpack.c.b16 %v9090, %v9090
    %v9093 = vpack.c.b16 %v9091, %v9091
    %vm9096 = vcmask 257024
    %9097 = vst.msk [vmem:[#allocation4] sm:$0xf] %vm9096, %v9092
    %9098 = vst.msk [vmem:[#allocation4 + $0xc] sm:$0xf] %vm9096, %v9093
    %v9101 = vunpack.c.l.b16 %v9063
    %v9102 = vunpack.c.h.b16 %v9063
    %v9103 = vunpack.c.l.b16 %v9064
    %v9104 = vpack.c.b16 %v9101, %v9101
    %v9105 = vpack.c.b16 %v9102, %v9102
    %v9106 = vpack.c.b16 %v9103, %v9103
    %v9108 = vshrl.u32 %v9104, 16
    %v9110 = vrot.slane %v9108, 4
    %v9111 = vshll.u32 %v9104, 16
    %v9113 = vrot.slane %v9111, 5
    %v9114 = vor.u32 %v9110, %v9113
    %v9115 = vrot.slane %v9114, 4
    %v9117 = vshll.u32 %v9105, 16
    %v9119 = vrot.slane %v9117, 5
    %v9120 = vsel %vm1010, %v9115, %v9119
    %v9121 = vshrl.u32 %v9105, 16
    %v9123 = vrot.slane %v9121, 4
    %v9124 = vor.u32 %v9123, %v9119
    %v9125 = vrot.slane %v9124, 4
    %v9127 = vshll.u32 %v9106, 16
    %v9129 = vrot.slane %v9127, 5
    %v9130 = vsel %vm1010, %v9125, %v9129
    %9131 = vrot.lane.b32.xlu0 %v9120, 32
    %v9132 = vpop.permute.xlu0 %9131
    %9133 = vrot.lane.b32.xlu0 %v9130, 32
    %v9134 = vpop.permute.xlu0 %9133
    %vm9137 = vcmask 519424
    %9138 = vst.msk [vmem:[#allocation4] sm:$0xf] %vm9137, %v9132
    %9139 = vst.msk [vmem:[#allocation4 + $0xc] sm:$0xf] %vm9137, %v9134
    %v9142 = vunpack.c.l.b16 %v9075
    %v9143 = vunpack.c.h.b16 %v9075
    %v9144 = vunpack.c.l.b16 %v9076
    %v9145 = vpack.c.b16 %v9142, %v9142
    %v9146 = vpack.c.b16 %v9143, %v9143
    %v9147 = vpack.c.b16 %v9144, %v9144
    %v9148 = vrot.slane %v9145, 5
    %v9149 = vrot.slane %v9148, 4
    %v9150 = vrot.slane %v9146, 5
    %v9151 = vsel %vm1529, %v9149, %v9150
    %v9152 = vrot.slane %v9150, 4
    %v9153 = vrot.slane %v9147, 5
    %v9154 = vsel %vm1529, %v9152, %v9153
    %9155 = vrot.lane.b32.xlu0 %v9151, 64
    %v9156 = vpop.permute.xlu0 %9155
    %9157 = vrot.lane.b32.xlu0 %v9154, 64
    %v9158 = vpop.permute.xlu0 %9157
    %vm9161 = vcmask 781824
    %9162 = vst.msk [vmem:[#allocation4] sm:$0xf] %vm9161, %v9156
    %9163 = vst.msk [vmem:[#allocation4 + $0xc] sm:$0xf] %vm9161, %v9158
    %v9165 = vunpack.c.l.b16 %v9088
    %v9166 = vpack.c.b16 %v9165, %v9165
    %vm9167 = vcmask 1041408
    %vm9168 = vcmask 1045508
    %vm9169 = vmor %vm9167, %vm9168
    %v9170 = vrot.slane %v9092, 6
    %v9171 = vrot.slane %v9170, 4
    %v9172 = vrot.slane %v9093, 6
    %v9173 = vsel %vm9169, %v9171, %v9172
    %v9174 = vrot.slane %v9172, 4
    %v9175 = vrot.slane %v9166, 6
    %v9176 = vsel %vm9169, %v9174, %v9175
    %9177 = vrot.lane.b32.xlu0 %v9173, 96
    %v9178 = vpop.permute.xlu0 %9177
    %9179 = vrot.lane.b32.xlu0 %v9176, 96
    %v9180 = vpop.permute.xlu0 %9179
    %vm9183 = vcmask 1044224
    %9184 = vst.msk [vmem:[#allocation4] sm:$0xf] %vm9183, %v9178
    %9185 = vst.msk [vmem:[#allocation4 + $0xc] sm:$0xf] %vm9183, %v9180
    %vm9186 = vsmask.f32 1280
    %vm9187 = vsmask.f32 5392
    %vm9188 = vmor %vm9186, %vm9187
    %v9189 = vrot.slane %v9108, 6
    %v9190 = vrot.slane %v9111, 7
    %v9191 = vor.u32 %v9189, %v9190
    %v9192 = vrot.slane %v9191, 4
    %v9193 = vrot.slane %v9121, 6
    %v9194 = vrot.slane %v9117, 7
    %v9195 = vor.u32 %v9193, %v9194
    %v9196 = vsel %vm9188, %v9192, %v9195
    %v9197 = vrot.slane %v9195, 4
    %v9198 = vshrl.u32 %v9106, 16
    %v9200 = vrot.slane %v9198, 6
    %v9201 = vrot.slane %v9127, 7
    %v9202 = vor.u32 %v9200, %v9201
    %v9203 = vsel %vm9188, %v9197, %v9202
    %9206 = vst.msk [vmem:[#allocation4 + $0x4] sm:$0xf] %vm9096, %v9196
    %9207 = vst.msk [vmem:[#allocation4 + $0x10] sm:$0xf] %vm9096, %v9203
    %vm9208 = vcmask 1044484
    %vm9209 = vmor %vm516, %vm9208
    %v9210 = vrot.slane %v9145, 7
    %v9211 = vrot.slane %v9210, 4
    %v9212 = vrot.slane %v9146, 7
    %v9213 = vsel %vm9209, %v9211, %v9212
    %v9214 = vrot.slane %v9212, 4
    %v9215 = vrot.slane %v9147, 7
    %v9216 = vsel %vm9209, %v9214, %v9215
    %9217 = vrot.lane.b32.xlu0 %v9213, 32
    %v9218 = vpop.permute.xlu0 %9217
    %9219 = vrot.lane.b32.xlu0 %v9216, 32
    %v9220 = vpop.permute.xlu0 %9219
    %9223 = vst.msk [vmem:[#allocation4 + $0x4] sm:$0xf] %vm9137, %v9218
    %9224 = vst.msk [vmem:[#allocation4 + $0x10] sm:$0xf] %vm9137, %v9220
    %9225 = vrot.lane.b32.xlu0 %v9093, 64
    %v9226 = vpop.permute.xlu0 %9225
    %9227 = vrot.lane.b32.xlu0 %v9166, 64
    %v9228 = vpop.permute.xlu0 %9227
    %9231 = vst.msk [vmem:[#allocation4 + $0x4] sm:$0xf] %vm9161, %v9226
    %9232 = vst.msk [vmem:[#allocation4 + $0x10] sm:$0xf] %vm9161, %v9228
    %v9233 = vunpack.c.h.b16 %v9064
    %v9234 = vpack.c.b16 %v9233, %v9233
    %v9235 = vrot.slane %v9198, 4
    %v9236 = vor.u32 %v9235, %v9129
    %v9237 = vrot.slane %v9236, 4
    %v9239 = vshll.u32 %v9234, 16
    %v9241 = vrot.slane %v9239, 5
    %v9242 = vsel %vm1010, %v9237, %v9241
    %9243 = vrot.lane.b32.xlu0 %v9130, 96
    %v9244 = vpop.permute.xlu0 %9243
    %9245 = vrot.lane.b32.xlu0 %v9242, 96
    %v9246 = vpop.permute.xlu0 %9245
    %9249 = vst.msk [vmem:[#allocation4 + $0x4] sm:$0xf] %vm9183, %v9244
    %9250 = vst.msk [vmem:[#allocation4 + $0x10] sm:$0xf] %vm9183, %v9246
    %v9251 = vunpack.c.h.b16 %v9076
    %v9252 = vpack.c.b16 %v9251, %v9251
    %v9253 = vrot.slane %v9153, 4
    %v9254 = vrot.slane %v9252, 5
    %v9255 = vsel %vm1529, %v9253, %v9254
    %9258 = vst.msk [vmem:[#allocation4 + $0x8] sm:$0xf] %vm9096, %v9154
    %9259 = vst.msk [vmem:[#allocation4 + $0x14] sm:$0xf] %vm9096, %v9255
    %v9260 = vpack.c.bf16 %v9034, %v9031
    %v9262 = vshrl.u32 %v9260, 16
    %v9264 = vrot.slane %v9262, 5
    %v9265 = vshll.u32 %v9260, 16
    %v9267 = vrot.slane %v9265, 6
    %v9268 = vor.u32 %v9264, %v9267
    %v9270 = vsel %vm9062, 0, %v9268
    %v9271 = vsel %vm9062, %v9268, 0
    %v9272 = vmul.bf16 %v9260, %v9043
    %v9274 = vshrl.u32 %v9272, 16
    %v9276 = vrot.slane %v9274, 5
    %v9277 = vshll.u32 %v9272, 16
    %v9279 = vrot.slane %v9277, 6
    %v9280 = vor.u32 %v9276, %v9279
    %v9282 = vsel %vm9062, 0, %v9280
    %v9283 = vsel %vm9062, %v9280, 0
    %v9284 = vmul.bf16 %v9260, %v9050
    %v9286 = vshrl.u32 %v9284, 16
    %v9288 = vrot.slane %v9286, 5
    %v9289 = vshll.u32 %v9284, 16
    %v9291 = vrot.slane %v9289, 6
    %v9292 = vor.u32 %v9288, %v9291
    %v9294 = vsel %vm9062, 0, %v9292
    %v9295 = vsel %vm9062, %v9292, 0
    %v9297 = vunpack.c.l.b16 %v9294
    %v9298 = vunpack.c.h.b16 %v9294
    %v9299 = vpack.c.b16 %v9297, %v9297
    %v9300 = vpack.c.b16 %v9298, %v9298
    %9303 = vst.msk [vmem:[#allocation4 + $0x18] sm:$0xf] %vm9096, %v9299
    %9304 = vst.msk [vmem:[#allocation4 + $0x24] sm:$0xf] %vm9096, %v9300
    %v9307 = vunpack.c.l.b16 %v9270
    %v9308 = vunpack.c.h.b16 %v9270
    %v9309 = vunpack.c.l.b16 %v9271
    %v9310 = vpack.c.b16 %v9307, %v9307
    %v9311 = vpack.c.b16 %v9308, %v9308
    %v9312 = vpack.c.b16 %v9309, %v9309
    %v9314 = vshrl.u32 %v9310, 16
    %v9316 = vrot.slane %v9314, 4
    %v9317 = vshll.u32 %v9310, 16
    %v9319 = vrot.slane %v9317, 5
    %v9320 = vor.u32 %v9316, %v9319
    %v9321 = vrot.slane %v9320, 4
    %v9323 = vshll.u32 %v9311, 16
    %v9325 = vrot.slane %v9323, 5
    %v9326 = vsel %vm1010, %v9321, %v9325
    %v9327 = vshrl.u32 %v9311, 16
    %v9329 = vrot.slane %v9327, 4
    %v9330 = vor.u32 %v9329, %v9325
    %v9331 = vrot.slane %v9330, 4
    %v9333 = vshll.u32 %v9312, 16
    %v9335 = vrot.slane %v9333, 5
    %v9336 = vsel %vm1010, %v9331, %v9335
    %9337 = vrot.lane.b32.xlu0 %v9326, 32
    %v9338 = vpop.permute.xlu0 %9337
    %9339 = vrot.lane.b32.xlu0 %v9336, 32
    %v9340 = vpop.permute.xlu0 %9339
    %9343 = vst.msk [vmem:[#allocation4 + $0x18] sm:$0xf] %vm9137, %v9338
    %9344 = vst.msk [vmem:[#allocation4 + $0x24] sm:$0xf] %vm9137, %v9340
    %v9347 = vunpack.c.l.b16 %v9282
    %v9348 = vunpack.c.h.b16 %v9282
    %v9349 = vunpack.c.l.b16 %v9283
    %v9350 = vpack.c.b16 %v9347, %v9347
    %v9351 = vpack.c.b16 %v9348, %v9348
    %v9352 = vpack.c.b16 %v9349, %v9349
    %v9353 = vrot.slane %v9350, 5
    %v9354 = vrot.slane %v9353, 4
    %v9355 = vrot.slane %v9351, 5
    %v9356 = vsel %vm1529, %v9354, %v9355
    %v9357 = vrot.slane %v9355, 4
    %v9358 = vrot.slane %v9352, 5
    %v9359 = vsel %vm1529, %v9357, %v9358
    %9360 = vrot.lane.b32.xlu0 %v9356, 64
    %v9361 = vpop.permute.xlu0 %9360
    %9362 = vrot.lane.b32.xlu0 %v9359, 64
    %v9363 = vpop.permute.xlu0 %9362
    %9366 = vst.msk [vmem:[#allocation4 + $0x18] sm:$0xf] %vm9161, %v9361
    %9367 = vst.msk [vmem:[#allocation4 + $0x24] sm:$0xf] %vm9161, %v9363
    %v9369 = vunpack.c.l.b16 %v9295
    %v9370 = vpack.c.b16 %v9369, %v9369
    %v9371 = vrot.slane %v9299, 6
    %v9372 = vrot.slane %v9371, 4
    %v9373 = vrot.slane %v9300, 6
    %v9374 = vsel %vm9169, %v9372, %v9373
    %v9375 = vrot.slane %v9373, 4
    %v9376 = vrot.slane %v9370, 6
    %v9377 = vsel %vm9169, %v9375, %v9376
    %9378 = vrot.lane.b32.xlu0 %v9374, 96
    %v9379 = vpop.permute.xlu0 %9378
    %9380 = vrot.lane.b32.xlu0 %v9377, 96
    %v9381 = vpop.permute.xlu0 %9380
    %9384 = vst.msk [vmem:[#allocation4 + $0x18] sm:$0xf] %vm9183, %v9379
    %9385 = vst.msk [vmem:[#allocation4 + $0x24] sm:$0xf] %vm9183, %v9381
    %v9386 = vrot.slane %v9314, 6
    %v9387 = vrot.slane %v9317, 7
    %v9388 = vor.u32 %v9386, %v9387
    %v9389 = vrot.slane %v9388, 4
    %v9390 = vrot.slane %v9327, 6
    %v9391 = vrot.slane %v9323, 7
    %v9392 = vor.u32 %v9390, %v9391
    %v9393 = vsel %vm9188, %v9389, %v9392
    %v9394 = vrot.slane %v9392, 4
    %v9395 = vshrl.u32 %v9312, 16
    %v9397 = vrot.slane %v9395, 6
    %v9398 = vrot.slane %v9333, 7
    %v9399 = vor.u32 %v9397, %v9398
    %v9400 = vsel %vm9188, %v9394, %v9399
    %9403 = vst.msk [vmem:[#allocation4 + $0x1c] sm:$0xf] %vm9096, %v9393
    %9404 = vst.msk [vmem:[#allocation4 + $0x28] sm:$0xf] %vm9096, %v9400
    %v9405 = vrot.slane %v9350, 7
    %v9406 = vrot.slane %v9405, 4
    %v9407 = vrot.slane %v9351, 7
    %v9408 = vsel %vm9209, %v9406, %v9407
    %v9409 = vrot.slane %v9407, 4
    %v9410 = vrot.slane %v9352, 7
    %v9411 = vsel %vm9209, %v9409, %v9410
    %9412 = vrot.lane.b32.xlu0 %v9408, 32
    %v9413 = vpop.permute.xlu0 %9412
    %9414 = vrot.lane.b32.xlu0 %v9411, 32
    %v9415 = vpop.permute.xlu0 %9414
    %9418 = vst.msk [vmem:[#allocation4 + $0x1c] sm:$0xf] %vm9137, %v9413
    %9419 = vst.msk [vmem:[#allocation4 + $0x28] sm:$0xf] %vm9137, %v9415
    %9420 = vrot.lane.b32.xlu0 %v9300, 64
    %v9421 = vpop.permute.xlu0 %9420
    %9422 = vrot.lane.b32.xlu0 %v9370, 64
    %v9423 = vpop.permute.xlu0 %9422
    %9426 = vst.msk [vmem:[#allocation4 + $0x1c] sm:$0xf] %vm9161, %v9421
    %9427 = vst.msk [vmem:[#allocation4 + $0x28] sm:$0xf] %vm9161, %v9423
    %v9428 = vunpack.c.h.b16 %v9271
    %v9429 = vpack.c.b16 %v9428, %v9428
    %v9430 = vrot.slane %v9395, 4
    %v9431 = vor.u32 %v9430, %v9335
    %v9432 = vrot.slane %v9431, 4
    %v9434 = vshll.u32 %v9429, 16
    %v9436 = vrot.slane %v9434, 5
    %v9437 = vsel %vm1010, %v9432, %v9436
    %9438 = vrot.lane.b32.xlu0 %v9336, 96
    %v9439 = vpop.permute.xlu0 %9438
    %9440 = vrot.lane.b32.xlu0 %v9437, 96
    %v9441 = vpop.permute.xlu0 %9440
    %9444 = vst.msk [vmem:[#allocation4 + $0x1c] sm:$0xf] %vm9183, %v9439
    %9445 = vst.msk [vmem:[#allocation4 + $0x28] sm:$0xf] %vm9183, %v9441
    %v9446 = vunpack.c.h.b16 %v9283
    %v9447 = vpack.c.b16 %v9446, %v9446
    %v9448 = vrot.slane %v9358, 4
    %v9449 = vrot.slane %v9447, 5
    %v9450 = vsel %vm1529, %v9448, %v9449
    %9453 = vst.msk [vmem:[#allocation4 + $0x20] sm:$0xf] %vm9096, %v9359
    %9454 = vst.msk [vmem:[#allocation4 + $0x2c] sm:$0xf] %vm9096, %v9450
    %v9455 = vld [vmem:[%s1 + $0x6c] sm:$0xf]
    %v9456 = vld [vmem:[%s1 + $0x70] sm:$0xf]
    %v9457 = vld [vmem:[%s1 + $0x74] sm:$0xf]
    %v9458 = vld [vmem:[%s1 + $0x78] sm:$0xf]
    %v9459 = vld [vmem:[%s1 + $0x7c] sm:$0xf]
    %v9460 = vld [vmem:[%s1 + $0x80] sm:$0xf]
    %v9461 = vld [vmem:[%s1 + $0x84] sm:$0xf]
    %v9462 = vld [vmem:[%s1 + $0x88] sm:$0xf]
    %v9463 = vld [vmem:[%s1 + $0x8c] sm:$0xf]
    %v9464 = vld [vmem:[%s1 + $0x90] sm:$0xf]
    %v9465 = vld [vmem:[%s1 + $0x94] sm:$0xf]
    %v9466 = vld [vmem:[%s1 + $0x98] sm:$0xf]
    %v9467 = vld [vmem:[%s1 + $0x9c] sm:$0xf]
    %v9468 = vld [vmem:[%s1 + $0xa0] sm:$0xf]
    %v9469 = vld [vmem:[%s1 + $0xa4] sm:$0xf]
    %v9470 = vld [vmem:[%s1 + $0xa8] sm:$0xf]
    %v9471 = vld [vmem:[%s1 + $0xac] sm:$0xf]
    %v9472 = vld [vmem:[%s1 + $0xb0] sm:$0xf]
    %v9473 = vld [vmem:[%s1 + $0xb4] sm:$0xf]
    %v9474 = vld [vmem:[%s1 + $0xb8] sm:$0xf]
    %v9475 = vld [vmem:[%s1 + $0xbc] sm:$0xf]
    %v9476 = vld [vmem:[%s1 + $0xc0] sm:$0xf]
    %v9477 = vld [vmem:[%s1 + $0xc4] sm:$0xf]
    %v9478 = vld [vmem:[%s1 + $0xc8] sm:$0xf]
    %v9479 = vld [vmem:[%s1 + $0xcc] sm:$0xf]
    %v9480 = vld [vmem:[%s1 + $0xd0] sm:$0xf]
    %v9481 = vld [vmem:[%s1 + $0xd4] sm:$0xf]
    %v9482 = vld [vmem:[%s1 + $0xd8] sm:$0xf]
    %v9483 = vld [vmem:[%s1 + $0xdc] sm:$0xf]
    %v9484 = vld [vmem:[%s1 + $0xe0] sm:$0xf]
    %v9485 = vld [vmem:[%s1 + $0xe4] sm:$0xf]
    %v9486 = vld [vmem:[%s1 + $0xe8] sm:$0xf]
    %v9487 = vld [vmem:[%s1 + $0xec] sm:$0xf]
    %v9488 = vld [vmem:[%s1 + $0xf0] sm:$0xf]
    %v9489 = vld [vmem:[%s1 + $0xf4] sm:$0xf]
    %v9490 = vld [vmem:[%s1 + $0xf8] sm:$0xf]
    %v9491 = vld [vmem:[%s2 + $0x30] sm:$0x1]
    %v9492 = vld [vmem:[#allocation4] sm:$0xff]
    %v9493 = vld [vmem:[#allocation4 + $0x8] sm:$0xf]
    %v9494 = vld [vmem:[#allocation4 + $0xc] sm:$0xff]
    %v9495 = vld [vmem:[#allocation4 + $0x14] sm:$0xf]
    %v9496 = vld [vmem:[#allocation4 + $0x18] sm:$0xff]
    %v9497 = vld [vmem:[#allocation4 + $0x20] sm:$0xf]
    %v9498 = vld [vmem:[#allocation4 + $0x24] sm:$0xff]
    %v9499 = vld [vmem:[#allocation4 + $0x2c] sm:$0xf]
    %v9500 = vlaneseq
    %v9501 = vshrl.u32 %v9500, 7
    %v9502 = vsub.s32 0, %v9501
    %v9503 = vrot.slane %v9491, %v9502
    %v9512 = vunpack.c.l.b16 %v9492
    %v9513 = vunpack.c.h.b16 %v9492
    %v9514 = vunpack.c.l.b16 %v9493
    %v9515 = vunpack.c.l.b16 %v9494
    %v9516 = vunpack.c.h.b16 %v9494
    %v9517 = vunpack.c.l.b16 %v9495
    %v9518 = vunpack.c.l.b16 %v9496
    %v9519 = vunpack.c.h.b16 %v9496
    %v9520 = vunpack.c.l.b16 %v9497
    %v9521 = vunpack.c.l.b16 %v9498
    %v9522 = vunpack.c.h.b16 %v9498
    %v9523 = vunpack.c.l.b16 %v9499
    %v9524 = vpack.c.b16 %v9515, %v9512
    %v9525 = vpack.c.b16 %v9516, %v9513
    %v9526 = vpack.c.b16 %v9517, %v9514
    %v9527 = vpack.c.b16 %v9521, %v9518
    %v9528 = vpack.c.b16 %v9522, %v9519
    %v9529 = vpack.c.b16 %v9523, %v9520
    %v9570 = vunpack.c.l.b16 %v9455
    %v9571 = vunpack.c.l.b16 %v9456
    %v9572 = vunpack.c.l.b16 %v9457
    %v9573 = vunpack.c.l.b16 %v9458
    %v9574 = vunpack.c.l.b16 %v9459
    %v9575 = vunpack.c.l.b16 %v9460
    %v9576 = vunpack.c.l.b16 %v9461
    %v9577 = vunpack.c.l.b16 %v9462
    %v9578 = vunpack.c.l.b16 %v9463
    %v9579 = vunpack.c.l.b16 %v9464
    %v9580 = vunpack.c.l.b16 %v9465
    %v9581 = vunpack.c.l.b16 %v9466
    %v9582 = vunpack.c.l.b16 %v9467
    %v9583 = vunpack.c.l.b16 %v9468
    %v9584 = vunpack.c.l.b16 %v9469
    %v9585 = vunpack.c.l.b16 %v9470
    %v9586 = vunpack.c.l.b16 %v9471
    %v9587 = vunpack.c.l.b16 %v9472
    %v9588 = vunpack.c.l.b16 %v9473
    %v9589 = vunpack.c.l.b16 %v9474
    %v9590 = vunpack.c.l.b16 %v9475
    %v9591 = vunpack.c.l.b16 %v9476
    %v9592 = vunpack.c.l.b16 %v9477
    %v9593 = vunpack.c.l.b16 %v9478
    %v9594 = vunpack.c.l.b16 %v9479
    %v9595 = vunpack.c.l.b16 %v9480
    %v9596 = vunpack.c.l.b16 %v9481
    %v9597 = vunpack.c.l.b16 %v9482
    %v9598 = vunpack.c.l.b16 %v9483
    %v9599 = vunpack.c.l.b16 %v9484
    %v9600 = vunpack.c.l.b16 %v9485
    %v9601 = vunpack.c.l.b16 %v9486
    %v9602 = vunpack.c.l.b16 %v9487
    %v9603 = vunpack.c.l.b16 %v9488
    %v9604 = vunpack.c.l.b16 %v9489
    %v9605 = vunpack.c.l.b16 %v9490
    %v9606 = vpack.c.b16 %v9571, %v9570
    %v9607 = vpack.c.b16 %v9573, %v9572
    %v9608 = vpack.c.b16 %v9575, %v9574
    %v9609 = vpack.c.b16 %v9577, %v9576
    %v9610 = vpack.c.b16 %v9579, %v9578
    %v9611 = vpack.c.b16 %v9581, %v9580
    %v9612 = vpack.c.b16 %v9583, %v9582
    %v9613 = vpack.c.b16 %v9585, %v9584
    %v9614 = vpack.c.b16 %v9587, %v9586
    %v9615 = vpack.c.b16 %v9589, %v9588
    %v9616 = vpack.c.b16 %v9591, %v9590
    %v9617 = vpack.c.b16 %v9593, %v9592
    %v9618 = vpack.c.b16 %v9595, %v9594
    %v9619 = vpack.c.b16 %v9597, %v9596
    %v9620 = vpack.c.b16 %v9599, %v9598
    %v9621 = vpack.c.b16 %v9601, %v9600
    %v9622 = vpack.c.b16 %v9603, %v9602
    %v9623 = vpack.c.b16 %v9605, %v9604
    %v9643 = vsel %vm8692, %v9526, 0
    %v9646 = vsel %vm8692, %v9529, 0
    %9648 = vmatprep.subr.bf16.mxu0 0
    %9649 = vmatpush1.bf16.msra.mxu0 %v9613
    %9650 = vmatprep.subr.bf16.mxu0 0
    %9651 = vmatpush1.bf16.msra.mxu0 %v9612
    %9652 = vmatprep.subr.bf16.mxu0 0
    %9653 = vmatpush1.bf16.msra.mxu0 %v9611
    %9654 = vmatprep.subr.bf16.mxu0 0
    %9655 = vmatpush1.bf16.msra.mxu0 %v9610
    %9656 = vmatprep.subr.bf16.mxu0 0
    %9657 = vmatpush1.bf16.msra.mxu0 %v9609
    %9658 = vmatprep.subr.bf16.mxu0 0
    %9659 = vmatpush1.bf16.msra.mxu0 %v9608
    %9660 = vmatprep.subr.bf16.mxu0 0
    %9661 = vmatpush1.bf16.msra.mxu0 %v9607
    %9662 = vmatprep.subr.bf16.mxu0 0
    %9663 = vmatpush1.bf16.msra.mxu0 %v9606
    %9664 = vmatprep.subr.bf16.mxu0 0
    %9665 = vmatpush2.bf16.msra.mxu0 %v9621
    %9666 = vmatprep.subr.bf16.mxu0 0
    %9667 = vmatpush2.bf16.msra.mxu0 %v9620
    %9668 = vmatprep.subr.bf16.mxu0 0
    %9669 = vmatpush2.bf16.msra.mxu0 %v9619
    %9670 = vmatprep.subr.bf16.mxu0 0
    %9671 = vmatpush2.bf16.msra.mxu0 %v9618
    %9672 = vmatprep.subr.bf16.mxu0 0
    %9673 = vmatpush2.bf16.msra.mxu0 %v9617
    %9674 = vmatprep.subr.bf16.mxu0 0
    %9675 = vmatpush2.bf16.msra.mxu0 %v9616
    %9676 = vmatprep.subr.bf16.mxu0 0
    %9677 = vmatpush2.bf16.msra.mxu0 %v9615
    %9678 = vmatprep.subr.bf16.mxu0 0
    %9679 = vmatpush2.bf16.msra.mxu0 %v9614
    %9680 = vmatprep.mubr.bf16.mxu0 %v9525
    %9681 = vmatmul.mubr.bf16.gmra.mxu0 %v9524
    %v9682 = vpop.f32.mrf.mxu0
    %v9683 = vadd.f32 %v9503, %v9682
    %v9684 = vpop.f32.mrf.mxu0
    %v9685 = vpop.f32.mrf.mxu0
    %v9686 = vadd.f32 %v9503, %v9685
    %v9687 = vpop.f32.mrf.mxu0
    %9688 = vmatprep.mubr.bf16.mxu0 %v9528
    %9689 = vmatmul.mubr.bf16.gmra.mxu0 %v9527
    %v9690 = vpop.f32.mrf.mxu0
    %v9691 = vadd.f32 %v9503, %v9690
    %v9692 = vpop.f32.mrf.mxu0
    %v9693 = vpop.f32.mrf.mxu0
    %v9694 = vadd.f32 %v9503, %v9693
    %v9695 = vpop.f32.mrf.mxu0
    %9696 = vdwg.mxu0
    %9697 = vmatprep.subr.bf16.mxu0 0
    %9698 = vmatpush1.bf16.msra.mxu0 0
    %9699 = vmatprep.subr.bf16.mxu0 0
    %9700 = vmatpush1.bf16.msra.mxu0 0
    %9701 = vmatprep.subr.bf16.mxu0 0
    %9702 = vmatpush1.bf16.msra.mxu0 0
    %9703 = vmatprep.subr.bf16.mxu0 0
    %9704 = vmatpush1.bf16.msra.mxu0 0
    %9705 = vmatprep.subr.bf16.mxu0 0
    %9706 = vmatpush1.bf16.msra.mxu0 0
    %9707 = vmatprep.subr.bf16.mxu0 0
    %9708 = vmatpush1.bf16.msra.mxu0 0
    %9709 = vmatprep.subr.bf16.mxu0 0
    %9710 = vmatpush1.bf16.msra.mxu0 %v9623
    %9711 = vmatprep.subr.bf16.mxu0 0
    %9712 = vmatpush1.bf16.msra.mxu0 %v9622
    %9713 = vmatprep.subr.bf16.mxu0 0
    %9714 = vmatpush2.bf16.msra.mxu0 0
    %9715 = vmatprep.subr.bf16.mxu0 0
    %9716 = vmatpush2.bf16.msra.mxu0 0
    %9717 = vmatprep.subr.bf16.mxu0 0
    %9718 = vmatpush2.bf16.msra.mxu0 0
    %9719 = vmatprep.subr.bf16.mxu0 0
    %9720 = vmatpush2.bf16.msra.mxu0 0
    %9721 = vmatprep.subr.bf16.mxu0 0
    %9722 = vmatpush2.bf16.msra.mxu0 0
    %9723 = vmatprep.subr.bf16.mxu0 0
    %9724 = vmatpush2.bf16.msra.mxu0 0
    %9725 = vmatprep.subr.bf16.mxu0 0
    %9726 = vmatpush2.bf16.msra.mxu0 0
    %9727 = vmatprep.subr.bf16.mxu0 0
    %9728 = vmatpush2.bf16.msra.mxu0 0
    %9729 = vmatprep.mubr.bf16.mxu0 0
    %9730 = vmatmul.mubr.bf16.gmra.mxu0 %v9643
    %v9731 = vpop.f32.mrf.mxu0
    %v9732 = vadd.f32 %v9683, %v9731
    %v9733 = vpop.f32.mrf.mxu0
    %v9734 = vpop.f32.mrf.mxu0
    %v9735 = vadd.f32 %v9686, %v9734
    %v9736 = vpop.f32.mrf.mxu0
    %9737 = vmatprep.mubr.bf16.mxu0 0
    %9738 = vmatmul.mubr.bf16.gmra.mxu0 %v9646
    %v9739 = vpop.f32.mrf.mxu0
    %v9740 = vadd.f32 %v9691, %v9739
    %v9741 = vpop.f32.mrf.mxu0
    %v9742 = vpop.f32.mrf.mxu0
    %v9743 = vadd.f32 %v9694, %v9742
    %v9744 = vpop.f32.mrf.mxu0
    %9745 = vdwg.mxu0
    %v9746 = vmax.f32 %v9732, 0.0
    %v9747 = vmax.f32 %v9735, 0.0
    %v9748 = vmax.f32 %v9740, 0.0
    %v9749 = vmax.f32 %v9743, 0.0
    %9750 = vst.msk [vmem:[#allocation5] sm:$0xff] %vm8899, %v9746
    %9751 = vst.msk [vmem:[#allocation5 + $0x8] sm:$0xff] %vm8899, %v9747
    %s9752 = scalar_lea.vmem [#allocation5], 16
    %9753 = vst.msk [vmem:[%s9752] sm:$0xff] %vm8899, %v9748
    %9754 = vst.msk [vmem:[%s9752 + $0x8] sm:$0xff] %vm8899, %v9749
    // Predicated region
    $region14: #{forward.1} parent=1 // pred_check
      _
    $region15: #{forward.1} parent=1 // pred_check_branch
      %9756 = sbr.rel (0) target = $region17
    $region16: #{forward.1} parent=1 // pred_region
      %s9758 = ssub.s32 512, 512
      %9759 = vsyncadd [#allocation6], %s9758
      %s9760 = sshll.u32 [#allocation5], 4
      %s9761 = int_to_ptr.vmem [resolvable:$true] %s9760
      %9766 = dma.vmem_to_hbm [thread:$0]  %s9761, 512, %s3, [#allocation6], 128, 128, 8
    $region17: #{forward.1} parent=1 // pred_fallthru
      _
    // Predicated region
    $region18: #{forward.1} parent=1 // pred_check
      _
    $region19: #{forward.1} parent=1 // pred_check_branch
      %9768 = sbr.rel (0) target = $region21
    $region20: #{forward.1} parent=1 // pred_region
      %9769 = dma.done [#allocation6], 512
    $region21: #{forward.1} parent=1 // pred_fallthru
      _
    %9770 = vsyncpa [#allocation6], 1

</llo_original>
